<compile_context>
chip_gen: v7x
topology: tpu7x:2x2x1
jax: 0.10.0
libtpu: 0.0.40
codegen_flags: <defaults>
</compile_context>

<pallas_src>
import functools

import numpy as np

import jax
import jax.numpy as jnp
from jax.experimental import pallas as pl
from jax.experimental.pallas import tpu as pltpu  # noqa: F401  (TPU backend)


# Order in which kernel-layout parameters are passed to the fused kernel.
_PARAM_ORDER = ("w1", "b1", "w2", "b2", "wfc", "bfc", "wm", "bm",
                "wr", "br", "wc", "bc", "wd1a", "wd1b", "wd1c", "bd1",
                "wd2", "bd2")


# ---------------------------------------------------------------------------
# Static gather table: for every conv2 patch element we record which conv1
# im2col patch of the raw NCHW input produces it.
#
#   row r   = j*(16*Bp) + p2*Bp + b     j  = di*3+dj   (conv2 3x3 tap)
#                                       p2 = ho2*4+wo2 (conv2 4x4 output pos)
#                                       b  = padded batch index
#   col     = (ki*3+kj)*Cin + ci        (conv1 3x3 tap x input channel)
#
# IDX flat-indexes the NCHW input with one zero sentinel appended, so
# xflat[IDX] is the conv1 patch slab for every conv2 offset.  MASK[r] = 0 for
# conv2 zero-padding rows so the conv1 bias is suppressed there (row == 0.0
# exactly, matching true zero padding of conv2's input).
# ---------------------------------------------------------------------------
def _build_conv2_gather(B, Bp):
    Cin, Hi, Wi = 4, 16, 16
    H1 = W1 = 8        # conv1 output spatial
    Ho = Wo = 4        # conv2 output spatial
    K = 3
    rows = K * K * Ho * Wo * Bp
    cols = K * K * Cin
    sentinel = B * Cin * Hi * Wi
    idx = np.full((rows, cols), sentinel, dtype=np.int32)
    msk = np.zeros((rows, 1), dtype=np.float32)
    for di in range(K):
        for dj in range(K):
            j = di * K + dj
            for ho in range(Ho):
                for wo in range(Wo):
                    p2 = ho * Wo + wo
                    h1 = 2 * ho + di - 1
                    w1 = 2 * wo + dj - 1
                    valid_hw = (0 <= h1 < H1) and (0 <= w1 < W1)
                    for b in range(Bp):
                        r = j * (Ho * Wo * Bp) + p2 * Bp + b
                        if valid_hw:
                            msk[r, 0] = 1.0
                        if not (valid_hw and b < B):
                            continue          # conv2 padding / batch padding
                        for ki in range(K):
                            for kj in range(K):
                                hi = 2 * h1 + ki - 1   # conv1 pad=1, stride=2
                                wi = 2 * w1 + kj - 1
                                if 0 <= hi < Hi and 0 <= wi < Wi:
                                    for c in range(Cin):
                                        idx[r, (ki * K + kj) * Cin + c] = (
                                            ((b * Cin + c) * Hi + hi) * Wi + wi)
    return idx, msk


# ---------------------------------------------------------------------------
# The single fused kernel: everything lives in VMEM for the whole forward.
# ---------------------------------------------------------------------------
def _fused_i2s_kernel(
        p1g_ref, mask_ref,
        w1_ref, b1_ref, w2_ref, b2_ref, wfc_ref, bfc_ref,
        wm_ref, bm_ref, wr_ref, br_ref, wc_ref, bc_ref,
        wd1a_ref, wd1b_ref, wd1c_ref, bd1_ref, wd2_ref, bd2_ref,
        eps_ref, prior_ref,
        gen_ref, cls_ref, emb_ref,
        *, bp, b_real, use_prior):
    f32 = jnp.float32
    dot = functools.partial(jnp.dot, preferred_element_type=f32)
    rows = 16 * bp                       # conv2 output rows = rows per offset

    # ---- conv1 + conv2 fused: 9 offset matmuls, intermediates stay in VMEM.
    w1 = w1_ref[...]                     # (36, 16)
    b1 = b1_ref[...]                     # (1, 16)
    w2 = w2_ref[...]                     # (144, 32), rows ordered (j, cin)
    acc2 = jnp.zeros((rows, 32), f32)
    for j in range(9):
        pj = p1g_ref[pl.ds(j * rows, rows), :]          # (rows, 36)
        mj = mask_ref[pl.ds(j * rows, rows), :]         # (rows, 1)
        # conv1 output (== conv2 patch slab for offset j); mask kills the bias
        # on conv2 zero-padding rows so those rows are exactly 0.
        hj = jnp.maximum(dot(pj, w1) + mj * b1, 0.0)    # (rows, 16)
        acc2 = acc2 + dot(hj, w2[j * 16:(j + 1) * 16, :])
    o2 = jnp.maximum(acc2 + b2_ref[...], 0.0)           # (16*bp, 32), rows=(p2,b)

    # ---- fc_embed: flatten-by-block matmuls (no in-kernel reshape).
    wfc = wfc_ref[...]                                  # (512, 128)
    acc = jnp.zeros((bp, 128), f32)
    for p in range(16):
        acc = acc + dot(o2[p * bp:(p + 1) * bp, :],
                        wfc[p * 32:(p + 1) * 32, :])
    img_embed = jnp.maximum(acc + bfc_ref[...], 0.0)    # (bp, 128)
    emb_ref[...] = img_embed

    # ---- mapper_img2snd (synthetic linear stand-in for VectorMapper).
    img2snd = dot(img_embed, wm_ref[...]) + bm_ref[...]          # (bp, 128)

    # ---- sound_reparam + reparameterize (original slicing bug preserved).
    reparam = dot(img2snd, wr_ref[...]) + br_ref[...]            # (bp, 256)
    mu = reparam[:, :128]
    logvar = reparam[:, :128]            # same slice as mu, as in the original
    z = eps_ref[...] * jnp.exp(logvar * 0.5) + mu                # (bp, 128)

    # ---- sound_classifier + argmax (lane-padded to 128; pads carry -1e30).
    logits = dot(img2snd, wc_ref[...]) + bc_ref[...]             # (bp, 128)
    lane = jax.lax.broadcasted_iota(jnp.int32, (bp, 128), 1)
    row = jax.lax.broadcasted_iota(jnp.int32, (bp, 128), 0)
    mx = jnp.max(logits, axis=1, keepdims=True)
    first_idx = jnp.min(jnp.where(logits >= mx, lane.astype(f32), 1e9),
                        axis=1, keepdims=True)
    cls = first_idx.astype(jnp.int32)                            # (bp, 1)
    cls_ref[...] = cls

    # ---- y_onehot with the original row-0 bug: every real sample's class is
    # written into row 0; all other rows stay zero.
    idx = prior_ref[...] if use_prior else cls                   # (bp, 1) int32
    hits = jnp.where((lane == idx) & (row < b_real), 1.0, 0.0)   # (bp, 128)
    row0 = jnp.max(hits, axis=0, keepdims=True)                  # (1, 128)
    y_onehot = jnp.where(row == 0, row0, 0.0)                    # (bp, 128)

    # ---- sound_decoder: split-weight dots replace the 276-wide concat.
    h = jnp.maximum(dot(img2snd, wd1a_ref[...])
                    + dot(y_onehot, wd1b_ref[...])
                    + dot(z, wd1c_ref[...])
                    + bd1_ref[...], 0.0)                         # (bp, 256)
    out = dot(h, wd2_ref[...]) + bd2_ref[...]                    # (bp, 128)
    # sigmoid via EUP exp + approximate reciprocal (no VPU divide).
    gen_ref[...] = pl.reciprocal(1.0 + jnp.exp(-out), approx=True)


# ---------------------------------------------------------------------------
# Wrapper: one gather of the raw input, one pallas_call, then slicing.
# ---------------------------------------------------------------------------
def forward_i2s(kparams, idx_gather, bias_mask, x, eps_key,
                prior=None, return_feature=False):
    B = x.shape[0]
    Bp = idx_gather.shape[0] // (9 * 16)        # padded batch (multiple of 8)
    f32 = jnp.float32

    # Input prep: flatten NCHW + single sentinel-based gather (replaces the
    # previous pad/strided-slice/concat im2col pipeline in XLA).
    xflat = jnp.concatenate([x.reshape(-1).astype(f32), jnp.zeros((1,), f32)])
    p1g = xflat[idx_gather]                                     # (9*16*Bp, 36)

    eps = jax.random.normal(eps_key, (B, 128), f32)
    eps = jnp.pad(eps, ((0, Bp - B), (0, 0)))

    if prior is None:
        use_prior = False
        prior_arr = jnp.zeros((Bp, 1), jnp.int32)
    else:
        use_prior = True
        prior_arr = jnp.pad(jnp.asarray(prior, jnp.int32).reshape(B, 1),
                            ((0, Bp - B), (0, 0)))

    inputs = [p1g, bias_mask] + [kparams[k] for k in _PARAM_ORDER] \
        + [eps, prior_arr]

    kern = functools.partial(_fused_i2s_kernel, bp=Bp, b_real=B,
                             use_prior=use_prior)
    gen, cls, emb = pl.pallas_call(
        kern,
        out_shape=(jax.ShapeDtypeStruct((Bp, 128), f32),
                   jax.ShapeDtypeStruct((Bp, 1), jnp.int32),
                   jax.ShapeDtypeStruct((Bp, 128), f32)),
        in_specs=[pl.BlockSpec(a.shape, lambda: (0, 0)) for a in inputs],
        out_specs=(pl.BlockSpec((Bp, 128), lambda: (0, 0)),
                   pl.BlockSpec((Bp, 1), lambda: (0, 0)),
                   pl.BlockSpec((Bp, 128), lambda: (0, 0))),
    )(*inputs)

    gen_sound = gen[:B, :64]           # decoder output was lane-padded to 128
    cls_out = cls[:B, 0]
    if return_feature:
        return gen_sound, cls_out, emb[:B]
    return gen_sound, cls_out


# ---------------------------------------------------------------------------
# Deterministic synthetic parameters in PyTorch layout (Linear: (out,in),
# Conv2d: (out,in,kh,kw)) and their conversion to the kernel layout.
# ---------------------------------------------------------------------------
def init_params(key):
    ks = jax.random.split(key, 8)

    def lin(k, o, i, s=0.05):
        kw, kb = jax.random.split(k)
        return (jax.random.normal(kw, (o, i), jnp.float32) * s,
                jax.random.normal(kb, (o,), jnp.float32) * s)

    def conv(k, o, i, s=0.05):
        kw, kb = jax.random.split(k)
        return (jax.random.normal(kw, (o, i, 3, 3), jnp.float32) * s,
                jax.random.normal(kb, (o,), jnp.float32) * s)

    return {
        "conv1": conv(ks[0], 16, 4),          # image encoder conv 4->16, s2 p1
        "conv2": conv(ks[1], 32, 16),         # image encoder conv 16->32, s2 p1
        "fc_embed": lin(ks[2], 128, 512),     # 32*4*4 -> 128 (NCHW flatten)
        "mapper_i2s": lin(ks[3], 128, 128),   # VectorMapper img2snd
        "snd_reparam": lin(ks[4], 256, 128),  # sound encoder vae_fc
        "snd_cls": lin(ks[5], 20, 128),       # sound classifier
        "snd_dec1": lin(ks[6], 256, 276),     # decoder: cat(img2snd,y,z)->256
        "snd_dec2": lin(ks[7], 64, 256),      # decoder: 256 -> 64, sigmoid
    }


def prepare_params(tp):
    """PyTorch-layout -> kernel-layout (transposes, lane padding, permutations
    and (1,N) biases) done once, outside the hot path."""
    f32 = jnp.float32
    w1, b1 = tp["conv1"]                                   # (16,4,3,3)
    W1 = jnp.transpose(w1, (2, 3, 1, 0)).reshape(36, 16)   # rows (ki,kj,cin)
    w2, b2 = tp["conv2"]                                   # (32,16,3,3)
    W2 = jnp.transpose(w2, (2, 3, 1, 0)).reshape(144, 32)  # rows (di,dj,cin)

    wf, bf = tp["fc_embed"]                                # (128, 512)
    # PyTorch flattens conv2's output NCHW (c,h,w); the kernel consumes
    # (h,w,c) blocks -> permute the weight rows accordingly (checkpoint parity).
    Wfc = wf.T.reshape(32, 16, 128).transpose(1, 0, 2).reshape(512, 128)

    wm, bm = tp["mapper_i2s"]
    wr, br = tp["snd_reparam"]

    wc, bc = tp["snd_cls"]                                 # (20, 128)
    Wc = jnp.zeros((128, 128), f32).at[:, :20].set(wc.T)   # lane-pad to 128
    bcp = jnp.full((128,), -1e30, f32).at[:20].set(bc)     # pads never win argmax

    wd1, bd1 = tp["snd_dec1"]                              # (256, 276)
    Wd1a = wd1[:, :128].T                                  # img2snd block
    Wd1b = jnp.zeros((128, 256), f32).at[:20, :].set(wd1[:, 128:148].T)
    Wd1c = wd1[:, 148:276].T                               # z block

    wd2, bd2 = tp["snd_dec2"]                              # (64, 256)
    Wd2 = jnp.zeros((256, 128), f32).at[:, :64].set(wd2.T)  # lane-dense output
    bd2p = jnp.zeros((128,), f32).at[:64].set(bd2)

    return {
        "w1": W1, "b1": b1.reshape(1, 16),
        "w2": W2, "b2": b2.reshape(1, 32),
        "wfc": Wfc, "bfc": bf.reshape(1, 128),
        "wm": wm.T, "bm": bm.reshape(1, 128),
        "wr": wr.T, "br": br.reshape(1, 256),
        "wc": Wc, "bc": bcp.reshape(1, 128),
        "wd1a": Wd1a, "wd1b": Wd1b, "wd1c": Wd1c, "bd1": bd1.reshape(1, 256),
        "wd2": Wd2, "bd2": bd2p.reshape(1, 128),
    }


if __name__ == "__main__":
    key = jax.random.PRNGKey(0)
    pk, xk, ek = jax.random.split(key, 3)
    tparams = init_params(pk)
    kparams = prepare_params(tparams)

    B = 2
    x = jax.random.normal(xk, (B, 4, 16, 16), jnp.float32)   # NCHW, as PyTorch

    Bp = ((B + 7) // 8) * 8                                  # sublane-pad batch
    idx_np, msk_np = _build_conv2_gather(B, Bp)
    idx_gather = jnp.asarray(idx_np)
    bias_mask = jnp.asarray(msk_np)

    fwd = jax.jit(functools.partial(forward_i2s, kparams, idx_gather, bias_mask))
    gen_sound, cls = fwd(x, ek)
    jax.block_until_ready((gen_sound, cls))

    assert gen_sound.shape == (B, 64), gen_sound.shape
    assert cls.shape == (B,), cls.shape
    assert bool(jnp.all(jnp.isfinite(gen_sound)))
    assert bool(jnp.all((cls >= 0) & (cls < 20)))
    print("KERNEL_OK")
</pallas_src>

<mosaic_0001>
module attributes {stable_mosaic.version = 11 : i64} {
  func.func @_fused_i2s_kernel(%arg0: memref<1152x36xf32, #tpu.memory_space<vmem>>, %arg1: memref<1152x1xf32, #tpu.memory_space<vmem>>, %arg2: memref<36x16xf32, #tpu.memory_space<vmem>>, %arg3: memref<1x16xf32, #tpu.memory_space<vmem>>, %arg4: memref<144x32xf32, #tpu.memory_space<vmem>>, %arg5: memref<1x32xf32, #tpu.memory_space<vmem>>, %arg6: memref<512x128xf32, #tpu.memory_space<vmem>>, %arg7: memref<1x128xf32, #tpu.memory_space<vmem>>, %arg8: memref<128x128xf32, #tpu.memory_space<vmem>>, %arg9: memref<1x128xf32, #tpu.memory_space<vmem>>, %arg10: memref<128x256xf32, #tpu.memory_space<vmem>>, %arg11: memref<1x256xf32, #tpu.memory_space<vmem>>, %arg12: memref<128x128xf32, #tpu.memory_space<vmem>>, %arg13: memref<1x128xf32, #tpu.memory_space<vmem>>, %arg14: memref<128x256xf32, #tpu.memory_space<vmem>>, %arg15: memref<128x256xf32, #tpu.memory_space<vmem>>, %arg16: memref<128x256xf32, #tpu.memory_space<vmem>>, %arg17: memref<1x256xf32, #tpu.memory_space<vmem>>, %arg18: memref<256x128xf32, #tpu.memory_space<vmem>>, %arg19: memref<1x128xf32, #tpu.memory_space<vmem>>, %arg20: memref<8x128xf32, #tpu.memory_space<vmem>>, %arg21: memref<8x1xi32, #tpu.memory_space<vmem>>, %arg22: memref<8x128xf32, #tpu.memory_space<vmem>>, %arg23: memref<8x1xi32, #tpu.memory_space<vmem>>, %arg24: memref<8x128xf32, #tpu.memory_space<vmem>>) attributes {dimension_semantics = [], scalar_prefetch = 0 : i64, scratch_operands = 0 : i64, tpu.core_type = #tpu.core_type<tc>} {
    %c0 = arith.constant 0 : index
    %c0_0 = arith.constant 0 : index
    %0 = vector.load %arg2[%c0, %c0_0] : memref<36x16xf32, #tpu.memory_space<vmem>>, vector<36x16xf32>
    %c0_1 = arith.constant 0 : index
    %c0_2 = arith.constant 0 : index
    %1 = vector.load %arg3[%c0_1, %c0_2] : memref<1x16xf32, #tpu.memory_space<vmem>>, vector<1x16xf32>
    %c0_3 = arith.constant 0 : index
    %c0_4 = arith.constant 0 : index
    %2 = vector.load %arg4[%c0_3, %c0_4] : memref<144x32xf32, #tpu.memory_space<vmem>>, vector<144x32xf32>
    %cst = arith.constant 0.000000e+00 : f32
    %3 = vector.broadcast %cst : f32 to vector<128x32xf32>
    %c0_5 = arith.constant 0 : index
    %c0_6 = arith.constant 0 : index
    %4 = vector.load %arg0[%c0_5, %c0_6] : memref<1152x36xf32, #tpu.memory_space<vmem>>, vector<128x36xf32>
    %c0_7 = arith.constant 0 : index
    %c0_8 = arith.constant 0 : index
    %5 = vector.load %arg1[%c0_7, %c0_8] : memref<1152x1xf32, #tpu.memory_space<vmem>>, vector<128x1xf32>
    %cst_9 = arith.constant dense<0.000000e+00> : vector<128x16xf32>
    %6 = tpu.matmul %4, %0, %cst_9 {dimension_numbers = #tpu.dot_dimension_numbers<[1], [0], [0], [1], [0, 0, 1, 1], [], []>} : vector<128x36xf32>, vector<36x16xf32>, vector<128x16xf32> -> vector<128x16xf32>
    %7 = vector.broadcast %5 : vector<128x1xf32> to vector<128x16xf32>
    %8 = vector.broadcast %1 : vector<1x16xf32> to vector<128x16xf32>
    %9 = arith.mulf %7, %8 : vector<128x16xf32>
    %10 = arith.addf %6, %9 : vector<128x16xf32>
    %cst_10 = arith.constant 0.000000e+00 : f32
    %11 = vector.broadcast %cst_10 : f32 to vector<128x16xf32>
    %12 = arith.maximumf %10, %11 : vector<128x16xf32>
    %13 = vector.extract_strided_slice %2 {offsets = [0, 0], sizes = [16, 32], strides = [1, 1]} : vector<144x32xf32> to vector<16x32xf32>
    %cst_11 = arith.constant dense<0.000000e+00> : vector<128x32xf32>
    %14 = tpu.matmul %12, %13, %cst_11 {dimension_numbers = #tpu.dot_dimension_numbers<[1], [0], [0], [1], [0, 0, 1, 1], [], []>} : vector<128x16xf32>, vector<16x32xf32>, vector<128x32xf32> -> vector<128x32xf32>
    %15 = arith.addf %3, %14 : vector<128x32xf32>
    %c128 = arith.constant 128 : index
    %c0_12 = arith.constant 0 : index
    %16 = vector.load %arg0[%c128, %c0_12] : memref<1152x36xf32, #tpu.memory_space<vmem>>, vector<128x36xf32>
    %c128_13 = arith.constant 128 : index
    %c0_14 = arith.constant 0 : index
    %17 = vector.load %arg1[%c128_13, %c0_14] : memref<1152x1xf32, #tpu.memory_space<vmem>>, vector<128x1xf32>
    %cst_15 = arith.constant dense<0.000000e+00> : vector<128x16xf32>
    %18 = tpu.matmul %16, %0, %cst_15 {dimension_numbers = #tpu.dot_dimension_numbers<[1], [0], [0], [1], [0, 0, 1, 1], [], []>} : vector<128x36xf32>, vector<36x16xf32>, vector<128x16xf32> -> vector<128x16xf32>
    %19 = vector.broadcast %17 : vector<128x1xf32> to vector<128x16xf32>
    %20 = vector.broadcast %1 : vector<1x16xf32> to vector<128x16xf32>
    %21 = arith.mulf %19, %20 : vector<128x16xf32>
    %22 = arith.addf %18, %21 : vector<128x16xf32>
    %cst_16 = arith.constant 0.000000e+00 : f32
    %23 = vector.broadcast %cst_16 : f32 to vector<128x16xf32>
    %24 = arith.maximumf %22, %23 : vector<128x16xf32>
    %25 = vector.extract_strided_slice %2 {offsets = [16, 0], sizes = [16, 32], strides = [1, 1]} : vector<144x32xf32> to vector<16x32xf32>
    %cst_17 = arith.constant dense<0.000000e+00> : vector<128x32xf32>
    %26 = tpu.matmul %24, %25, %cst_17 {dimension_numbers = #tpu.dot_dimension_numbers<[1], [0], [0], [1], [0, 0, 1, 1], [], []>} : vector<128x16xf32>, vector<16x32xf32>, vector<128x32xf32> -> vector<128x32xf32>
    %27 = arith.addf %15, %26 : vector<128x32xf32>
    %c256 = arith.constant 256 : index
    %c0_18 = arith.constant 0 : index
    %28 = vector.load %arg0[%c256, %c0_18] : memref<1152x36xf32, #tpu.memory_space<vmem>>, vector<128x36xf32>
    %c256_19 = arith.constant 256 : index
    %c0_20 = arith.constant 0 : index
    %29 = vector.load %arg1[%c256_19, %c0_20] : memref<1152x1xf32, #tpu.memory_space<vmem>>, vector<128x1xf32>
    %cst_21 = arith.constant dense<0.000000e+00> : vector<128x16xf32>
    %30 = tpu.matmul %28, %0, %cst_21 {dimension_numbers = #tpu.dot_dimension_numbers<[1], [0], [0], [1], [0, 0, 1, 1], [], []>} : vector<128x36xf32>, vector<36x16xf32>, vector<128x16xf32> -> vector<128x16xf32>
    %31 = vector.broadcast %29 : vector<128x1xf32> to vector<128x16xf32>
    %32 = vector.broadcast %1 : vector<1x16xf32> to vector<128x16xf32>
    %33 = arith.mulf %31, %32 : vector<128x16xf32>
    %34 = arith.addf %30, %33 : vector<128x16xf32>
    %cst_22 = arith.constant 0.000000e+00 : f32
    %35 = vector.broadcast %cst_22 : f32 to vector<128x16xf32>
    %36 = arith.maximumf %34, %35 : vector<128x16xf32>
    %37 = vector.extract_strided_slice %2 {offsets = [32, 0], sizes = [16, 32], strides = [1, 1]} : vector<144x32xf32> to vector<16x32xf32>
    %cst_23 = arith.constant dense<0.000000e+00> : vector<128x32xf32>
    %38 = tpu.matmul %36, %37, %cst_23 {dimension_numbers = #tpu.dot_dimension_numbers<[1], [0], [0], [1], [0, 0, 1, 1], [], []>} : vector<128x16xf32>, vector<16x32xf32>, vector<128x32xf32> -> vector<128x32xf32>
    %39 = arith.addf %27, %38 : vector<128x32xf32>
    %c384 = arith.constant 384 : index
    %c0_24 = arith.constant 0 : index
    %40 = vector.load %arg0[%c384, %c0_24] : memref<1152x36xf32, #tpu.memory_space<vmem>>, vector<128x36xf32>
    %c384_25 = arith.constant 384 : index
    %c0_26 = arith.constant 0 : index
    %41 = vector.load %arg1[%c384_25, %c0_26] : memref<1152x1xf32, #tpu.memory_space<vmem>>, vector<128x1xf32>
    %cst_27 = arith.constant dense<0.000000e+00> : vector<128x16xf32>
    %42 = tpu.matmul %40, %0, %cst_27 {dimension_numbers = #tpu.dot_dimension_numbers<[1], [0], [0], [1], [0, 0, 1, 1], [], []>} : vector<128x36xf32>, vector<36x16xf32>, vector<128x16xf32> -> vector<128x16xf32>
    %43 = vector.broadcast %41 : vector<128x1xf32> to vector<128x16xf32>
    %44 = vector.broadcast %1 : vector<1x16xf32> to vector<128x16xf32>
    %45 = arith.mulf %43, %44 : vector<128x16xf32>
    %46 = arith.addf %42, %45 : vector<128x16xf32>
    %cst_28 = arith.constant 0.000000e+00 : f32
    %47 = vector.broadcast %cst_28 : f32 to vector<128x16xf32>
    %48 = arith.maximumf %46, %47 : vector<128x16xf32>
    %49 = vector.extract_strided_slice %2 {offsets = [48, 0], sizes = [16, 32], strides = [1, 1]} : vector<144x32xf32> to vector<16x32xf32>
    %cst_29 = arith.constant dense<0.000000e+00> : vector<128x32xf32>
    %50 = tpu.matmul %48, %49, %cst_29 {dimension_numbers = #tpu.dot_dimension_numbers<[1], [0], [0], [1], [0, 0, 1, 1], [], []>} : vector<128x16xf32>, vector<16x32xf32>, vector<128x32xf32> -> vector<128x32xf32>
    %51 = arith.addf %39, %50 : vector<128x32xf32>
    %c512 = arith.constant 512 : index
    %c0_30 = arith.constant 0 : index
    %52 = vector.load %arg0[%c512, %c0_30] : memref<1152x36xf32, #tpu.memory_space<vmem>>, vector<128x36xf32>
    %c512_31 = arith.constant 512 : index
    %c0_32 = arith.constant 0 : index
    %53 = vector.load %arg1[%c512_31, %c0_32] : memref<1152x1xf32, #tpu.memory_space<vmem>>, vector<128x1xf32>
    %cst_33 = arith.constant dense<0.000000e+00> : vector<128x16xf32>
    %54 = tpu.matmul %52, %0, %cst_33 {dimension_numbers = #tpu.dot_dimension_numbers<[1], [0], [0], [1], [0, 0, 1, 1], [], []>} : vector<128x36xf32>, vector<36x16xf32>, vector<128x16xf32> -> vector<128x16xf32>
    %55 = vector.broadcast %53 : vector<128x1xf32> to vector<128x16xf32>
    %56 = vector.broadcast %1 : vector<1x16xf32> to vector<128x16xf32>
    %57 = arith.mulf %55, %56 : vector<128x16xf32>
    %58 = arith.addf %54, %57 : vector<128x16xf32>
    %cst_34 = arith.constant 0.000000e+00 : f32
    %59 = vector.broadcast %cst_34 : f32 to vector<128x16xf32>
    %60 = arith.maximumf %58, %59 : vector<128x16xf32>
    %61 = vector.extract_strided_slice %2 {offsets = [64, 0], sizes = [16, 32], strides = [1, 1]} : vector<144x32xf32> to vector<16x32xf32>
    %cst_35 = arith.constant dense<0.000000e+00> : vector<128x32xf32>
    %62 = tpu.matmul %60, %61, %cst_35 {dimension_numbers = #tpu.dot_dimension_numbers<[1], [0], [0], [1], [0, 0, 1, 1], [], []>} : vector<128x16xf32>, vector<16x32xf32>, vector<128x32xf32> -> vector<128x32xf32>
    %63 = arith.addf %51, %62 : vector<128x32xf32>
    %c640 = arith.constant 640 : index
    %c0_36 = arith.constant 0 : index
    %64 = vector.load %arg0[%c640, %c0_36] : memref<1152x36xf32, #tpu.memory_space<vmem>>, vector<128x36xf32>
    %c640_37 = arith.constant 640 : index
    %c0_38 = arith.constant 0 : index
    %65 = vector.load %arg1[%c640_37, %c0_38] : memref<1152x1xf32, #tpu.memory_space<vmem>>, vector<128x1xf32>
    %cst_39 = arith.constant dense<0.000000e+00> : vector<128x16xf32>
    %66 = tpu.matmul %64, %0, %cst_39 {dimension_numbers = #tpu.dot_dimension_numbers<[1], [0], [0], [1], [0, 0, 1, 1], [], []>} : vector<128x36xf32>, vector<36x16xf32>, vector<128x16xf32> -> vector<128x16xf32>
    %67 = vector.broadcast %65 : vector<128x1xf32> to vector<128x16xf32>
    %68 = vector.broadcast %1 : vector<1x16xf32> to vector<128x16xf32>
    %69 = arith.mulf %67, %68 : vector<128x16xf32>
    %70 = arith.addf %66, %69 : vector<128x16xf32>
    %cst_40 = arith.constant 0.000000e+00 : f32
    %71 = vector.broadcast %cst_40 : f32 to vector<128x16xf32>
    %72 = arith.maximumf %70, %71 : vector<128x16xf32>
    %73 = vector.extract_strided_slice %2 {offsets = [80, 0], sizes = [16, 32], strides = [1, 1]} : vector<144x32xf32> to vector<16x32xf32>
    %cst_41 = arith.constant dense<0.000000e+00> : vector<128x32xf32>
    %74 = tpu.matmul %72, %73, %cst_41 {dimension_numbers = #tpu.dot_dimension_numbers<[1], [0], [0], [1], [0, 0, 1, 1], [], []>} : vector<128x16xf32>, vector<16x32xf32>, vector<128x32xf32> -> vector<128x32xf32>
    %75 = arith.addf %63, %74 : vector<128x32xf32>
    %c768 = arith.constant 768 : index
    %c0_42 = arith.constant 0 : index
    %76 = vector.load %arg0[%c768, %c0_42] : memref<1152x36xf32, #tpu.memory_space<vmem>>, vector<128x36xf32>
    %c768_43 = arith.constant 768 : index
    %c0_44 = arith.constant 0 : index
    %77 = vector.load %arg1[%c768_43, %c0_44] : memref<1152x1xf32, #tpu.memory_space<vmem>>, vector<128x1xf32>
    %cst_45 = arith.constant dense<0.000000e+00> : vector<128x16xf32>
    %78 = tpu.matmul %76, %0, %cst_45 {dimension_numbers = #tpu.dot_dimension_numbers<[1], [0], [0], [1], [0, 0, 1, 1], [], []>} : vector<128x36xf32>, vector<36x16xf32>, vector<128x16xf32> -> vector<128x16xf32>
    %79 = vector.broadcast %77 : vector<128x1xf32> to vector<128x16xf32>
    %80 = vector.broadcast %1 : vector<1x16xf32> to vector<128x16xf32>
    %81 = arith.mulf %79, %80 : vector<128x16xf32>
    %82 = arith.addf %78, %81 : vector<128x16xf32>
    %cst_46 = arith.constant 0.000000e+00 : f32
    %83 = vector.broadcast %cst_46 : f32 to vector<128x16xf32>
    %84 = arith.maximumf %82, %83 : vector<128x16xf32>
    %85 = vector.extract_strided_slice %2 {offsets = [96, 0], sizes = [16, 32], strides = [1, 1]} : vector<144x32xf32> to vector<16x32xf32>
    %cst_47 = arith.constant dense<0.000000e+00> : vector<128x32xf32>
    %86 = tpu.matmul %84, %85, %cst_47 {dimension_numbers = #tpu.dot_dimension_numbers<[1], [0], [0], [1], [0, 0, 1, 1], [], []>} : vector<128x16xf32>, vector<16x32xf32>, vector<128x32xf32> -> vector<128x32xf32>
    %87 = arith.addf %75, %86 : vector<128x32xf32>
    %c896 = arith.constant 896 : index
    %c0_48 = arith.constant 0 : index
    %88 = vector.load %arg0[%c896, %c0_48] : memref<1152x36xf32, #tpu.memory_space<vmem>>, vector<128x36xf32>
    %c896_49 = arith.constant 896 : index
    %c0_50 = arith.constant 0 : index
    %89 = vector.load %arg1[%c896_49, %c0_50] : memref<1152x1xf32, #tpu.memory_space<vmem>>, vector<128x1xf32>
    %cst_51 = arith.constant dense<0.000000e+00> : vector<128x16xf32>
    %90 = tpu.matmul %88, %0, %cst_51 {dimension_numbers = #tpu.dot_dimension_numbers<[1], [0], [0], [1], [0, 0, 1, 1], [], []>} : vector<128x36xf32>, vector<36x16xf32>, vector<128x16xf32> -> vector<128x16xf32>
    %91 = vector.broadcast %89 : vector<128x1xf32> to vector<128x16xf32>
    %92 = vector.broadcast %1 : vector<1x16xf32> to vector<128x16xf32>
    %93 = arith.mulf %91, %92 : vector<128x16xf32>
    %94 = arith.addf %90, %93 : vector<128x16xf32>
    %cst_52 = arith.constant 0.000000e+00 : f32
    %95 = vector.broadcast %cst_52 : f32 to vector<128x16xf32>
    %96 = arith.maximumf %94, %95 : vector<128x16xf32>
    %97 = vector.extract_strided_slice %2 {offsets = [112, 0], sizes = [16, 32], strides = [1, 1]} : vector<144x32xf32> to vector<16x32xf32>
    %cst_53 = arith.constant dense<0.000000e+00> : vector<128x32xf32>
    %98 = tpu.matmul %96, %97, %cst_53 {dimension_numbers = #tpu.dot_dimension_numbers<[1], [0], [0], [1], [0, 0, 1, 1], [], []>} : vector<128x16xf32>, vector<16x32xf32>, vector<128x32xf32> -> vector<128x32xf32>
    %99 = arith.addf %87, %98 : vector<128x32xf32>
    %c1024 = arith.constant 1024 : index
    %c0_54 = arith.constant 0 : index
    %100 = vector.load %arg0[%c1024, %c0_54] : memref<1152x36xf32, #tpu.memory_space<vmem>>, vector<128x36xf32>
    %c1024_55 = arith.constant 1024 : index
    %c0_56 = arith.constant 0 : index
    %101 = vector.load %arg1[%c1024_55, %c0_56] : memref<1152x1xf32, #tpu.memory_space<vmem>>, vector<128x1xf32>
    %cst_57 = arith.constant dense<0.000000e+00> : vector<128x16xf32>
    %102 = tpu.matmul %100, %0, %cst_57 {dimension_numbers = #tpu.dot_dimension_numbers<[1], [0], [0], [1], [0, 0, 1, 1], [], []>} : vector<128x36xf32>, vector<36x16xf32>, vector<128x16xf32> -> vector<128x16xf32>
    %103 = vector.broadcast %101 : vector<128x1xf32> to vector<128x16xf32>
    %104 = vector.broadcast %1 : vector<1x16xf32> to vector<128x16xf32>
    %105 = arith.mulf %103, %104 : vector<128x16xf32>
    %106 = arith.addf %102, %105 : vector<128x16xf32>
    %cst_58 = arith.constant 0.000000e+00 : f32
    %107 = vector.broadcast %cst_58 : f32 to vector<128x16xf32>
    %108 = arith.maximumf %106, %107 : vector<128x16xf32>
    %109 = vector.extract_strided_slice %2 {offsets = [128, 0], sizes = [16, 32], strides = [1, 1]} : vector<144x32xf32> to vector<16x32xf32>
    %cst_59 = arith.constant dense<0.000000e+00> : vector<128x32xf32>
    %110 = tpu.matmul %108, %109, %cst_59 {dimension_numbers = #tpu.dot_dimension_numbers<[1], [0], [0], [1], [0, 0, 1, 1], [], []>} : vector<128x16xf32>, vector<16x32xf32>, vector<128x32xf32> -> vector<128x32xf32>
    %111 = arith.addf %99, %110 : vector<128x32xf32>
    %c0_60 = arith.constant 0 : index
    %c0_61 = arith.constant 0 : index
    %112 = vector.load %arg5[%c0_60, %c0_61] : memref<1x32xf32, #tpu.memory_space<vmem>>, vector<1x32xf32>
    %113 = vector.broadcast %112 : vector<1x32xf32> to vector<128x32xf32>
    %114 = arith.addf %111, %113 : vector<128x32xf32>
    %cst_62 = arith.constant 0.000000e+00 : f32
    %115 = vector.broadcast %cst_62 : f32 to vector<128x32xf32>
    %116 = arith.maximumf %114, %115 : vector<128x32xf32>
    %c0_63 = arith.constant 0 : index
    %c0_64 = arith.constant 0 : index
    %117 = vector.load %arg6[%c0_63, %c0_64] : memref<512x128xf32, #tpu.memory_space<vmem>>, vector<512x128xf32>
    %cst_65 = arith.constant 0.000000e+00 : f32
    %118 = vector.broadcast %cst_65 : f32 to vector<8x128xf32>
    %119 = vector.extract_strided_slice %116 {offsets = [0, 0], sizes = [8, 32], strides = [1, 1]} : vector<128x32xf32> to vector<8x32xf32>
    %120 = vector.extract_strided_slice %117 {offsets = [0, 0], sizes = [32, 128], strides = [1, 1]} : vector<512x128xf32> to vector<32x128xf32>
    %cst_66 = arith.constant dense<0.000000e+00> : vector<8x128xf32>
    %121 = tpu.matmul %119, %120, %cst_66 {dimension_numbers = #tpu.dot_dimension_numbers<[1], [0], [0], [1], [0, 0, 1, 1], [], []>} : vector<8x32xf32>, vector<32x128xf32>, vector<8x128xf32> -> vector<8x128xf32>
    %122 = arith.addf %118, %121 : vector<8x128xf32>
    %123 = vector.extract_strided_slice %116 {offsets = [8, 0], sizes = [8, 32], strides = [1, 1]} : vector<128x32xf32> to vector<8x32xf32>
    %124 = vector.extract_strided_slice %117 {offsets = [32, 0], sizes = [32, 128], strides = [1, 1]} : vector<512x128xf32> to vector<32x128xf32>
    %cst_67 = arith.constant dense<0.000000e+00> : vector<8x128xf32>
    %125 = tpu.matmul %123, %124, %cst_67 {dimension_numbers = #tpu.dot_dimension_numbers<[1], [0], [0], [1], [0, 0, 1, 1], [], []>} : vector<8x32xf32>, vector<32x128xf32>, vector<8x128xf32> -> vector<8x128xf32>
    %126 = arith.addf %122, %125 : vector<8x128xf32>
    %127 = vector.extract_strided_slice %116 {offsets = [16, 0], sizes = [8, 32], strides = [1, 1]} : vector<128x32xf32> to vector<8x32xf32>
    %128 = vector.extract_strided_slice %117 {offsets = [64, 0], sizes = [32, 128], strides = [1, 1]} : vector<512x128xf32> to vector<32x128xf32>
    %cst_68 = arith.constant dense<0.000000e+00> : vector<8x128xf32>
    %129 = tpu.matmul %127, %128, %cst_68 {dimension_numbers = #tpu.dot_dimension_numbers<[1], [0], [0], [1], [0, 0, 1, 1], [], []>} : vector<8x32xf32>, vector<32x128xf32>, vector<8x128xf32> -> vector<8x128xf32>
    %130 = arith.addf %126, %129 : vector<8x128xf32>
    %131 = vector.extract_strided_slice %116 {offsets = [24, 0], sizes = [8, 32], strides = [1, 1]} : vector<128x32xf32> to vector<8x32xf32>
    %132 = vector.extract_strided_slice %117 {offsets = [96, 0], sizes = [32, 128], strides = [1, 1]} : vector<512x128xf32> to vector<32x128xf32>
    %cst_69 = arith.constant dense<0.000000e+00> : vector<8x128xf32>
    %133 = tpu.matmul %131, %132, %cst_69 {dimension_numbers = #tpu.dot_dimension_numbers<[1], [0], [0], [1], [0, 0, 1, 1], [], []>} : vector<8x32xf32>, vector<32x128xf32>, vector<8x128xf32> -> vector<8x128xf32>
    %134 = arith.addf %130, %133 : vector<8x128xf32>
    %135 = vector.extract_strided_slice %116 {offsets = [32, 0], sizes = [8, 32], strides = [1, 1]} : vector<128x32xf32> to vector<8x32xf32>
    %136 = vector.extract_strided_slice %117 {offsets = [128, 0], sizes = [32, 128], strides = [1, 1]} : vector<512x128xf32> to vector<32x128xf32>
    %cst_70 = arith.constant dense<0.000000e+00> : vector<8x128xf32>
    %137 = tpu.matmul %135, %136, %cst_70 {dimension_numbers = #tpu.dot_dimension_numbers<[1], [0], [0], [1], [0, 0, 1, 1], [], []>} : vector<8x32xf32>, vector<32x128xf32>, vector<8x128xf32> -> vector<8x128xf32>
    %138 = arith.addf %134, %137 : vector<8x128xf32>
    %139 = vector.extract_strided_slice %116 {offsets = [40, 0], sizes = [8, 32], strides = [1, 1]} : vector<128x32xf32> to vector<8x32xf32>
    %140 = vector.extract_strided_slice %117 {offsets = [160, 0], sizes = [32, 128], strides = [1, 1]} : vector<512x128xf32> to vector<32x128xf32>
    %cst_71 = arith.constant dense<0.000000e+00> : vector<8x128xf32>
    %141 = tpu.matmul %139, %140, %cst_71 {dimension_numbers = #tpu.dot_dimension_numbers<[1], [0], [0], [1], [0, 0, 1, 1], [], []>} : vector<8x32xf32>, vector<32x128xf32>, vector<8x128xf32> -> vector<8x128xf32>
    %142 = arith.addf %138, %141 : vector<8x128xf32>
    %143 = vector.extract_strided_slice %116 {offsets = [48, 0], sizes = [8, 32], strides = [1, 1]} : vector<128x32xf32> to vector<8x32xf32>
    %144 = vector.extract_strided_slice %117 {offsets = [192, 0], sizes = [32, 128], strides = [1, 1]} : vector<512x128xf32> to vector<32x128xf32>
    %cst_72 = arith.constant dense<0.000000e+00> : vector<8x128xf32>
    %145 = tpu.matmul %143, %144, %cst_72 {dimension_numbers = #tpu.dot_dimension_numbers<[1], [0], [0], [1], [0, 0, 1, 1], [], []>} : vector<8x32xf32>, vector<32x128xf32>, vector<8x128xf32> -> vector<8x128xf32>
    %146 = arith.addf %142, %145 : vector<8x128xf32>
    %147 = vector.extract_strided_slice %116 {offsets = [56, 0], sizes = [8, 32], strides = [1, 1]} : vector<128x32xf32> to vector<8x32xf32>
    %148 = vector.extract_strided_slice %117 {offsets = [224, 0], sizes = [32, 128], strides = [1, 1]} : vector<512x128xf32> to vector<32x128xf32>
    %cst_73 = arith.constant dense<0.000000e+00> : vector<8x128xf32>
    %149 = tpu.matmul %147, %148, %cst_73 {dimension_numbers = #tpu.dot_dimension_numbers<[1], [0], [0], [1], [0, 0, 1, 1], [], []>} : vector<8x32xf32>, vector<32x128xf32>, vector<8x128xf32> -> vector<8x128xf32>
    %150 = arith.addf %146, %149 : vector<8x128xf32>
    %151 = vector.extract_strided_slice %116 {offsets = [64, 0], sizes = [8, 32], strides = [1, 1]} : vector<128x32xf32> to vector<8x32xf32>
    %152 = vector.extract_strided_slice %117 {offsets = [256, 0], sizes = [32, 128], strides = [1, 1]} : vector<512x128xf32> to vector<32x128xf32>
    %cst_74 = arith.constant dense<0.000000e+00> : vector<8x128xf32>
    %153 = tpu.matmul %151, %152, %cst_74 {dimension_numbers = #tpu.dot_dimension_numbers<[1], [0], [0], [1], [0, 0, 1, 1], [], []>} : vector<8x32xf32>, vector<32x128xf32>, vector<8x128xf32> -> vector<8x128xf32>
    %154 = arith.addf %150, %153 : vector<8x128xf32>
    %155 = vector.extract_strided_slice %116 {offsets = [72, 0], sizes = [8, 32], strides = [1, 1]} : vector<128x32xf32> to vector<8x32xf32>
    %156 = vector.extract_strided_slice %117 {offsets = [288, 0], sizes = [32, 128], strides = [1, 1]} : vector<512x128xf32> to vector<32x128xf32>
    %cst_75 = arith.constant dense<0.000000e+00> : vector<8x128xf32>
    %157 = tpu.matmul %155, %156, %cst_75 {dimension_numbers = #tpu.dot_dimension_numbers<[1], [0], [0], [1], [0, 0, 1, 1], [], []>} : vector<8x32xf32>, vector<32x128xf32>, vector<8x128xf32> -> vector<8x128xf32>
    %158 = arith.addf %154, %157 : vector<8x128xf32>
    %159 = vector.extract_strided_slice %116 {offsets = [80, 0], sizes = [8, 32], strides = [1, 1]} : vector<128x32xf32> to vector<8x32xf32>
    %160 = vector.extract_strided_slice %117 {offsets = [320, 0], sizes = [32, 128], strides = [1, 1]} : vector<512x128xf32> to vector<32x128xf32>
    %cst_76 = arith.constant dense<0.000000e+00> : vector<8x128xf32>
    %161 = tpu.matmul %159, %160, %cst_76 {dimension_numbers = #tpu.dot_dimension_numbers<[1], [0], [0], [1], [0, 0, 1, 1], [], []>} : vector<8x32xf32>, vector<32x128xf32>, vector<8x128xf32> -> vector<8x128xf32>
    %162 = arith.addf %158, %161 : vector<8x128xf32>
    %163 = vector.extract_strided_slice %116 {offsets = [88, 0], sizes = [8, 32], strides = [1, 1]} : vector<128x32xf32> to vector<8x32xf32>
    %164 = vector.extract_strided_slice %117 {offsets = [352, 0], sizes = [32, 128], strides = [1, 1]} : vector<512x128xf32> to vector<32x128xf32>
    %cst_77 = arith.constant dense<0.000000e+00> : vector<8x128xf32>
    %165 = tpu.matmul %163, %164, %cst_77 {dimension_numbers = #tpu.dot_dimension_numbers<[1], [0], [0], [1], [0, 0, 1, 1], [], []>} : vector<8x32xf32>, vector<32x128xf32>, vector<8x128xf32> -> vector<8x128xf32>
    %166 = arith.addf %162, %165 : vector<8x128xf32>
    %167 = vector.extract_strided_slice %116 {offsets = [96, 0], sizes = [8, 32], strides = [1, 1]} : vector<128x32xf32> to vector<8x32xf32>
    %168 = vector.extract_strided_slice %117 {offsets = [384, 0], sizes = [32, 128], strides = [1, 1]} : vector<512x128xf32> to vector<32x128xf32>
    %cst_78 = arith.constant dense<0.000000e+00> : vector<8x128xf32>
    %169 = tpu.matmul %167, %168, %cst_78 {dimension_numbers = #tpu.dot_dimension_numbers<[1], [0], [0], [1], [0, 0, 1, 1], [], []>} : vector<8x32xf32>, vector<32x128xf32>, vector<8x128xf32> -> vector<8x128xf32>
    %170 = arith.addf %166, %169 : vector<8x128xf32>
    %171 = vector.extract_strided_slice %116 {offsets = [104, 0], sizes = [8, 32], strides = [1, 1]} : vector<128x32xf32> to vector<8x32xf32>
    %172 = vector.extract_strided_slice %117 {offsets = [416, 0], sizes = [32, 128], strides = [1, 1]} : vector<512x128xf32> to vector<32x128xf32>
    %cst_79 = arith.constant dense<0.000000e+00> : vector<8x128xf32>
    %173 = tpu.matmul %171, %172, %cst_79 {dimension_numbers = #tpu.dot_dimension_numbers<[1], [0], [0], [1], [0, 0, 1, 1], [], []>} : vector<8x32xf32>, vector<32x128xf32>, vector<8x128xf32> -> vector<8x128xf32>
    %174 = arith.addf %170, %173 : vector<8x128xf32>
    %175 = vector.extract_strided_slice %116 {offsets = [112, 0], sizes = [8, 32], strides = [1, 1]} : vector<128x32xf32> to vector<8x32xf32>
    %176 = vector.extract_strided_slice %117 {offsets = [448, 0], sizes = [32, 128], strides = [1, 1]} : vector<512x128xf32> to vector<32x128xf32>
    %cst_80 = arith.constant dense<0.000000e+00> : vector<8x128xf32>
    %177 = tpu.matmul %175, %176, %cst_80 {dimension_numbers = #tpu.dot_dimension_numbers<[1], [0], [0], [1], [0, 0, 1, 1], [], []>} : vector<8x32xf32>, vector<32x128xf32>, vector<8x128xf32> -> vector<8x128xf32>
    %178 = arith.addf %174, %177 : vector<8x128xf32>
    %179 = vector.extract_strided_slice %116 {offsets = [120, 0], sizes = [8, 32], strides = [1, 1]} : vector<128x32xf32> to vector<8x32xf32>
    %180 = vector.extract_strided_slice %117 {offsets = [480, 0], sizes = [32, 128], strides = [1, 1]} : vector<512x128xf32> to vector<32x128xf32>
    %cst_81 = arith.constant dense<0.000000e+00> : vector<8x128xf32>
    %181 = tpu.matmul %179, %180, %cst_81 {dimension_numbers = #tpu.dot_dimension_numbers<[1], [0], [0], [1], [0, 0, 1, 1], [], []>} : vector<8x32xf32>, vector<32x128xf32>, vector<8x128xf32> -> vector<8x128xf32>
    %182 = arith.addf %178, %181 : vector<8x128xf32>
    %c0_82 = arith.constant 0 : index
    %c0_83 = arith.constant 0 : index
    %183 = vector.load %arg7[%c0_82, %c0_83] : memref<1x128xf32, #tpu.memory_space<vmem>>, vector<1x128xf32>
    %184 = vector.broadcast %183 : vector<1x128xf32> to vector<8x128xf32>
    %185 = arith.addf %182, %184 : vector<8x128xf32>
    %cst_84 = arith.constant 0.000000e+00 : f32
    %186 = vector.broadcast %cst_84 : f32 to vector<8x128xf32>
    %187 = arith.maximumf %185, %186 : vector<8x128xf32>
    %c0_85 = arith.constant 0 : index
    %c0_86 = arith.constant 0 : index
    %188 = vector.load %arg24[%c0_85, %c0_86] : memref<8x128xf32, #tpu.memory_space<vmem>>, vector<8x128xf32>
    tpu.vector_store %arg24[%c0_85, %c0_86], %187 {strides = array<i32>} : memref<8x128xf32, #tpu.memory_space<vmem>>, vector<8x128xf32>,
    %c0_87 = arith.constant 0 : index
    %c0_88 = arith.constant 0 : index
    %189 = vector.load %arg8[%c0_87, %c0_88] : memref<128x128xf32, #tpu.memory_space<vmem>>, vector<128x128xf32>
    %cst_89 = arith.constant dense<0.000000e+00> : vector<8x128xf32>
    %190 = tpu.matmul %187, %189, %cst_89 {dimension_numbers = #tpu.dot_dimension_numbers<[1], [0], [0], [1], [0, 0, 1, 1], [], []>} : vector<8x128xf32>, vector<128x128xf32>, vector<8x128xf32> -> vector<8x128xf32>
    %c0_90 = arith.constant 0 : index
    %c0_91 = arith.constant 0 : index
    %191 = vector.load %arg9[%c0_90, %c0_91] : memref<1x128xf32, #tpu.memory_space<vmem>>, vector<1x128xf32>
    %192 = vector.broadcast %191 : vector<1x128xf32> to vector<8x128xf32>
    %193 = arith.addf %190, %192 : vector<8x128xf32>
    %c0_92 = arith.constant 0 : index
    %c0_93 = arith.constant 0 : index
    %194 = vector.load %arg10[%c0_92, %c0_93] : memref<128x256xf32, #tpu.memory_space<vmem>>, vector<128x256xf32>
    %cst_94 = arith.constant dense<0.000000e+00> : vector<8x256xf32>
    %195 = tpu.matmul %193, %194, %cst_94 {dimension_numbers = #tpu.dot_dimension_numbers<[1], [0], [0], [1], [0, 0, 1, 1], [], []>} : vector<8x128xf32>, vector<128x256xf32>, vector<8x256xf32> -> vector<8x256xf32>
    %c0_95 = arith.constant 0 : index
    %c0_96 = arith.constant 0 : index
    %196 = vector.load %arg11[%c0_95, %c0_96] : memref<1x256xf32, #tpu.memory_space<vmem>>, vector<1x256xf32>
    %197 = vector.broadcast %196 : vector<1x256xf32> to vector<8x256xf32>
    %198 = arith.addf %195, %197 : vector<8x256xf32>
    %199 = vector.extract_strided_slice %198 {offsets = [0, 0], sizes = [8, 128], strides = [1, 1]} : vector<8x256xf32> to vector<8x128xf32>
    %200 = vector.extract_strided_slice %198 {offsets = [0, 0], sizes = [8, 128], strides = [1, 1]} : vector<8x256xf32> to vector<8x128xf32>
    %c0_97 = arith.constant 0 : index
    %c0_98 = arith.constant 0 : index
    %201 = vector.load %arg20[%c0_97, %c0_98] : memref<8x128xf32, #tpu.memory_space<vmem>>, vector<8x128xf32>
    %cst_99 = arith.constant 5.000000e-01 : f32
    %202 = vector.broadcast %cst_99 : f32 to vector<8x128xf32>
    %203 = arith.mulf %200, %202 : vector<8x128xf32>
    %204 = math.exp %203 : vector<8x128xf32>
    %205 = arith.mulf %201, %204 : vector<8x128xf32>
    %206 = arith.addf %205, %199 : vector<8x128xf32>
    %c0_100 = arith.constant 0 : index
    %c0_101 = arith.constant 0 : index
    %207 = vector.load %arg12[%c0_100, %c0_101] : memref<128x128xf32, #tpu.memory_space<vmem>>, vector<128x128xf32>
    %cst_102 = arith.constant dense<0.000000e+00> : vector<8x128xf32>
    %208 = tpu.matmul %193, %207, %cst_102 {dimension_numbers = #tpu.dot_dimension_numbers<[1], [0], [0], [1], [0, 0, 1, 1], [], []>} : vector<8x128xf32>, vector<128x128xf32>, vector<8x128xf32> -> vector<8x128xf32>
    %c0_103 = arith.constant 0 : index
    %c0_104 = arith.constant 0 : index
    %209 = vector.load %arg13[%c0_103, %c0_104] : memref<1x128xf32, #tpu.memory_space<vmem>>, vector<1x128xf32>
    %210 = vector.broadcast %209 : vector<1x128xf32> to vector<8x128xf32>
    %211 = arith.addf %208, %210 : vector<8x128xf32>
    %212 = tpu.iota {dimensions = array<i32: 1>} : vector<8x128xi32>
    %213 = tpu.iota {dimensions = array<i32: 0>} : vector<8x128xi32>
    %cst_105 = arith.constant dense<0xFF800000> : vector<8xf32>
    %214 = vector.multi_reduction <maximumf>, %211, %cst_105 [1] : vector<8x128xf32> to vector<8xf32>
    %215 = vector.shape_cast %214 : vector<8xf32> to vector<8x1xf32>
    %216 = vector.broadcast %215 : vector<8x1xf32> to vector<8x128xf32>
    %217 = arith.cmpf oge, %211, %216 : vector<8x128xf32>
    %218 = arith.sitofp %212 : vector<8x128xi32> to vector<8x128xf32>
    %cst_106 = arith.constant 1.000000e+09 : f32
    %219 = vector.broadcast %cst_106 : f32 to vector<8x128xf32>
    %220 = arith.select %217, %218, %219 : vector<8x128xi1>, vector<8x128xf32>
    %cst_107 = arith.constant dense<0x7F800000> : vector<8xf32>
    %221 = vector.multi_reduction <minimumf>, %220, %cst_107 [1] : vector<8x128xf32> to vector<8xf32>
    %222 = vector.shape_cast %221 : vector<8xf32> to vector<8x1xf32>
    %223 = arith.fptosi %222 : vector<8x1xf32> to vector<8x1xi32>
    %c0_108 = arith.constant 0 : index
    %c0_109 = arith.constant 0 : index
    %224 = vector.load %arg23[%c0_108, %c0_109] : memref<8x1xi32, #tpu.memory_space<vmem>>, vector<8x1xi32>
    tpu.vector_store %arg23[%c0_108, %c0_109], %223 {strides = array<i32>} : memref<8x1xi32, #tpu.memory_space<vmem>>, vector<8x1xi32>,
    %225 = vector.broadcast %223 : vector<8x1xi32> to vector<8x128xi32>
    %226 = arith.cmpi eq, %212, %225 : vector<8x128xi32>
    %c2_i32 = arith.constant 2 : i32
    %227 = vector.broadcast %c2_i32 : i32 to vector<8x128xi32>
    %228 = arith.cmpi slt, %213, %227 : vector<8x128xi32>
    %229 = arith.andi %226, %228 : vector<8x128xi1>
    %cst_110 = arith.constant 1.000000e+00 : f32
    %cst_111 = arith.constant 0.000000e+00 : f32
    %230 = vector.broadcast %cst_110 : f32 to vector<8x128xf32>
    %231 = vector.broadcast %cst_111 : f32 to vector<8x128xf32>
    %232 = arith.select %229, %230, %231 : vector<8x128xi1>, vector<8x128xf32>
    %cst_112 = arith.constant dense<0xFF800000> : vector<128xf32>
    %233 = vector.multi_reduction <maximumf>, %232, %cst_112 [0] : vector<8x128xf32> to vector<128xf32>
    %234 = vector.shape_cast %233 : vector<128xf32> to vector<1x128xf32>
    %c0_i32 = arith.constant 0 : i32
    %235 = vector.broadcast %c0_i32 : i32 to vector<8x128xi32>
    %236 = arith.cmpi eq, %213, %235 : vector<8x128xi32>
    %cst_113 = arith.constant 0.000000e+00 : f32
    %237 = vector.shape_cast %234 : vector<1x128xf32> to vector<1x128xf32>
    %238 = vector.broadcast %237 : vector<1x128xf32> to vector<8x128xf32>
    %239 = vector.broadcast %cst_113 : f32 to vector<8x128xf32>
    %240 = arith.select %236, %238, %239 : vector<8x128xi1>, vector<8x128xf32>
    %c0_114 = arith.constant 0 : index
    %c0_115 = arith.constant 0 : index
    %241 = vector.load %arg14[%c0_114, %c0_115] : memref<128x256xf32, #tpu.memory_space<vmem>>, vector<128x256xf32>
    %cst_116 = arith.constant dense<0.000000e+00> : vector<8x256xf32>
    %242 = tpu.matmul %193, %241, %cst_116 {dimension_numbers = #tpu.dot_dimension_numbers<[1], [0], [0], [1], [0, 0, 1, 1], [], []>} : vector<8x128xf32>, vector<128x256xf32>, vector<8x256xf32> -> vector<8x256xf32>
    %c0_117 = arith.constant 0 : index
    %c0_118 = arith.constant 0 : index
    %243 = vector.load %arg15[%c0_117, %c0_118] : memref<128x256xf32, #tpu.memory_space<vmem>>, vector<128x256xf32>
    %cst_119 = arith.constant dense<0.000000e+00> : vector<8x256xf32>
    %244 = tpu.matmul %240, %243, %cst_119 {dimension_numbers = #tpu.dot_dimension_numbers<[1], [0], [0], [1], [0, 0, 1, 1], [], []>} : vector<8x128xf32>, vector<128x256xf32>, vector<8x256xf32> -> vector<8x256xf32>
    %245 = arith.addf %242, %244 : vector<8x256xf32>
    %c0_120 = arith.constant 0 : index
    %c0_121 = arith.constant 0 : index
    %246 = vector.load %arg16[%c0_120, %c0_121] : memref<128x256xf32, #tpu.memory_space<vmem>>, vector<128x256xf32>
    %cst_122 = arith.constant dense<0.000000e+00> : vector<8x256xf32>
    %247 = tpu.matmul %206, %246, %cst_122 {dimension_numbers = #tpu.dot_dimension_numbers<[1], [0], [0], [1], [0, 0, 1, 1], [], []>} : vector<8x128xf32>, vector<128x256xf32>, vector<8x256xf32> -> vector<8x256xf32>
    %248 = arith.addf %245, %247 : vector<8x256xf32>
    %c0_123 = arith.constant 0 : index
    %c0_124 = arith.constant 0 : index
    %249 = vector.load %arg17[%c0_123, %c0_124] : memref<1x256xf32, #tpu.memory_space<vmem>>, vector<1x256xf32>
    %250 = vector.broadcast %249 : vector<1x256xf32> to vector<8x256xf32>
    %251 = arith.addf %248, %250 : vector<8x256xf32>
    %cst_125 = arith.constant 0.000000e+00 : f32
    %252 = vector.broadcast %cst_125 : f32 to vector<8x256xf32>
    %253 = arith.maximumf %251, %252 : vector<8x256xf32>
    %c0_126 = arith.constant 0 : index
    %c0_127 = arith.constant 0 : index
    %254 = vector.load %arg18[%c0_126, %c0_127] : memref<256x128xf32, #tpu.memory_space<vmem>>, vector<256x128xf32>
    %cst_128 = arith.constant dense<0.000000e+00> : vector<8x128xf32>
    %255 = tpu.matmul %253, %254, %cst_128 {dimension_numbers = #tpu.dot_dimension_numbers<[1], [0], [0], [1], [0, 0, 1, 1], [], []>} : vector<8x256xf32>, vector<256x128xf32>, vector<8x128xf32> -> vector<8x128xf32>
    %c0_129 = arith.constant 0 : index
    %c0_130 = arith.constant 0 : index
    %256 = vector.load %arg19[%c0_129, %c0_130] : memref<1x128xf32, #tpu.memory_space<vmem>>, vector<1x128xf32>
    %257 = vector.broadcast %256 : vector<1x128xf32> to vector<8x128xf32>
    %258 = arith.addf %255, %257 : vector<8x128xf32>
    %cst_131 = arith.constant 0.000000e+00 : f32
    %259 = vector.broadcast %cst_131 : f32 to vector<8x128xf32>
    %260 = arith.subf %259, %258 : vector<8x128xf32>
    %261 = math.exp %260 : vector<8x128xf32>
    %cst_132 = arith.constant 1.000000e+00 : f32
    %262 = vector.broadcast %cst_132 : f32 to vector<8x128xf32>
    %263 = arith.addf %262, %261 : vector<8x128xf32>
    %264 = tpu.reciprocal %263 {approx = true} : vector<8x128xf32> -> vector<8x128xf32>
    %c0_133 = arith.constant 0 : index
    %c0_134 = arith.constant 0 : index
    %265 = vector.load %arg22[%c0_133, %c0_134] : memref<8x128xf32, #tpu.memory_space<vmem>>, vector<8x128xf32>
    tpu.vector_store %arg22[%c0_133, %c0_134], %264 {strides = array<i32>} : memref<8x128xf32, #tpu.memory_space<vmem>>, vector<8x128xf32>,
    return
  }
}

</mosaic_0001>

<llo_original>
// kernel: forward_i2s.1
$region0: #{forward_i2s.1}
  #allocation0 [shape = 'u32[]', space=smem, size = 0x4, offset = 0x4, fixed_abs, tag = 'smem constant byte address 0x4 - core index']
  #allocation1 [shape = 'u32[144,128]{1,0:T(1,128)}', space=vmem, size = 0x12000, scoped, tag = 'internal scratch']
  %s0 = inlined_call_operand.vmem [shape: f32[1152,36], index: 0, kind: input, shape index: {}]
  %s1 = inlined_call_operand.vmem [shape: f32[1152,1], index: 1, kind: input, shape index: {}]
  %s2 = inlined_call_operand.hbm [shape: f32[36,16], index: 2, kind: input, shape index: {}]
  %s3 = inlined_call_operand.vmem [shape: f32[1,16], index: 3, kind: input, shape index: {}]
  %s4 = inlined_call_operand.hbm [shape: f32[144,32], index: 4, kind: input, shape index: {}]
  %s5 = inlined_call_operand.vmem [shape: f32[1,32], index: 5, kind: input, shape index: {}]
  %s6 = inlined_call_operand.hbm [shape: f32[512,128], index: 6, kind: input, shape index: {}]
  %s7 = inlined_call_operand.vmem [shape: f32[1,128], index: 7, kind: input, shape index: {}]
  %s8 = inlined_call_operand.vmem [shape: f32[128,128], index: 8, kind: input, shape index: {}]
  %s9 = inlined_call_operand.vmem [shape: f32[1,128], index: 9, kind: input, shape index: {}]
  %s10 = inlined_call_operand.vmem [shape: f32[128,256], index: 10, kind: input, shape index: {}]
  %s11 = inlined_call_operand.vmem [shape: f32[1,256], index: 11, kind: input, shape index: {}]
  %s12 = inlined_call_operand.hbm [shape: f32[128,128], index: 12, kind: input, shape index: {}]
  %s13 = inlined_call_operand.vmem [shape: f32[1,128], index: 13, kind: input, shape index: {}]
  %s14 = inlined_call_operand.hbm [shape: f32[128,256], index: 14, kind: input, shape index: {}]
  %s15 = inlined_call_operand.hbm [shape: f32[128,256], index: 15, kind: input, shape index: {}]
  %s16 = inlined_call_operand.hbm [shape: f32[128,256], index: 16, kind: input, shape index: {}]
  %s17 = inlined_call_operand.vmem [shape: f32[1,256], index: 17, kind: input, shape index: {}]
  %s18 = inlined_call_operand.hbm [shape: f32[256,128], index: 18, kind: input, shape index: {}]
  %s19 = inlined_call_operand.vmem [shape: f32[1,128], index: 19, kind: input, shape index: {}]
  %s20 = inlined_call_operand.vmem [shape: f32[8,128], index: 20, kind: input, shape index: {}]
  %s21 = inlined_call_operand.vmem [shape: s32[8,1], index: 21, kind: input, shape index: {}]
  %s22 = inlined_call_operand.vmem [shape: f32[8,128], index: 22, kind: output, shape index: {0}]
  %s23 = inlined_call_operand.vmem [shape: s32[8,1], index: 23, kind: output, shape index: {1}]
  %s24 = inlined_call_operand.hbm [shape: f32[8,128], index: 24, kind: output, shape index: {2}]
  %25 = xla_tuple %s22, %s23, %s24
  %s26 = sld [smem:[#allocation0]]
  $region146: #{forward_i2s.1} parent=0
    _
  %s28 = ssub.s32 1, %s26
  %s29 = scalar_select 0, %s28, %s26
  $region1: #{forward_i2s.1} parent=0
    #allocation2 [shape = 'u8[20480]{0}', space=vmem, size = 0x5000, scoped, tag = 'input window, operand 2, single buffered']
    #allocation3 [shape = 's32[1]{0}', space=sflag, size = 0x4, scoped, tag = 'scoped memory for forward_i2s.1']
    #allocation4 [shape = 's32[1]{0}', space=sflag, size = 0x4, scoped, tag = 'scoped memory for forward_i2s.1']
    #allocation5 [shape = 'u8[73728]{0}', space=vmem, size = 0x12000, scoped, tag = 'input window, operand 4, single buffered']
    #allocation6 [shape = 's32[1]{0}', space=sflag, size = 0x4, scoped, tag = 'scoped memory for forward_i2s.1']
    #allocation7 [shape = 'u8[262144]{0}', space=vmem, size = 0x40000, scoped, tag = 'input window, operand 6, single buffered']
    #allocation8 [shape = 'u8[65536]{0}', space=vmem, size = 0x10000, scoped, tag = 'input window, operand 12, single buffered']
    #allocation9 [shape = 's32[1]{0}', space=sflag, size = 0x4, scoped, tag = 'scoped memory for forward_i2s.1']
    #allocation10 [shape = 'u8[131072]{0}', space=vmem, size = 0x20000, scoped, tag = 'input window, operand 14, single buffered']
    #allocation11 [shape = 'u8[131072]{0}', space=vmem, size = 0x20000, scoped, tag = 'input window, operand 15, single buffered']
    #allocation12 [shape = 's32[1]{0}', space=sflag, size = 0x4, scoped, tag = 'scoped memory for forward_i2s.1']
    #allocation13 [shape = 'u8[131072]{0}', space=vmem, size = 0x20000, scoped, tag = 'input window, operand 16, single buffered']
    #allocation14 [shape = 'u8[131072]{0}', space=vmem, size = 0x20000, scoped, tag = 'input window, operand 18, single buffered']
    #allocation15 [shape = 's32[1]{0}', space=sflag, size = 0x4, scoped, tag = 'scoped memory for forward_i2s.1']
    #allocation16 [shape = 'u8[4096]{0}', space=vmem, size = 0x1000, scoped, tag = 'output window, operand 2, single buffered']
    %30 = vsyncpa [#allocation3], 0
    %31 = vsyncpa [#allocation6], 0
    %32 = vsyncpa [#allocation9], 0
    %33 = vsyncpa [#allocation12], 0
    %34 = vsyncpa [#allocation15], 0
    %35 = vsyncpa [#allocation4], 0
    // Predicated region
    $region2: #{forward_i2s.1} parent=1 // pred_check
      _
    $region3: #{forward_i2s.1} parent=1 // pred_check_branch
      %37 = sbr.rel (0) target = $region5
    $region4: #{forward_i2s.1} parent=1 // pred_region
      _
    $region5: #{forward_i2s.1} parent=1 // pred_fallthru
      _
    // Predicated region
    $region6: #{forward_i2s.1} parent=1 // pred_check
      _
    $region7: #{forward_i2s.1} parent=1 // pred_check_branch
      %39 = sbr.rel (0) target = $region9
    $region8: #{forward_i2s.1} parent=1 // pred_region
      _
    $region9: #{forward_i2s.1} parent=1 // pred_fallthru
      _
    // Predicated region
    $region10: #{forward_i2s.1} parent=1 // pred_check
      _
    $region11: #{forward_i2s.1} parent=1 // pred_check_branch
      %41 = sbr.rel (0) target = $region13
    $region12: #{forward_i2s.1} parent=1 // pred_region
      %s43 = ssub.s32 640, 640
      %44 = vsyncadd [#allocation3], %s43
      %s45 = sshll.u32 [#allocation2], 4
      %s46 = int_to_ptr.vmem [resolvable:$true] %s45
      %51 = dma.hbm_to_vmem [thread:$0]  %s2, 640, %s46, [#allocation3], 128, 128, 8
    $region13: #{forward_i2s.1} parent=1 // pred_fallthru
      _
    // Predicated region
    $region14: #{forward_i2s.1} parent=1 // pred_check
      _
    $region15: #{forward_i2s.1} parent=1 // pred_check_branch
      %53 = sbr.rel (0) target = $region17
    $region16: #{forward_i2s.1} parent=1 // pred_region
      _
    $region17: #{forward_i2s.1} parent=1 // pred_fallthru
      _
    // Predicated region
    $region18: #{forward_i2s.1} parent=1 // pred_check
      _
    $region19: #{forward_i2s.1} parent=1 // pred_check_branch
      %55 = sbr.rel (0) target = $region21
    $region20: #{forward_i2s.1} parent=1 // pred_region
      %s57 = ssub.s32 2304, 2304
      %58 = vsyncadd [#allocation6], %s57
      %s59 = sshll.u32 [#allocation5], 4
      %s60 = int_to_ptr.vmem [resolvable:$true] %s59
      %65 = dma.hbm_to_vmem [thread:$0]  %s4, 2304, %s60, [#allocation6], 128, 128, 8
    $region21: #{forward_i2s.1} parent=1 // pred_fallthru
      _
    // Predicated region
    $region22: #{forward_i2s.1} parent=1 // pred_check
      _
    $region23: #{forward_i2s.1} parent=1 // pred_check_branch
      %67 = sbr.rel (0) target = $region25
    $region24: #{forward_i2s.1} parent=1 // pred_region
      _
    $region25: #{forward_i2s.1} parent=1 // pred_fallthru
      _
    // Predicated region
    $region26: #{forward_i2s.1} parent=1 // pred_check
      _
    $region27: #{forward_i2s.1} parent=1 // pred_check_branch
      %69 = sbr.rel (0) target = $region29
    $region28: #{forward_i2s.1} parent=1 // pred_region
      %s71 = ssub.s32 8192, 8192
      %72 = vsyncadd [#allocation6], %s71
      %s73 = sshll.u32 [#allocation7], 4
      %s74 = int_to_ptr.vmem [resolvable:$true] %s73
      %79 = dma.hbm_to_vmem [thread:$0]  %s6, 8192, %s74, [#allocation6], 128, 128, 8
    $region29: #{forward_i2s.1} parent=1 // pred_fallthru
      _
    // Predicated region
    $region30: #{forward_i2s.1} parent=1 // pred_check
      _
    $region31: #{forward_i2s.1} parent=1 // pred_check_branch
      %81 = sbr.rel (0) target = $region33
    $region32: #{forward_i2s.1} parent=1 // pred_region
      _
    $region33: #{forward_i2s.1} parent=1 // pred_fallthru
      _
    // Predicated region
    $region34: #{forward_i2s.1} parent=1 // pred_check
      _
    $region35: #{forward_i2s.1} parent=1 // pred_check_branch
      %83 = sbr.rel (0) target = $region37
    $region36: #{forward_i2s.1} parent=1 // pred_region
      _
    $region37: #{forward_i2s.1} parent=1 // pred_fallthru
      _
    // Predicated region
    $region38: #{forward_i2s.1} parent=1 // pred_check
      _
    $region39: #{forward_i2s.1} parent=1 // pred_check_branch
      %85 = sbr.rel (0) target = $region41
    $region40: #{forward_i2s.1} parent=1 // pred_region
      _
    $region41: #{forward_i2s.1} parent=1 // pred_fallthru
      _
    // Predicated region
    $region42: #{forward_i2s.1} parent=1 // pred_check
      _
    $region43: #{forward_i2s.1} parent=1 // pred_check_branch
      %87 = sbr.rel (0) target = $region45
    $region44: #{forward_i2s.1} parent=1 // pred_region
      _
    $region45: #{forward_i2s.1} parent=1 // pred_fallthru
      _
    // Predicated region
    $region46: #{forward_i2s.1} parent=1 // pred_check
      _
    $region47: #{forward_i2s.1} parent=1 // pred_check_branch
      %89 = sbr.rel (0) target = $region49
    $region48: #{forward_i2s.1} parent=1 // pred_region
      _
    $region49: #{forward_i2s.1} parent=1 // pred_fallthru
      _
    // Predicated region
    $region50: #{forward_i2s.1} parent=1 // pred_check
      _
    $region51: #{forward_i2s.1} parent=1 // pred_check_branch
      %91 = sbr.rel (0) target = $region53
    $region52: #{forward_i2s.1} parent=1 // pred_region
      %s93 = ssub.s32 2048, 2048
      %94 = vsyncadd [#allocation9], %s93
      %s95 = sshll.u32 [#allocation8], 4
      %s96 = int_to_ptr.vmem [resolvable:$true] %s95
      %101 = dma.hbm_to_vmem [thread:$0]  %s12, 2048, %s96, [#allocation9], 128, 128, 8
    $region53: #{forward_i2s.1} parent=1 // pred_fallthru
      _
    // Predicated region
    $region54: #{forward_i2s.1} parent=1 // pred_check
      _
    $region55: #{forward_i2s.1} parent=1 // pred_check_branch
      %103 = sbr.rel (0) target = $region57
    $region56: #{forward_i2s.1} parent=1 // pred_region
      _
    $region57: #{forward_i2s.1} parent=1 // pred_fallthru
      _
    // Predicated region
    $region58: #{forward_i2s.1} parent=1 // pred_check
      _
    $region59: #{forward_i2s.1} parent=1 // pred_check_branch
      %105 = sbr.rel (0) target = $region61
    $region60: #{forward_i2s.1} parent=1 // pred_region
      %s107 = ssub.s32 4096, 4096
      %108 = vsyncadd [#allocation9], %s107
      %s109 = sshll.u32 [#allocation10], 4
      %s110 = int_to_ptr.vmem [resolvable:$true] %s109
      %115 = dma.hbm_to_vmem [thread:$0]  %s14, 4096, %s110, [#allocation9], 256, 256, 16
    $region61: #{forward_i2s.1} parent=1 // pred_fallthru
      _
    // Predicated region
    $region62: #{forward_i2s.1} parent=1 // pred_check
      _
    $region63: #{forward_i2s.1} parent=1 // pred_check_branch
      %117 = sbr.rel (0) target = $region65
    $region64: #{forward_i2s.1} parent=1 // pred_region
      %s119 = ssub.s32 4096, 4096
      %120 = vsyncadd [#allocation12], %s119
      %s121 = sshll.u32 [#allocation11], 4
      %s122 = int_to_ptr.vmem [resolvable:$true] %s121
      %127 = dma.hbm_to_vmem [thread:$0]  %s15, 4096, %s122, [#allocation12], 256, 256, 16
    $region65: #{forward_i2s.1} parent=1 // pred_fallthru
      _
    // Predicated region
    $region66: #{forward_i2s.1} parent=1 // pred_check
      _
    $region67: #{forward_i2s.1} parent=1 // pred_check_branch
      %129 = sbr.rel (0) target = $region69
    $region68: #{forward_i2s.1} parent=1 // pred_region
      %s131 = ssub.s32 4096, 4096
      %132 = vsyncadd [#allocation12], %s131
      %s133 = sshll.u32 [#allocation13], 4
      %s134 = int_to_ptr.vmem [resolvable:$true] %s133
      %139 = dma.hbm_to_vmem [thread:$0]  %s16, 4096, %s134, [#allocation12], 256, 256, 16
    $region69: #{forward_i2s.1} parent=1 // pred_fallthru
      _
    // Predicated region
    $region70: #{forward_i2s.1} parent=1 // pred_check
      _
    $region71: #{forward_i2s.1} parent=1 // pred_check_branch
      %141 = sbr.rel (0) target = $region73
    $region72: #{forward_i2s.1} parent=1 // pred_region
      _
    $region73: #{forward_i2s.1} parent=1 // pred_fallthru
      _
    // Predicated region
    $region74: #{forward_i2s.1} parent=1 // pred_check
      _
    $region75: #{forward_i2s.1} parent=1 // pred_check_branch
      %143 = sbr.rel (0) target = $region77
    $region76: #{forward_i2s.1} parent=1 // pred_region
      %s145 = ssub.s32 4096, 4096
      %146 = vsyncadd [#allocation15], %s145
      %s147 = sshll.u32 [#allocation14], 4
      %s148 = int_to_ptr.vmem [resolvable:$true] %s147
      %153 = dma.hbm_to_vmem [thread:$0]  %s18, 4096, %s148, [#allocation15], 128, 128, 8
    $region77: #{forward_i2s.1} parent=1 // pred_fallthru
      _
    // Predicated region
    $region78: #{forward_i2s.1} parent=1 // pred_check
      _
    $region79: #{forward_i2s.1} parent=1 // pred_check_branch
      %155 = sbr.rel (0) target = $region81
    $region80: #{forward_i2s.1} parent=1 // pred_region
      _
    $region81: #{forward_i2s.1} parent=1 // pred_fallthru
      _
    // Predicated region
    $region82: #{forward_i2s.1} parent=1 // pred_check
      _
    $region83: #{forward_i2s.1} parent=1 // pred_check_branch
      %157 = sbr.rel (0) target = $region85
    $region84: #{forward_i2s.1} parent=1 // pred_region
      _
    $region85: #{forward_i2s.1} parent=1 // pred_fallthru
      _
    // Predicated region
    $region86: #{forward_i2s.1} parent=1 // pred_check
      _
    $region87: #{forward_i2s.1} parent=1 // pred_check_branch
      %159 = sbr.rel (0) target = $region89
    $region88: #{forward_i2s.1} parent=1 // pred_region
      _
    $region89: #{forward_i2s.1} parent=1 // pred_fallthru
      _
    // Predicated region
    $region90: #{forward_i2s.1} parent=1 // pred_check
      _
    $region91: #{forward_i2s.1} parent=1 // pred_check_branch
      %161 = sbr.rel (0) target = $region93
    $region92: #{forward_i2s.1} parent=1 // pred_region
      %162 = dma.done [#allocation3], 640
    $region93: #{forward_i2s.1} parent=1 // pred_fallthru
      _
    // Predicated region
    $region94: #{forward_i2s.1} parent=1 // pred_check
      _
    $region95: #{forward_i2s.1} parent=1 // pred_check_branch
      %164 = sbr.rel (0) target = $region97
    $region96: #{forward_i2s.1} parent=1 // pred_region
      %165 = dma.done [#allocation6], 2304
    $region97: #{forward_i2s.1} parent=1 // pred_fallthru
      _
    // Predicated region
    $region98: #{forward_i2s.1} parent=1 // pred_check
      _
    $region99: #{forward_i2s.1} parent=1 // pred_check_branch
      %167 = sbr.rel (0) target = $region101
    $region100: #{forward_i2s.1} parent=1 // pred_region
      %168 = dma.done [#allocation6], 8192
    $region101: #{forward_i2s.1} parent=1 // pred_fallthru
      _
    // Predicated region
    $region102: #{forward_i2s.1} parent=1 // pred_check
      _
    $region103: #{forward_i2s.1} parent=1 // pred_check_branch
      %170 = sbr.rel (0) target = $region105
    $region104: #{forward_i2s.1} parent=1 // pred_region
      %171 = dma.done [#allocation9], 2048
    $region105: #{forward_i2s.1} parent=1 // pred_fallthru
      _
    // Predicated region
    $region106: #{forward_i2s.1} parent=1 // pred_check
      _
    $region107: #{forward_i2s.1} parent=1 // pred_check_branch
      %173 = sbr.rel (0) target = $region109
    $region108: #{forward_i2s.1} parent=1 // pred_region
      %174 = dma.done [#allocation9], 4096
    $region109: #{forward_i2s.1} parent=1 // pred_fallthru
      _
    // Predicated region
    $region110: #{forward_i2s.1} parent=1 // pred_check
      _
    $region111: #{forward_i2s.1} parent=1 // pred_check_branch
      %176 = sbr.rel (0) target = $region113
    $region112: #{forward_i2s.1} parent=1 // pred_region
      %177 = dma.done [#allocation12], 4096
    $region113: #{forward_i2s.1} parent=1 // pred_fallthru
      _
    // Predicated region
    $region114: #{forward_i2s.1} parent=1 // pred_check
      _
    $region115: #{forward_i2s.1} parent=1 // pred_check_branch
      %179 = sbr.rel (0) target = $region117
    $region116: #{forward_i2s.1} parent=1 // pred_region
      %180 = dma.done [#allocation12], 4096
    $region117: #{forward_i2s.1} parent=1 // pred_fallthru
      _
    // Predicated region
    $region118: #{forward_i2s.1} parent=1 // pred_check
      _
    $region119: #{forward_i2s.1} parent=1 // pred_check_branch
      %182 = sbr.rel (0) target = $region121
    $region120: #{forward_i2s.1} parent=1 // pred_region
      %183 = dma.done [#allocation15], 4096
    $region121: #{forward_i2s.1} parent=1 // pred_fallthru
      _
    %v184 = vld [vmem:[#allocation2] sm:$0xff]
    %v185 = vld [vmem:[#allocation2 + $0x8] sm:$0xff]
    %v186 = vld [vmem:[#allocation2 + $0x10] sm:$0xff]
    %v187 = vld [vmem:[#allocation2 + $0x18] sm:$0xff]
    %v188 = vld [vmem:[#allocation2 + $0x20] sm:$0xf]
    %v189 = vld [vmem:[%s3] sm:$0x1]
    %v190 = vld [vmem:[#allocation5] sm:$0xff]
    %v191 = vld [vmem:[#allocation5 + $0x8] sm:$0xff]
    %v192 = vld [vmem:[#allocation5 + $0x10] sm:$0xff]
    %v193 = vld [vmem:[#allocation5 + $0x18] sm:$0xff]
    %v194 = vld [vmem:[#allocation5 + $0x20] sm:$0xff]
    %v195 = vld [vmem:[#allocation5 + $0x28] sm:$0xff]
    %v196 = vld [vmem:[#allocation5 + $0x30] sm:$0xff]
    %v197 = vld [vmem:[#allocation5 + $0x38] sm:$0xff]
    %v198 = vld [vmem:[#allocation5 + $0x40] sm:$0xff]
    %v199 = vld [vmem:[#allocation5 + $0x48] sm:$0xff]
    %v200 = vld [vmem:[#allocation5 + $0x50] sm:$0xff]
    %v201 = vld [vmem:[#allocation5 + $0x58] sm:$0xff]
    %v202 = vld [vmem:[#allocation5 + $0x60] sm:$0xff]
    %v203 = vld [vmem:[#allocation5 + $0x68] sm:$0xff]
    %v204 = vld [vmem:[#allocation5 + $0x70] sm:$0xff]
    %v205 = vld [vmem:[#allocation5 + $0x78] sm:$0xff]
    %v206 = vld [vmem:[#allocation5 + $0x80] sm:$0xff]
    %v207 = vld [vmem:[#allocation5 + $0x88] sm:$0xff]
    %v208 = vld [vmem:[%s0] sm:$0xff]
    %v209 = vld [vmem:[%s0 + $0x8] sm:$0xff]
    %v210 = vld [vmem:[%s0 + $0x10] sm:$0xff]
    %v211 = vld [vmem:[%s0 + $0x18] sm:$0xff]
    %v212 = vld [vmem:[%s0 + $0x20] sm:$0xff]
    %v213 = vld [vmem:[%s0 + $0x28] sm:$0xff]
    %v214 = vld [vmem:[%s0 + $0x30] sm:$0xff]
    %v215 = vld [vmem:[%s0 + $0x38] sm:$0xff]
    %v216 = vld [vmem:[%s0 + $0x40] sm:$0xff]
    %v217 = vld [vmem:[%s0 + $0x48] sm:$0xff]
    %v218 = vld [vmem:[%s0 + $0x50] sm:$0xff]
    %v219 = vld [vmem:[%s0 + $0x58] sm:$0xff]
    %v220 = vld [vmem:[%s0 + $0x60] sm:$0xff]
    %v221 = vld [vmem:[%s0 + $0x68] sm:$0xff]
    %v222 = vld [vmem:[%s0 + $0x70] sm:$0xff]
    %v223 = vld [vmem:[%s0 + $0x78] sm:$0xff]
    %v224 = vld [vmem:[%s1] sm:$0xff]
    %v225 = vld [vmem:[%s1 + $0x8] sm:$0xff]
    %v226 = vld [vmem:[%s1 + $0x10] sm:$0xff]
    %v227 = vld [vmem:[%s1 + $0x18] sm:$0xff]
    %v228 = vld [vmem:[%s1 + $0x20] sm:$0xff]
    %v229 = vld [vmem:[%s1 + $0x28] sm:$0xff]
    %v230 = vld [vmem:[%s1 + $0x30] sm:$0xff]
    %v231 = vld [vmem:[%s1 + $0x38] sm:$0xff]
    %v232 = vld [vmem:[%s1 + $0x40] sm:$0xff]
    %v233 = vld [vmem:[%s1 + $0x48] sm:$0xff]
    %v234 = vld [vmem:[%s1 + $0x50] sm:$0xff]
    %v235 = vld [vmem:[%s1 + $0x58] sm:$0xff]
    %v236 = vld [vmem:[%s1 + $0x60] sm:$0xff]
    %v237 = vld [vmem:[%s1 + $0x68] sm:$0xff]
    %v238 = vld [vmem:[%s1 + $0x70] sm:$0xff]
    %v239 = vld [vmem:[%s1 + $0x78] sm:$0xff]
    %241 = vset.pattern.permute.xlu0 0
    %242 = vperm.xlu0 %241, %v224
    %v243 = vpop.permute.xlu0 %242
    %246 = vset.pattern.permute.xlu0 0
    %247 = vperm.xlu0 %246, %v225
    %v248 = vpop.permute.xlu0 %247
    %251 = vset.pattern.permute.xlu0 0
    %252 = vperm.xlu0 %251, %v226
    %v253 = vpop.permute.xlu0 %252
    %256 = vset.pattern.permute.xlu0 0
    %257 = vperm.xlu0 %256, %v227
    %v258 = vpop.permute.xlu0 %257
    %261 = vset.pattern.permute.xlu0 0
    %262 = vperm.xlu0 %261, %v228
    %v263 = vpop.permute.xlu0 %262
    %266 = vset.pattern.permute.xlu0 0
    %267 = vperm.xlu0 %266, %v229
    %v268 = vpop.permute.xlu0 %267
    %271 = vset.pattern.permute.xlu0 0
    %272 = vperm.xlu0 %271, %v230
    %v273 = vpop.permute.xlu0 %272
    %276 = vset.pattern.permute.xlu0 0
    %277 = vperm.xlu0 %276, %v231
    %v278 = vpop.permute.xlu0 %277
    %281 = vset.pattern.permute.xlu0 0
    %282 = vperm.xlu0 %281, %v232
    %v283 = vpop.permute.xlu0 %282
    %286 = vset.pattern.permute.xlu0 0
    %287 = vperm.xlu0 %286, %v233
    %v288 = vpop.permute.xlu0 %287
    %291 = vset.pattern.permute.xlu0 0
    %292 = vperm.xlu0 %291, %v234
    %v293 = vpop.permute.xlu0 %292
    %296 = vset.pattern.permute.xlu0 0
    %297 = vperm.xlu0 %296, %v235
    %v298 = vpop.permute.xlu0 %297
    %301 = vset.pattern.permute.xlu0 0
    %302 = vperm.xlu0 %301, %v236
    %v303 = vpop.permute.xlu0 %302
    %306 = vset.pattern.permute.xlu0 0
    %307 = vperm.xlu0 %306, %v237
    %v308 = vpop.permute.xlu0 %307
    %311 = vset.pattern.permute.xlu0 0
    %312 = vperm.xlu0 %311, %v238
    %v313 = vpop.permute.xlu0 %312
    %316 = vset.pattern.permute.xlu0 0
    %317 = vperm.xlu0 %316, %v239
    %v318 = vpop.permute.xlu0 %317
    %v321 = vlaneseq
    %v322 = vshrl.u32 %v321, 7
    %v323 = vsub.s32 0, %v322
    %v324 = vrot.slane %v189, %v323
    %v326 = vmul.f32 %v243, %v324
    %v327 = vmul.f32 %v248, %v324
    %v328 = vmul.f32 %v253, %v324
    %v329 = vmul.f32 %v258, %v324
    %v330 = vmul.f32 %v263, %v324
    %v331 = vmul.f32 %v268, %v324
    %v332 = vmul.f32 %v273, %v324
    %v333 = vmul.f32 %v278, %v324
    %v334 = vmul.f32 %v283, %v324
    %v335 = vmul.f32 %v288, %v324
    %v336 = vmul.f32 %v293, %v324
    %v337 = vmul.f32 %v298, %v324
    %v338 = vmul.f32 %v303, %v324
    %v339 = vmul.f32 %v308, %v324
    %v340 = vmul.f32 %v313, %v324
    %v341 = vmul.f32 %v318, %v324
    %vm342 = vcmask 293888
    %v344 = vsel %vm342, %v208, 0
    %v347 = vsel %vm342, %v209, 0
    %v350 = vsel %vm342, %v210, 0
    %v353 = vsel %vm342, %v211, 0
    %v356 = vsel %vm342, %v212, 0
    %v359 = vsel %vm342, %v213, 0
    %v362 = vsel %vm342, %v214, 0
    %v365 = vsel %vm342, %v215, 0
    %v368 = vsel %vm342, %v216, 0
    %v371 = vsel %vm342, %v217, 0
    %v374 = vsel %vm342, %v218, 0
    %v377 = vsel %vm342, %v219, 0
    %v380 = vsel %vm342, %v220, 0
    %v383 = vsel %vm342, %v221, 0
    %v386 = vsel %vm342, %v222, 0
    %v389 = vsel %vm342, %v223, 0
    %vm391 = vcmask 1043456
    %v393 = vsel %vm391, %v188, 0
    %395 = vmatprep.subr.mxu0 0.0
    %396 = vmatpush1.msra.mxu0 %v184
    %397 = vmatprep.subr.mxu0 0.0
    %398 = vmatpush1.msra.mxu0 %v185
    %399 = vmatprep.subr.mxu0 0.0
    %400 = vmatpush1.msra.mxu0 %v186
    %401 = vmatprep.subr.mxu0 0.0
    %402 = vmatpush1.msra.mxu0 %v187
    %403 = vmatprep.subr.mxu0 0.0
    %404 = vmatpush1.msra.mxu0 %v393
    %405 = vmatprep.subr.mxu0 0.0
    %406 = vmatpush1.msra.mxu0 0.0
    %407 = vmatprep.subr.mxu0 0.0
    %408 = vmatpush1.msra.mxu0 0.0
    %409 = vmatprep.subr.mxu0 0.0
    %410 = vmatpush1.msra.mxu0 0.0
    %411 = vmatprep.subr.mxu0 0.0
    %412 = vmatpush1.msra.mxu0 0.0
    %413 = vmatprep.subr.mxu0 0.0
    %414 = vmatpush1.msra.mxu0 0.0
    %415 = vmatprep.subr.mxu0 0.0
    %416 = vmatpush1.msra.mxu0 0.0
    %417 = vmatprep.subr.mxu0 0.0
    %418 = vmatpush1.msra.mxu0 0.0
    %419 = vmatprep.subr.mxu0 0.0
    %420 = vmatpush1.msra.mxu0 0.0
    %421 = vmatprep.subr.mxu0 0.0
    %422 = vmatpush1.msra.mxu0 0.0
    %423 = vmatprep.subr.mxu0 0.0
    %424 = vmatpush1.msra.mxu0 0.0
    %425 = vmatprep.subr.mxu0 0.0
    %426 = vmatpush1.msra.mxu0 0.0
    %427 = vmatprep.subr.mxu0 0.0
    %428 = vmatpush1.msra.mxu0 0.0
    %429 = vmatprep.subr.mxu0 0.0
    %430 = vmatpush1.msra.mxu0 0.0
    %431 = vmatprep.subr.mxu0 0.0
    %432 = vmatpush1.msra.mxu0 0.0
    %433 = vmatprep.subr.mxu0 0.0
    %434 = vmatpush1.msra.mxu0 0.0
    %435 = vmatprep.subr.mxu0 0.0
    %436 = vmatpush1.msra.mxu0 0.0
    %437 = vmatprep.subr.mxu0 0.0
    %438 = vmatpush1.msra.mxu0 0.0
    %439 = vmatprep.subr.mxu0 0.0
    %440 = vmatpush1.msra.mxu0 0.0
    %441 = vmatprep.subr.mxu0 0.0
    %442 = vmatpush1.msra.mxu0 0.0
    %443 = vmatprep.subr.mxu0 0.0
    %444 = vmatpush1.msra.mxu0 0.0
    %445 = vmatprep.subr.mxu0 0.0
    %446 = vmatpush1.msra.mxu0 0.0
    %447 = vmatprep.subr.mxu0 0.0
    %448 = vmatpush1.msra.mxu0 0.0
    %449 = vmatprep.subr.mxu0 0.0
    %450 = vmatpush1.msra.mxu0 0.0
    %451 = vmatprep.subr.mxu0 0.0
    %452 = vmatpush1.msra.mxu0 0.0
    %453 = vmatprep.subr.mxu0 0.0
    %454 = vmatpush1.msra.mxu0 0.0
    %455 = vmatprep.subr.mxu0 0.0
    %456 = vmatpush1.msra.mxu0 0.0
    %457 = vmatprep.subr.mxu0 0.0
    %458 = vmatpush1.msra.mxu0 0.0
    %459 = vmatprep.mubr.f32.mxu0 0.0
    %460 = vmatmul.mubr.f32.gmra.mrb[0].mxu0 %v344
    %v461 = vpop.f32.mrb[0].mxu0
    %v462 = vadd.f32 %v326, %v461
    %v463 = vpop.f32.mrb[0].mxu0
    %464 = vmatprep.mubr.f32.mxu0 0.0
    %465 = vmatmul.mubr.f32.gmra.mrb[0].mxu0 %v347
    %v466 = vpop.f32.mrb[0].mxu0
    %v467 = vadd.f32 %v327, %v466
    %v468 = vpop.f32.mrb[0].mxu0
    %469 = vmatprep.mubr.f32.mxu0 0.0
    %470 = vmatmul.mubr.f32.gmra.mrb[0].mxu0 %v350
    %v471 = vpop.f32.mrb[0].mxu0
    %v472 = vadd.f32 %v328, %v471
    %v473 = vpop.f32.mrb[0].mxu0
    %474 = vmatprep.mubr.f32.mxu0 0.0
    %475 = vmatmul.mubr.f32.gmra.mrb[0].mxu0 %v353
    %v476 = vpop.f32.mrb[0].mxu0
    %v477 = vadd.f32 %v329, %v476
    %v478 = vpop.f32.mrb[0].mxu0
    %479 = vmatprep.mubr.f32.mxu0 0.0
    %480 = vmatmul.mubr.f32.gmra.mrb[0].mxu0 %v356
    %v481 = vpop.f32.mrb[0].mxu0
    %v482 = vadd.f32 %v330, %v481
    %v483 = vpop.f32.mrb[0].mxu0
    %484 = vmatprep.mubr.f32.mxu0 0.0
    %485 = vmatmul.mubr.f32.gmra.mrb[0].mxu0 %v359
    %v486 = vpop.f32.mrb[0].mxu0
    %v487 = vadd.f32 %v331, %v486
    %v488 = vpop.f32.mrb[0].mxu0
    %489 = vmatprep.mubr.f32.mxu0 0.0
    %490 = vmatmul.mubr.f32.gmra.mrb[0].mxu0 %v362
    %v491 = vpop.f32.mrb[0].mxu0
    %v492 = vadd.f32 %v332, %v491
    %v493 = vpop.f32.mrb[0].mxu0
    %494 = vmatprep.mubr.f32.mxu0 0.0
    %495 = vmatmul.mubr.f32.gmra.mrb[0].mxu0 %v365
    %v496 = vpop.f32.mrb[0].mxu0
    %v497 = vadd.f32 %v333, %v496
    %v498 = vpop.f32.mrb[0].mxu0
    %499 = vmatprep.mubr.f32.mxu0 0.0
    %500 = vmatmul.mubr.f32.gmra.mrb[0].mxu0 %v368
    %v501 = vpop.f32.mrb[0].mxu0
    %v502 = vadd.f32 %v334, %v501
    %v503 = vpop.f32.mrb[0].mxu0
    %504 = vmatprep.mubr.f32.mxu0 0.0
    %505 = vmatmul.mubr.f32.gmra.mrb[0].mxu0 %v371
    %v506 = vpop.f32.mrb[0].mxu0
    %v507 = vadd.f32 %v335, %v506
    %v508 = vpop.f32.mrb[0].mxu0
    %509 = vmatprep.mubr.f32.mxu0 0.0
    %510 = vmatmul.mubr.f32.gmra.mrb[0].mxu0 %v374
    %v511 = vpop.f32.mrb[0].mxu0
    %v512 = vadd.f32 %v336, %v511
    %v513 = vpop.f32.mrb[0].mxu0
    %514 = vmatprep.mubr.f32.mxu0 0.0
    %515 = vmatmul.mubr.f32.gmra.mrb[0].mxu0 %v377
    %v516 = vpop.f32.mrb[0].mxu0
    %v517 = vadd.f32 %v337, %v516
    %v518 = vpop.f32.mrb[0].mxu0
    %519 = vmatprep.mubr.f32.mxu0 0.0
    %520 = vmatmul.mubr.f32.gmra.mrb[0].mxu0 %v380
    %v521 = vpop.f32.mrb[0].mxu0
    %v522 = vadd.f32 %v338, %v521
    %v523 = vpop.f32.mrb[0].mxu0
    %524 = vmatprep.mubr.f32.mxu0 0.0
    %525 = vmatmul.mubr.f32.gmra.mrb[0].mxu0 %v383
    %v526 = vpop.f32.mrb[0].mxu0
    %v527 = vadd.f32 %v339, %v526
    %v528 = vpop.f32.mrb[0].mxu0
    %529 = vmatprep.mubr.f32.mxu0 0.0
    %530 = vmatmul.mubr.f32.gmra.mrb[0].mxu0 %v386
    %v531 = vpop.f32.mrb[0].mxu0
    %v532 = vadd.f32 %v340, %v531
    %v533 = vpop.f32.mrb[0].mxu0
    %534 = vmatprep.mubr.f32.mxu0 0.0
    %535 = vmatmul.mubr.f32.gmra.mrb[0].mxu0 %v389
    %v536 = vpop.f32.mrb[0].mxu0
    %v537 = vadd.f32 %v341, %v536
    %v538 = vpop.f32.mrb[0].mxu0
    %539 = vdwg.mxu0
    %v540 = vmax.f32 %v462, 0.0
    %v541 = vmax.f32 %v467, 0.0
    %v542 = vmax.f32 %v472, 0.0
    %v543 = vmax.f32 %v477, 0.0
    %v544 = vmax.f32 %v482, 0.0
    %v545 = vmax.f32 %v487, 0.0
    %v546 = vmax.f32 %v492, 0.0
    %v547 = vmax.f32 %v497, 0.0
    %v548 = vmax.f32 %v502, 0.0
    %v549 = vmax.f32 %v507, 0.0
    %v550 = vmax.f32 %v512, 0.0
    %v551 = vmax.f32 %v517, 0.0
    %v552 = vmax.f32 %v522, 0.0
    %v553 = vmax.f32 %v527, 0.0
    %v554 = vmax.f32 %v532, 0.0
    %v555 = vmax.f32 %v537, 0.0
    %v556 = vld [vmem:[%s0 + $0x80] sm:$0xff]
    %v557 = vld [vmem:[%s0 + $0x88] sm:$0xff]
    %v558 = vld [vmem:[%s0 + $0x90] sm:$0xff]
    %v559 = vld [vmem:[%s0 + $0x98] sm:$0xff]
    %v560 = vld [vmem:[%s0 + $0xa0] sm:$0xff]
    %v561 = vld [vmem:[%s0 + $0xa8] sm:$0xff]
    %v562 = vld [vmem:[%s0 + $0xb0] sm:$0xff]
    %v563 = vld [vmem:[%s0 + $0xb8] sm:$0xff]
    %v564 = vld [vmem:[%s0 + $0xc0] sm:$0xff]
    %v565 = vld [vmem:[%s0 + $0xc8] sm:$0xff]
    %v566 = vld [vmem:[%s0 + $0xd0] sm:$0xff]
    %v567 = vld [vmem:[%s0 + $0xd8] sm:$0xff]
    %v568 = vld [vmem:[%s0 + $0xe0] sm:$0xff]
    %v569 = vld [vmem:[%s0 + $0xe8] sm:$0xff]
    %v570 = vld [vmem:[%s0 + $0xf0] sm:$0xff]
    %v571 = vld [vmem:[%s0 + $0xf8] sm:$0xff]
    %v572 = vld [vmem:[%s1 + $0x80] sm:$0xff]
    %v573 = vld [vmem:[%s1 + $0x88] sm:$0xff]
    %v574 = vld [vmem:[%s1 + $0x90] sm:$0xff]
    %v575 = vld [vmem:[%s1 + $0x98] sm:$0xff]
    %v576 = vld [vmem:[%s1 + $0xa0] sm:$0xff]
    %v577 = vld [vmem:[%s1 + $0xa8] sm:$0xff]
    %v578 = vld [vmem:[%s1 + $0xb0] sm:$0xff]
    %v579 = vld [vmem:[%s1 + $0xb8] sm:$0xff]
    %v580 = vld [vmem:[%s1 + $0xc0] sm:$0xff]
    %v581 = vld [vmem:[%s1 + $0xc8] sm:$0xff]
    %v582 = vld [vmem:[%s1 + $0xd0] sm:$0xff]
    %v583 = vld [vmem:[%s1 + $0xd8] sm:$0xff]
    %v584 = vld [vmem:[%s1 + $0xe0] sm:$0xff]
    %v585 = vld [vmem:[%s1 + $0xe8] sm:$0xff]
    %v586 = vld [vmem:[%s1 + $0xf0] sm:$0xff]
    %v587 = vld [vmem:[%s1 + $0xf8] sm:$0xff]
    %589 = vset.pattern.permute.xlu0 0
    %590 = vperm.xlu0 %589, %v572
    %v591 = vpop.permute.xlu0 %590
    %594 = vset.pattern.permute.xlu0 0
    %595 = vperm.xlu0 %594, %v573
    %v596 = vpop.permute.xlu0 %595
    %599 = vset.pattern.permute.xlu0 0
    %600 = vperm.xlu0 %599, %v574
    %v601 = vpop.permute.xlu0 %600
    %604 = vset.pattern.permute.xlu0 0
    %605 = vperm.xlu0 %604, %v575
    %v606 = vpop.permute.xlu0 %605
    %609 = vset.pattern.permute.xlu0 0
    %610 = vperm.xlu0 %609, %v576
    %v611 = vpop.permute.xlu0 %610
    %614 = vset.pattern.permute.xlu0 0
    %615 = vperm.xlu0 %614, %v577
    %v616 = vpop.permute.xlu0 %615
    %619 = vset.pattern.permute.xlu0 0
    %620 = vperm.xlu0 %619, %v578
    %v621 = vpop.permute.xlu0 %620
    %624 = vset.pattern.permute.xlu0 0
    %625 = vperm.xlu0 %624, %v579
    %v626 = vpop.permute.xlu0 %625
    %629 = vset.pattern.permute.xlu0 0
    %630 = vperm.xlu0 %629, %v580
    %v631 = vpop.permute.xlu0 %630
    %634 = vset.pattern.permute.xlu0 0
    %635 = vperm.xlu0 %634, %v581
    %v636 = vpop.permute.xlu0 %635
    %639 = vset.pattern.permute.xlu0 0
    %640 = vperm.xlu0 %639, %v582
    %v641 = vpop.permute.xlu0 %640
    %644 = vset.pattern.permute.xlu0 0
    %645 = vperm.xlu0 %644, %v583
    %v646 = vpop.permute.xlu0 %645
    %649 = vset.pattern.permute.xlu0 0
    %650 = vperm.xlu0 %649, %v584
    %v651 = vpop.permute.xlu0 %650
    %654 = vset.pattern.permute.xlu0 0
    %655 = vperm.xlu0 %654, %v585
    %v656 = vpop.permute.xlu0 %655
    %659 = vset.pattern.permute.xlu0 0
    %660 = vperm.xlu0 %659, %v586
    %v661 = vpop.permute.xlu0 %660
    %664 = vset.pattern.permute.xlu0 0
    %665 = vperm.xlu0 %664, %v587
    %v666 = vpop.permute.xlu0 %665
    %v668 = vmul.f32 %v591, %v324
    %v669 = vmul.f32 %v596, %v324
    %v670 = vmul.f32 %v601, %v324
    %v671 = vmul.f32 %v606, %v324
    %v672 = vmul.f32 %v611, %v324
    %v673 = vmul.f32 %v616, %v324
    %v674 = vmul.f32 %v621, %v324
    %v675 = vmul.f32 %v626, %v324
    %v676 = vmul.f32 %v631, %v324
    %v677 = vmul.f32 %v636, %v324
    %v678 = vmul.f32 %v641, %v324
    %v679 = vmul.f32 %v646, %v324
    %v680 = vmul.f32 %v651, %v324
    %v681 = vmul.f32 %v656, %v324
    %v682 = vmul.f32 %v661, %v324
    %v683 = vmul.f32 %v666, %v324
    %v685 = vsel %vm342, %v556, 0
    %v688 = vsel %vm342, %v557, 0
    %v691 = vsel %vm342, %v558, 0
    %v694 = vsel %vm342, %v559, 0
    %v697 = vsel %vm342, %v560, 0
    %v700 = vsel %vm342, %v561, 0
    %v703 = vsel %vm342, %v562, 0
    %v706 = vsel %vm342, %v563, 0
    %v709 = vsel %vm342, %v564, 0
    %v712 = vsel %vm342, %v565, 0
    %v715 = vsel %vm342, %v566, 0
    %v718 = vsel %vm342, %v567, 0
    %v721 = vsel %vm342, %v568, 0
    %v724 = vsel %vm342, %v569, 0
    %v727 = vsel %vm342, %v570, 0
    %v730 = vsel %vm342, %v571, 0
    %732 = vmatprep.subr.mxu0 0.0
    %733 = vmatpush1.msra.mxu0 %v184
    %734 = vmatprep.subr.mxu0 0.0
    %735 = vmatpush1.msra.mxu0 %v185
    %736 = vmatprep.subr.mxu0 0.0
    %737 = vmatpush1.msra.mxu0 %v186
    %738 = vmatprep.subr.mxu0 0.0
    %739 = vmatpush1.msra.mxu0 %v187
    %740 = vmatprep.subr.mxu0 0.0
    %741 = vmatpush1.msra.mxu0 %v393
    %742 = vmatprep.subr.mxu0 0.0
    %743 = vmatpush1.msra.mxu0 0.0
    %744 = vmatprep.subr.mxu0 0.0
    %745 = vmatpush1.msra.mxu0 0.0
    %746 = vmatprep.subr.mxu0 0.0
    %747 = vmatpush1.msra.mxu0 0.0
    %748 = vmatprep.subr.mxu0 0.0
    %749 = vmatpush1.msra.mxu0 0.0
    %750 = vmatprep.subr.mxu0 0.0
    %751 = vmatpush1.msra.mxu0 0.0
    %752 = vmatprep.subr.mxu0 0.0
    %753 = vmatpush1.msra.mxu0 0.0
    %754 = vmatprep.subr.mxu0 0.0
    %755 = vmatpush1.msra.mxu0 0.0
    %756 = vmatprep.subr.mxu0 0.0
    %757 = vmatpush1.msra.mxu0 0.0
    %758 = vmatprep.subr.mxu0 0.0
    %759 = vmatpush1.msra.mxu0 0.0
    %760 = vmatprep.subr.mxu0 0.0
    %761 = vmatpush1.msra.mxu0 0.0
    %762 = vmatprep.subr.mxu0 0.0
    %763 = vmatpush1.msra.mxu0 0.0
    %764 = vmatprep.subr.mxu0 0.0
    %765 = vmatpush1.msra.mxu0 0.0
    %766 = vmatprep.subr.mxu0 0.0
    %767 = vmatpush1.msra.mxu0 0.0
    %768 = vmatprep.subr.mxu0 0.0
    %769 = vmatpush1.msra.mxu0 0.0
    %770 = vmatprep.subr.mxu0 0.0
    %771 = vmatpush1.msra.mxu0 0.0
    %772 = vmatprep.subr.mxu0 0.0
    %773 = vmatpush1.msra.mxu0 0.0
    %774 = vmatprep.subr.mxu0 0.0
    %775 = vmatpush1.msra.mxu0 0.0
    %776 = vmatprep.subr.mxu0 0.0
    %777 = vmatpush1.msra.mxu0 0.0
    %778 = vmatprep.subr.mxu0 0.0
    %779 = vmatpush1.msra.mxu0 0.0
    %780 = vmatprep.subr.mxu0 0.0
    %781 = vmatpush1.msra.mxu0 0.0
    %782 = vmatprep.subr.mxu0 0.0
    %783 = vmatpush1.msra.mxu0 0.0
    %784 = vmatprep.subr.mxu0 0.0
    %785 = vmatpush1.msra.mxu0 0.0
    %786 = vmatprep.subr.mxu0 0.0
    %787 = vmatpush1.msra.mxu0 0.0
    %788 = vmatprep.subr.mxu0 0.0
    %789 = vmatpush1.msra.mxu0 0.0
    %790 = vmatprep.subr.mxu0 0.0
    %791 = vmatpush1.msra.mxu0 0.0
    %792 = vmatprep.subr.mxu0 0.0
    %793 = vmatpush1.msra.mxu0 0.0
    %794 = vmatprep.subr.mxu0 0.0
    %795 = vmatpush1.msra.mxu0 0.0
    %796 = vmatprep.mubr.f32.mxu0 0.0
    %797 = vmatmul.mubr.f32.gmra.mrb[0].mxu0 %v685
    %v798 = vpop.f32.mrb[0].mxu0
    %v799 = vadd.f32 %v668, %v798
    %v800 = vpop.f32.mrb[0].mxu0
    %801 = vmatprep.mubr.f32.mxu0 0.0
    %802 = vmatmul.mubr.f32.gmra.mrb[0].mxu0 %v688
    %v803 = vpop.f32.mrb[0].mxu0
    %v804 = vadd.f32 %v669, %v803
    %v805 = vpop.f32.mrb[0].mxu0
    %806 = vmatprep.mubr.f32.mxu0 0.0
    %807 = vmatmul.mubr.f32.gmra.mrb[0].mxu0 %v691
    %v808 = vpop.f32.mrb[0].mxu0
    %v809 = vadd.f32 %v670, %v808
    %v810 = vpop.f32.mrb[0].mxu0
    %811 = vmatprep.mubr.f32.mxu0 0.0
    %812 = vmatmul.mubr.f32.gmra.mrb[0].mxu0 %v694
    %v813 = vpop.f32.mrb[0].mxu0
    %v814 = vadd.f32 %v671, %v813
    %v815 = vpop.f32.mrb[0].mxu0
    %816 = vmatprep.mubr.f32.mxu0 0.0
    %817 = vmatmul.mubr.f32.gmra.mrb[0].mxu0 %v697
    %v818 = vpop.f32.mrb[0].mxu0
    %v819 = vadd.f32 %v672, %v818
    %v820 = vpop.f32.mrb[0].mxu0
    %821 = vmatprep.mubr.f32.mxu0 0.0
    %822 = vmatmul.mubr.f32.gmra.mrb[0].mxu0 %v700
    %v823 = vpop.f32.mrb[0].mxu0
    %v824 = vadd.f32 %v673, %v823
    %v825 = vpop.f32.mrb[0].mxu0
    %826 = vmatprep.mubr.f32.mxu0 0.0
    %827 = vmatmul.mubr.f32.gmra.mrb[0].mxu0 %v703
    %v828 = vpop.f32.mrb[0].mxu0
    %v829 = vadd.f32 %v674, %v828
    %v830 = vpop.f32.mrb[0].mxu0
    %831 = vmatprep.mubr.f32.mxu0 0.0
    %832 = vmatmul.mubr.f32.gmra.mrb[0].mxu0 %v706
    %v833 = vpop.f32.mrb[0].mxu0
    %v834 = vadd.f32 %v675, %v833
    %v835 = vpop.f32.mrb[0].mxu0
    %836 = vmatprep.mubr.f32.mxu0 0.0
    %837 = vmatmul.mubr.f32.gmra.mrb[0].mxu0 %v709
    %v838 = vpop.f32.mrb[0].mxu0
    %v839 = vadd.f32 %v676, %v838
    %v840 = vpop.f32.mrb[0].mxu0
    %841 = vmatprep.mubr.f32.mxu0 0.0
    %842 = vmatmul.mubr.f32.gmra.mrb[0].mxu0 %v712
    %v843 = vpop.f32.mrb[0].mxu0
    %v844 = vadd.f32 %v677, %v843
    %v845 = vpop.f32.mrb[0].mxu0
    %846 = vmatprep.mubr.f32.mxu0 0.0
    %847 = vmatmul.mubr.f32.gmra.mrb[0].mxu0 %v715
    %v848 = vpop.f32.mrb[0].mxu0
    %v849 = vadd.f32 %v678, %v848
    %v850 = vpop.f32.mrb[0].mxu0
    %851 = vmatprep.mubr.f32.mxu0 0.0
    %852 = vmatmul.mubr.f32.gmra.mrb[0].mxu0 %v718
    %v853 = vpop.f32.mrb[0].mxu0
    %v854 = vadd.f32 %v679, %v853
    %v855 = vpop.f32.mrb[0].mxu0
    %856 = vmatprep.mubr.f32.mxu0 0.0
    %857 = vmatmul.mubr.f32.gmra.mrb[0].mxu0 %v721
    %v858 = vpop.f32.mrb[0].mxu0
    %v859 = vadd.f32 %v680, %v858
    %v860 = vpop.f32.mrb[0].mxu0
    %861 = vmatprep.mubr.f32.mxu0 0.0
    %862 = vmatmul.mubr.f32.gmra.mrb[0].mxu0 %v724
    %v863 = vpop.f32.mrb[0].mxu0
    %v864 = vadd.f32 %v681, %v863
    %v865 = vpop.f32.mrb[0].mxu0
    %866 = vmatprep.mubr.f32.mxu0 0.0
    %867 = vmatmul.mubr.f32.gmra.mrb[0].mxu0 %v727
    %v868 = vpop.f32.mrb[0].mxu0
    %v869 = vadd.f32 %v682, %v868
    %v870 = vpop.f32.mrb[0].mxu0
    %871 = vmatprep.mubr.f32.mxu0 0.0
    %872 = vmatmul.mubr.f32.gmra.mrb[0].mxu0 %v730
    %v873 = vpop.f32.mrb[0].mxu0
    %v874 = vadd.f32 %v683, %v873
    %v875 = vpop.f32.mrb[0].mxu0
    %876 = vdwg.mxu0
    %v877 = vmax.f32 %v799, 0.0
    %v878 = vmax.f32 %v804, 0.0
    %v879 = vmax.f32 %v809, 0.0
    %v880 = vmax.f32 %v814, 0.0
    %v881 = vmax.f32 %v819, 0.0
    %v882 = vmax.f32 %v824, 0.0
    %v883 = vmax.f32 %v829, 0.0
    %v884 = vmax.f32 %v834, 0.0
    %v885 = vmax.f32 %v839, 0.0
    %v886 = vmax.f32 %v844, 0.0
    %v887 = vmax.f32 %v849, 0.0
    %v888 = vmax.f32 %v854, 0.0
    %v889 = vmax.f32 %v859, 0.0
    %v890 = vmax.f32 %v864, 0.0
    %v891 = vmax.f32 %v869, 0.0
    %v892 = vmax.f32 %v874, 0.0
    %vm893 = vcmask 130048
    %v895 = vsel %vm893, %v877, 0
    %v898 = vsel %vm893, %v878, 0
    %v901 = vsel %vm893, %v879, 0
    %v904 = vsel %vm893, %v880, 0
    %v907 = vsel %vm893, %v881, 0
    %v910 = vsel %vm893, %v882, 0
    %v913 = vsel %vm893, %v883, 0
    %v916 = vsel %vm893, %v884, 0
    %v919 = vsel %vm893, %v885, 0
    %v922 = vsel %vm893, %v886, 0
    %v925 = vsel %vm893, %v887, 0
    %v928 = vsel %vm893, %v888, 0
    %v931 = vsel %vm893, %v889, 0
    %v934 = vsel %vm893, %v890, 0
    %v937 = vsel %vm893, %v891, 0
    %v940 = vsel %vm893, %v892, 0
    %942 = vmatprep.subr.mxu0 0.0
    %943 = vmatpush1.msra.mxu0 %v192
    %944 = vmatprep.subr.mxu0 0.0
    %945 = vmatpush1.msra.mxu0 %v193
    %946 = vmatprep.subr.mxu0 0.0
    %947 = vmatpush1.msra.mxu0 0.0
    %948 = vmatprep.subr.mxu0 0.0
    %949 = vmatpush1.msra.mxu0 0.0
    %950 = vmatprep.subr.mxu0 0.0
    %951 = vmatpush1.msra.mxu0 0.0
    %952 = vmatprep.subr.mxu0 0.0
    %953 = vmatpush1.msra.mxu0 0.0
    %954 = vmatprep.subr.mxu0 0.0
    %955 = vmatpush1.msra.mxu0 0.0
    %956 = vmatprep.subr.mxu0 0.0
    %957 = vmatpush1.msra.mxu0 0.0
    %958 = vmatprep.subr.mxu0 0.0
    %959 = vmatpush1.msra.mxu0 0.0
    %960 = vmatprep.subr.mxu0 0.0
    %961 = vmatpush1.msra.mxu0 0.0
    %962 = vmatprep.subr.mxu0 0.0
    %963 = vmatpush1.msra.mxu0 0.0
    %964 = vmatprep.subr.mxu0 0.0
    %965 = vmatpush1.msra.mxu0 0.0
    %966 = vmatprep.subr.mxu0 0.0
    %967 = vmatpush1.msra.mxu0 0.0
    %968 = vmatprep.subr.mxu0 0.0
    %969 = vmatpush1.msra.mxu0 0.0
    %970 = vmatprep.subr.mxu0 0.0
    %971 = vmatpush1.msra.mxu0 0.0
    %972 = vmatprep.subr.mxu0 0.0
    %973 = vmatpush1.msra.mxu0 0.0
    %974 = vmatprep.subr.mxu0 0.0
    %975 = vmatpush1.msra.mxu0 0.0
    %976 = vmatprep.subr.mxu0 0.0
    %977 = vmatpush1.msra.mxu0 0.0
    %978 = vmatprep.subr.mxu0 0.0
    %979 = vmatpush1.msra.mxu0 0.0
    %980 = vmatprep.subr.mxu0 0.0
    %981 = vmatpush1.msra.mxu0 0.0
    %982 = vmatprep.subr.mxu0 0.0
    %983 = vmatpush1.msra.mxu0 0.0
    %984 = vmatprep.subr.mxu0 0.0
    %985 = vmatpush1.msra.mxu0 0.0
    %986 = vmatprep.subr.mxu0 0.0
    %987 = vmatpush1.msra.mxu0 0.0
    %988 = vmatprep.subr.mxu0 0.0
    %989 = vmatpush1.msra.mxu0 0.0
    %990 = vmatprep.subr.mxu0 0.0
    %991 = vmatpush1.msra.mxu0 0.0
    %992 = vmatprep.subr.mxu0 0.0
    %993 = vmatpush1.msra.mxu0 0.0
    %994 = vmatprep.subr.mxu0 0.0
    %995 = vmatpush1.msra.mxu0 0.0
    %996 = vmatprep.subr.mxu0 0.0
    %997 = vmatpush1.msra.mxu0 0.0
    %998 = vmatprep.subr.mxu0 0.0
    %999 = vmatpush1.msra.mxu0 0.0
    %1000 = vmatprep.subr.mxu0 0.0
    %1001 = vmatpush1.msra.mxu0 0.0
    %1002 = vmatprep.subr.mxu0 0.0
    %1003 = vmatpush1.msra.mxu0 0.0
    %1004 = vmatprep.subr.mxu0 0.0
    %1005 = vmatpush1.msra.mxu0 0.0
    %1006 = vmatprep.mubr.f32.mxu0 0.0
    %1007 = vmatmul.mubr.f32.gmra.mrb[0].mxu0 %v895
    %v1008 = vpop.f32.mrb[0].mxu0
    %v1009 = vadd.f32 0.0, %v1008
    %v1010 = vpop.f32.mrb[0].mxu0
    %1011 = vmatprep.mubr.f32.mxu0 0.0
    %1012 = vmatmul.mubr.f32.gmra.mrb[0].mxu0 %v898
    %v1013 = vpop.f32.mrb[0].mxu0
    %v1014 = vadd.f32 0.0, %v1013
    %v1015 = vpop.f32.mrb[0].mxu0
    %1016 = vmatprep.mubr.f32.mxu0 0.0
    %1017 = vmatmul.mubr.f32.gmra.mrb[0].mxu0 %v901
    %v1018 = vpop.f32.mrb[0].mxu0
    %v1019 = vadd.f32 0.0, %v1018
    %v1020 = vpop.f32.mrb[0].mxu0
    %1021 = vmatprep.mubr.f32.mxu0 0.0
    %1022 = vmatmul.mubr.f32.gmra.mrb[0].mxu0 %v904
    %v1023 = vpop.f32.mrb[0].mxu0
    %v1024 = vadd.f32 0.0, %v1023
    %v1025 = vpop.f32.mrb[0].mxu0
    %1026 = vmatprep.mubr.f32.mxu0 0.0
    %1027 = vmatmul.mubr.f32.gmra.mrb[0].mxu0 %v907
    %v1028 = vpop.f32.mrb[0].mxu0
    %v1029 = vadd.f32 0.0, %v1028
    %v1030 = vpop.f32.mrb[0].mxu0
    %1031 = vmatprep.mubr.f32.mxu0 0.0
    %1032 = vmatmul.mubr.f32.gmra.mrb[0].mxu0 %v910
    %v1033 = vpop.f32.mrb[0].mxu0
    %v1034 = vadd.f32 0.0, %v1033
    %v1035 = vpop.f32.mrb[0].mxu0
    %1036 = vmatprep.mubr.f32.mxu0 0.0
    %1037 = vmatmul.mubr.f32.gmra.mrb[0].mxu0 %v913
    %v1038 = vpop.f32.mrb[0].mxu0
    %v1039 = vadd.f32 0.0, %v1038
    %v1040 = vpop.f32.mrb[0].mxu0
    %1041 = vmatprep.mubr.f32.mxu0 0.0
    %1042 = vmatmul.mubr.f32.gmra.mrb[0].mxu0 %v916
    %v1043 = vpop.f32.mrb[0].mxu0
    %v1044 = vadd.f32 0.0, %v1043
    %v1045 = vpop.f32.mrb[0].mxu0
    %1046 = vmatprep.mubr.f32.mxu0 0.0
    %1047 = vmatmul.mubr.f32.gmra.mrb[0].mxu0 %v919
    %v1048 = vpop.f32.mrb[0].mxu0
    %v1049 = vadd.f32 0.0, %v1048
    %v1050 = vpop.f32.mrb[0].mxu0
    %1051 = vmatprep.mubr.f32.mxu0 0.0
    %1052 = vmatmul.mubr.f32.gmra.mrb[0].mxu0 %v922
    %v1053 = vpop.f32.mrb[0].mxu0
    %v1054 = vadd.f32 0.0, %v1053
    %v1055 = vpop.f32.mrb[0].mxu0
    %1056 = vmatprep.mubr.f32.mxu0 0.0
    %1057 = vmatmul.mubr.f32.gmra.mrb[0].mxu0 %v925
    %v1058 = vpop.f32.mrb[0].mxu0
    %v1059 = vadd.f32 0.0, %v1058
    %v1060 = vpop.f32.mrb[0].mxu0
    %1061 = vmatprep.mubr.f32.mxu0 0.0
    %1062 = vmatmul.mubr.f32.gmra.mrb[0].mxu0 %v928
    %v1063 = vpop.f32.mrb[0].mxu0
    %v1064 = vadd.f32 0.0, %v1063
    %v1065 = vpop.f32.mrb[0].mxu0
    %1066 = vmatprep.mubr.f32.mxu0 0.0
    %1067 = vmatmul.mubr.f32.gmra.mrb[0].mxu0 %v931
    %v1068 = vpop.f32.mrb[0].mxu0
    %v1069 = vadd.f32 0.0, %v1068
    %v1070 = vpop.f32.mrb[0].mxu0
    %1071 = vmatprep.mubr.f32.mxu0 0.0
    %1072 = vmatmul.mubr.f32.gmra.mrb[0].mxu0 %v934
    %v1073 = vpop.f32.mrb[0].mxu0
    %v1074 = vadd.f32 0.0, %v1073
    %v1075 = vpop.f32.mrb[0].mxu0
    %1076 = vmatprep.mubr.f32.mxu0 0.0
    %1077 = vmatmul.mubr.f32.gmra.mrb[0].mxu0 %v937
    %v1078 = vpop.f32.mrb[0].mxu0
    %v1079 = vadd.f32 0.0, %v1078
    %v1080 = vpop.f32.mrb[0].mxu0
    %1081 = vmatprep.mubr.f32.mxu0 0.0
    %1082 = vmatmul.mubr.f32.gmra.mrb[0].mxu0 %v940
    %v1083 = vpop.f32.mrb[0].mxu0
    %v1084 = vadd.f32 0.0, %v1083
    %v1085 = vpop.f32.mrb[0].mxu0
    %1086 = vdwg.mxu0
    %v1088 = vsel %vm893, %v540, 0
    %v1091 = vsel %vm893, %v541, 0
    %v1094 = vsel %vm893, %v542, 0
    %v1097 = vsel %vm893, %v543, 0
    %v1100 = vsel %vm893, %v544, 0
    %v1103 = vsel %vm893, %v545, 0
    %v1106 = vsel %vm893, %v546, 0
    %v1109 = vsel %vm893, %v547, 0
    %v1112 = vsel %vm893, %v548, 0
    %v1115 = vsel %vm893, %v549, 0
    %v1118 = vsel %vm893, %v550, 0
    %v1121 = vsel %vm893, %v551, 0
    %v1124 = vsel %vm893, %v552, 0
    %v1127 = vsel %vm893, %v553, 0
    %v1130 = vsel %vm893, %v554, 0
    %v1133 = vsel %vm893, %v555, 0
    %1135 = vmatprep.subr.mxu0 0.0
    %1136 = vmatpush1.msra.mxu0 %v190
    %1137 = vmatprep.subr.mxu0 0.0
    %1138 = vmatpush1.msra.mxu0 %v191
    %1139 = vmatprep.subr.mxu0 0.0
    %1140 = vmatpush1.msra.mxu0 0.0
    %1141 = vmatprep.subr.mxu0 0.0
    %1142 = vmatpush1.msra.mxu0 0.0
    %1143 = vmatprep.subr.mxu0 0.0
    %1144 = vmatpush1.msra.mxu0 0.0
    %1145 = vmatprep.subr.mxu0 0.0
    %1146 = vmatpush1.msra.mxu0 0.0
    %1147 = vmatprep.subr.mxu0 0.0
    %1148 = vmatpush1.msra.mxu0 0.0
    %1149 = vmatprep.subr.mxu0 0.0
    %1150 = vmatpush1.msra.mxu0 0.0
    %1151 = vmatprep.subr.mxu0 0.0
    %1152 = vmatpush1.msra.mxu0 0.0
    %1153 = vmatprep.subr.mxu0 0.0
    %1154 = vmatpush1.msra.mxu0 0.0
    %1155 = vmatprep.subr.mxu0 0.0
    %1156 = vmatpush1.msra.mxu0 0.0
    %1157 = vmatprep.subr.mxu0 0.0
    %1158 = vmatpush1.msra.mxu0 0.0
    %1159 = vmatprep.subr.mxu0 0.0
    %1160 = vmatpush1.msra.mxu0 0.0
    %1161 = vmatprep.subr.mxu0 0.0
    %1162 = vmatpush1.msra.mxu0 0.0
    %1163 = vmatprep.subr.mxu0 0.0
    %1164 = vmatpush1.msra.mxu0 0.0
    %1165 = vmatprep.subr.mxu0 0.0
    %1166 = vmatpush1.msra.mxu0 0.0
    %1167 = vmatprep.subr.mxu0 0.0
    %1168 = vmatpush1.msra.mxu0 0.0
    %1169 = vmatprep.subr.mxu0 0.0
    %1170 = vmatpush1.msra.mxu0 0.0
    %1171 = vmatprep.subr.mxu0 0.0
    %1172 = vmatpush1.msra.mxu0 0.0
    %1173 = vmatprep.subr.mxu0 0.0
    %1174 = vmatpush1.msra.mxu0 0.0
    %1175 = vmatprep.subr.mxu0 0.0
    %1176 = vmatpush1.msra.mxu0 0.0
    %1177 = vmatprep.subr.mxu0 0.0
    %1178 = vmatpush1.msra.mxu0 0.0
    %1179 = vmatprep.subr.mxu0 0.0
    %1180 = vmatpush1.msra.mxu0 0.0
    %1181 = vmatprep.subr.mxu0 0.0
    %1182 = vmatpush1.msra.mxu0 0.0
    %1183 = vmatprep.subr.mxu0 0.0
    %1184 = vmatpush1.msra.mxu0 0.0
    %1185 = vmatprep.subr.mxu0 0.0
    %1186 = vmatpush1.msra.mxu0 0.0
    %1187 = vmatprep.subr.mxu0 0.0
    %1188 = vmatpush1.msra.mxu0 0.0
    %1189 = vmatprep.subr.mxu0 0.0
    %1190 = vmatpush1.msra.mxu0 0.0
    %1191 = vmatprep.subr.mxu0 0.0
    %1192 = vmatpush1.msra.mxu0 0.0
    %1193 = vmatprep.subr.mxu0 0.0
    %1194 = vmatpush1.msra.mxu0 0.0
    %1195 = vmatprep.subr.mxu0 0.0
    %1196 = vmatpush1.msra.mxu0 0.0
    %1197 = vmatprep.subr.mxu0 0.0
    %1198 = vmatpush1.msra.mxu0 0.0
    %1199 = vmatprep.mubr.f32.mxu0 0.0
    %1200 = vmatmul.mubr.f32.gmra.mrb[0].mxu0 %v1088
    %v1201 = vpop.f32.mrb[0].mxu0
    %v1202 = vadd.f32 %v1009, %v1201
    %v1203 = vpop.f32.mrb[0].mxu0
    %1204 = vmatprep.mubr.f32.mxu0 0.0
    %1205 = vmatmul.mubr.f32.gmra.mrb[0].mxu0 %v1091
    %v1206 = vpop.f32.mrb[0].mxu0
    %v1207 = vadd.f32 %v1014, %v1206
    %v1208 = vpop.f32.mrb[0].mxu0
    %1209 = vmatprep.mubr.f32.mxu0 0.0
    %1210 = vmatmul.mubr.f32.gmra.mrb[0].mxu0 %v1094
    %v1211 = vpop.f32.mrb[0].mxu0
    %v1212 = vadd.f32 %v1019, %v1211
    %v1213 = vpop.f32.mrb[0].mxu0
    %1214 = vmatprep.mubr.f32.mxu0 0.0
    %1215 = vmatmul.mubr.f32.gmra.mrb[0].mxu0 %v1097
    %v1216 = vpop.f32.mrb[0].mxu0
    %v1217 = vadd.f32 %v1024, %v1216
    %v1218 = vpop.f32.mrb[0].mxu0
    %1219 = vmatprep.mubr.f32.mxu0 0.0
    %1220 = vmatmul.mubr.f32.gmra.mrb[0].mxu0 %v1100
    %v1221 = vpop.f32.mrb[0].mxu0
    %v1222 = vadd.f32 %v1029, %v1221
    %v1223 = vpop.f32.mrb[0].mxu0
    %1224 = vmatprep.mubr.f32.mxu0 0.0
    %1225 = vmatmul.mubr.f32.gmra.mrb[0].mxu0 %v1103
    %v1226 = vpop.f32.mrb[0].mxu0
    %v1227 = vadd.f32 %v1034, %v1226
    %v1228 = vpop.f32.mrb[0].mxu0
    %1229 = vmatprep.mubr.f32.mxu0 0.0
    %1230 = vmatmul.mubr.f32.gmra.mrb[0].mxu0 %v1106
    %v1231 = vpop.f32.mrb[0].mxu0
    %v1232 = vadd.f32 %v1039, %v1231
    %v1233 = vpop.f32.mrb[0].mxu0
    %1234 = vmatprep.mubr.f32.mxu0 0.0
    %1235 = vmatmul.mubr.f32.gmra.mrb[0].mxu0 %v1109
    %v1236 = vpop.f32.mrb[0].mxu0
    %v1237 = vadd.f32 %v1044, %v1236
    %v1238 = vpop.f32.mrb[0].mxu0
    %1239 = vmatprep.mubr.f32.mxu0 0.0
    %1240 = vmatmul.mubr.f32.gmra.mrb[0].mxu0 %v1112
    %v1241 = vpop.f32.mrb[0].mxu0
    %v1242 = vadd.f32 %v1049, %v1241
    %v1243 = vpop.f32.mrb[0].mxu0
    %1244 = vmatprep.mubr.f32.mxu0 0.0
    %1245 = vmatmul.mubr.f32.gmra.mrb[0].mxu0 %v1115
    %v1246 = vpop.f32.mrb[0].mxu0
    %v1247 = vadd.f32 %v1054, %v1246
    %v1248 = vpop.f32.mrb[0].mxu0
    %1249 = vmatprep.mubr.f32.mxu0 0.0
    %1250 = vmatmul.mubr.f32.gmra.mrb[0].mxu0 %v1118
    %v1251 = vpop.f32.mrb[0].mxu0
    %v1252 = vadd.f32 %v1059, %v1251
    %v1253 = vpop.f32.mrb[0].mxu0
    %1254 = vmatprep.mubr.f32.mxu0 0.0
    %1255 = vmatmul.mubr.f32.gmra.mrb[0].mxu0 %v1121
    %v1256 = vpop.f32.mrb[0].mxu0
    %v1257 = vadd.f32 %v1064, %v1256
    %v1258 = vpop.f32.mrb[0].mxu0
    %1259 = vmatprep.mubr.f32.mxu0 0.0
    %1260 = vmatmul.mubr.f32.gmra.mrb[0].mxu0 %v1124
    %v1261 = vpop.f32.mrb[0].mxu0
    %v1262 = vadd.f32 %v1069, %v1261
    %v1263 = vpop.f32.mrb[0].mxu0
    %1264 = vmatprep.mubr.f32.mxu0 0.0
    %1265 = vmatmul.mubr.f32.gmra.mrb[0].mxu0 %v1127
    %v1266 = vpop.f32.mrb[0].mxu0
    %v1267 = vadd.f32 %v1074, %v1266
    %v1268 = vpop.f32.mrb[0].mxu0
    %1269 = vmatprep.mubr.f32.mxu0 0.0
    %1270 = vmatmul.mubr.f32.gmra.mrb[0].mxu0 %v1130
    %v1271 = vpop.f32.mrb[0].mxu0
    %v1272 = vadd.f32 %v1079, %v1271
    %v1273 = vpop.f32.mrb[0].mxu0
    %1274 = vmatprep.mubr.f32.mxu0 0.0
    %1275 = vmatmul.mubr.f32.gmra.mrb[0].mxu0 %v1133
    %v1276 = vpop.f32.mrb[0].mxu0
    %v1277 = vadd.f32 %v1084, %v1276
    %v1278 = vpop.f32.mrb[0].mxu0
    %1279 = vdwg.mxu0
    %v1280 = vld [vmem:[%s0 + $0x100] sm:$0xff]
    %v1281 = vld [vmem:[%s0 + $0x108] sm:$0xff]
    %v1282 = vld [vmem:[%s0 + $0x110] sm:$0xff]
    %v1283 = vld [vmem:[%s0 + $0x118] sm:$0xff]
    %v1284 = vld [vmem:[%s0 + $0x120] sm:$0xff]
    %v1285 = vld [vmem:[%s0 + $0x128] sm:$0xff]
    %v1286 = vld [vmem:[%s0 + $0x130] sm:$0xff]
    %v1287 = vld [vmem:[%s0 + $0x138] sm:$0xff]
    %v1288 = vld [vmem:[%s0 + $0x140] sm:$0xff]
    %v1289 = vld [vmem:[%s0 + $0x148] sm:$0xff]
    %v1290 = vld [vmem:[%s0 + $0x150] sm:$0xff]
    %v1291 = vld [vmem:[%s0 + $0x158] sm:$0xff]
    %v1292 = vld [vmem:[%s0 + $0x160] sm:$0xff]
    %v1293 = vld [vmem:[%s0 + $0x168] sm:$0xff]
    %v1294 = vld [vmem:[%s0 + $0x170] sm:$0xff]
    %v1295 = vld [vmem:[%s0 + $0x178] sm:$0xff]
    %v1296 = vld [vmem:[%s1 + $0x100] sm:$0xff]
    %v1297 = vld [vmem:[%s1 + $0x108] sm:$0xff]
    %v1298 = vld [vmem:[%s1 + $0x110] sm:$0xff]
    %v1299 = vld [vmem:[%s1 + $0x118] sm:$0xff]
    %v1300 = vld [vmem:[%s1 + $0x120] sm:$0xff]
    %v1301 = vld [vmem:[%s1 + $0x128] sm:$0xff]
    %v1302 = vld [vmem:[%s1 + $0x130] sm:$0xff]
    %v1303 = vld [vmem:[%s1 + $0x138] sm:$0xff]
    %v1304 = vld [vmem:[%s1 + $0x140] sm:$0xff]
    %v1305 = vld [vmem:[%s1 + $0x148] sm:$0xff]
    %v1306 = vld [vmem:[%s1 + $0x150] sm:$0xff]
    %v1307 = vld [vmem:[%s1 + $0x158] sm:$0xff]
    %v1308 = vld [vmem:[%s1 + $0x160] sm:$0xff]
    %v1309 = vld [vmem:[%s1 + $0x168] sm:$0xff]
    %v1310 = vld [vmem:[%s1 + $0x170] sm:$0xff]
    %v1311 = vld [vmem:[%s1 + $0x178] sm:$0xff]
    %1313 = vset.pattern.permute.xlu0 0
    %1314 = vperm.xlu0 %1313, %v1296
    %v1315 = vpop.permute.xlu0 %1314
    %1318 = vset.pattern.permute.xlu0 0
    %1319 = vperm.xlu0 %1318, %v1297
    %v1320 = vpop.permute.xlu0 %1319
    %1323 = vset.pattern.permute.xlu0 0
    %1324 = vperm.xlu0 %1323, %v1298
    %v1325 = vpop.permute.xlu0 %1324
    %1328 = vset.pattern.permute.xlu0 0
    %1329 = vperm.xlu0 %1328, %v1299
    %v1330 = vpop.permute.xlu0 %1329
    %1333 = vset.pattern.permute.xlu0 0
    %1334 = vperm.xlu0 %1333, %v1300
    %v1335 = vpop.permute.xlu0 %1334
    %1338 = vset.pattern.permute.xlu0 0
    %1339 = vperm.xlu0 %1338, %v1301
    %v1340 = vpop.permute.xlu0 %1339
    %1343 = vset.pattern.permute.xlu0 0
    %1344 = vperm.xlu0 %1343, %v1302
    %v1345 = vpop.permute.xlu0 %1344
    %1348 = vset.pattern.permute.xlu0 0
    %1349 = vperm.xlu0 %1348, %v1303
    %v1350 = vpop.permute.xlu0 %1349
    %1353 = vset.pattern.permute.xlu0 0
    %1354 = vperm.xlu0 %1353, %v1304
    %v1355 = vpop.permute.xlu0 %1354
    %1358 = vset.pattern.permute.xlu0 0
    %1359 = vperm.xlu0 %1358, %v1305
    %v1360 = vpop.permute.xlu0 %1359
    %1363 = vset.pattern.permute.xlu0 0
    %1364 = vperm.xlu0 %1363, %v1306
    %v1365 = vpop.permute.xlu0 %1364
    %1368 = vset.pattern.permute.xlu0 0
    %1369 = vperm.xlu0 %1368, %v1307
    %v1370 = vpop.permute.xlu0 %1369
    %1373 = vset.pattern.permute.xlu0 0
    %1374 = vperm.xlu0 %1373, %v1308
    %v1375 = vpop.permute.xlu0 %1374
    %1378 = vset.pattern.permute.xlu0 0
    %1379 = vperm.xlu0 %1378, %v1309
    %v1380 = vpop.permute.xlu0 %1379
    %1383 = vset.pattern.permute.xlu0 0
    %1384 = vperm.xlu0 %1383, %v1310
    %v1385 = vpop.permute.xlu0 %1384
    %1388 = vset.pattern.permute.xlu0 0
    %1389 = vperm.xlu0 %1388, %v1311
    %v1390 = vpop.permute.xlu0 %1389
    %v1392 = vmul.f32 %v1315, %v324
    %v1393 = vmul.f32 %v1320, %v324
    %v1394 = vmul.f32 %v1325, %v324
    %v1395 = vmul.f32 %v1330, %v324
    %v1396 = vmul.f32 %v1335, %v324
    %v1397 = vmul.f32 %v1340, %v324
    %v1398 = vmul.f32 %v1345, %v324
    %v1399 = vmul.f32 %v1350, %v324
    %v1400 = vmul.f32 %v1355, %v324
    %v1401 = vmul.f32 %v1360, %v324
    %v1402 = vmul.f32 %v1365, %v324
    %v1403 = vmul.f32 %v1370, %v324
    %v1404 = vmul.f32 %v1375, %v324
    %v1405 = vmul.f32 %v1380, %v324
    %v1406 = vmul.f32 %v1385, %v324
    %v1407 = vmul.f32 %v1390, %v324
    %v1409 = vsel %vm342, %v1280, 0
    %v1412 = vsel %vm342, %v1281, 0
    %v1415 = vsel %vm342, %v1282, 0
    %v1418 = vsel %vm342, %v1283, 0
    %v1421 = vsel %vm342, %v1284, 0
    %v1424 = vsel %vm342, %v1285, 0
    %v1427 = vsel %vm342, %v1286, 0
    %v1430 = vsel %vm342, %v1287, 0
    %v1433 = vsel %vm342, %v1288, 0
    %v1436 = vsel %vm342, %v1289, 0
    %v1439 = vsel %vm342, %v1290, 0
    %v1442 = vsel %vm342, %v1291, 0
    %v1445 = vsel %vm342, %v1292, 0
    %v1448 = vsel %vm342, %v1293, 0
    %v1451 = vsel %vm342, %v1294, 0
    %v1454 = vsel %vm342, %v1295, 0
    %1456 = vmatprep.subr.mxu0 0.0
    %1457 = vmatpush1.msra.mxu0 %v184
    %1458 = vmatprep.subr.mxu0 0.0
    %1459 = vmatpush1.msra.mxu0 %v185
    %1460 = vmatprep.subr.mxu0 0.0
    %1461 = vmatpush1.msra.mxu0 %v186
    %1462 = vmatprep.subr.mxu0 0.0
    %1463 = vmatpush1.msra.mxu0 %v187
    %1464 = vmatprep.subr.mxu0 0.0
    %1465 = vmatpush1.msra.mxu0 %v393
    %1466 = vmatprep.subr.mxu0 0.0
    %1467 = vmatpush1.msra.mxu0 0.0
    %1468 = vmatprep.subr.mxu0 0.0
    %1469 = vmatpush1.msra.mxu0 0.0
    %1470 = vmatprep.subr.mxu0 0.0
    %1471 = vmatpush1.msra.mxu0 0.0
    %1472 = vmatprep.subr.mxu0 0.0
    %1473 = vmatpush1.msra.mxu0 0.0
    %1474 = vmatprep.subr.mxu0 0.0
    %1475 = vmatpush1.msra.mxu0 0.0
    %1476 = vmatprep.subr.mxu0 0.0
    %1477 = vmatpush1.msra.mxu0 0.0
    %1478 = vmatprep.subr.mxu0 0.0
    %1479 = vmatpush1.msra.mxu0 0.0
    %1480 = vmatprep.subr.mxu0 0.0
    %1481 = vmatpush1.msra.mxu0 0.0
    %1482 = vmatprep.subr.mxu0 0.0
    %1483 = vmatpush1.msra.mxu0 0.0
    %1484 = vmatprep.subr.mxu0 0.0
    %1485 = vmatpush1.msra.mxu0 0.0
    %1486 = vmatprep.subr.mxu0 0.0
    %1487 = vmatpush1.msra.mxu0 0.0
    %1488 = vmatprep.subr.mxu0 0.0
    %1489 = vmatpush1.msra.mxu0 0.0
    %1490 = vmatprep.subr.mxu0 0.0
    %1491 = vmatpush1.msra.mxu0 0.0
    %1492 = vmatprep.subr.mxu0 0.0
    %1493 = vmatpush1.msra.mxu0 0.0
    %1494 = vmatprep.subr.mxu0 0.0
    %1495 = vmatpush1.msra.mxu0 0.0
    %1496 = vmatprep.subr.mxu0 0.0
    %1497 = vmatpush1.msra.mxu0 0.0
    %1498 = vmatprep.subr.mxu0 0.0
    %1499 = vmatpush1.msra.mxu0 0.0
    %1500 = vmatprep.subr.mxu0 0.0
    %1501 = vmatpush1.msra.mxu0 0.0
    %1502 = vmatprep.subr.mxu0 0.0
    %1503 = vmatpush1.msra.mxu0 0.0
    %1504 = vmatprep.subr.mxu0 0.0
    %1505 = vmatpush1.msra.mxu0 0.0
    %1506 = vmatprep.subr.mxu0 0.0
    %1507 = vmatpush1.msra.mxu0 0.0
    %1508 = vmatprep.subr.mxu0 0.0
    %1509 = vmatpush1.msra.mxu0 0.0
    %1510 = vmatprep.subr.mxu0 0.0
    %1511 = vmatpush1.msra.mxu0 0.0
    %1512 = vmatprep.subr.mxu0 0.0
    %1513 = vmatpush1.msra.mxu0 0.0
    %1514 = vmatprep.subr.mxu0 0.0
    %1515 = vmatpush1.msra.mxu0 0.0
    %1516 = vmatprep.subr.mxu0 0.0
    %1517 = vmatpush1.msra.mxu0 0.0
    %1518 = vmatprep.subr.mxu0 0.0
    %1519 = vmatpush1.msra.mxu0 0.0
    %1520 = vmatprep.mubr.f32.mxu0 0.0
    %1521 = vmatmul.mubr.f32.gmra.mrb[0].mxu0 %v1409
    %v1522 = vpop.f32.mrb[0].mxu0
    %v1523 = vadd.f32 %v1392, %v1522
    %v1524 = vpop.f32.mrb[0].mxu0
    %1525 = vmatprep.mubr.f32.mxu0 0.0
    %1526 = vmatmul.mubr.f32.gmra.mrb[0].mxu0 %v1412
    %v1527 = vpop.f32.mrb[0].mxu0
    %v1528 = vadd.f32 %v1393, %v1527
    %v1529 = vpop.f32.mrb[0].mxu0
    %1530 = vmatprep.mubr.f32.mxu0 0.0
    %1531 = vmatmul.mubr.f32.gmra.mrb[0].mxu0 %v1415
    %v1532 = vpop.f32.mrb[0].mxu0
    %v1533 = vadd.f32 %v1394, %v1532
    %v1534 = vpop.f32.mrb[0].mxu0
    %1535 = vmatprep.mubr.f32.mxu0 0.0
    %1536 = vmatmul.mubr.f32.gmra.mrb[0].mxu0 %v1418
    %v1537 = vpop.f32.mrb[0].mxu0
    %v1538 = vadd.f32 %v1395, %v1537
    %v1539 = vpop.f32.mrb[0].mxu0
    %1540 = vmatprep.mubr.f32.mxu0 0.0
    %1541 = vmatmul.mubr.f32.gmra.mrb[0].mxu0 %v1421
    %v1542 = vpop.f32.mrb[0].mxu0
    %v1543 = vadd.f32 %v1396, %v1542
    %v1544 = vpop.f32.mrb[0].mxu0
    %1545 = vmatprep.mubr.f32.mxu0 0.0
    %1546 = vmatmul.mubr.f32.gmra.mrb[0].mxu0 %v1424
    %v1547 = vpop.f32.mrb[0].mxu0
    %v1548 = vadd.f32 %v1397, %v1547
    %v1549 = vpop.f32.mrb[0].mxu0
    %1550 = vmatprep.mubr.f32.mxu0 0.0
    %1551 = vmatmul.mubr.f32.gmra.mrb[0].mxu0 %v1427
    %v1552 = vpop.f32.mrb[0].mxu0
    %v1553 = vadd.f32 %v1398, %v1552
    %v1554 = vpop.f32.mrb[0].mxu0
    %1555 = vmatprep.mubr.f32.mxu0 0.0
    %1556 = vmatmul.mubr.f32.gmra.mrb[0].mxu0 %v1430
    %v1557 = vpop.f32.mrb[0].mxu0
    %v1558 = vadd.f32 %v1399, %v1557
    %v1559 = vpop.f32.mrb[0].mxu0
    %1560 = vmatprep.mubr.f32.mxu0 0.0
    %1561 = vmatmul.mubr.f32.gmra.mrb[0].mxu0 %v1433
    %v1562 = vpop.f32.mrb[0].mxu0
    %v1563 = vadd.f32 %v1400, %v1562
    %v1564 = vpop.f32.mrb[0].mxu0
    %1565 = vmatprep.mubr.f32.mxu0 0.0
    %1566 = vmatmul.mubr.f32.gmra.mrb[0].mxu0 %v1436
    %v1567 = vpop.f32.mrb[0].mxu0
    %v1568 = vadd.f32 %v1401, %v1567
    %v1569 = vpop.f32.mrb[0].mxu0
    %1570 = vmatprep.mubr.f32.mxu0 0.0
    %1571 = vmatmul.mubr.f32.gmra.mrb[0].mxu0 %v1439
    %v1572 = vpop.f32.mrb[0].mxu0
    %v1573 = vadd.f32 %v1402, %v1572
    %v1574 = vpop.f32.mrb[0].mxu0
    %1575 = vmatprep.mubr.f32.mxu0 0.0
    %1576 = vmatmul.mubr.f32.gmra.mrb[0].mxu0 %v1442
    %v1577 = vpop.f32.mrb[0].mxu0
    %v1578 = vadd.f32 %v1403, %v1577
    %v1579 = vpop.f32.mrb[0].mxu0
    %1580 = vmatprep.mubr.f32.mxu0 0.0
    %1581 = vmatmul.mubr.f32.gmra.mrb[0].mxu0 %v1445
    %v1582 = vpop.f32.mrb[0].mxu0
    %v1583 = vadd.f32 %v1404, %v1582
    %v1584 = vpop.f32.mrb[0].mxu0
    %1585 = vmatprep.mubr.f32.mxu0 0.0
    %1586 = vmatmul.mubr.f32.gmra.mrb[0].mxu0 %v1448
    %v1587 = vpop.f32.mrb[0].mxu0
    %v1588 = vadd.f32 %v1405, %v1587
    %v1589 = vpop.f32.mrb[0].mxu0
    %1590 = vmatprep.mubr.f32.mxu0 0.0
    %1591 = vmatmul.mubr.f32.gmra.mrb[0].mxu0 %v1451
    %v1592 = vpop.f32.mrb[0].mxu0
    %v1593 = vadd.f32 %v1406, %v1592
    %v1594 = vpop.f32.mrb[0].mxu0
    %1595 = vmatprep.mubr.f32.mxu0 0.0
    %1596 = vmatmul.mubr.f32.gmra.mrb[0].mxu0 %v1454
    %v1597 = vpop.f32.mrb[0].mxu0
    %v1598 = vadd.f32 %v1407, %v1597
    %v1599 = vpop.f32.mrb[0].mxu0
    %1600 = vdwg.mxu0
    %v1601 = vmax.f32 %v1523, 0.0
    %v1602 = vmax.f32 %v1528, 0.0
    %v1603 = vmax.f32 %v1533, 0.0
    %v1604 = vmax.f32 %v1538, 0.0
    %v1605 = vmax.f32 %v1543, 0.0
    %v1606 = vmax.f32 %v1548, 0.0
    %v1607 = vmax.f32 %v1553, 0.0
    %v1608 = vmax.f32 %v1558, 0.0
    %v1609 = vmax.f32 %v1563, 0.0
    %v1610 = vmax.f32 %v1568, 0.0
    %v1611 = vmax.f32 %v1573, 0.0
    %v1612 = vmax.f32 %v1578, 0.0
    %v1613 = vmax.f32 %v1583, 0.0
    %v1614 = vmax.f32 %v1588, 0.0
    %v1615 = vmax.f32 %v1593, 0.0
    %v1616 = vmax.f32 %v1598, 0.0
    %v1618 = vsel %vm893, %v1601, 0
    %v1621 = vsel %vm893, %v1602, 0
    %v1624 = vsel %vm893, %v1603, 0
    %v1627 = vsel %vm893, %v1604, 0
    %v1630 = vsel %vm893, %v1605, 0
    %v1633 = vsel %vm893, %v1606, 0
    %v1636 = vsel %vm893, %v1607, 0
    %v1639 = vsel %vm893, %v1608, 0
    %v1642 = vsel %vm893, %v1609, 0
    %v1645 = vsel %vm893, %v1610, 0
    %v1648 = vsel %vm893, %v1611, 0
    %v1651 = vsel %vm893, %v1612, 0
    %v1654 = vsel %vm893, %v1613, 0
    %v1657 = vsel %vm893, %v1614, 0
    %v1660 = vsel %vm893, %v1615, 0
    %v1663 = vsel %vm893, %v1616, 0
    %1665 = vmatprep.subr.mxu0 0.0
    %1666 = vmatpush1.msra.mxu0 %v194
    %1667 = vmatprep.subr.mxu0 0.0
    %1668 = vmatpush1.msra.mxu0 %v195
    %1669 = vmatprep.subr.mxu0 0.0
    %1670 = vmatpush1.msra.mxu0 0.0
    %1671 = vmatprep.subr.mxu0 0.0
    %1672 = vmatpush1.msra.mxu0 0.0
    %1673 = vmatprep.subr.mxu0 0.0
    %1674 = vmatpush1.msra.mxu0 0.0
    %1675 = vmatprep.subr.mxu0 0.0
    %1676 = vmatpush1.msra.mxu0 0.0
    %1677 = vmatprep.subr.mxu0 0.0
    %1678 = vmatpush1.msra.mxu0 0.0
    %1679 = vmatprep.subr.mxu0 0.0
    %1680 = vmatpush1.msra.mxu0 0.0
    %1681 = vmatprep.subr.mxu0 0.0
    %1682 = vmatpush1.msra.mxu0 0.0
    %1683 = vmatprep.subr.mxu0 0.0
    %1684 = vmatpush1.msra.mxu0 0.0
    %1685 = vmatprep.subr.mxu0 0.0
    %1686 = vmatpush1.msra.mxu0 0.0
    %1687 = vmatprep.subr.mxu0 0.0
    %1688 = vmatpush1.msra.mxu0 0.0
    %1689 = vmatprep.subr.mxu0 0.0
    %1690 = vmatpush1.msra.mxu0 0.0
    %1691 = vmatprep.subr.mxu0 0.0
    %1692 = vmatpush1.msra.mxu0 0.0
    %1693 = vmatprep.subr.mxu0 0.0
    %1694 = vmatpush1.msra.mxu0 0.0
    %1695 = vmatprep.subr.mxu0 0.0
    %1696 = vmatpush1.msra.mxu0 0.0
    %1697 = vmatprep.subr.mxu0 0.0
    %1698 = vmatpush1.msra.mxu0 0.0
    %1699 = vmatprep.subr.mxu0 0.0
    %1700 = vmatpush1.msra.mxu0 0.0
    %1701 = vmatprep.subr.mxu0 0.0
    %1702 = vmatpush1.msra.mxu0 0.0
    %1703 = vmatprep.subr.mxu0 0.0
    %1704 = vmatpush1.msra.mxu0 0.0
    %1705 = vmatprep.subr.mxu0 0.0
    %1706 = vmatpush1.msra.mxu0 0.0
    %1707 = vmatprep.subr.mxu0 0.0
    %1708 = vmatpush1.msra.mxu0 0.0
    %1709 = vmatprep.subr.mxu0 0.0
    %1710 = vmatpush1.msra.mxu0 0.0
    %1711 = vmatprep.subr.mxu0 0.0
    %1712 = vmatpush1.msra.mxu0 0.0
    %1713 = vmatprep.subr.mxu0 0.0
    %1714 = vmatpush1.msra.mxu0 0.0
    %1715 = vmatprep.subr.mxu0 0.0
    %1716 = vmatpush1.msra.mxu0 0.0
    %1717 = vmatprep.subr.mxu0 0.0
    %1718 = vmatpush1.msra.mxu0 0.0
    %1719 = vmatprep.subr.mxu0 0.0
    %1720 = vmatpush1.msra.mxu0 0.0
    %1721 = vmatprep.subr.mxu0 0.0
    %1722 = vmatpush1.msra.mxu0 0.0
    %1723 = vmatprep.subr.mxu0 0.0
    %1724 = vmatpush1.msra.mxu0 0.0
    %1725 = vmatprep.subr.mxu0 0.0
    %1726 = vmatpush1.msra.mxu0 0.0
    %1727 = vmatprep.subr.mxu0 0.0
    %1728 = vmatpush1.msra.mxu0 0.0
    %1729 = vmatprep.mubr.f32.mxu0 0.0
    %1730 = vmatmul.mubr.f32.gmra.mrb[0].mxu0 %v1618
    %v1731 = vpop.f32.mrb[0].mxu0
    %v1732 = vadd.f32 0.0, %v1731
    %v1733 = vpop.f32.mrb[0].mxu0
    %1734 = vmatprep.mubr.f32.mxu0 0.0
    %1735 = vmatmul.mubr.f32.gmra.mrb[0].mxu0 %v1621
    %v1736 = vpop.f32.mrb[0].mxu0
    %v1737 = vadd.f32 0.0, %v1736
    %v1738 = vpop.f32.mrb[0].mxu0
    %1739 = vmatprep.mubr.f32.mxu0 0.0
    %1740 = vmatmul.mubr.f32.gmra.mrb[0].mxu0 %v1624
    %v1741 = vpop.f32.mrb[0].mxu0
    %v1742 = vadd.f32 0.0, %v1741
    %v1743 = vpop.f32.mrb[0].mxu0
    %1744 = vmatprep.mubr.f32.mxu0 0.0
    %1745 = vmatmul.mubr.f32.gmra.mrb[0].mxu0 %v1627
    %v1746 = vpop.f32.mrb[0].mxu0
    %v1747 = vadd.f32 0.0, %v1746
    %v1748 = vpop.f32.mrb[0].mxu0
    %1749 = vmatprep.mubr.f32.mxu0 0.0
    %1750 = vmatmul.mubr.f32.gmra.mrb[0].mxu0 %v1630
    %v1751 = vpop.f32.mrb[0].mxu0
    %v1752 = vadd.f32 0.0, %v1751
    %v1753 = vpop.f32.mrb[0].mxu0
    %1754 = vmatprep.mubr.f32.mxu0 0.0
    %1755 = vmatmul.mubr.f32.gmra.mrb[0].mxu0 %v1633
    %v1756 = vpop.f32.mrb[0].mxu0
    %v1757 = vadd.f32 0.0, %v1756
    %v1758 = vpop.f32.mrb[0].mxu0
    %1759 = vmatprep.mubr.f32.mxu0 0.0
    %1760 = vmatmul.mubr.f32.gmra.mrb[0].mxu0 %v1636
    %v1761 = vpop.f32.mrb[0].mxu0
    %v1762 = vadd.f32 0.0, %v1761
    %v1763 = vpop.f32.mrb[0].mxu0
    %1764 = vmatprep.mubr.f32.mxu0 0.0
    %1765 = vmatmul.mubr.f32.gmra.mrb[0].mxu0 %v1639
    %v1766 = vpop.f32.mrb[0].mxu0
    %v1767 = vadd.f32 0.0, %v1766
    %v1768 = vpop.f32.mrb[0].mxu0
    %1769 = vmatprep.mubr.f32.mxu0 0.0
    %1770 = vmatmul.mubr.f32.gmra.mrb[0].mxu0 %v1642
    %v1771 = vpop.f32.mrb[0].mxu0
    %v1772 = vadd.f32 0.0, %v1771
    %v1773 = vpop.f32.mrb[0].mxu0
    %1774 = vmatprep.mubr.f32.mxu0 0.0
    %1775 = vmatmul.mubr.f32.gmra.mrb[0].mxu0 %v1645
    %v1776 = vpop.f32.mrb[0].mxu0
    %v1777 = vadd.f32 0.0, %v1776
    %v1778 = vpop.f32.mrb[0].mxu0
    %1779 = vmatprep.mubr.f32.mxu0 0.0
    %1780 = vmatmul.mubr.f32.gmra.mrb[0].mxu0 %v1648
    %v1781 = vpop.f32.mrb[0].mxu0
    %v1782 = vadd.f32 0.0, %v1781
    %v1783 = vpop.f32.mrb[0].mxu0
    %1784 = vmatprep.mubr.f32.mxu0 0.0
    %1785 = vmatmul.mubr.f32.gmra.mrb[0].mxu0 %v1651
    %v1786 = vpop.f32.mrb[0].mxu0
    %v1787 = vadd.f32 0.0, %v1786
    %v1788 = vpop.f32.mrb[0].mxu0
    %1789 = vmatprep.mubr.f32.mxu0 0.0
    %1790 = vmatmul.mubr.f32.gmra.mrb[0].mxu0 %v1654
    %v1791 = vpop.f32.mrb[0].mxu0
    %v1792 = vadd.f32 0.0, %v1791
    %v1793 = vpop.f32.mrb[0].mxu0
    %1794 = vmatprep.mubr.f32.mxu0 0.0
    %1795 = vmatmul.mubr.f32.gmra.mrb[0].mxu0 %v1657
    %v1796 = vpop.f32.mrb[0].mxu0
    %v1797 = vadd.f32 0.0, %v1796
    %v1798 = vpop.f32.mrb[0].mxu0
    %1799 = vmatprep.mubr.f32.mxu0 0.0
    %1800 = vmatmul.mubr.f32.gmra.mrb[0].mxu0 %v1660
    %v1801 = vpop.f32.mrb[0].mxu0
    %v1802 = vadd.f32 0.0, %v1801
    %v1803 = vpop.f32.mrb[0].mxu0
    %1804 = vmatprep.mubr.f32.mxu0 0.0
    %1805 = vmatmul.mubr.f32.gmra.mrb[0].mxu0 %v1663
    %v1806 = vpop.f32.mrb[0].mxu0
    %v1807 = vadd.f32 0.0, %v1806
    %v1808 = vpop.f32.mrb[0].mxu0
    %1809 = vdwg.mxu0
    %v1810 = vadd.f32 %v1202, %v1732
    %v1811 = vadd.f32 %v1207, %v1737
    %v1812 = vadd.f32 %v1212, %v1742
    %v1813 = vadd.f32 %v1217, %v1747
    %v1814 = vadd.f32 %v1222, %v1752
    %v1815 = vadd.f32 %v1227, %v1757
    %v1816 = vadd.f32 %v1232, %v1762
    %v1817 = vadd.f32 %v1237, %v1767
    %v1818 = vadd.f32 %v1242, %v1772
    %v1819 = vadd.f32 %v1247, %v1777
    %v1820 = vadd.f32 %v1252, %v1782
    %v1821 = vadd.f32 %v1257, %v1787
    %v1822 = vadd.f32 %v1262, %v1792
    %v1823 = vadd.f32 %v1267, %v1797
    %v1824 = vadd.f32 %v1272, %v1802
    %v1825 = vadd.f32 %v1277, %v1807
    %v1826 = vld [vmem:[%s0 + $0x180] sm:$0xff]
    %v1827 = vld [vmem:[%s0 + $0x188] sm:$0xff]
    %v1828 = vld [vmem:[%s0 + $0x190] sm:$0xff]
    %v1829 = vld [vmem:[%s0 + $0x198] sm:$0xff]
    %v1830 = vld [vmem:[%s0 + $0x1a0] sm:$0xff]
    %v1831 = vld [vmem:[%s0 + $0x1a8] sm:$0xff]
    %v1832 = vld [vmem:[%s0 + $0x1b0] sm:$0xff]
    %v1833 = vld [vmem:[%s0 + $0x1b8] sm:$0xff]
    %v1834 = vld [vmem:[%s0 + $0x1c0] sm:$0xff]
    %v1835 = vld [vmem:[%s0 + $0x1c8] sm:$0xff]
    %v1836 = vld [vmem:[%s0 + $0x1d0] sm:$0xff]
    %v1837 = vld [vmem:[%s0 + $0x1d8] sm:$0xff]
    %v1838 = vld [vmem:[%s0 + $0x1e0] sm:$0xff]
    %v1839 = vld [vmem:[%s0 + $0x1e8] sm:$0xff]
    %v1840 = vld [vmem:[%s0 + $0x1f0] sm:$0xff]
    %v1841 = vld [vmem:[%s0 + $0x1f8] sm:$0xff]
    %v1842 = vld [vmem:[%s1 + $0x180] sm:$0xff]
    %v1843 = vld [vmem:[%s1 + $0x188] sm:$0xff]
    %v1844 = vld [vmem:[%s1 + $0x190] sm:$0xff]
    %v1845 = vld [vmem:[%s1 + $0x198] sm:$0xff]
    %v1846 = vld [vmem:[%s1 + $0x1a0] sm:$0xff]
    %v1847 = vld [vmem:[%s1 + $0x1a8] sm:$0xff]
    %v1848 = vld [vmem:[%s1 + $0x1b0] sm:$0xff]
    %v1849 = vld [vmem:[%s1 + $0x1b8] sm:$0xff]
    %v1850 = vld [vmem:[%s1 + $0x1c0] sm:$0xff]
    %v1851 = vld [vmem:[%s1 + $0x1c8] sm:$0xff]
    %v1852 = vld [vmem:[%s1 + $0x1d0] sm:$0xff]
    %v1853 = vld [vmem:[%s1 + $0x1d8] sm:$0xff]
    %v1854 = vld [vmem:[%s1 + $0x1e0] sm:$0xff]
    %v1855 = vld [vmem:[%s1 + $0x1e8] sm:$0xff]
    %v1856 = vld [vmem:[%s1 + $0x1f0] sm:$0xff]
    %v1857 = vld [vmem:[%s1 + $0x1f8] sm:$0xff]
    %1859 = vset.pattern.permute.xlu0 0
    %1860 = vperm.xlu0 %1859, %v1842
    %v1861 = vpop.permute.xlu0 %1860
    %1864 = vset.pattern.permute.xlu0 0
    %1865 = vperm.xlu0 %1864, %v1843
    %v1866 = vpop.permute.xlu0 %1865
    %1869 = vset.pattern.permute.xlu0 0
    %1870 = vperm.xlu0 %1869, %v1844
    %v1871 = vpop.permute.xlu0 %1870
    %1874 = vset.pattern.permute.xlu0 0
    %1875 = vperm.xlu0 %1874, %v1845
    %v1876 = vpop.permute.xlu0 %1875
    %1879 = vset.pattern.permute.xlu0 0
    %1880 = vperm.xlu0 %1879, %v1846
    %v1881 = vpop.permute.xlu0 %1880
    %1884 = vset.pattern.permute.xlu0 0
    %1885 = vperm.xlu0 %1884, %v1847
    %v1886 = vpop.permute.xlu0 %1885
    %1889 = vset.pattern.permute.xlu0 0
    %1890 = vperm.xlu0 %1889, %v1848
    %v1891 = vpop.permute.xlu0 %1890
    %1894 = vset.pattern.permute.xlu0 0
    %1895 = vperm.xlu0 %1894, %v1849
    %v1896 = vpop.permute.xlu0 %1895
    %1899 = vset.pattern.permute.xlu0 0
    %1900 = vperm.xlu0 %1899, %v1850
    %v1901 = vpop.permute.xlu0 %1900
    %1904 = vset.pattern.permute.xlu0 0
    %1905 = vperm.xlu0 %1904, %v1851
    %v1906 = vpop.permute.xlu0 %1905
    %1909 = vset.pattern.permute.xlu0 0
    %1910 = vperm.xlu0 %1909, %v1852
    %v1911 = vpop.permute.xlu0 %1910
    %1914 = vset.pattern.permute.xlu0 0
    %1915 = vperm.xlu0 %1914, %v1853
    %v1916 = vpop.permute.xlu0 %1915
    %1919 = vset.pattern.permute.xlu0 0
    %1920 = vperm.xlu0 %1919, %v1854
    %v1921 = vpop.permute.xlu0 %1920
    %1924 = vset.pattern.permute.xlu0 0
    %1925 = vperm.xlu0 %1924, %v1855
    %v1926 = vpop.permute.xlu0 %1925
    %1929 = vset.pattern.permute.xlu0 0
    %1930 = vperm.xlu0 %1929, %v1856
    %v1931 = vpop.permute.xlu0 %1930
    %1934 = vset.pattern.permute.xlu0 0
    %1935 = vperm.xlu0 %1934, %v1857
    %v1936 = vpop.permute.xlu0 %1935
    %v1938 = vmul.f32 %v1861, %v324
    %v1939 = vmul.f32 %v1866, %v324
    %v1940 = vmul.f32 %v1871, %v324
    %v1941 = vmul.f32 %v1876, %v324
    %v1942 = vmul.f32 %v1881, %v324
    %v1943 = vmul.f32 %v1886, %v324
    %v1944 = vmul.f32 %v1891, %v324
    %v1945 = vmul.f32 %v1896, %v324
    %v1946 = vmul.f32 %v1901, %v324
    %v1947 = vmul.f32 %v1906, %v324
    %v1948 = vmul.f32 %v1911, %v324
    %v1949 = vmul.f32 %v1916, %v324
    %v1950 = vmul.f32 %v1921, %v324
    %v1951 = vmul.f32 %v1926, %v324
    %v1952 = vmul.f32 %v1931, %v324
    %v1953 = vmul.f32 %v1936, %v324
    %v1955 = vsel %vm342, %v1826, 0
    %v1958 = vsel %vm342, %v1827, 0
    %v1961 = vsel %vm342, %v1828, 0
    %v1964 = vsel %vm342, %v1829, 0
    %v1967 = vsel %vm342, %v1830, 0
    %v1970 = vsel %vm342, %v1831, 0
    %v1973 = vsel %vm342, %v1832, 0
    %v1976 = vsel %vm342, %v1833, 0
    %v1979 = vsel %vm342, %v1834, 0
    %v1982 = vsel %vm342, %v1835, 0
    %v1985 = vsel %vm342, %v1836, 0
    %v1988 = vsel %vm342, %v1837, 0
    %v1991 = vsel %vm342, %v1838, 0
    %v1994 = vsel %vm342, %v1839, 0
    %v1997 = vsel %vm342, %v1840, 0
    %v2000 = vsel %vm342, %v1841, 0
    %2002 = vmatprep.subr.mxu0 0.0
    %2003 = vmatpush1.msra.mxu0 %v184
    %2004 = vmatprep.subr.mxu0 0.0
    %2005 = vmatpush1.msra.mxu0 %v185
    %2006 = vmatprep.subr.mxu0 0.0
    %2007 = vmatpush1.msra.mxu0 %v186
    %2008 = vmatprep.subr.mxu0 0.0
    %2009 = vmatpush1.msra.mxu0 %v187
    %2010 = vmatprep.subr.mxu0 0.0
    %2011 = vmatpush1.msra.mxu0 %v393
    %2012 = vmatprep.subr.mxu0 0.0
    %2013 = vmatpush1.msra.mxu0 0.0
    %2014 = vmatprep.subr.mxu0 0.0
    %2015 = vmatpush1.msra.mxu0 0.0
    %2016 = vmatprep.subr.mxu0 0.0
    %2017 = vmatpush1.msra.mxu0 0.0
    %2018 = vmatprep.subr.mxu0 0.0
    %2019 = vmatpush1.msra.mxu0 0.0
    %2020 = vmatprep.subr.mxu0 0.0
    %2021 = vmatpush1.msra.mxu0 0.0
    %2022 = vmatprep.subr.mxu0 0.0
    %2023 = vmatpush1.msra.mxu0 0.0
    %2024 = vmatprep.subr.mxu0 0.0
    %2025 = vmatpush1.msra.mxu0 0.0
    %2026 = vmatprep.subr.mxu0 0.0
    %2027 = vmatpush1.msra.mxu0 0.0
    %2028 = vmatprep.subr.mxu0 0.0
    %2029 = vmatpush1.msra.mxu0 0.0
    %2030 = vmatprep.subr.mxu0 0.0
    %2031 = vmatpush1.msra.mxu0 0.0
    %2032 = vmatprep.subr.mxu0 0.0
    %2033 = vmatpush1.msra.mxu0 0.0
    %2034 = vmatprep.subr.mxu0 0.0
    %2035 = vmatpush1.msra.mxu0 0.0
    %2036 = vmatprep.subr.mxu0 0.0
    %2037 = vmatpush1.msra.mxu0 0.0
    %2038 = vmatprep.subr.mxu0 0.0
    %2039 = vmatpush1.msra.mxu0 0.0
    %2040 = vmatprep.subr.mxu0 0.0
    %2041 = vmatpush1.msra.mxu0 0.0
    %2042 = vmatprep.subr.mxu0 0.0
    %2043 = vmatpush1.msra.mxu0 0.0
    %2044 = vmatprep.subr.mxu0 0.0
    %2045 = vmatpush1.msra.mxu0 0.0
    %2046 = vmatprep.subr.mxu0 0.0
    %2047 = vmatpush1.msra.mxu0 0.0
    %2048 = vmatprep.subr.mxu0 0.0
    %2049 = vmatpush1.msra.mxu0 0.0
    %2050 = vmatprep.subr.mxu0 0.0
    %2051 = vmatpush1.msra.mxu0 0.0
    %2052 = vmatprep.subr.mxu0 0.0
    %2053 = vmatpush1.msra.mxu0 0.0
    %2054 = vmatprep.subr.mxu0 0.0
    %2055 = vmatpush1.msra.mxu0 0.0
    %2056 = vmatprep.subr.mxu0 0.0
    %2057 = vmatpush1.msra.mxu0 0.0
    %2058 = vmatprep.subr.mxu0 0.0
    %2059 = vmatpush1.msra.mxu0 0.0
    %2060 = vmatprep.subr.mxu0 0.0
    %2061 = vmatpush1.msra.mxu0 0.0
    %2062 = vmatprep.subr.mxu0 0.0
    %2063 = vmatpush1.msra.mxu0 0.0
    %2064 = vmatprep.subr.mxu0 0.0
    %2065 = vmatpush1.msra.mxu0 0.0
    %2066 = vmatprep.mubr.f32.mxu0 0.0
    %2067 = vmatmul.mubr.f32.gmra.mrb[0].mxu0 %v1955
    %v2068 = vpop.f32.mrb[0].mxu0
    %v2069 = vadd.f32 %v1938, %v2068
    %v2070 = vpop.f32.mrb[0].mxu0
    %2071 = vmatprep.mubr.f32.mxu0 0.0
    %2072 = vmatmul.mubr.f32.gmra.mrb[0].mxu0 %v1958
    %v2073 = vpop.f32.mrb[0].mxu0
    %v2074 = vadd.f32 %v1939, %v2073
    %v2075 = vpop.f32.mrb[0].mxu0
    %2076 = vmatprep.mubr.f32.mxu0 0.0
    %2077 = vmatmul.mubr.f32.gmra.mrb[0].mxu0 %v1961
    %v2078 = vpop.f32.mrb[0].mxu0
    %v2079 = vadd.f32 %v1940, %v2078
    %v2080 = vpop.f32.mrb[0].mxu0
    %2081 = vmatprep.mubr.f32.mxu0 0.0
    %2082 = vmatmul.mubr.f32.gmra.mrb[0].mxu0 %v1964
    %v2083 = vpop.f32.mrb[0].mxu0
    %v2084 = vadd.f32 %v1941, %v2083
    %v2085 = vpop.f32.mrb[0].mxu0
    %2086 = vmatprep.mubr.f32.mxu0 0.0
    %2087 = vmatmul.mubr.f32.gmra.mrb[0].mxu0 %v1967
    %v2088 = vpop.f32.mrb[0].mxu0
    %v2089 = vadd.f32 %v1942, %v2088
    %v2090 = vpop.f32.mrb[0].mxu0
    %2091 = vmatprep.mubr.f32.mxu0 0.0
    %2092 = vmatmul.mubr.f32.gmra.mrb[0].mxu0 %v1970
    %v2093 = vpop.f32.mrb[0].mxu0
    %v2094 = vadd.f32 %v1943, %v2093
    %v2095 = vpop.f32.mrb[0].mxu0
    %2096 = vmatprep.mubr.f32.mxu0 0.0
    %2097 = vmatmul.mubr.f32.gmra.mrb[0].mxu0 %v1973
    %v2098 = vpop.f32.mrb[0].mxu0
    %v2099 = vadd.f32 %v1944, %v2098
    %v2100 = vpop.f32.mrb[0].mxu0
    %2101 = vmatprep.mubr.f32.mxu0 0.0
    %2102 = vmatmul.mubr.f32.gmra.mrb[0].mxu0 %v1976
    %v2103 = vpop.f32.mrb[0].mxu0
    %v2104 = vadd.f32 %v1945, %v2103
    %v2105 = vpop.f32.mrb[0].mxu0
    %2106 = vmatprep.mubr.f32.mxu0 0.0
    %2107 = vmatmul.mubr.f32.gmra.mrb[0].mxu0 %v1979
    %v2108 = vpop.f32.mrb[0].mxu0
    %v2109 = vadd.f32 %v1946, %v2108
    %v2110 = vpop.f32.mrb[0].mxu0
    %2111 = vmatprep.mubr.f32.mxu0 0.0
    %2112 = vmatmul.mubr.f32.gmra.mrb[0].mxu0 %v1982
    %v2113 = vpop.f32.mrb[0].mxu0
    %v2114 = vadd.f32 %v1947, %v2113
    %v2115 = vpop.f32.mrb[0].mxu0
    %2116 = vmatprep.mubr.f32.mxu0 0.0
    %2117 = vmatmul.mubr.f32.gmra.mrb[0].mxu0 %v1985
    %v2118 = vpop.f32.mrb[0].mxu0
    %v2119 = vadd.f32 %v1948, %v2118
    %v2120 = vpop.f32.mrb[0].mxu0
    %2121 = vmatprep.mubr.f32.mxu0 0.0
    %2122 = vmatmul.mubr.f32.gmra.mrb[0].mxu0 %v1988
    %v2123 = vpop.f32.mrb[0].mxu0
    %v2124 = vadd.f32 %v1949, %v2123
    %v2125 = vpop.f32.mrb[0].mxu0
    %2126 = vmatprep.mubr.f32.mxu0 0.0
    %2127 = vmatmul.mubr.f32.gmra.mrb[0].mxu0 %v1991
    %v2128 = vpop.f32.mrb[0].mxu0
    %v2129 = vadd.f32 %v1950, %v2128
    %v2130 = vpop.f32.mrb[0].mxu0
    %2131 = vmatprep.mubr.f32.mxu0 0.0
    %2132 = vmatmul.mubr.f32.gmra.mrb[0].mxu0 %v1994
    %v2133 = vpop.f32.mrb[0].mxu0
    %v2134 = vadd.f32 %v1951, %v2133
    %v2135 = vpop.f32.mrb[0].mxu0
    %2136 = vmatprep.mubr.f32.mxu0 0.0
    %2137 = vmatmul.mubr.f32.gmra.mrb[0].mxu0 %v1997
    %v2138 = vpop.f32.mrb[0].mxu0
    %v2139 = vadd.f32 %v1952, %v2138
    %v2140 = vpop.f32.mrb[0].mxu0
    %2141 = vmatprep.mubr.f32.mxu0 0.0
    %2142 = vmatmul.mubr.f32.gmra.mrb[0].mxu0 %v2000
    %v2143 = vpop.f32.mrb[0].mxu0
    %v2144 = vadd.f32 %v1953, %v2143
    %v2145 = vpop.f32.mrb[0].mxu0
    %2146 = vdwg.mxu0
    %v2147 = vmax.f32 %v2069, 0.0
    %v2148 = vmax.f32 %v2074, 0.0
    %v2149 = vmax.f32 %v2079, 0.0
    %v2150 = vmax.f32 %v2084, 0.0
    %v2151 = vmax.f32 %v2089, 0.0
    %v2152 = vmax.f32 %v2094, 0.0
    %v2153 = vmax.f32 %v2099, 0.0
    %v2154 = vmax.f32 %v2104, 0.0
    %v2155 = vmax.f32 %v2109, 0.0
    %v2156 = vmax.f32 %v2114, 0.0
    %v2157 = vmax.f32 %v2119, 0.0
    %v2158 = vmax.f32 %v2124, 0.0
    %v2159 = vmax.f32 %v2129, 0.0
    %v2160 = vmax.f32 %v2134, 0.0
    %v2161 = vmax.f32 %v2139, 0.0
    %v2162 = vmax.f32 %v2144, 0.0
    %v2164 = vsel %vm893, %v2147, 0
    %v2167 = vsel %vm893, %v2148, 0
    %v2170 = vsel %vm893, %v2149, 0
    %v2173 = vsel %vm893, %v2150, 0
    %v2176 = vsel %vm893, %v2151, 0
    %v2179 = vsel %vm893, %v2152, 0
    %v2182 = vsel %vm893, %v2153, 0
    %v2185 = vsel %vm893, %v2154, 0
    %v2188 = vsel %vm893, %v2155, 0
    %v2191 = vsel %vm893, %v2156, 0
    %v2194 = vsel %vm893, %v2157, 0
    %v2197 = vsel %vm893, %v2158, 0
    %v2200 = vsel %vm893, %v2159, 0
    %v2203 = vsel %vm893, %v2160, 0
    %v2206 = vsel %vm893, %v2161, 0
    %v2209 = vsel %vm893, %v2162, 0
    %2211 = vmatprep.subr.mxu0 0.0
    %2212 = vmatpush1.msra.mxu0 %v196
    %2213 = vmatprep.subr.mxu0 0.0
    %2214 = vmatpush1.msra.mxu0 %v197
    %2215 = vmatprep.subr.mxu0 0.0
    %2216 = vmatpush1.msra.mxu0 0.0
    %2217 = vmatprep.subr.mxu0 0.0
    %2218 = vmatpush1.msra.mxu0 0.0
    %2219 = vmatprep.subr.mxu0 0.0
    %2220 = vmatpush1.msra.mxu0 0.0
    %2221 = vmatprep.subr.mxu0 0.0
    %2222 = vmatpush1.msra.mxu0 0.0
    %2223 = vmatprep.subr.mxu0 0.0
    %2224 = vmatpush1.msra.mxu0 0.0
    %2225 = vmatprep.subr.mxu0 0.0
    %2226 = vmatpush1.msra.mxu0 0.0
    %2227 = vmatprep.subr.mxu0 0.0
    %2228 = vmatpush1.msra.mxu0 0.0
    %2229 = vmatprep.subr.mxu0 0.0
    %2230 = vmatpush1.msra.mxu0 0.0
    %2231 = vmatprep.subr.mxu0 0.0
    %2232 = vmatpush1.msra.mxu0 0.0
    %2233 = vmatprep.subr.mxu0 0.0
    %2234 = vmatpush1.msra.mxu0 0.0
    %2235 = vmatprep.subr.mxu0 0.0
    %2236 = vmatpush1.msra.mxu0 0.0
    %2237 = vmatprep.subr.mxu0 0.0
    %2238 = vmatpush1.msra.mxu0 0.0
    %2239 = vmatprep.subr.mxu0 0.0
    %2240 = vmatpush1.msra.mxu0 0.0
    %2241 = vmatprep.subr.mxu0 0.0
    %2242 = vmatpush1.msra.mxu0 0.0
    %2243 = vmatprep.subr.mxu0 0.0
    %2244 = vmatpush1.msra.mxu0 0.0
    %2245 = vmatprep.subr.mxu0 0.0
    %2246 = vmatpush1.msra.mxu0 0.0
    %2247 = vmatprep.subr.mxu0 0.0
    %2248 = vmatpush1.msra.mxu0 0.0
    %2249 = vmatprep.subr.mxu0 0.0
    %2250 = vmatpush1.msra.mxu0 0.0
    %2251 = vmatprep.subr.mxu0 0.0
    %2252 = vmatpush1.msra.mxu0 0.0
    %2253 = vmatprep.subr.mxu0 0.0
    %2254 = vmatpush1.msra.mxu0 0.0
    %2255 = vmatprep.subr.mxu0 0.0
    %2256 = vmatpush1.msra.mxu0 0.0
    %2257 = vmatprep.subr.mxu0 0.0
    %2258 = vmatpush1.msra.mxu0 0.0
    %2259 = vmatprep.subr.mxu0 0.0
    %2260 = vmatpush1.msra.mxu0 0.0
    %2261 = vmatprep.subr.mxu0 0.0
    %2262 = vmatpush1.msra.mxu0 0.0
    %2263 = vmatprep.subr.mxu0 0.0
    %2264 = vmatpush1.msra.mxu0 0.0
    %2265 = vmatprep.subr.mxu0 0.0
    %2266 = vmatpush1.msra.mxu0 0.0
    %2267 = vmatprep.subr.mxu0 0.0
    %2268 = vmatpush1.msra.mxu0 0.0
    %2269 = vmatprep.subr.mxu0 0.0
    %2270 = vmatpush1.msra.mxu0 0.0
    %2271 = vmatprep.subr.mxu0 0.0
    %2272 = vmatpush1.msra.mxu0 0.0
    %2273 = vmatprep.subr.mxu0 0.0
    %2274 = vmatpush1.msra.mxu0 0.0
    %2275 = vmatprep.mubr.f32.mxu0 0.0
    %2276 = vmatmul.mubr.f32.gmra.mrb[0].mxu0 %v2164
    %v2277 = vpop.f32.mrb[0].mxu0
    %v2278 = vadd.f32 0.0, %v2277
    %v2279 = vpop.f32.mrb[0].mxu0
    %2280 = vmatprep.mubr.f32.mxu0 0.0
    %2281 = vmatmul.mubr.f32.gmra.mrb[0].mxu0 %v2167
    %v2282 = vpop.f32.mrb[0].mxu0
    %v2283 = vadd.f32 0.0, %v2282
    %v2284 = vpop.f32.mrb[0].mxu0
    %2285 = vmatprep.mubr.f32.mxu0 0.0
    %2286 = vmatmul.mubr.f32.gmra.mrb[0].mxu0 %v2170
    %v2287 = vpop.f32.mrb[0].mxu0
    %v2288 = vadd.f32 0.0, %v2287
    %v2289 = vpop.f32.mrb[0].mxu0
    %2290 = vmatprep.mubr.f32.mxu0 0.0
    %2291 = vmatmul.mubr.f32.gmra.mrb[0].mxu0 %v2173
    %v2292 = vpop.f32.mrb[0].mxu0
    %v2293 = vadd.f32 0.0, %v2292
    %v2294 = vpop.f32.mrb[0].mxu0
    %2295 = vmatprep.mubr.f32.mxu0 0.0
    %2296 = vmatmul.mubr.f32.gmra.mrb[0].mxu0 %v2176
    %v2297 = vpop.f32.mrb[0].mxu0
    %v2298 = vadd.f32 0.0, %v2297
    %v2299 = vpop.f32.mrb[0].mxu0
    %2300 = vmatprep.mubr.f32.mxu0 0.0
    %2301 = vmatmul.mubr.f32.gmra.mrb[0].mxu0 %v2179
    %v2302 = vpop.f32.mrb[0].mxu0
    %v2303 = vadd.f32 0.0, %v2302
    %v2304 = vpop.f32.mrb[0].mxu0
    %2305 = vmatprep.mubr.f32.mxu0 0.0
    %2306 = vmatmul.mubr.f32.gmra.mrb[0].mxu0 %v2182
    %v2307 = vpop.f32.mrb[0].mxu0
    %v2308 = vadd.f32 0.0, %v2307
    %v2309 = vpop.f32.mrb[0].mxu0
    %2310 = vmatprep.mubr.f32.mxu0 0.0
    %2311 = vmatmul.mubr.f32.gmra.mrb[0].mxu0 %v2185
    %v2312 = vpop.f32.mrb[0].mxu0
    %v2313 = vadd.f32 0.0, %v2312
    %v2314 = vpop.f32.mrb[0].mxu0
    %2315 = vmatprep.mubr.f32.mxu0 0.0
    %2316 = vmatmul.mubr.f32.gmra.mrb[0].mxu0 %v2188
    %v2317 = vpop.f32.mrb[0].mxu0
    %v2318 = vadd.f32 0.0, %v2317
    %v2319 = vpop.f32.mrb[0].mxu0
    %2320 = vmatprep.mubr.f32.mxu0 0.0
    %2321 = vmatmul.mubr.f32.gmra.mrb[0].mxu0 %v2191
    %v2322 = vpop.f32.mrb[0].mxu0
    %v2323 = vadd.f32 0.0, %v2322
    %v2324 = vpop.f32.mrb[0].mxu0
    %2325 = vmatprep.mubr.f32.mxu0 0.0
    %2326 = vmatmul.mubr.f32.gmra.mrb[0].mxu0 %v2194
    %v2327 = vpop.f32.mrb[0].mxu0
    %v2328 = vadd.f32 0.0, %v2327
    %v2329 = vpop.f32.mrb[0].mxu0
    %2330 = vmatprep.mubr.f32.mxu0 0.0
    %2331 = vmatmul.mubr.f32.gmra.mrb[0].mxu0 %v2197
    %v2332 = vpop.f32.mrb[0].mxu0
    %v2333 = vadd.f32 0.0, %v2332
    %v2334 = vpop.f32.mrb[0].mxu0
    %2335 = vmatprep.mubr.f32.mxu0 0.0
    %2336 = vmatmul.mubr.f32.gmra.mrb[0].mxu0 %v2200
    %v2337 = vpop.f32.mrb[0].mxu0
    %v2338 = vadd.f32 0.0, %v2337
    %v2339 = vpop.f32.mrb[0].mxu0
    %2340 = vmatprep.mubr.f32.mxu0 0.0
    %2341 = vmatmul.mubr.f32.gmra.mrb[0].mxu0 %v2203
    %v2342 = vpop.f32.mrb[0].mxu0
    %v2343 = vadd.f32 0.0, %v2342
    %v2344 = vpop.f32.mrb[0].mxu0
    %2345 = vmatprep.mubr.f32.mxu0 0.0
    %2346 = vmatmul.mubr.f32.gmra.mrb[0].mxu0 %v2206
    %v2347 = vpop.f32.mrb[0].mxu0
    %v2348 = vadd.f32 0.0, %v2347
    %v2349 = vpop.f32.mrb[0].mxu0
    %2350 = vmatprep.mubr.f32.mxu0 0.0
    %2351 = vmatmul.mubr.f32.gmra.mrb[0].mxu0 %v2209
    %v2352 = vpop.f32.mrb[0].mxu0
    %v2353 = vadd.f32 0.0, %v2352
    %v2354 = vpop.f32.mrb[0].mxu0
    %2355 = vdwg.mxu0
    %v2356 = vadd.f32 %v1810, %v2278
    %v2357 = vadd.f32 %v1811, %v2283
    %v2358 = vadd.f32 %v1812, %v2288
    %v2359 = vadd.f32 %v1813, %v2293
    %v2360 = vadd.f32 %v1814, %v2298
    %v2361 = vadd.f32 %v1815, %v2303
    %v2362 = vadd.f32 %v1816, %v2308
    %v2363 = vadd.f32 %v1817, %v2313
    %v2364 = vadd.f32 %v1818, %v2318
    %v2365 = vadd.f32 %v1819, %v2323
    %v2366 = vadd.f32 %v1820, %v2328
    %v2367 = vadd.f32 %v1821, %v2333
    %v2368 = vadd.f32 %v1822, %v2338
    %v2369 = vadd.f32 %v1823, %v2343
    %v2370 = vadd.f32 %v1824, %v2348
    %v2371 = vadd.f32 %v1825, %v2353
    %v2372 = vld [vmem:[%s0 + $0x200] sm:$0xff]
    %v2373 = vld [vmem:[%s0 + $0x208] sm:$0xff]
    %v2374 = vld [vmem:[%s0 + $0x210] sm:$0xff]
    %v2375 = vld [vmem:[%s0 + $0x218] sm:$0xff]
    %v2376 = vld [vmem:[%s0 + $0x220] sm:$0xff]
    %v2377 = vld [vmem:[%s0 + $0x228] sm:$0xff]
    %v2378 = vld [vmem:[%s0 + $0x230] sm:$0xff]
    %v2379 = vld [vmem:[%s0 + $0x238] sm:$0xff]
    %v2380 = vld [vmem:[%s0 + $0x240] sm:$0xff]
    %v2381 = vld [vmem:[%s0 + $0x248] sm:$0xff]
    %v2382 = vld [vmem:[%s0 + $0x250] sm:$0xff]
    %v2383 = vld [vmem:[%s0 + $0x258] sm:$0xff]
    %v2384 = vld [vmem:[%s0 + $0x260] sm:$0xff]
    %v2385 = vld [vmem:[%s0 + $0x268] sm:$0xff]
    %v2386 = vld [vmem:[%s0 + $0x270] sm:$0xff]
    %v2387 = vld [vmem:[%s0 + $0x278] sm:$0xff]
    %v2388 = vld [vmem:[%s1 + $0x200] sm:$0xff]
    %v2389 = vld [vmem:[%s1 + $0x208] sm:$0xff]
    %v2390 = vld [vmem:[%s1 + $0x210] sm:$0xff]
    %v2391 = vld [vmem:[%s1 + $0x218] sm:$0xff]
    %v2392 = vld [vmem:[%s1 + $0x220] sm:$0xff]
    %v2393 = vld [vmem:[%s1 + $0x228] sm:$0xff]
    %v2394 = vld [vmem:[%s1 + $0x230] sm:$0xff]
    %v2395 = vld [vmem:[%s1 + $0x238] sm:$0xff]
    %v2396 = vld [vmem:[%s1 + $0x240] sm:$0xff]
    %v2397 = vld [vmem:[%s1 + $0x248] sm:$0xff]
    %v2398 = vld [vmem:[%s1 + $0x250] sm:$0xff]
    %v2399 = vld [vmem:[%s1 + $0x258] sm:$0xff]
    %v2400 = vld [vmem:[%s1 + $0x260] sm:$0xff]
    %v2401 = vld [vmem:[%s1 + $0x268] sm:$0xff]
    %v2402 = vld [vmem:[%s1 + $0x270] sm:$0xff]
    %v2403 = vld [vmem:[%s1 + $0x278] sm:$0xff]
    %2405 = vset.pattern.permute.xlu0 0
    %2406 = vperm.xlu0 %2405, %v2388
    %v2407 = vpop.permute.xlu0 %2406
    %2410 = vset.pattern.permute.xlu0 0
    %2411 = vperm.xlu0 %2410, %v2389
    %v2412 = vpop.permute.xlu0 %2411
    %2415 = vset.pattern.permute.xlu0 0
    %2416 = vperm.xlu0 %2415, %v2390
    %v2417 = vpop.permute.xlu0 %2416
    %2420 = vset.pattern.permute.xlu0 0
    %2421 = vperm.xlu0 %2420, %v2391
    %v2422 = vpop.permute.xlu0 %2421
    %2425 = vset.pattern.permute.xlu0 0
    %2426 = vperm.xlu0 %2425, %v2392
    %v2427 = vpop.permute.xlu0 %2426
    %2430 = vset.pattern.permute.xlu0 0
    %2431 = vperm.xlu0 %2430, %v2393
    %v2432 = vpop.permute.xlu0 %2431
    %2435 = vset.pattern.permute.xlu0 0
    %2436 = vperm.xlu0 %2435, %v2394
    %v2437 = vpop.permute.xlu0 %2436
    %2440 = vset.pattern.permute.xlu0 0
    %2441 = vperm.xlu0 %2440, %v2395
    %v2442 = vpop.permute.xlu0 %2441
    %2445 = vset.pattern.permute.xlu0 0
    %2446 = vperm.xlu0 %2445, %v2396
    %v2447 = vpop.permute.xlu0 %2446
    %2450 = vset.pattern.permute.xlu0 0
    %2451 = vperm.xlu0 %2450, %v2397
    %v2452 = vpop.permute.xlu0 %2451
    %2455 = vset.pattern.permute.xlu0 0
    %2456 = vperm.xlu0 %2455, %v2398
    %v2457 = vpop.permute.xlu0 %2456
    %2460 = vset.pattern.permute.xlu0 0
    %2461 = vperm.xlu0 %2460, %v2399
    %v2462 = vpop.permute.xlu0 %2461
    %2465 = vset.pattern.permute.xlu0 0
    %2466 = vperm.xlu0 %2465, %v2400
    %v2467 = vpop.permute.xlu0 %2466
    %2470 = vset.pattern.permute.xlu0 0
    %2471 = vperm.xlu0 %2470, %v2401
    %v2472 = vpop.permute.xlu0 %2471
    %2475 = vset.pattern.permute.xlu0 0
    %2476 = vperm.xlu0 %2475, %v2402
    %v2477 = vpop.permute.xlu0 %2476
    %2480 = vset.pattern.permute.xlu0 0
    %2481 = vperm.xlu0 %2480, %v2403
    %v2482 = vpop.permute.xlu0 %2481
    %v2484 = vmul.f32 %v2407, %v324
    %v2485 = vmul.f32 %v2412, %v324
    %v2486 = vmul.f32 %v2417, %v324
    %v2487 = vmul.f32 %v2422, %v324
    %v2488 = vmul.f32 %v2427, %v324
    %v2489 = vmul.f32 %v2432, %v324
    %v2490 = vmul.f32 %v2437, %v324
    %v2491 = vmul.f32 %v2442, %v324
    %v2492 = vmul.f32 %v2447, %v324
    %v2493 = vmul.f32 %v2452, %v324
    %v2494 = vmul.f32 %v2457, %v324
    %v2495 = vmul.f32 %v2462, %v324
    %v2496 = vmul.f32 %v2467, %v324
    %v2497 = vmul.f32 %v2472, %v324
    %v2498 = vmul.f32 %v2477, %v324
    %v2499 = vmul.f32 %v2482, %v324
    %v2501 = vsel %vm342, %v2372, 0
    %v2504 = vsel %vm342, %v2373, 0
    %v2507 = vsel %vm342, %v2374, 0
    %v2510 = vsel %vm342, %v2375, 0
    %v2513 = vsel %vm342, %v2376, 0
    %v2516 = vsel %vm342, %v2377, 0
    %v2519 = vsel %vm342, %v2378, 0
    %v2522 = vsel %vm342, %v2379, 0
    %v2525 = vsel %vm342, %v2380, 0
    %v2528 = vsel %vm342, %v2381, 0
    %v2531 = vsel %vm342, %v2382, 0
    %v2534 = vsel %vm342, %v2383, 0
    %v2537 = vsel %vm342, %v2384, 0
    %v2540 = vsel %vm342, %v2385, 0
    %v2543 = vsel %vm342, %v2386, 0
    %v2546 = vsel %vm342, %v2387, 0
    %2548 = vmatprep.subr.mxu0 0.0
    %2549 = vmatpush1.msra.mxu0 %v184
    %2550 = vmatprep.subr.mxu0 0.0
    %2551 = vmatpush1.msra.mxu0 %v185
    %2552 = vmatprep.subr.mxu0 0.0
    %2553 = vmatpush1.msra.mxu0 %v186
    %2554 = vmatprep.subr.mxu0 0.0
    %2555 = vmatpush1.msra.mxu0 %v187
    %2556 = vmatprep.subr.mxu0 0.0
    %2557 = vmatpush1.msra.mxu0 %v393
    %2558 = vmatprep.subr.mxu0 0.0
    %2559 = vmatpush1.msra.mxu0 0.0
    %2560 = vmatprep.subr.mxu0 0.0
    %2561 = vmatpush1.msra.mxu0 0.0
    %2562 = vmatprep.subr.mxu0 0.0
    %2563 = vmatpush1.msra.mxu0 0.0
    %2564 = vmatprep.subr.mxu0 0.0
    %2565 = vmatpush1.msra.mxu0 0.0
    %2566 = vmatprep.subr.mxu0 0.0
    %2567 = vmatpush1.msra.mxu0 0.0
    %2568 = vmatprep.subr.mxu0 0.0
    %2569 = vmatpush1.msra.mxu0 0.0
    %2570 = vmatprep.subr.mxu0 0.0
    %2571 = vmatpush1.msra.mxu0 0.0
    %2572 = vmatprep.subr.mxu0 0.0
    %2573 = vmatpush1.msra.mxu0 0.0
    %2574 = vmatprep.subr.mxu0 0.0
    %2575 = vmatpush1.msra.mxu0 0.0
    %2576 = vmatprep.subr.mxu0 0.0
    %2577 = vmatpush1.msra.mxu0 0.0
    %2578 = vmatprep.subr.mxu0 0.0
    %2579 = vmatpush1.msra.mxu0 0.0
    %2580 = vmatprep.subr.mxu0 0.0
    %2581 = vmatpush1.msra.mxu0 0.0
    %2582 = vmatprep.subr.mxu0 0.0
    %2583 = vmatpush1.msra.mxu0 0.0
    %2584 = vmatprep.subr.mxu0 0.0
    %2585 = vmatpush1.msra.mxu0 0.0
    %2586 = vmatprep.subr.mxu0 0.0
    %2587 = vmatpush1.msra.mxu0 0.0
    %2588 = vmatprep.subr.mxu0 0.0
    %2589 = vmatpush1.msra.mxu0 0.0
    %2590 = vmatprep.subr.mxu0 0.0
    %2591 = vmatpush1.msra.mxu0 0.0
    %2592 = vmatprep.subr.mxu0 0.0
    %2593 = vmatpush1.msra.mxu0 0.0
    %2594 = vmatprep.subr.mxu0 0.0
    %2595 = vmatpush1.msra.mxu0 0.0
    %2596 = vmatprep.subr.mxu0 0.0
    %2597 = vmatpush1.msra.mxu0 0.0
    %2598 = vmatprep.subr.mxu0 0.0
    %2599 = vmatpush1.msra.mxu0 0.0
    %2600 = vmatprep.subr.mxu0 0.0
    %2601 = vmatpush1.msra.mxu0 0.0
    %2602 = vmatprep.subr.mxu0 0.0
    %2603 = vmatpush1.msra.mxu0 0.0
    %2604 = vmatprep.subr.mxu0 0.0
    %2605 = vmatpush1.msra.mxu0 0.0
    %2606 = vmatprep.subr.mxu0 0.0
    %2607 = vmatpush1.msra.mxu0 0.0
    %2608 = vmatprep.subr.mxu0 0.0
    %2609 = vmatpush1.msra.mxu0 0.0
    %2610 = vmatprep.subr.mxu0 0.0
    %2611 = vmatpush1.msra.mxu0 0.0
    %2612 = vmatprep.mubr.f32.mxu0 0.0
    %2613 = vmatmul.mubr.f32.gmra.mrb[0].mxu0 %v2501
    %v2614 = vpop.f32.mrb[0].mxu0
    %v2615 = vadd.f32 %v2484, %v2614
    %v2616 = vpop.f32.mrb[0].mxu0
    %2617 = vmatprep.mubr.f32.mxu0 0.0
    %2618 = vmatmul.mubr.f32.gmra.mrb[0].mxu0 %v2504
    %v2619 = vpop.f32.mrb[0].mxu0
    %v2620 = vadd.f32 %v2485, %v2619
    %v2621 = vpop.f32.mrb[0].mxu0
    %2622 = vmatprep.mubr.f32.mxu0 0.0
    %2623 = vmatmul.mubr.f32.gmra.mrb[0].mxu0 %v2507
    %v2624 = vpop.f32.mrb[0].mxu0
    %v2625 = vadd.f32 %v2486, %v2624
    %v2626 = vpop.f32.mrb[0].mxu0
    %2627 = vmatprep.mubr.f32.mxu0 0.0
    %2628 = vmatmul.mubr.f32.gmra.mrb[0].mxu0 %v2510
    %v2629 = vpop.f32.mrb[0].mxu0
    %v2630 = vadd.f32 %v2487, %v2629
    %v2631 = vpop.f32.mrb[0].mxu0
    %2632 = vmatprep.mubr.f32.mxu0 0.0
    %2633 = vmatmul.mubr.f32.gmra.mrb[0].mxu0 %v2513
    %v2634 = vpop.f32.mrb[0].mxu0
    %v2635 = vadd.f32 %v2488, %v2634
    %v2636 = vpop.f32.mrb[0].mxu0
    %2637 = vmatprep.mubr.f32.mxu0 0.0
    %2638 = vmatmul.mubr.f32.gmra.mrb[0].mxu0 %v2516
    %v2639 = vpop.f32.mrb[0].mxu0
    %v2640 = vadd.f32 %v2489, %v2639
    %v2641 = vpop.f32.mrb[0].mxu0
    %2642 = vmatprep.mubr.f32.mxu0 0.0
    %2643 = vmatmul.mubr.f32.gmra.mrb[0].mxu0 %v2519
    %v2644 = vpop.f32.mrb[0].mxu0
    %v2645 = vadd.f32 %v2490, %v2644
    %v2646 = vpop.f32.mrb[0].mxu0
    %2647 = vmatprep.mubr.f32.mxu0 0.0
    %2648 = vmatmul.mubr.f32.gmra.mrb[0].mxu0 %v2522
    %v2649 = vpop.f32.mrb[0].mxu0
    %v2650 = vadd.f32 %v2491, %v2649
    %v2651 = vpop.f32.mrb[0].mxu0
    %2652 = vmatprep.mubr.f32.mxu0 0.0
    %2653 = vmatmul.mubr.f32.gmra.mrb[0].mxu0 %v2525
    %v2654 = vpop.f32.mrb[0].mxu0
    %v2655 = vadd.f32 %v2492, %v2654
    %v2656 = vpop.f32.mrb[0].mxu0
    %2657 = vmatprep.mubr.f32.mxu0 0.0
    %2658 = vmatmul.mubr.f32.gmra.mrb[0].mxu0 %v2528
    %v2659 = vpop.f32.mrb[0].mxu0
    %v2660 = vadd.f32 %v2493, %v2659
    %v2661 = vpop.f32.mrb[0].mxu0
    %2662 = vmatprep.mubr.f32.mxu0 0.0
    %2663 = vmatmul.mubr.f32.gmra.mrb[0].mxu0 %v2531
    %v2664 = vpop.f32.mrb[0].mxu0
    %v2665 = vadd.f32 %v2494, %v2664
    %v2666 = vpop.f32.mrb[0].mxu0
    %2667 = vmatprep.mubr.f32.mxu0 0.0
    %2668 = vmatmul.mubr.f32.gmra.mrb[0].mxu0 %v2534
    %v2669 = vpop.f32.mrb[0].mxu0
    %v2670 = vadd.f32 %v2495, %v2669
    %v2671 = vpop.f32.mrb[0].mxu0
    %2672 = vmatprep.mubr.f32.mxu0 0.0
    %2673 = vmatmul.mubr.f32.gmra.mrb[0].mxu0 %v2537
    %v2674 = vpop.f32.mrb[0].mxu0
    %v2675 = vadd.f32 %v2496, %v2674
    %v2676 = vpop.f32.mrb[0].mxu0
    %2677 = vmatprep.mubr.f32.mxu0 0.0
    %2678 = vmatmul.mubr.f32.gmra.mrb[0].mxu0 %v2540
    %v2679 = vpop.f32.mrb[0].mxu0
    %v2680 = vadd.f32 %v2497, %v2679
    %v2681 = vpop.f32.mrb[0].mxu0
    %2682 = vmatprep.mubr.f32.mxu0 0.0
    %2683 = vmatmul.mubr.f32.gmra.mrb[0].mxu0 %v2543
    %v2684 = vpop.f32.mrb[0].mxu0
    %v2685 = vadd.f32 %v2498, %v2684
    %v2686 = vpop.f32.mrb[0].mxu0
    %2687 = vmatprep.mubr.f32.mxu0 0.0
    %2688 = vmatmul.mubr.f32.gmra.mrb[0].mxu0 %v2546
    %v2689 = vpop.f32.mrb[0].mxu0
    %v2690 = vadd.f32 %v2499, %v2689
    %v2691 = vpop.f32.mrb[0].mxu0
    %2692 = vdwg.mxu0
    %v2693 = vmax.f32 %v2615, 0.0
    %v2694 = vmax.f32 %v2620, 0.0
    %v2695 = vmax.f32 %v2625, 0.0
    %v2696 = vmax.f32 %v2630, 0.0
    %v2697 = vmax.f32 %v2635, 0.0
    %v2698 = vmax.f32 %v2640, 0.0
    %v2699 = vmax.f32 %v2645, 0.0
    %v2700 = vmax.f32 %v2650, 0.0
    %v2701 = vmax.f32 %v2655, 0.0
    %v2702 = vmax.f32 %v2660, 0.0
    %v2703 = vmax.f32 %v2665, 0.0
    %v2704 = vmax.f32 %v2670, 0.0
    %v2705 = vmax.f32 %v2675, 0.0
    %v2706 = vmax.f32 %v2680, 0.0
    %v2707 = vmax.f32 %v2685, 0.0
    %v2708 = vmax.f32 %v2690, 0.0
    %v2710 = vsel %vm893, %v2693, 0
    %v2713 = vsel %vm893, %v2694, 0
    %v2716 = vsel %vm893, %v2695, 0
    %v2719 = vsel %vm893, %v2696, 0
    %v2722 = vsel %vm893, %v2697, 0
    %v2725 = vsel %vm893, %v2698, 0
    %v2728 = vsel %vm893, %v2699, 0
    %v2731 = vsel %vm893, %v2700, 0
    %v2734 = vsel %vm893, %v2701, 0
    %v2737 = vsel %vm893, %v2702, 0
    %v2740 = vsel %vm893, %v2703, 0
    %v2743 = vsel %vm893, %v2704, 0
    %v2746 = vsel %vm893, %v2705, 0
    %v2749 = vsel %vm893, %v2706, 0
    %v2752 = vsel %vm893, %v2707, 0
    %v2755 = vsel %vm893, %v2708, 0
    %2757 = vmatprep.subr.mxu0 0.0
    %2758 = vmatpush1.msra.mxu0 %v198
    %2759 = vmatprep.subr.mxu0 0.0
    %2760 = vmatpush1.msra.mxu0 %v199
    %2761 = vmatprep.subr.mxu0 0.0
    %2762 = vmatpush1.msra.mxu0 0.0
    %2763 = vmatprep.subr.mxu0 0.0
    %2764 = vmatpush1.msra.mxu0 0.0
    %2765 = vmatprep.subr.mxu0 0.0
    %2766 = vmatpush1.msra.mxu0 0.0
    %2767 = vmatprep.subr.mxu0 0.0
    %2768 = vmatpush1.msra.mxu0 0.0
    %2769 = vmatprep.subr.mxu0 0.0
    %2770 = vmatpush1.msra.mxu0 0.0
    %2771 = vmatprep.subr.mxu0 0.0
    %2772 = vmatpush1.msra.mxu0 0.0
    %2773 = vmatprep.subr.mxu0 0.0
    %2774 = vmatpush1.msra.mxu0 0.0
    %2775 = vmatprep.subr.mxu0 0.0
    %2776 = vmatpush1.msra.mxu0 0.0
    %2777 = vmatprep.subr.mxu0 0.0
    %2778 = vmatpush1.msra.mxu0 0.0
    %2779 = vmatprep.subr.mxu0 0.0
    %2780 = vmatpush1.msra.mxu0 0.0
    %2781 = vmatprep.subr.mxu0 0.0
    %2782 = vmatpush1.msra.mxu0 0.0
    %2783 = vmatprep.subr.mxu0 0.0
    %2784 = vmatpush1.msra.mxu0 0.0
    %2785 = vmatprep.subr.mxu0 0.0
    %2786 = vmatpush1.msra.mxu0 0.0
    %2787 = vmatprep.subr.mxu0 0.0
    %2788 = vmatpush1.msra.mxu0 0.0
    %2789 = vmatprep.subr.mxu0 0.0
    %2790 = vmatpush1.msra.mxu0 0.0
    %2791 = vmatprep.subr.mxu0 0.0
    %2792 = vmatpush1.msra.mxu0 0.0
    %2793 = vmatprep.subr.mxu0 0.0
    %2794 = vmatpush1.msra.mxu0 0.0
    %2795 = vmatprep.subr.mxu0 0.0
    %2796 = vmatpush1.msra.mxu0 0.0
    %2797 = vmatprep.subr.mxu0 0.0
    %2798 = vmatpush1.msra.mxu0 0.0
    %2799 = vmatprep.subr.mxu0 0.0
    %2800 = vmatpush1.msra.mxu0 0.0
    %2801 = vmatprep.subr.mxu0 0.0
    %2802 = vmatpush1.msra.mxu0 0.0
    %2803 = vmatprep.subr.mxu0 0.0
    %2804 = vmatpush1.msra.mxu0 0.0
    %2805 = vmatprep.subr.mxu0 0.0
    %2806 = vmatpush1.msra.mxu0 0.0
    %2807 = vmatprep.subr.mxu0 0.0
    %2808 = vmatpush1.msra.mxu0 0.0
    %2809 = vmatprep.subr.mxu0 0.0
    %2810 = vmatpush1.msra.mxu0 0.0
    %2811 = vmatprep.subr.mxu0 0.0
    %2812 = vmatpush1.msra.mxu0 0.0
    %2813 = vmatprep.subr.mxu0 0.0
    %2814 = vmatpush1.msra.mxu0 0.0
    %2815 = vmatprep.subr.mxu0 0.0
    %2816 = vmatpush1.msra.mxu0 0.0
    %2817 = vmatprep.subr.mxu0 0.0
    %2818 = vmatpush1.msra.mxu0 0.0
    %2819 = vmatprep.subr.mxu0 0.0
    %2820 = vmatpush1.msra.mxu0 0.0
    %2821 = vmatprep.mubr.f32.mxu0 0.0
    %2822 = vmatmul.mubr.f32.gmra.mrb[0].mxu0 %v2710
    %v2823 = vpop.f32.mrb[0].mxu0
    %v2824 = vadd.f32 0.0, %v2823
    %v2825 = vpop.f32.mrb[0].mxu0
    %2826 = vmatprep.mubr.f32.mxu0 0.0
    %2827 = vmatmul.mubr.f32.gmra.mrb[0].mxu0 %v2713
    %v2828 = vpop.f32.mrb[0].mxu0
    %v2829 = vadd.f32 0.0, %v2828
    %v2830 = vpop.f32.mrb[0].mxu0
    %2831 = vmatprep.mubr.f32.mxu0 0.0
    %2832 = vmatmul.mubr.f32.gmra.mrb[0].mxu0 %v2716
    %v2833 = vpop.f32.mrb[0].mxu0
    %v2834 = vadd.f32 0.0, %v2833
    %v2835 = vpop.f32.mrb[0].mxu0
    %2836 = vmatprep.mubr.f32.mxu0 0.0
    %2837 = vmatmul.mubr.f32.gmra.mrb[0].mxu0 %v2719
    %v2838 = vpop.f32.mrb[0].mxu0
    %v2839 = vadd.f32 0.0, %v2838
    %v2840 = vpop.f32.mrb[0].mxu0
    %2841 = vmatprep.mubr.f32.mxu0 0.0
    %2842 = vmatmul.mubr.f32.gmra.mrb[0].mxu0 %v2722
    %v2843 = vpop.f32.mrb[0].mxu0
    %v2844 = vadd.f32 0.0, %v2843
    %v2845 = vpop.f32.mrb[0].mxu0
    %2846 = vmatprep.mubr.f32.mxu0 0.0
    %2847 = vmatmul.mubr.f32.gmra.mrb[0].mxu0 %v2725
    %v2848 = vpop.f32.mrb[0].mxu0
    %v2849 = vadd.f32 0.0, %v2848
    %v2850 = vpop.f32.mrb[0].mxu0
    %2851 = vmatprep.mubr.f32.mxu0 0.0
    %2852 = vmatmul.mubr.f32.gmra.mrb[0].mxu0 %v2728
    %v2853 = vpop.f32.mrb[0].mxu0
    %v2854 = vadd.f32 0.0, %v2853
    %v2855 = vpop.f32.mrb[0].mxu0
    %2856 = vmatprep.mubr.f32.mxu0 0.0
    %2857 = vmatmul.mubr.f32.gmra.mrb[0].mxu0 %v2731
    %v2858 = vpop.f32.mrb[0].mxu0
    %v2859 = vadd.f32 0.0, %v2858
    %v2860 = vpop.f32.mrb[0].mxu0
    %2861 = vmatprep.mubr.f32.mxu0 0.0
    %2862 = vmatmul.mubr.f32.gmra.mrb[0].mxu0 %v2734
    %v2863 = vpop.f32.mrb[0].mxu0
    %v2864 = vadd.f32 0.0, %v2863
    %v2865 = vpop.f32.mrb[0].mxu0
    %2866 = vmatprep.mubr.f32.mxu0 0.0
    %2867 = vmatmul.mubr.f32.gmra.mrb[0].mxu0 %v2737
    %v2868 = vpop.f32.mrb[0].mxu0
    %v2869 = vadd.f32 0.0, %v2868
    %v2870 = vpop.f32.mrb[0].mxu0
    %2871 = vmatprep.mubr.f32.mxu0 0.0
    %2872 = vmatmul.mubr.f32.gmra.mrb[0].mxu0 %v2740
    %v2873 = vpop.f32.mrb[0].mxu0
    %v2874 = vadd.f32 0.0, %v2873
    %v2875 = vpop.f32.mrb[0].mxu0
    %2876 = vmatprep.mubr.f32.mxu0 0.0
    %2877 = vmatmul.mubr.f32.gmra.mrb[0].mxu0 %v2743
    %v2878 = vpop.f32.mrb[0].mxu0
    %v2879 = vadd.f32 0.0, %v2878
    %v2880 = vpop.f32.mrb[0].mxu0
    %2881 = vmatprep.mubr.f32.mxu0 0.0
    %2882 = vmatmul.mubr.f32.gmra.mrb[0].mxu0 %v2746
    %v2883 = vpop.f32.mrb[0].mxu0
    %v2884 = vadd.f32 0.0, %v2883
    %v2885 = vpop.f32.mrb[0].mxu0
    %2886 = vmatprep.mubr.f32.mxu0 0.0
    %2887 = vmatmul.mubr.f32.gmra.mrb[0].mxu0 %v2749
    %v2888 = vpop.f32.mrb[0].mxu0
    %v2889 = vadd.f32 0.0, %v2888
    %v2890 = vpop.f32.mrb[0].mxu0
    %2891 = vmatprep.mubr.f32.mxu0 0.0
    %2892 = vmatmul.mubr.f32.gmra.mrb[0].mxu0 %v2752
    %v2893 = vpop.f32.mrb[0].mxu0
    %v2894 = vadd.f32 0.0, %v2893
    %v2895 = vpop.f32.mrb[0].mxu0
    %2896 = vmatprep.mubr.f32.mxu0 0.0
    %2897 = vmatmul.mubr.f32.gmra.mrb[0].mxu0 %v2755
    %v2898 = vpop.f32.mrb[0].mxu0
    %v2899 = vadd.f32 0.0, %v2898
    %v2900 = vpop.f32.mrb[0].mxu0
    %2901 = vdwg.mxu0
    %v2902 = vadd.f32 %v2356, %v2824
    %v2903 = vadd.f32 %v2357, %v2829
    %v2904 = vadd.f32 %v2358, %v2834
    %v2905 = vadd.f32 %v2359, %v2839
    %v2906 = vadd.f32 %v2360, %v2844
    %v2907 = vadd.f32 %v2361, %v2849
    %v2908 = vadd.f32 %v2362, %v2854
    %v2909 = vadd.f32 %v2363, %v2859
    %v2910 = vadd.f32 %v2364, %v2864
    %v2911 = vadd.f32 %v2365, %v2869
    %v2912 = vadd.f32 %v2366, %v2874
    %v2913 = vadd.f32 %v2367, %v2879
    %v2914 = vadd.f32 %v2368, %v2884
    %v2915 = vadd.f32 %v2369, %v2889
    %v2916 = vadd.f32 %v2370, %v2894
    %v2917 = vadd.f32 %v2371, %v2899
    %v2918 = vld [vmem:[%s0 + $0x280] sm:$0xff]
    %v2919 = vld [vmem:[%s0 + $0x288] sm:$0xff]
    %v2920 = vld [vmem:[%s0 + $0x290] sm:$0xff]
    %v2921 = vld [vmem:[%s0 + $0x298] sm:$0xff]
    %v2922 = vld [vmem:[%s0 + $0x2a0] sm:$0xff]
    %v2923 = vld [vmem:[%s0 + $0x2a8] sm:$0xff]
    %v2924 = vld [vmem:[%s0 + $0x2b0] sm:$0xff]
    %v2925 = vld [vmem:[%s0 + $0x2b8] sm:$0xff]
    %v2926 = vld [vmem:[%s0 + $0x2c0] sm:$0xff]
    %v2927 = vld [vmem:[%s0 + $0x2c8] sm:$0xff]
    %v2928 = vld [vmem:[%s0 + $0x2d0] sm:$0xff]
    %v2929 = vld [vmem:[%s0 + $0x2d8] sm:$0xff]
    %v2930 = vld [vmem:[%s0 + $0x2e0] sm:$0xff]
    %v2931 = vld [vmem:[%s0 + $0x2e8] sm:$0xff]
    %v2932 = vld [vmem:[%s0 + $0x2f0] sm:$0xff]
    %v2933 = vld [vmem:[%s0 + $0x2f8] sm:$0xff]
    %v2934 = vld [vmem:[%s1 + $0x280] sm:$0xff]
    %v2935 = vld [vmem:[%s1 + $0x288] sm:$0xff]
    %v2936 = vld [vmem:[%s1 + $0x290] sm:$0xff]
    %v2937 = vld [vmem:[%s1 + $0x298] sm:$0xff]
    %v2938 = vld [vmem:[%s1 + $0x2a0] sm:$0xff]
    %v2939 = vld [vmem:[%s1 + $0x2a8] sm:$0xff]
    %v2940 = vld [vmem:[%s1 + $0x2b0] sm:$0xff]
    %v2941 = vld [vmem:[%s1 + $0x2b8] sm:$0xff]
    %v2942 = vld [vmem:[%s1 + $0x2c0] sm:$0xff]
    %v2943 = vld [vmem:[%s1 + $0x2c8] sm:$0xff]
    %v2944 = vld [vmem:[%s1 + $0x2d0] sm:$0xff]
    %v2945 = vld [vmem:[%s1 + $0x2d8] sm:$0xff]
    %v2946 = vld [vmem:[%s1 + $0x2e0] sm:$0xff]
    %v2947 = vld [vmem:[%s1 + $0x2e8] sm:$0xff]
    %v2948 = vld [vmem:[%s1 + $0x2f0] sm:$0xff]
    %v2949 = vld [vmem:[%s1 + $0x2f8] sm:$0xff]
    %2951 = vset.pattern.permute.xlu0 0
    %2952 = vperm.xlu0 %2951, %v2934
    %v2953 = vpop.permute.xlu0 %2952
    %2956 = vset.pattern.permute.xlu0 0
    %2957 = vperm.xlu0 %2956, %v2935
    %v2958 = vpop.permute.xlu0 %2957
    %2961 = vset.pattern.permute.xlu0 0
    %2962 = vperm.xlu0 %2961, %v2936
    %v2963 = vpop.permute.xlu0 %2962
    %2966 = vset.pattern.permute.xlu0 0
    %2967 = vperm.xlu0 %2966, %v2937
    %v2968 = vpop.permute.xlu0 %2967
    %2971 = vset.pattern.permute.xlu0 0
    %2972 = vperm.xlu0 %2971, %v2938
    %v2973 = vpop.permute.xlu0 %2972
    %2976 = vset.pattern.permute.xlu0 0
    %2977 = vperm.xlu0 %2976, %v2939
    %v2978 = vpop.permute.xlu0 %2977
    %2981 = vset.pattern.permute.xlu0 0
    %2982 = vperm.xlu0 %2981, %v2940
    %v2983 = vpop.permute.xlu0 %2982
    %2986 = vset.pattern.permute.xlu0 0
    %2987 = vperm.xlu0 %2986, %v2941
    %v2988 = vpop.permute.xlu0 %2987
    %2991 = vset.pattern.permute.xlu0 0
    %2992 = vperm.xlu0 %2991, %v2942
    %v2993 = vpop.permute.xlu0 %2992
    %2996 = vset.pattern.permute.xlu0 0
    %2997 = vperm.xlu0 %2996, %v2943
    %v2998 = vpop.permute.xlu0 %2997
    %3001 = vset.pattern.permute.xlu0 0
    %3002 = vperm.xlu0 %3001, %v2944
    %v3003 = vpop.permute.xlu0 %3002
    %3006 = vset.pattern.permute.xlu0 0
    %3007 = vperm.xlu0 %3006, %v2945
    %v3008 = vpop.permute.xlu0 %3007
    %3011 = vset.pattern.permute.xlu0 0
    %3012 = vperm.xlu0 %3011, %v2946
    %v3013 = vpop.permute.xlu0 %3012
    %3016 = vset.pattern.permute.xlu0 0
    %3017 = vperm.xlu0 %3016, %v2947
    %v3018 = vpop.permute.xlu0 %3017
    %3021 = vset.pattern.permute.xlu0 0
    %3022 = vperm.xlu0 %3021, %v2948
    %v3023 = vpop.permute.xlu0 %3022
    %3026 = vset.pattern.permute.xlu0 0
    %3027 = vperm.xlu0 %3026, %v2949
    %v3028 = vpop.permute.xlu0 %3027
    %v3030 = vmul.f32 %v2953, %v324
    %v3031 = vmul.f32 %v2958, %v324
    %v3032 = vmul.f32 %v2963, %v324
    %v3033 = vmul.f32 %v2968, %v324
    %v3034 = vmul.f32 %v2973, %v324
    %v3035 = vmul.f32 %v2978, %v324
    %v3036 = vmul.f32 %v2983, %v324
    %v3037 = vmul.f32 %v2988, %v324
    %v3038 = vmul.f32 %v2993, %v324
    %v3039 = vmul.f32 %v2998, %v324
    %v3040 = vmul.f32 %v3003, %v324
    %v3041 = vmul.f32 %v3008, %v324
    %v3042 = vmul.f32 %v3013, %v324
    %v3043 = vmul.f32 %v3018, %v324
    %v3044 = vmul.f32 %v3023, %v324
    %v3045 = vmul.f32 %v3028, %v324
    %v3047 = vsel %vm342, %v2918, 0
    %v3050 = vsel %vm342, %v2919, 0
    %v3053 = vsel %vm342, %v2920, 0
    %v3056 = vsel %vm342, %v2921, 0
    %v3059 = vsel %vm342, %v2922, 0
    %v3062 = vsel %vm342, %v2923, 0
    %v3065 = vsel %vm342, %v2924, 0
    %v3068 = vsel %vm342, %v2925, 0
    %v3071 = vsel %vm342, %v2926, 0
    %v3074 = vsel %vm342, %v2927, 0
    %v3077 = vsel %vm342, %v2928, 0
    %v3080 = vsel %vm342, %v2929, 0
    %v3083 = vsel %vm342, %v2930, 0
    %v3086 = vsel %vm342, %v2931, 0
    %v3089 = vsel %vm342, %v2932, 0
    %v3092 = vsel %vm342, %v2933, 0
    %3094 = vmatprep.subr.mxu0 0.0
    %3095 = vmatpush1.msra.mxu0 %v184
    %3096 = vmatprep.subr.mxu0 0.0
    %3097 = vmatpush1.msra.mxu0 %v185
    %3098 = vmatprep.subr.mxu0 0.0
    %3099 = vmatpush1.msra.mxu0 %v186
    %3100 = vmatprep.subr.mxu0 0.0
    %3101 = vmatpush1.msra.mxu0 %v187
    %3102 = vmatprep.subr.mxu0 0.0
    %3103 = vmatpush1.msra.mxu0 %v393
    %3104 = vmatprep.subr.mxu0 0.0
    %3105 = vmatpush1.msra.mxu0 0.0
    %3106 = vmatprep.subr.mxu0 0.0
    %3107 = vmatpush1.msra.mxu0 0.0
    %3108 = vmatprep.subr.mxu0 0.0
    %3109 = vmatpush1.msra.mxu0 0.0
    %3110 = vmatprep.subr.mxu0 0.0
    %3111 = vmatpush1.msra.mxu0 0.0
    %3112 = vmatprep.subr.mxu0 0.0
    %3113 = vmatpush1.msra.mxu0 0.0
    %3114 = vmatprep.subr.mxu0 0.0
    %3115 = vmatpush1.msra.mxu0 0.0
    %3116 = vmatprep.subr.mxu0 0.0
    %3117 = vmatpush1.msra.mxu0 0.0
    %3118 = vmatprep.subr.mxu0 0.0
    %3119 = vmatpush1.msra.mxu0 0.0
    %3120 = vmatprep.subr.mxu0 0.0
    %3121 = vmatpush1.msra.mxu0 0.0
    %3122 = vmatprep.subr.mxu0 0.0
    %3123 = vmatpush1.msra.mxu0 0.0
    %3124 = vmatprep.subr.mxu0 0.0
    %3125 = vmatpush1.msra.mxu0 0.0
    %3126 = vmatprep.subr.mxu0 0.0
    %3127 = vmatpush1.msra.mxu0 0.0
    %3128 = vmatprep.subr.mxu0 0.0
    %3129 = vmatpush1.msra.mxu0 0.0
    %3130 = vmatprep.subr.mxu0 0.0
    %3131 = vmatpush1.msra.mxu0 0.0
    %3132 = vmatprep.subr.mxu0 0.0
    %3133 = vmatpush1.msra.mxu0 0.0
    %3134 = vmatprep.subr.mxu0 0.0
    %3135 = vmatpush1.msra.mxu0 0.0
    %3136 = vmatprep.subr.mxu0 0.0
    %3137 = vmatpush1.msra.mxu0 0.0
    %3138 = vmatprep.subr.mxu0 0.0
    %3139 = vmatpush1.msra.mxu0 0.0
    %3140 = vmatprep.subr.mxu0 0.0
    %3141 = vmatpush1.msra.mxu0 0.0
    %3142 = vmatprep.subr.mxu0 0.0
    %3143 = vmatpush1.msra.mxu0 0.0
    %3144 = vmatprep.subr.mxu0 0.0
    %3145 = vmatpush1.msra.mxu0 0.0
    %3146 = vmatprep.subr.mxu0 0.0
    %3147 = vmatpush1.msra.mxu0 0.0
    %3148 = vmatprep.subr.mxu0 0.0
    %3149 = vmatpush1.msra.mxu0 0.0
    %3150 = vmatprep.subr.mxu0 0.0
    %3151 = vmatpush1.msra.mxu0 0.0
    %3152 = vmatprep.subr.mxu0 0.0
    %3153 = vmatpush1.msra.mxu0 0.0
    %3154 = vmatprep.subr.mxu0 0.0
    %3155 = vmatpush1.msra.mxu0 0.0
    %3156 = vmatprep.subr.mxu0 0.0
    %3157 = vmatpush1.msra.mxu0 0.0
    %3158 = vmatprep.mubr.f32.mxu0 0.0
    %3159 = vmatmul.mubr.f32.gmra.mrb[0].mxu0 %v3047
    %v3160 = vpop.f32.mrb[0].mxu0
    %v3161 = vadd.f32 %v3030, %v3160
    %v3162 = vpop.f32.mrb[0].mxu0
    %3163 = vmatprep.mubr.f32.mxu0 0.0
    %3164 = vmatmul.mubr.f32.gmra.mrb[0].mxu0 %v3050
    %v3165 = vpop.f32.mrb[0].mxu0
    %v3166 = vadd.f32 %v3031, %v3165
    %v3167 = vpop.f32.mrb[0].mxu0
    %3168 = vmatprep.mubr.f32.mxu0 0.0
    %3169 = vmatmul.mubr.f32.gmra.mrb[0].mxu0 %v3053
    %v3170 = vpop.f32.mrb[0].mxu0
    %v3171 = vadd.f32 %v3032, %v3170
    %v3172 = vpop.f32.mrb[0].mxu0
    %3173 = vmatprep.mubr.f32.mxu0 0.0
    %3174 = vmatmul.mubr.f32.gmra.mrb[0].mxu0 %v3056
    %v3175 = vpop.f32.mrb[0].mxu0
    %v3176 = vadd.f32 %v3033, %v3175
    %v3177 = vpop.f32.mrb[0].mxu0
    %3178 = vmatprep.mubr.f32.mxu0 0.0
    %3179 = vmatmul.mubr.f32.gmra.mrb[0].mxu0 %v3059
    %v3180 = vpop.f32.mrb[0].mxu0
    %v3181 = vadd.f32 %v3034, %v3180
    %v3182 = vpop.f32.mrb[0].mxu0
    %3183 = vmatprep.mubr.f32.mxu0 0.0
    %3184 = vmatmul.mubr.f32.gmra.mrb[0].mxu0 %v3062
    %v3185 = vpop.f32.mrb[0].mxu0
    %v3186 = vadd.f32 %v3035, %v3185
    %v3187 = vpop.f32.mrb[0].mxu0
    %3188 = vmatprep.mubr.f32.mxu0 0.0
    %3189 = vmatmul.mubr.f32.gmra.mrb[0].mxu0 %v3065
    %v3190 = vpop.f32.mrb[0].mxu0
    %v3191 = vadd.f32 %v3036, %v3190
    %v3192 = vpop.f32.mrb[0].mxu0
    %3193 = vmatprep.mubr.f32.mxu0 0.0
    %3194 = vmatmul.mubr.f32.gmra.mrb[0].mxu0 %v3068
    %v3195 = vpop.f32.mrb[0].mxu0
    %v3196 = vadd.f32 %v3037, %v3195
    %v3197 = vpop.f32.mrb[0].mxu0
    %3198 = vmatprep.mubr.f32.mxu0 0.0
    %3199 = vmatmul.mubr.f32.gmra.mrb[0].mxu0 %v3071
    %v3200 = vpop.f32.mrb[0].mxu0
    %v3201 = vadd.f32 %v3038, %v3200
    %v3202 = vpop.f32.mrb[0].mxu0
    %3203 = vmatprep.mubr.f32.mxu0 0.0
    %3204 = vmatmul.mubr.f32.gmra.mrb[0].mxu0 %v3074
    %v3205 = vpop.f32.mrb[0].mxu0
    %v3206 = vadd.f32 %v3039, %v3205
    %v3207 = vpop.f32.mrb[0].mxu0
    %3208 = vmatprep.mubr.f32.mxu0 0.0
    %3209 = vmatmul.mubr.f32.gmra.mrb[0].mxu0 %v3077
    %v3210 = vpop.f32.mrb[0].mxu0
    %v3211 = vadd.f32 %v3040, %v3210
    %v3212 = vpop.f32.mrb[0].mxu0
    %3213 = vmatprep.mubr.f32.mxu0 0.0
    %3214 = vmatmul.mubr.f32.gmra.mrb[0].mxu0 %v3080
    %v3215 = vpop.f32.mrb[0].mxu0
    %v3216 = vadd.f32 %v3041, %v3215
    %v3217 = vpop.f32.mrb[0].mxu0
    %3218 = vmatprep.mubr.f32.mxu0 0.0
    %3219 = vmatmul.mubr.f32.gmra.mrb[0].mxu0 %v3083
    %v3220 = vpop.f32.mrb[0].mxu0
    %v3221 = vadd.f32 %v3042, %v3220
    %v3222 = vpop.f32.mrb[0].mxu0
    %3223 = vmatprep.mubr.f32.mxu0 0.0
    %3224 = vmatmul.mubr.f32.gmra.mrb[0].mxu0 %v3086
    %v3225 = vpop.f32.mrb[0].mxu0
    %v3226 = vadd.f32 %v3043, %v3225
    %v3227 = vpop.f32.mrb[0].mxu0
    %3228 = vmatprep.mubr.f32.mxu0 0.0
    %3229 = vmatmul.mubr.f32.gmra.mrb[0].mxu0 %v3089
    %v3230 = vpop.f32.mrb[0].mxu0
    %v3231 = vadd.f32 %v3044, %v3230
    %v3232 = vpop.f32.mrb[0].mxu0
    %3233 = vmatprep.mubr.f32.mxu0 0.0
    %3234 = vmatmul.mubr.f32.gmra.mrb[0].mxu0 %v3092
    %v3235 = vpop.f32.mrb[0].mxu0
    %v3236 = vadd.f32 %v3045, %v3235
    %v3237 = vpop.f32.mrb[0].mxu0
    %3238 = vdwg.mxu0
    %v3239 = vmax.f32 %v3161, 0.0
    %v3240 = vmax.f32 %v3166, 0.0
    %v3241 = vmax.f32 %v3171, 0.0
    %v3242 = vmax.f32 %v3176, 0.0
    %v3243 = vmax.f32 %v3181, 0.0
    %v3244 = vmax.f32 %v3186, 0.0
    %v3245 = vmax.f32 %v3191, 0.0
    %v3246 = vmax.f32 %v3196, 0.0
    %v3247 = vmax.f32 %v3201, 0.0
    %v3248 = vmax.f32 %v3206, 0.0
    %v3249 = vmax.f32 %v3211, 0.0
    %v3250 = vmax.f32 %v3216, 0.0
    %v3251 = vmax.f32 %v3221, 0.0
    %v3252 = vmax.f32 %v3226, 0.0
    %v3253 = vmax.f32 %v3231, 0.0
    %v3254 = vmax.f32 %v3236, 0.0
    %v3256 = vsel %vm893, %v3239, 0
    %v3259 = vsel %vm893, %v3240, 0
    %v3262 = vsel %vm893, %v3241, 0
    %v3265 = vsel %vm893, %v3242, 0
    %v3268 = vsel %vm893, %v3243, 0
    %v3271 = vsel %vm893, %v3244, 0
    %v3274 = vsel %vm893, %v3245, 0
    %v3277 = vsel %vm893, %v3246, 0
    %v3280 = vsel %vm893, %v3247, 0
    %v3283 = vsel %vm893, %v3248, 0
    %v3286 = vsel %vm893, %v3249, 0
    %v3289 = vsel %vm893, %v3250, 0
    %v3292 = vsel %vm893, %v3251, 0
    %v3295 = vsel %vm893, %v3252, 0
    %v3298 = vsel %vm893, %v3253, 0
    %v3301 = vsel %vm893, %v3254, 0
    %3303 = vmatprep.subr.mxu0 0.0
    %3304 = vmatpush1.msra.mxu0 %v200
    %3305 = vmatprep.subr.mxu0 0.0
    %3306 = vmatpush1.msra.mxu0 %v201
    %3307 = vmatprep.subr.mxu0 0.0
    %3308 = vmatpush1.msra.mxu0 0.0
    %3309 = vmatprep.subr.mxu0 0.0
    %3310 = vmatpush1.msra.mxu0 0.0
    %3311 = vmatprep.subr.mxu0 0.0
    %3312 = vmatpush1.msra.mxu0 0.0
    %3313 = vmatprep.subr.mxu0 0.0
    %3314 = vmatpush1.msra.mxu0 0.0
    %3315 = vmatprep.subr.mxu0 0.0
    %3316 = vmatpush1.msra.mxu0 0.0
    %3317 = vmatprep.subr.mxu0 0.0
    %3318 = vmatpush1.msra.mxu0 0.0
    %3319 = vmatprep.subr.mxu0 0.0
    %3320 = vmatpush1.msra.mxu0 0.0
    %3321 = vmatprep.subr.mxu0 0.0
    %3322 = vmatpush1.msra.mxu0 0.0
    %3323 = vmatprep.subr.mxu0 0.0
    %3324 = vmatpush1.msra.mxu0 0.0
    %3325 = vmatprep.subr.mxu0 0.0
    %3326 = vmatpush1.msra.mxu0 0.0
    %3327 = vmatprep.subr.mxu0 0.0
    %3328 = vmatpush1.msra.mxu0 0.0
    %3329 = vmatprep.subr.mxu0 0.0
    %3330 = vmatpush1.msra.mxu0 0.0
    %3331 = vmatprep.subr.mxu0 0.0
    %3332 = vmatpush1.msra.mxu0 0.0
    %3333 = vmatprep.subr.mxu0 0.0
    %3334 = vmatpush1.msra.mxu0 0.0
    %3335 = vmatprep.subr.mxu0 0.0
    %3336 = vmatpush1.msra.mxu0 0.0
    %3337 = vmatprep.subr.mxu0 0.0
    %3338 = vmatpush1.msra.mxu0 0.0
    %3339 = vmatprep.subr.mxu0 0.0
    %3340 = vmatpush1.msra.mxu0 0.0
    %3341 = vmatprep.subr.mxu0 0.0
    %3342 = vmatpush1.msra.mxu0 0.0
    %3343 = vmatprep.subr.mxu0 0.0
    %3344 = vmatpush1.msra.mxu0 0.0
    %3345 = vmatprep.subr.mxu0 0.0
    %3346 = vmatpush1.msra.mxu0 0.0
    %3347 = vmatprep.subr.mxu0 0.0
    %3348 = vmatpush1.msra.mxu0 0.0
    %3349 = vmatprep.subr.mxu0 0.0
    %3350 = vmatpush1.msra.mxu0 0.0
    %3351 = vmatprep.subr.mxu0 0.0
    %3352 = vmatpush1.msra.mxu0 0.0
    %3353 = vmatprep.subr.mxu0 0.0
    %3354 = vmatpush1.msra.mxu0 0.0
    %3355 = vmatprep.subr.mxu0 0.0
    %3356 = vmatpush1.msra.mxu0 0.0
    %3357 = vmatprep.subr.mxu0 0.0
    %3358 = vmatpush1.msra.mxu0 0.0
    %3359 = vmatprep.subr.mxu0 0.0
    %3360 = vmatpush1.msra.mxu0 0.0
    %3361 = vmatprep.subr.mxu0 0.0
    %3362 = vmatpush1.msra.mxu0 0.0
    %3363 = vmatprep.subr.mxu0 0.0
    %3364 = vmatpush1.msra.mxu0 0.0
    %3365 = vmatprep.subr.mxu0 0.0
    %3366 = vmatpush1.msra.mxu0 0.0
    %3367 = vmatprep.mubr.f32.mxu0 0.0
    %3368 = vmatmul.mubr.f32.gmra.mrb[0].mxu0 %v3256
    %v3369 = vpop.f32.mrb[0].mxu0
    %v3370 = vadd.f32 0.0, %v3369
    %v3371 = vpop.f32.mrb[0].mxu0
    %3372 = vmatprep.mubr.f32.mxu0 0.0
    %3373 = vmatmul.mubr.f32.gmra.mrb[0].mxu0 %v3259
    %v3374 = vpop.f32.mrb[0].mxu0
    %v3375 = vadd.f32 0.0, %v3374
    %v3376 = vpop.f32.mrb[0].mxu0
    %3377 = vmatprep.mubr.f32.mxu0 0.0
    %3378 = vmatmul.mubr.f32.gmra.mrb[0].mxu0 %v3262
    %v3379 = vpop.f32.mrb[0].mxu0
    %v3380 = vadd.f32 0.0, %v3379
    %v3381 = vpop.f32.mrb[0].mxu0
    %3382 = vmatprep.mubr.f32.mxu0 0.0
    %3383 = vmatmul.mubr.f32.gmra.mrb[0].mxu0 %v3265
    %v3384 = vpop.f32.mrb[0].mxu0
    %v3385 = vadd.f32 0.0, %v3384
    %v3386 = vpop.f32.mrb[0].mxu0
    %3387 = vmatprep.mubr.f32.mxu0 0.0
    %3388 = vmatmul.mubr.f32.gmra.mrb[0].mxu0 %v3268
    %v3389 = vpop.f32.mrb[0].mxu0
    %v3390 = vadd.f32 0.0, %v3389
    %v3391 = vpop.f32.mrb[0].mxu0
    %3392 = vmatprep.mubr.f32.mxu0 0.0
    %3393 = vmatmul.mubr.f32.gmra.mrb[0].mxu0 %v3271
    %v3394 = vpop.f32.mrb[0].mxu0
    %v3395 = vadd.f32 0.0, %v3394
    %v3396 = vpop.f32.mrb[0].mxu0
    %3397 = vmatprep.mubr.f32.mxu0 0.0
    %3398 = vmatmul.mubr.f32.gmra.mrb[0].mxu0 %v3274
    %v3399 = vpop.f32.mrb[0].mxu0
    %v3400 = vadd.f32 0.0, %v3399
    %v3401 = vpop.f32.mrb[0].mxu0
    %3402 = vmatprep.mubr.f32.mxu0 0.0
    %3403 = vmatmul.mubr.f32.gmra.mrb[0].mxu0 %v3277
    %v3404 = vpop.f32.mrb[0].mxu0
    %v3405 = vadd.f32 0.0, %v3404
    %v3406 = vpop.f32.mrb[0].mxu0
    %3407 = vmatprep.mubr.f32.mxu0 0.0
    %3408 = vmatmul.mubr.f32.gmra.mrb[0].mxu0 %v3280
    %v3409 = vpop.f32.mrb[0].mxu0
    %v3410 = vadd.f32 0.0, %v3409
    %v3411 = vpop.f32.mrb[0].mxu0
    %3412 = vmatprep.mubr.f32.mxu0 0.0
    %3413 = vmatmul.mubr.f32.gmra.mrb[0].mxu0 %v3283
    %v3414 = vpop.f32.mrb[0].mxu0
    %v3415 = vadd.f32 0.0, %v3414
    %v3416 = vpop.f32.mrb[0].mxu0
    %3417 = vmatprep.mubr.f32.mxu0 0.0
    %3418 = vmatmul.mubr.f32.gmra.mrb[0].mxu0 %v3286
    %v3419 = vpop.f32.mrb[0].mxu0
    %v3420 = vadd.f32 0.0, %v3419
    %v3421 = vpop.f32.mrb[0].mxu0
    %3422 = vmatprep.mubr.f32.mxu0 0.0
    %3423 = vmatmul.mubr.f32.gmra.mrb[0].mxu0 %v3289
    %v3424 = vpop.f32.mrb[0].mxu0
    %v3425 = vadd.f32 0.0, %v3424
    %v3426 = vpop.f32.mrb[0].mxu0
    %3427 = vmatprep.mubr.f32.mxu0 0.0
    %3428 = vmatmul.mubr.f32.gmra.mrb[0].mxu0 %v3292
    %v3429 = vpop.f32.mrb[0].mxu0
    %v3430 = vadd.f32 0.0, %v3429
    %v3431 = vpop.f32.mrb[0].mxu0
    %3432 = vmatprep.mubr.f32.mxu0 0.0
    %3433 = vmatmul.mubr.f32.gmra.mrb[0].mxu0 %v3295
    %v3434 = vpop.f32.mrb[0].mxu0
    %v3435 = vadd.f32 0.0, %v3434
    %v3436 = vpop.f32.mrb[0].mxu0
    %3437 = vmatprep.mubr.f32.mxu0 0.0
    %3438 = vmatmul.mubr.f32.gmra.mrb[0].mxu0 %v3298
    %v3439 = vpop.f32.mrb[0].mxu0
    %v3440 = vadd.f32 0.0, %v3439
    %v3441 = vpop.f32.mrb[0].mxu0
    %3442 = vmatprep.mubr.f32.mxu0 0.0
    %3443 = vmatmul.mubr.f32.gmra.mrb[0].mxu0 %v3301
    %v3444 = vpop.f32.mrb[0].mxu0
    %v3445 = vadd.f32 0.0, %v3444
    %v3446 = vpop.f32.mrb[0].mxu0
    %3447 = vdwg.mxu0
    %v3448 = vadd.f32 %v2902, %v3370
    %v3449 = vadd.f32 %v2903, %v3375
    %v3450 = vadd.f32 %v2904, %v3380
    %v3451 = vadd.f32 %v2905, %v3385
    %v3452 = vadd.f32 %v2906, %v3390
    %v3453 = vadd.f32 %v2907, %v3395
    %v3454 = vadd.f32 %v2908, %v3400
    %v3455 = vadd.f32 %v2909, %v3405
    %v3456 = vadd.f32 %v2910, %v3410
    %v3457 = vadd.f32 %v2911, %v3415
    %v3458 = vadd.f32 %v2912, %v3420
    %v3459 = vadd.f32 %v2913, %v3425
    %v3460 = vadd.f32 %v2914, %v3430
    %v3461 = vadd.f32 %v2915, %v3435
    %v3462 = vadd.f32 %v2916, %v3440
    %v3463 = vadd.f32 %v2917, %v3445
    %v3464 = vld [vmem:[%s0 + $0x300] sm:$0xff]
    %v3465 = vld [vmem:[%s0 + $0x308] sm:$0xff]
    %v3466 = vld [vmem:[%s0 + $0x310] sm:$0xff]
    %v3467 = vld [vmem:[%s0 + $0x318] sm:$0xff]
    %v3468 = vld [vmem:[%s0 + $0x320] sm:$0xff]
    %v3469 = vld [vmem:[%s0 + $0x328] sm:$0xff]
    %v3470 = vld [vmem:[%s0 + $0x330] sm:$0xff]
    %v3471 = vld [vmem:[%s0 + $0x338] sm:$0xff]
    %v3472 = vld [vmem:[%s0 + $0x340] sm:$0xff]
    %v3473 = vld [vmem:[%s0 + $0x348] sm:$0xff]
    %v3474 = vld [vmem:[%s0 + $0x350] sm:$0xff]
    %v3475 = vld [vmem:[%s0 + $0x358] sm:$0xff]
    %v3476 = vld [vmem:[%s0 + $0x360] sm:$0xff]
    %v3477 = vld [vmem:[%s0 + $0x368] sm:$0xff]
    %v3478 = vld [vmem:[%s0 + $0x370] sm:$0xff]
    %v3479 = vld [vmem:[%s0 + $0x378] sm:$0xff]
    %v3480 = vld [vmem:[%s1 + $0x300] sm:$0xff]
    %v3481 = vld [vmem:[%s1 + $0x308] sm:$0xff]
    %v3482 = vld [vmem:[%s1 + $0x310] sm:$0xff]
    %v3483 = vld [vmem:[%s1 + $0x318] sm:$0xff]
    %v3484 = vld [vmem:[%s1 + $0x320] sm:$0xff]
    %v3485 = vld [vmem:[%s1 + $0x328] sm:$0xff]
    %v3486 = vld [vmem:[%s1 + $0x330] sm:$0xff]
    %v3487 = vld [vmem:[%s1 + $0x338] sm:$0xff]
    %v3488 = vld [vmem:[%s1 + $0x340] sm:$0xff]
    %v3489 = vld [vmem:[%s1 + $0x348] sm:$0xff]
    %v3490 = vld [vmem:[%s1 + $0x350] sm:$0xff]
    %v3491 = vld [vmem:[%s1 + $0x358] sm:$0xff]
    %v3492 = vld [vmem:[%s1 + $0x360] sm:$0xff]
    %v3493 = vld [vmem:[%s1 + $0x368] sm:$0xff]
    %v3494 = vld [vmem:[%s1 + $0x370] sm:$0xff]
    %v3495 = vld [vmem:[%s1 + $0x378] sm:$0xff]
    %3497 = vset.pattern.permute.xlu0 0
    %3498 = vperm.xlu0 %3497, %v3480
    %v3499 = vpop.permute.xlu0 %3498
    %3502 = vset.pattern.permute.xlu0 0
    %3503 = vperm.xlu0 %3502, %v3481
    %v3504 = vpop.permute.xlu0 %3503
    %3507 = vset.pattern.permute.xlu0 0
    %3508 = vperm.xlu0 %3507, %v3482
    %v3509 = vpop.permute.xlu0 %3508
    %3512 = vset.pattern.permute.xlu0 0
    %3513 = vperm.xlu0 %3512, %v3483
    %v3514 = vpop.permute.xlu0 %3513
    %3517 = vset.pattern.permute.xlu0 0
    %3518 = vperm.xlu0 %3517, %v3484
    %v3519 = vpop.permute.xlu0 %3518
    %3522 = vset.pattern.permute.xlu0 0
    %3523 = vperm.xlu0 %3522, %v3485
    %v3524 = vpop.permute.xlu0 %3523
    %3527 = vset.pattern.permute.xlu0 0
    %3528 = vperm.xlu0 %3527, %v3486
    %v3529 = vpop.permute.xlu0 %3528
    %3532 = vset.pattern.permute.xlu0 0
    %3533 = vperm.xlu0 %3532, %v3487
    %v3534 = vpop.permute.xlu0 %3533
    %3537 = vset.pattern.permute.xlu0 0
    %3538 = vperm.xlu0 %3537, %v3488
    %v3539 = vpop.permute.xlu0 %3538
    %3542 = vset.pattern.permute.xlu0 0
    %3543 = vperm.xlu0 %3542, %v3489
    %v3544 = vpop.permute.xlu0 %3543
    %3547 = vset.pattern.permute.xlu0 0
    %3548 = vperm.xlu0 %3547, %v3490
    %v3549 = vpop.permute.xlu0 %3548
    %3552 = vset.pattern.permute.xlu0 0
    %3553 = vperm.xlu0 %3552, %v3491
    %v3554 = vpop.permute.xlu0 %3553
    %3557 = vset.pattern.permute.xlu0 0
    %3558 = vperm.xlu0 %3557, %v3492
    %v3559 = vpop.permute.xlu0 %3558
    %3562 = vset.pattern.permute.xlu0 0
    %3563 = vperm.xlu0 %3562, %v3493
    %v3564 = vpop.permute.xlu0 %3563
    %3567 = vset.pattern.permute.xlu0 0
    %3568 = vperm.xlu0 %3567, %v3494
    %v3569 = vpop.permute.xlu0 %3568
    %3572 = vset.pattern.permute.xlu0 0
    %3573 = vperm.xlu0 %3572, %v3495
    %v3574 = vpop.permute.xlu0 %3573
    %v3576 = vmul.f32 %v3499, %v324
    %v3577 = vmul.f32 %v3504, %v324
    %v3578 = vmul.f32 %v3509, %v324
    %v3579 = vmul.f32 %v3514, %v324
    %v3580 = vmul.f32 %v3519, %v324
    %v3581 = vmul.f32 %v3524, %v324
    %v3582 = vmul.f32 %v3529, %v324
    %v3583 = vmul.f32 %v3534, %v324
    %v3584 = vmul.f32 %v3539, %v324
    %v3585 = vmul.f32 %v3544, %v324
    %v3586 = vmul.f32 %v3549, %v324
    %v3587 = vmul.f32 %v3554, %v324
    %v3588 = vmul.f32 %v3559, %v324
    %v3589 = vmul.f32 %v3564, %v324
    %v3590 = vmul.f32 %v3569, %v324
    %v3591 = vmul.f32 %v3574, %v324
    %v3593 = vsel %vm342, %v3464, 0
    %v3596 = vsel %vm342, %v3465, 0
    %v3599 = vsel %vm342, %v3466, 0
    %v3602 = vsel %vm342, %v3467, 0
    %v3605 = vsel %vm342, %v3468, 0
    %v3608 = vsel %vm342, %v3469, 0
    %v3611 = vsel %vm342, %v3470, 0
    %v3614 = vsel %vm342, %v3471, 0
    %v3617 = vsel %vm342, %v3472, 0
    %v3620 = vsel %vm342, %v3473, 0
    %v3623 = vsel %vm342, %v3474, 0
    %v3626 = vsel %vm342, %v3475, 0
    %v3629 = vsel %vm342, %v3476, 0
    %v3632 = vsel %vm342, %v3477, 0
    %v3635 = vsel %vm342, %v3478, 0
    %v3638 = vsel %vm342, %v3479, 0
    %3640 = vmatprep.subr.mxu0 0.0
    %3641 = vmatpush1.msra.mxu0 %v184
    %3642 = vmatprep.subr.mxu0 0.0
    %3643 = vmatpush1.msra.mxu0 %v185
    %3644 = vmatprep.subr.mxu0 0.0
    %3645 = vmatpush1.msra.mxu0 %v186
    %3646 = vmatprep.subr.mxu0 0.0
    %3647 = vmatpush1.msra.mxu0 %v187
    %3648 = vmatprep.subr.mxu0 0.0
    %3649 = vmatpush1.msra.mxu0 %v393
    %3650 = vmatprep.subr.mxu0 0.0
    %3651 = vmatpush1.msra.mxu0 0.0
    %3652 = vmatprep.subr.mxu0 0.0
    %3653 = vmatpush1.msra.mxu0 0.0
    %3654 = vmatprep.subr.mxu0 0.0
    %3655 = vmatpush1.msra.mxu0 0.0
    %3656 = vmatprep.subr.mxu0 0.0
    %3657 = vmatpush1.msra.mxu0 0.0
    %3658 = vmatprep.subr.mxu0 0.0
    %3659 = vmatpush1.msra.mxu0 0.0
    %3660 = vmatprep.subr.mxu0 0.0
    %3661 = vmatpush1.msra.mxu0 0.0
    %3662 = vmatprep.subr.mxu0 0.0
    %3663 = vmatpush1.msra.mxu0 0.0
    %3664 = vmatprep.subr.mxu0 0.0
    %3665 = vmatpush1.msra.mxu0 0.0
    %3666 = vmatprep.subr.mxu0 0.0
    %3667 = vmatpush1.msra.mxu0 0.0
    %3668 = vmatprep.subr.mxu0 0.0
    %3669 = vmatpush1.msra.mxu0 0.0
    %3670 = vmatprep.subr.mxu0 0.0
    %3671 = vmatpush1.msra.mxu0 0.0
    %3672 = vmatprep.subr.mxu0 0.0
    %3673 = vmatpush1.msra.mxu0 0.0
    %3674 = vmatprep.subr.mxu0 0.0
    %3675 = vmatpush1.msra.mxu0 0.0
    %3676 = vmatprep.subr.mxu0 0.0
    %3677 = vmatpush1.msra.mxu0 0.0
    %3678 = vmatprep.subr.mxu0 0.0
    %3679 = vmatpush1.msra.mxu0 0.0
    %3680 = vmatprep.subr.mxu0 0.0
    %3681 = vmatpush1.msra.mxu0 0.0
    %3682 = vmatprep.subr.mxu0 0.0
    %3683 = vmatpush1.msra.mxu0 0.0
    %3684 = vmatprep.subr.mxu0 0.0
    %3685 = vmatpush1.msra.mxu0 0.0
    %3686 = vmatprep.subr.mxu0 0.0
    %3687 = vmatpush1.msra.mxu0 0.0
    %3688 = vmatprep.subr.mxu0 0.0
    %3689 = vmatpush1.msra.mxu0 0.0
    %3690 = vmatprep.subr.mxu0 0.0
    %3691 = vmatpush1.msra.mxu0 0.0
    %3692 = vmatprep.subr.mxu0 0.0
    %3693 = vmatpush1.msra.mxu0 0.0
    %3694 = vmatprep.subr.mxu0 0.0
    %3695 = vmatpush1.msra.mxu0 0.0
    %3696 = vmatprep.subr.mxu0 0.0
    %3697 = vmatpush1.msra.mxu0 0.0
    %3698 = vmatprep.subr.mxu0 0.0
    %3699 = vmatpush1.msra.mxu0 0.0
    %3700 = vmatprep.subr.mxu0 0.0
    %3701 = vmatpush1.msra.mxu0 0.0
    %3702 = vmatprep.subr.mxu0 0.0
    %3703 = vmatpush1.msra.mxu0 0.0
    %3704 = vmatprep.mubr.f32.mxu0 0.0
    %3705 = vmatmul.mubr.f32.gmra.mrb[0].mxu0 %v3593
    %v3706 = vpop.f32.mrb[0].mxu0
    %v3707 = vadd.f32 %v3576, %v3706
    %v3708 = vpop.f32.mrb[0].mxu0
    %3709 = vmatprep.mubr.f32.mxu0 0.0
    %3710 = vmatmul.mubr.f32.gmra.mrb[0].mxu0 %v3596
    %v3711 = vpop.f32.mrb[0].mxu0
    %v3712 = vadd.f32 %v3577, %v3711
    %v3713 = vpop.f32.mrb[0].mxu0
    %3714 = vmatprep.mubr.f32.mxu0 0.0
    %3715 = vmatmul.mubr.f32.gmra.mrb[0].mxu0 %v3599
    %v3716 = vpop.f32.mrb[0].mxu0
    %v3717 = vadd.f32 %v3578, %v3716
    %v3718 = vpop.f32.mrb[0].mxu0
    %3719 = vmatprep.mubr.f32.mxu0 0.0
    %3720 = vmatmul.mubr.f32.gmra.mrb[0].mxu0 %v3602
    %v3721 = vpop.f32.mrb[0].mxu0
    %v3722 = vadd.f32 %v3579, %v3721
    %v3723 = vpop.f32.mrb[0].mxu0
    %3724 = vmatprep.mubr.f32.mxu0 0.0
    %3725 = vmatmul.mubr.f32.gmra.mrb[0].mxu0 %v3605
    %v3726 = vpop.f32.mrb[0].mxu0
    %v3727 = vadd.f32 %v3580, %v3726
    %v3728 = vpop.f32.mrb[0].mxu0
    %3729 = vmatprep.mubr.f32.mxu0 0.0
    %3730 = vmatmul.mubr.f32.gmra.mrb[0].mxu0 %v3608
    %v3731 = vpop.f32.mrb[0].mxu0
    %v3732 = vadd.f32 %v3581, %v3731
    %v3733 = vpop.f32.mrb[0].mxu0
    %3734 = vmatprep.mubr.f32.mxu0 0.0
    %3735 = vmatmul.mubr.f32.gmra.mrb[0].mxu0 %v3611
    %v3736 = vpop.f32.mrb[0].mxu0
    %v3737 = vadd.f32 %v3582, %v3736
    %v3738 = vpop.f32.mrb[0].mxu0
    %3739 = vmatprep.mubr.f32.mxu0 0.0
    %3740 = vmatmul.mubr.f32.gmra.mrb[0].mxu0 %v3614
    %v3741 = vpop.f32.mrb[0].mxu0
    %v3742 = vadd.f32 %v3583, %v3741
    %v3743 = vpop.f32.mrb[0].mxu0
    %3744 = vmatprep.mubr.f32.mxu0 0.0
    %3745 = vmatmul.mubr.f32.gmra.mrb[0].mxu0 %v3617
    %v3746 = vpop.f32.mrb[0].mxu0
    %v3747 = vadd.f32 %v3584, %v3746
    %v3748 = vpop.f32.mrb[0].mxu0
    %3749 = vmatprep.mubr.f32.mxu0 0.0
    %3750 = vmatmul.mubr.f32.gmra.mrb[0].mxu0 %v3620
    %v3751 = vpop.f32.mrb[0].mxu0
    %v3752 = vadd.f32 %v3585, %v3751
    %v3753 = vpop.f32.mrb[0].mxu0
    %3754 = vmatprep.mubr.f32.mxu0 0.0
    %3755 = vmatmul.mubr.f32.gmra.mrb[0].mxu0 %v3623
    %v3756 = vpop.f32.mrb[0].mxu0
    %v3757 = vadd.f32 %v3586, %v3756
    %v3758 = vpop.f32.mrb[0].mxu0
    %3759 = vmatprep.mubr.f32.mxu0 0.0
    %3760 = vmatmul.mubr.f32.gmra.mrb[0].mxu0 %v3626
    %v3761 = vpop.f32.mrb[0].mxu0
    %v3762 = vadd.f32 %v3587, %v3761
    %v3763 = vpop.f32.mrb[0].mxu0
    %3764 = vmatprep.mubr.f32.mxu0 0.0
    %3765 = vmatmul.mubr.f32.gmra.mrb[0].mxu0 %v3629
    %v3766 = vpop.f32.mrb[0].mxu0
    %v3767 = vadd.f32 %v3588, %v3766
    %v3768 = vpop.f32.mrb[0].mxu0
    %3769 = vmatprep.mubr.f32.mxu0 0.0
    %3770 = vmatmul.mubr.f32.gmra.mrb[0].mxu0 %v3632
    %v3771 = vpop.f32.mrb[0].mxu0
    %v3772 = vadd.f32 %v3589, %v3771
    %v3773 = vpop.f32.mrb[0].mxu0
    %3774 = vmatprep.mubr.f32.mxu0 0.0
    %3775 = vmatmul.mubr.f32.gmra.mrb[0].mxu0 %v3635
    %v3776 = vpop.f32.mrb[0].mxu0
    %v3777 = vadd.f32 %v3590, %v3776
    %v3778 = vpop.f32.mrb[0].mxu0
    %3779 = vmatprep.mubr.f32.mxu0 0.0
    %3780 = vmatmul.mubr.f32.gmra.mrb[0].mxu0 %v3638
    %v3781 = vpop.f32.mrb[0].mxu0
    %v3782 = vadd.f32 %v3591, %v3781
    %v3783 = vpop.f32.mrb[0].mxu0
    %3784 = vdwg.mxu0
    %v3785 = vmax.f32 %v3707, 0.0
    %v3786 = vmax.f32 %v3712, 0.0
    %v3787 = vmax.f32 %v3717, 0.0
    %v3788 = vmax.f32 %v3722, 0.0
    %v3789 = vmax.f32 %v3727, 0.0
    %v3790 = vmax.f32 %v3732, 0.0
    %v3791 = vmax.f32 %v3737, 0.0
    %v3792 = vmax.f32 %v3742, 0.0
    %v3793 = vmax.f32 %v3747, 0.0
    %v3794 = vmax.f32 %v3752, 0.0
    %v3795 = vmax.f32 %v3757, 0.0
    %v3796 = vmax.f32 %v3762, 0.0
    %v3797 = vmax.f32 %v3767, 0.0
    %v3798 = vmax.f32 %v3772, 0.0
    %v3799 = vmax.f32 %v3777, 0.0
    %v3800 = vmax.f32 %v3782, 0.0
    %v3802 = vsel %vm893, %v3785, 0
    %v3805 = vsel %vm893, %v3786, 0
    %v3808 = vsel %vm893, %v3787, 0
    %v3811 = vsel %vm893, %v3788, 0
    %v3814 = vsel %vm893, %v3789, 0
    %v3817 = vsel %vm893, %v3790, 0
    %v3820 = vsel %vm893, %v3791, 0
    %v3823 = vsel %vm893, %v3792, 0
    %v3826 = vsel %vm893, %v3793, 0
    %v3829 = vsel %vm893, %v3794, 0
    %v3832 = vsel %vm893, %v3795, 0
    %v3835 = vsel %vm893, %v3796, 0
    %v3838 = vsel %vm893, %v3797, 0
    %v3841 = vsel %vm893, %v3798, 0
    %v3844 = vsel %vm893, %v3799, 0
    %v3847 = vsel %vm893, %v3800, 0
    %3849 = vmatprep.subr.mxu0 0.0
    %3850 = vmatpush1.msra.mxu0 %v202
    %3851 = vmatprep.subr.mxu0 0.0
    %3852 = vmatpush1.msra.mxu0 %v203
    %3853 = vmatprep.subr.mxu0 0.0
    %3854 = vmatpush1.msra.mxu0 0.0
    %3855 = vmatprep.subr.mxu0 0.0
    %3856 = vmatpush1.msra.mxu0 0.0
    %3857 = vmatprep.subr.mxu0 0.0
    %3858 = vmatpush1.msra.mxu0 0.0
    %3859 = vmatprep.subr.mxu0 0.0
    %3860 = vmatpush1.msra.mxu0 0.0
    %3861 = vmatprep.subr.mxu0 0.0
    %3862 = vmatpush1.msra.mxu0 0.0
    %3863 = vmatprep.subr.mxu0 0.0
    %3864 = vmatpush1.msra.mxu0 0.0
    %3865 = vmatprep.subr.mxu0 0.0
    %3866 = vmatpush1.msra.mxu0 0.0
    %3867 = vmatprep.subr.mxu0 0.0
    %3868 = vmatpush1.msra.mxu0 0.0
    %3869 = vmatprep.subr.mxu0 0.0
    %3870 = vmatpush1.msra.mxu0 0.0
    %3871 = vmatprep.subr.mxu0 0.0
    %3872 = vmatpush1.msra.mxu0 0.0
    %3873 = vmatprep.subr.mxu0 0.0
    %3874 = vmatpush1.msra.mxu0 0.0
    %3875 = vmatprep.subr.mxu0 0.0
    %3876 = vmatpush1.msra.mxu0 0.0
    %3877 = vmatprep.subr.mxu0 0.0
    %3878 = vmatpush1.msra.mxu0 0.0
    %3879 = vmatprep.subr.mxu0 0.0
    %3880 = vmatpush1.msra.mxu0 0.0
    %3881 = vmatprep.subr.mxu0 0.0
    %3882 = vmatpush1.msra.mxu0 0.0
    %3883 = vmatprep.subr.mxu0 0.0
    %3884 = vmatpush1.msra.mxu0 0.0
    %3885 = vmatprep.subr.mxu0 0.0
    %3886 = vmatpush1.msra.mxu0 0.0
    %3887 = vmatprep.subr.mxu0 0.0
    %3888 = vmatpush1.msra.mxu0 0.0
    %3889 = vmatprep.subr.mxu0 0.0
    %3890 = vmatpush1.msra.mxu0 0.0
    %3891 = vmatprep.subr.mxu0 0.0
    %3892 = vmatpush1.msra.mxu0 0.0
    %3893 = vmatprep.subr.mxu0 0.0
    %3894 = vmatpush1.msra.mxu0 0.0
    %3895 = vmatprep.subr.mxu0 0.0
    %3896 = vmatpush1.msra.mxu0 0.0
    %3897 = vmatprep.subr.mxu0 0.0
    %3898 = vmatpush1.msra.mxu0 0.0
    %3899 = vmatprep.subr.mxu0 0.0
    %3900 = vmatpush1.msra.mxu0 0.0
    %3901 = vmatprep.subr.mxu0 0.0
    %3902 = vmatpush1.msra.mxu0 0.0
    %3903 = vmatprep.subr.mxu0 0.0
    %3904 = vmatpush1.msra.mxu0 0.0
    %3905 = vmatprep.subr.mxu0 0.0
    %3906 = vmatpush1.msra.mxu0 0.0
    %3907 = vmatprep.subr.mxu0 0.0
    %3908 = vmatpush1.msra.mxu0 0.0
    %3909 = vmatprep.subr.mxu0 0.0
    %3910 = vmatpush1.msra.mxu0 0.0
    %3911 = vmatprep.subr.mxu0 0.0
    %3912 = vmatpush1.msra.mxu0 0.0
    %3913 = vmatprep.mubr.f32.mxu0 0.0
    %3914 = vmatmul.mubr.f32.gmra.mrb[0].mxu0 %v3802
    %v3915 = vpop.f32.mrb[0].mxu0
    %v3916 = vadd.f32 0.0, %v3915
    %v3917 = vpop.f32.mrb[0].mxu0
    %3918 = vmatprep.mubr.f32.mxu0 0.0
    %3919 = vmatmul.mubr.f32.gmra.mrb[0].mxu0 %v3805
    %v3920 = vpop.f32.mrb[0].mxu0
    %v3921 = vadd.f32 0.0, %v3920
    %v3922 = vpop.f32.mrb[0].mxu0
    %3923 = vmatprep.mubr.f32.mxu0 0.0
    %3924 = vmatmul.mubr.f32.gmra.mrb[0].mxu0 %v3808
    %v3925 = vpop.f32.mrb[0].mxu0
    %v3926 = vadd.f32 0.0, %v3925
    %v3927 = vpop.f32.mrb[0].mxu0
    %3928 = vmatprep.mubr.f32.mxu0 0.0
    %3929 = vmatmul.mubr.f32.gmra.mrb[0].mxu0 %v3811
    %v3930 = vpop.f32.mrb[0].mxu0
    %v3931 = vadd.f32 0.0, %v3930
    %v3932 = vpop.f32.mrb[0].mxu0
    %3933 = vmatprep.mubr.f32.mxu0 0.0
    %3934 = vmatmul.mubr.f32.gmra.mrb[0].mxu0 %v3814
    %v3935 = vpop.f32.mrb[0].mxu0
    %v3936 = vadd.f32 0.0, %v3935
    %v3937 = vpop.f32.mrb[0].mxu0
    %3938 = vmatprep.mubr.f32.mxu0 0.0
    %3939 = vmatmul.mubr.f32.gmra.mrb[0].mxu0 %v3817
    %v3940 = vpop.f32.mrb[0].mxu0
    %v3941 = vadd.f32 0.0, %v3940
    %v3942 = vpop.f32.mrb[0].mxu0
    %3943 = vmatprep.mubr.f32.mxu0 0.0
    %3944 = vmatmul.mubr.f32.gmra.mrb[0].mxu0 %v3820
    %v3945 = vpop.f32.mrb[0].mxu0
    %v3946 = vadd.f32 0.0, %v3945
    %v3947 = vpop.f32.mrb[0].mxu0
    %3948 = vmatprep.mubr.f32.mxu0 0.0
    %3949 = vmatmul.mubr.f32.gmra.mrb[0].mxu0 %v3823
    %v3950 = vpop.f32.mrb[0].mxu0
    %v3951 = vadd.f32 0.0, %v3950
    %v3952 = vpop.f32.mrb[0].mxu0
    %3953 = vmatprep.mubr.f32.mxu0 0.0
    %3954 = vmatmul.mubr.f32.gmra.mrb[0].mxu0 %v3826
    %v3955 = vpop.f32.mrb[0].mxu0
    %v3956 = vadd.f32 0.0, %v3955
    %v3957 = vpop.f32.mrb[0].mxu0
    %3958 = vmatprep.mubr.f32.mxu0 0.0
    %3959 = vmatmul.mubr.f32.gmra.mrb[0].mxu0 %v3829
    %v3960 = vpop.f32.mrb[0].mxu0
    %v3961 = vadd.f32 0.0, %v3960
    %v3962 = vpop.f32.mrb[0].mxu0
    %3963 = vmatprep.mubr.f32.mxu0 0.0
    %3964 = vmatmul.mubr.f32.gmra.mrb[0].mxu0 %v3832
    %v3965 = vpop.f32.mrb[0].mxu0
    %v3966 = vadd.f32 0.0, %v3965
    %v3967 = vpop.f32.mrb[0].mxu0
    %3968 = vmatprep.mubr.f32.mxu0 0.0
    %3969 = vmatmul.mubr.f32.gmra.mrb[0].mxu0 %v3835
    %v3970 = vpop.f32.mrb[0].mxu0
    %v3971 = vadd.f32 0.0, %v3970
    %v3972 = vpop.f32.mrb[0].mxu0
    %3973 = vmatprep.mubr.f32.mxu0 0.0
    %3974 = vmatmul.mubr.f32.gmra.mrb[0].mxu0 %v3838
    %v3975 = vpop.f32.mrb[0].mxu0
    %v3976 = vadd.f32 0.0, %v3975
    %v3977 = vpop.f32.mrb[0].mxu0
    %3978 = vmatprep.mubr.f32.mxu0 0.0
    %3979 = vmatmul.mubr.f32.gmra.mrb[0].mxu0 %v3841
    %v3980 = vpop.f32.mrb[0].mxu0
    %v3981 = vadd.f32 0.0, %v3980
    %v3982 = vpop.f32.mrb[0].mxu0
    %3983 = vmatprep.mubr.f32.mxu0 0.0
    %3984 = vmatmul.mubr.f32.gmra.mrb[0].mxu0 %v3844
    %v3985 = vpop.f32.mrb[0].mxu0
    %v3986 = vadd.f32 0.0, %v3985
    %v3987 = vpop.f32.mrb[0].mxu0
    %3988 = vmatprep.mubr.f32.mxu0 0.0
    %3989 = vmatmul.mubr.f32.gmra.mrb[0].mxu0 %v3847
    %v3990 = vpop.f32.mrb[0].mxu0
    %v3991 = vadd.f32 0.0, %v3990
    %v3992 = vpop.f32.mrb[0].mxu0
    %3993 = vdwg.mxu0
    %v3994 = vadd.f32 %v3448, %v3916
    %v3995 = vadd.f32 %v3449, %v3921
    %v3996 = vadd.f32 %v3450, %v3926
    %v3997 = vadd.f32 %v3451, %v3931
    %v3998 = vadd.f32 %v3452, %v3936
    %v3999 = vadd.f32 %v3453, %v3941
    %v4000 = vadd.f32 %v3454, %v3946
    %v4001 = vadd.f32 %v3455, %v3951
    %v4002 = vadd.f32 %v3456, %v3956
    %v4003 = vadd.f32 %v3457, %v3961
    %v4004 = vadd.f32 %v3458, %v3966
    %v4005 = vadd.f32 %v3459, %v3971
    %v4006 = vadd.f32 %v3460, %v3976
    %v4007 = vadd.f32 %v3461, %v3981
    %v4008 = vadd.f32 %v3462, %v3986
    %v4009 = vadd.f32 %v3463, %v3991
    %v4010 = vld [vmem:[%s0 + $0x380] sm:$0xff]
    %v4011 = vld [vmem:[%s0 + $0x388] sm:$0xff]
    %v4012 = vld [vmem:[%s0 + $0x390] sm:$0xff]
    %v4013 = vld [vmem:[%s0 + $0x398] sm:$0xff]
    %v4014 = vld [vmem:[%s0 + $0x3a0] sm:$0xff]
    %v4015 = vld [vmem:[%s0 + $0x3a8] sm:$0xff]
    %v4016 = vld [vmem:[%s0 + $0x3b0] sm:$0xff]
    %v4017 = vld [vmem:[%s0 + $0x3b8] sm:$0xff]
    %v4018 = vld [vmem:[%s0 + $0x3c0] sm:$0xff]
    %v4019 = vld [vmem:[%s0 + $0x3c8] sm:$0xff]
    %v4020 = vld [vmem:[%s0 + $0x3d0] sm:$0xff]
    %v4021 = vld [vmem:[%s0 + $0x3d8] sm:$0xff]
    %v4022 = vld [vmem:[%s0 + $0x3e0] sm:$0xff]
    %v4023 = vld [vmem:[%s0 + $0x3e8] sm:$0xff]
    %v4024 = vld [vmem:[%s0 + $0x3f0] sm:$0xff]
    %v4025 = vld [vmem:[%s0 + $0x3f8] sm:$0xff]
    %v4026 = vld [vmem:[%s1 + $0x380] sm:$0xff]
    %v4027 = vld [vmem:[%s1 + $0x388] sm:$0xff]
    %v4028 = vld [vmem:[%s1 + $0x390] sm:$0xff]
    %v4029 = vld [vmem:[%s1 + $0x398] sm:$0xff]
    %v4030 = vld [vmem:[%s1 + $0x3a0] sm:$0xff]
    %v4031 = vld [vmem:[%s1 + $0x3a8] sm:$0xff]
    %v4032 = vld [vmem:[%s1 + $0x3b0] sm:$0xff]
    %v4033 = vld [vmem:[%s1 + $0x3b8] sm:$0xff]
    %v4034 = vld [vmem:[%s1 + $0x3c0] sm:$0xff]
    %v4035 = vld [vmem:[%s1 + $0x3c8] sm:$0xff]
    %v4036 = vld [vmem:[%s1 + $0x3d0] sm:$0xff]
    %v4037 = vld [vmem:[%s1 + $0x3d8] sm:$0xff]
    %v4038 = vld [vmem:[%s1 + $0x3e0] sm:$0xff]
    %v4039 = vld [vmem:[%s1 + $0x3e8] sm:$0xff]
    %v4040 = vld [vmem:[%s1 + $0x3f0] sm:$0xff]
    %v4041 = vld [vmem:[%s1 + $0x3f8] sm:$0xff]
    %4043 = vset.pattern.permute.xlu0 0
    %4044 = vperm.xlu0 %4043, %v4026
    %v4045 = vpop.permute.xlu0 %4044
    %4048 = vset.pattern.permute.xlu0 0
    %4049 = vperm.xlu0 %4048, %v4027
    %v4050 = vpop.permute.xlu0 %4049
    %4053 = vset.pattern.permute.xlu0 0
    %4054 = vperm.xlu0 %4053, %v4028
    %v4055 = vpop.permute.xlu0 %4054
    %4058 = vset.pattern.permute.xlu0 0
    %4059 = vperm.xlu0 %4058, %v4029
    %v4060 = vpop.permute.xlu0 %4059
    %4063 = vset.pattern.permute.xlu0 0
    %4064 = vperm.xlu0 %4063, %v4030
    %v4065 = vpop.permute.xlu0 %4064
    %4068 = vset.pattern.permute.xlu0 0
    %4069 = vperm.xlu0 %4068, %v4031
    %v4070 = vpop.permute.xlu0 %4069
    %4073 = vset.pattern.permute.xlu0 0
    %4074 = vperm.xlu0 %4073, %v4032
    %v4075 = vpop.permute.xlu0 %4074
    %4078 = vset.pattern.permute.xlu0 0
    %4079 = vperm.xlu0 %4078, %v4033
    %v4080 = vpop.permute.xlu0 %4079
    %4083 = vset.pattern.permute.xlu0 0
    %4084 = vperm.xlu0 %4083, %v4034
    %v4085 = vpop.permute.xlu0 %4084
    %4088 = vset.pattern.permute.xlu0 0
    %4089 = vperm.xlu0 %4088, %v4035
    %v4090 = vpop.permute.xlu0 %4089
    %4093 = vset.pattern.permute.xlu0 0
    %4094 = vperm.xlu0 %4093, %v4036
    %v4095 = vpop.permute.xlu0 %4094
    %4098 = vset.pattern.permute.xlu0 0
    %4099 = vperm.xlu0 %4098, %v4037
    %v4100 = vpop.permute.xlu0 %4099
    %4103 = vset.pattern.permute.xlu0 0
    %4104 = vperm.xlu0 %4103, %v4038
    %v4105 = vpop.permute.xlu0 %4104
    %4108 = vset.pattern.permute.xlu0 0
    %4109 = vperm.xlu0 %4108, %v4039
    %v4110 = vpop.permute.xlu0 %4109
    %4113 = vset.pattern.permute.xlu0 0
    %4114 = vperm.xlu0 %4113, %v4040
    %v4115 = vpop.permute.xlu0 %4114
    %4118 = vset.pattern.permute.xlu0 0
    %4119 = vperm.xlu0 %4118, %v4041
    %v4120 = vpop.permute.xlu0 %4119
    %v4122 = vmul.f32 %v4045, %v324
    %v4123 = vmul.f32 %v4050, %v324
    %v4124 = vmul.f32 %v4055, %v324
    %v4125 = vmul.f32 %v4060, %v324
    %v4126 = vmul.f32 %v4065, %v324
    %v4127 = vmul.f32 %v4070, %v324
    %v4128 = vmul.f32 %v4075, %v324
    %v4129 = vmul.f32 %v4080, %v324
    %v4130 = vmul.f32 %v4085, %v324
    %v4131 = vmul.f32 %v4090, %v324
    %v4132 = vmul.f32 %v4095, %v324
    %v4133 = vmul.f32 %v4100, %v324
    %v4134 = vmul.f32 %v4105, %v324
    %v4135 = vmul.f32 %v4110, %v324
    %v4136 = vmul.f32 %v4115, %v324
    %v4137 = vmul.f32 %v4120, %v324
    %v4139 = vsel %vm342, %v4010, 0
    %v4142 = vsel %vm342, %v4011, 0
    %v4145 = vsel %vm342, %v4012, 0
    %v4148 = vsel %vm342, %v4013, 0
    %v4151 = vsel %vm342, %v4014, 0
    %v4154 = vsel %vm342, %v4015, 0
    %v4157 = vsel %vm342, %v4016, 0
    %v4160 = vsel %vm342, %v4017, 0
    %v4163 = vsel %vm342, %v4018, 0
    %v4166 = vsel %vm342, %v4019, 0
    %v4169 = vsel %vm342, %v4020, 0
    %v4172 = vsel %vm342, %v4021, 0
    %v4175 = vsel %vm342, %v4022, 0
    %v4178 = vsel %vm342, %v4023, 0
    %v4181 = vsel %vm342, %v4024, 0
    %v4184 = vsel %vm342, %v4025, 0
    %4186 = vmatprep.subr.mxu0 0.0
    %4187 = vmatpush1.msra.mxu0 %v184
    %4188 = vmatprep.subr.mxu0 0.0
    %4189 = vmatpush1.msra.mxu0 %v185
    %4190 = vmatprep.subr.mxu0 0.0
    %4191 = vmatpush1.msra.mxu0 %v186
    %4192 = vmatprep.subr.mxu0 0.0
    %4193 = vmatpush1.msra.mxu0 %v187
    %4194 = vmatprep.subr.mxu0 0.0
    %4195 = vmatpush1.msra.mxu0 %v393
    %4196 = vmatprep.subr.mxu0 0.0
    %4197 = vmatpush1.msra.mxu0 0.0
    %4198 = vmatprep.subr.mxu0 0.0
    %4199 = vmatpush1.msra.mxu0 0.0
    %4200 = vmatprep.subr.mxu0 0.0
    %4201 = vmatpush1.msra.mxu0 0.0
    %4202 = vmatprep.subr.mxu0 0.0
    %4203 = vmatpush1.msra.mxu0 0.0
    %4204 = vmatprep.subr.mxu0 0.0
    %4205 = vmatpush1.msra.mxu0 0.0
    %4206 = vmatprep.subr.mxu0 0.0
    %4207 = vmatpush1.msra.mxu0 0.0
    %4208 = vmatprep.subr.mxu0 0.0
    %4209 = vmatpush1.msra.mxu0 0.0
    %4210 = vmatprep.subr.mxu0 0.0
    %4211 = vmatpush1.msra.mxu0 0.0
    %4212 = vmatprep.subr.mxu0 0.0
    %4213 = vmatpush1.msra.mxu0 0.0
    %4214 = vmatprep.subr.mxu0 0.0
    %4215 = vmatpush1.msra.mxu0 0.0
    %4216 = vmatprep.subr.mxu0 0.0
    %4217 = vmatpush1.msra.mxu0 0.0
    %4218 = vmatprep.subr.mxu0 0.0
    %4219 = vmatpush1.msra.mxu0 0.0
    %4220 = vmatprep.subr.mxu0 0.0
    %4221 = vmatpush1.msra.mxu0 0.0
    %4222 = vmatprep.subr.mxu0 0.0
    %4223 = vmatpush1.msra.mxu0 0.0
    %4224 = vmatprep.subr.mxu0 0.0
    %4225 = vmatpush1.msra.mxu0 0.0
    %4226 = vmatprep.subr.mxu0 0.0
    %4227 = vmatpush1.msra.mxu0 0.0
    %4228 = vmatprep.subr.mxu0 0.0
    %4229 = vmatpush1.msra.mxu0 0.0
    %4230 = vmatprep.subr.mxu0 0.0
    %4231 = vmatpush1.msra.mxu0 0.0
    %4232 = vmatprep.subr.mxu0 0.0
    %4233 = vmatpush1.msra.mxu0 0.0
    %4234 = vmatprep.subr.mxu0 0.0
    %4235 = vmatpush1.msra.mxu0 0.0
    %4236 = vmatprep.subr.mxu0 0.0
    %4237 = vmatpush1.msra.mxu0 0.0
    %4238 = vmatprep.subr.mxu0 0.0
    %4239 = vmatpush1.msra.mxu0 0.0
    %4240 = vmatprep.subr.mxu0 0.0
    %4241 = vmatpush1.msra.mxu0 0.0
    %4242 = vmatprep.subr.mxu0 0.0
    %4243 = vmatpush1.msra.mxu0 0.0
    %4244 = vmatprep.subr.mxu0 0.0
    %4245 = vmatpush1.msra.mxu0 0.0
    %4246 = vmatprep.subr.mxu0 0.0
    %4247 = vmatpush1.msra.mxu0 0.0
    %4248 = vmatprep.subr.mxu0 0.0
    %4249 = vmatpush1.msra.mxu0 0.0
    %4250 = vmatprep.mubr.f32.mxu0 0.0
    %4251 = vmatmul.mubr.f32.gmra.mrb[0].mxu0 %v4139
    %v4252 = vpop.f32.mrb[0].mxu0
    %v4253 = vadd.f32 %v4122, %v4252
    %v4254 = vpop.f32.mrb[0].mxu0
    %4255 = vmatprep.mubr.f32.mxu0 0.0
    %4256 = vmatmul.mubr.f32.gmra.mrb[0].mxu0 %v4142
    %v4257 = vpop.f32.mrb[0].mxu0
    %v4258 = vadd.f32 %v4123, %v4257
    %v4259 = vpop.f32.mrb[0].mxu0
    %4260 = vmatprep.mubr.f32.mxu0 0.0
    %4261 = vmatmul.mubr.f32.gmra.mrb[0].mxu0 %v4145
    %v4262 = vpop.f32.mrb[0].mxu0
    %v4263 = vadd.f32 %v4124, %v4262
    %v4264 = vpop.f32.mrb[0].mxu0
    %4265 = vmatprep.mubr.f32.mxu0 0.0
    %4266 = vmatmul.mubr.f32.gmra.mrb[0].mxu0 %v4148
    %v4267 = vpop.f32.mrb[0].mxu0
    %v4268 = vadd.f32 %v4125, %v4267
    %v4269 = vpop.f32.mrb[0].mxu0
    %4270 = vmatprep.mubr.f32.mxu0 0.0
    %4271 = vmatmul.mubr.f32.gmra.mrb[0].mxu0 %v4151
    %v4272 = vpop.f32.mrb[0].mxu0
    %v4273 = vadd.f32 %v4126, %v4272
    %v4274 = vpop.f32.mrb[0].mxu0
    %4275 = vmatprep.mubr.f32.mxu0 0.0
    %4276 = vmatmul.mubr.f32.gmra.mrb[0].mxu0 %v4154
    %v4277 = vpop.f32.mrb[0].mxu0
    %v4278 = vadd.f32 %v4127, %v4277
    %v4279 = vpop.f32.mrb[0].mxu0
    %4280 = vmatprep.mubr.f32.mxu0 0.0
    %4281 = vmatmul.mubr.f32.gmra.mrb[0].mxu0 %v4157
    %v4282 = vpop.f32.mrb[0].mxu0
    %v4283 = vadd.f32 %v4128, %v4282
    %v4284 = vpop.f32.mrb[0].mxu0
    %4285 = vmatprep.mubr.f32.mxu0 0.0
    %4286 = vmatmul.mubr.f32.gmra.mrb[0].mxu0 %v4160
    %v4287 = vpop.f32.mrb[0].mxu0
    %v4288 = vadd.f32 %v4129, %v4287
    %v4289 = vpop.f32.mrb[0].mxu0
    %4290 = vmatprep.mubr.f32.mxu0 0.0
    %4291 = vmatmul.mubr.f32.gmra.mrb[0].mxu0 %v4163
    %v4292 = vpop.f32.mrb[0].mxu0
    %v4293 = vadd.f32 %v4130, %v4292
    %v4294 = vpop.f32.mrb[0].mxu0
    %4295 = vmatprep.mubr.f32.mxu0 0.0
    %4296 = vmatmul.mubr.f32.gmra.mrb[0].mxu0 %v4166
    %v4297 = vpop.f32.mrb[0].mxu0
    %v4298 = vadd.f32 %v4131, %v4297
    %v4299 = vpop.f32.mrb[0].mxu0
    %4300 = vmatprep.mubr.f32.mxu0 0.0
    %4301 = vmatmul.mubr.f32.gmra.mrb[0].mxu0 %v4169
    %v4302 = vpop.f32.mrb[0].mxu0
    %v4303 = vadd.f32 %v4132, %v4302
    %v4304 = vpop.f32.mrb[0].mxu0
    %4305 = vmatprep.mubr.f32.mxu0 0.0
    %4306 = vmatmul.mubr.f32.gmra.mrb[0].mxu0 %v4172
    %v4307 = vpop.f32.mrb[0].mxu0
    %v4308 = vadd.f32 %v4133, %v4307
    %v4309 = vpop.f32.mrb[0].mxu0
    %4310 = vmatprep.mubr.f32.mxu0 0.0
    %4311 = vmatmul.mubr.f32.gmra.mrb[0].mxu0 %v4175
    %v4312 = vpop.f32.mrb[0].mxu0
    %v4313 = vadd.f32 %v4134, %v4312
    %v4314 = vpop.f32.mrb[0].mxu0
    %4315 = vmatprep.mubr.f32.mxu0 0.0
    %4316 = vmatmul.mubr.f32.gmra.mrb[0].mxu0 %v4178
    %v4317 = vpop.f32.mrb[0].mxu0
    %v4318 = vadd.f32 %v4135, %v4317
    %v4319 = vpop.f32.mrb[0].mxu0
    %4320 = vmatprep.mubr.f32.mxu0 0.0
    %4321 = vmatmul.mubr.f32.gmra.mrb[0].mxu0 %v4181
    %v4322 = vpop.f32.mrb[0].mxu0
    %v4323 = vadd.f32 %v4136, %v4322
    %v4324 = vpop.f32.mrb[0].mxu0
    %4325 = vmatprep.mubr.f32.mxu0 0.0
    %4326 = vmatmul.mubr.f32.gmra.mrb[0].mxu0 %v4184
    %v4327 = vpop.f32.mrb[0].mxu0
    %v4328 = vadd.f32 %v4137, %v4327
    %v4329 = vpop.f32.mrb[0].mxu0
    %4330 = vdwg.mxu0
    %v4331 = vmax.f32 %v4253, 0.0
    %v4332 = vmax.f32 %v4258, 0.0
    %v4333 = vmax.f32 %v4263, 0.0
    %v4334 = vmax.f32 %v4268, 0.0
    %v4335 = vmax.f32 %v4273, 0.0
    %v4336 = vmax.f32 %v4278, 0.0
    %v4337 = vmax.f32 %v4283, 0.0
    %v4338 = vmax.f32 %v4288, 0.0
    %v4339 = vmax.f32 %v4293, 0.0
    %v4340 = vmax.f32 %v4298, 0.0
    %v4341 = vmax.f32 %v4303, 0.0
    %v4342 = vmax.f32 %v4308, 0.0
    %v4343 = vmax.f32 %v4313, 0.0
    %v4344 = vmax.f32 %v4318, 0.0
    %v4345 = vmax.f32 %v4323, 0.0
    %v4346 = vmax.f32 %v4328, 0.0
    %v4348 = vsel %vm893, %v4331, 0
    %v4351 = vsel %vm893, %v4332, 0
    %v4354 = vsel %vm893, %v4333, 0
    %v4357 = vsel %vm893, %v4334, 0
    %v4360 = vsel %vm893, %v4335, 0
    %v4363 = vsel %vm893, %v4336, 0
    %v4366 = vsel %vm893, %v4337, 0
    %v4369 = vsel %vm893, %v4338, 0
    %v4372 = vsel %vm893, %v4339, 0
    %v4375 = vsel %vm893, %v4340, 0
    %v4378 = vsel %vm893, %v4341, 0
    %v4381 = vsel %vm893, %v4342, 0
    %v4384 = vsel %vm893, %v4343, 0
    %v4387 = vsel %vm893, %v4344, 0
    %v4390 = vsel %vm893, %v4345, 0
    %v4393 = vsel %vm893, %v4346, 0
    %4395 = vmatprep.subr.mxu0 0.0
    %4396 = vmatpush1.msra.mxu0 %v204
    %4397 = vmatprep.subr.mxu0 0.0
    %4398 = vmatpush1.msra.mxu0 %v205
    %4399 = vmatprep.subr.mxu0 0.0
    %4400 = vmatpush1.msra.mxu0 0.0
    %4401 = vmatprep.subr.mxu0 0.0
    %4402 = vmatpush1.msra.mxu0 0.0
    %4403 = vmatprep.subr.mxu0 0.0
    %4404 = vmatpush1.msra.mxu0 0.0
    %4405 = vmatprep.subr.mxu0 0.0
    %4406 = vmatpush1.msra.mxu0 0.0
    %4407 = vmatprep.subr.mxu0 0.0
    %4408 = vmatpush1.msra.mxu0 0.0
    %4409 = vmatprep.subr.mxu0 0.0
    %4410 = vmatpush1.msra.mxu0 0.0
    %4411 = vmatprep.subr.mxu0 0.0
    %4412 = vmatpush1.msra.mxu0 0.0
    %4413 = vmatprep.subr.mxu0 0.0
    %4414 = vmatpush1.msra.mxu0 0.0
    %4415 = vmatprep.subr.mxu0 0.0
    %4416 = vmatpush1.msra.mxu0 0.0
    %4417 = vmatprep.subr.mxu0 0.0
    %4418 = vmatpush1.msra.mxu0 0.0
    %4419 = vmatprep.subr.mxu0 0.0
    %4420 = vmatpush1.msra.mxu0 0.0
    %4421 = vmatprep.subr.mxu0 0.0
    %4422 = vmatpush1.msra.mxu0 0.0
    %4423 = vmatprep.subr.mxu0 0.0
    %4424 = vmatpush1.msra.mxu0 0.0
    %4425 = vmatprep.subr.mxu0 0.0
    %4426 = vmatpush1.msra.mxu0 0.0
    %4427 = vmatprep.subr.mxu0 0.0
    %4428 = vmatpush1.msra.mxu0 0.0
    %4429 = vmatprep.subr.mxu0 0.0
    %4430 = vmatpush1.msra.mxu0 0.0
    %4431 = vmatprep.subr.mxu0 0.0
    %4432 = vmatpush1.msra.mxu0 0.0
    %4433 = vmatprep.subr.mxu0 0.0
    %4434 = vmatpush1.msra.mxu0 0.0
    %4435 = vmatprep.subr.mxu0 0.0
    %4436 = vmatpush1.msra.mxu0 0.0
    %4437 = vmatprep.subr.mxu0 0.0
    %4438 = vmatpush1.msra.mxu0 0.0
    %4439 = vmatprep.subr.mxu0 0.0
    %4440 = vmatpush1.msra.mxu0 0.0
    %4441 = vmatprep.subr.mxu0 0.0
    %4442 = vmatpush1.msra.mxu0 0.0
    %4443 = vmatprep.subr.mxu0 0.0
    %4444 = vmatpush1.msra.mxu0 0.0
    %4445 = vmatprep.subr.mxu0 0.0
    %4446 = vmatpush1.msra.mxu0 0.0
    %4447 = vmatprep.subr.mxu0 0.0
    %4448 = vmatpush1.msra.mxu0 0.0
    %4449 = vmatprep.subr.mxu0 0.0
    %4450 = vmatpush1.msra.mxu0 0.0
    %4451 = vmatprep.subr.mxu0 0.0
    %4452 = vmatpush1.msra.mxu0 0.0
    %4453 = vmatprep.subr.mxu0 0.0
    %4454 = vmatpush1.msra.mxu0 0.0
    %4455 = vmatprep.subr.mxu0 0.0
    %4456 = vmatpush1.msra.mxu0 0.0
    %4457 = vmatprep.subr.mxu0 0.0
    %4458 = vmatpush1.msra.mxu0 0.0
    %4459 = vmatprep.mubr.f32.mxu0 0.0
    %4460 = vmatmul.mubr.f32.gmra.mrb[0].mxu0 %v4348
    %v4461 = vpop.f32.mrb[0].mxu0
    %v4462 = vadd.f32 0.0, %v4461
    %v4463 = vpop.f32.mrb[0].mxu0
    %4464 = vmatprep.mubr.f32.mxu0 0.0
    %4465 = vmatmul.mubr.f32.gmra.mrb[0].mxu0 %v4351
    %v4466 = vpop.f32.mrb[0].mxu0
    %v4467 = vadd.f32 0.0, %v4466
    %v4468 = vpop.f32.mrb[0].mxu0
    %4469 = vmatprep.mubr.f32.mxu0 0.0
    %4470 = vmatmul.mubr.f32.gmra.mrb[0].mxu0 %v4354
    %v4471 = vpop.f32.mrb[0].mxu0
    %v4472 = vadd.f32 0.0, %v4471
    %v4473 = vpop.f32.mrb[0].mxu0
    %4474 = vmatprep.mubr.f32.mxu0 0.0
    %4475 = vmatmul.mubr.f32.gmra.mrb[0].mxu0 %v4357
    %v4476 = vpop.f32.mrb[0].mxu0
    %v4477 = vadd.f32 0.0, %v4476
    %v4478 = vpop.f32.mrb[0].mxu0
    %4479 = vmatprep.mubr.f32.mxu0 0.0
    %4480 = vmatmul.mubr.f32.gmra.mrb[0].mxu0 %v4360
    %v4481 = vpop.f32.mrb[0].mxu0
    %v4482 = vadd.f32 0.0, %v4481
    %v4483 = vpop.f32.mrb[0].mxu0
    %4484 = vmatprep.mubr.f32.mxu0 0.0
    %4485 = vmatmul.mubr.f32.gmra.mrb[0].mxu0 %v4363
    %v4486 = vpop.f32.mrb[0].mxu0
    %v4487 = vadd.f32 0.0, %v4486
    %v4488 = vpop.f32.mrb[0].mxu0
    %4489 = vmatprep.mubr.f32.mxu0 0.0
    %4490 = vmatmul.mubr.f32.gmra.mrb[0].mxu0 %v4366
    %v4491 = vpop.f32.mrb[0].mxu0
    %v4492 = vadd.f32 0.0, %v4491
    %v4493 = vpop.f32.mrb[0].mxu0
    %4494 = vmatprep.mubr.f32.mxu0 0.0
    %4495 = vmatmul.mubr.f32.gmra.mrb[0].mxu0 %v4369
    %v4496 = vpop.f32.mrb[0].mxu0
    %v4497 = vadd.f32 0.0, %v4496
    %v4498 = vpop.f32.mrb[0].mxu0
    %4499 = vmatprep.mubr.f32.mxu0 0.0
    %4500 = vmatmul.mubr.f32.gmra.mrb[0].mxu0 %v4372
    %v4501 = vpop.f32.mrb[0].mxu0
    %v4502 = vadd.f32 0.0, %v4501
    %v4503 = vpop.f32.mrb[0].mxu0
    %4504 = vmatprep.mubr.f32.mxu0 0.0
    %4505 = vmatmul.mubr.f32.gmra.mrb[0].mxu0 %v4375
    %v4506 = vpop.f32.mrb[0].mxu0
    %v4507 = vadd.f32 0.0, %v4506
    %v4508 = vpop.f32.mrb[0].mxu0
    %4509 = vmatprep.mubr.f32.mxu0 0.0
    %4510 = vmatmul.mubr.f32.gmra.mrb[0].mxu0 %v4378
    %v4511 = vpop.f32.mrb[0].mxu0
    %v4512 = vadd.f32 0.0, %v4511
    %v4513 = vpop.f32.mrb[0].mxu0
    %4514 = vmatprep.mubr.f32.mxu0 0.0
    %4515 = vmatmul.mubr.f32.gmra.mrb[0].mxu0 %v4381
    %v4516 = vpop.f32.mrb[0].mxu0
    %v4517 = vadd.f32 0.0, %v4516
    %v4518 = vpop.f32.mrb[0].mxu0
    %4519 = vmatprep.mubr.f32.mxu0 0.0
    %4520 = vmatmul.mubr.f32.gmra.mrb[0].mxu0 %v4384
    %v4521 = vpop.f32.mrb[0].mxu0
    %v4522 = vadd.f32 0.0, %v4521
    %v4523 = vpop.f32.mrb[0].mxu0
    %4524 = vmatprep.mubr.f32.mxu0 0.0
    %4525 = vmatmul.mubr.f32.gmra.mrb[0].mxu0 %v4387
    %v4526 = vpop.f32.mrb[0].mxu0
    %v4527 = vadd.f32 0.0, %v4526
    %v4528 = vpop.f32.mrb[0].mxu0
    %4529 = vmatprep.mubr.f32.mxu0 0.0
    %4530 = vmatmul.mubr.f32.gmra.mrb[0].mxu0 %v4390
    %v4531 = vpop.f32.mrb[0].mxu0
    %v4532 = vadd.f32 0.0, %v4531
    %v4533 = vpop.f32.mrb[0].mxu0
    %4534 = vmatprep.mubr.f32.mxu0 0.0
    %4535 = vmatmul.mubr.f32.gmra.mrb[0].mxu0 %v4393
    %v4536 = vpop.f32.mrb[0].mxu0
    %v4537 = vadd.f32 0.0, %v4536
    %v4538 = vpop.f32.mrb[0].mxu0
    %4539 = vdwg.mxu0
    %v4540 = vadd.f32 %v3994, %v4462
    %v4541 = vadd.f32 %v3995, %v4467
    %v4542 = vadd.f32 %v3996, %v4472
    %v4543 = vadd.f32 %v3997, %v4477
    %v4544 = vadd.f32 %v3998, %v4482
    %v4545 = vadd.f32 %v3999, %v4487
    %v4546 = vadd.f32 %v4000, %v4492
    %v4547 = vadd.f32 %v4001, %v4497
    %v4548 = vadd.f32 %v4002, %v4502
    %v4549 = vadd.f32 %v4003, %v4507
    %v4550 = vadd.f32 %v4004, %v4512
    %v4551 = vadd.f32 %v4005, %v4517
    %v4552 = vadd.f32 %v4006, %v4522
    %v4553 = vadd.f32 %v4007, %v4527
    %v4554 = vadd.f32 %v4008, %v4532
    %v4555 = vadd.f32 %v4009, %v4537
    %v4556 = vld [vmem:[%s0 + $0x400] sm:$0xff]
    %v4557 = vld [vmem:[%s0 + $0x408] sm:$0xff]
    %v4558 = vld [vmem:[%s0 + $0x410] sm:$0xff]
    %v4559 = vld [vmem:[%s0 + $0x418] sm:$0xff]
    %v4560 = vld [vmem:[%s0 + $0x420] sm:$0xff]
    %v4561 = vld [vmem:[%s0 + $0x428] sm:$0xff]
    %v4562 = vld [vmem:[%s0 + $0x430] sm:$0xff]
    %v4563 = vld [vmem:[%s0 + $0x438] sm:$0xff]
    %v4564 = vld [vmem:[%s0 + $0x440] sm:$0xff]
    %v4565 = vld [vmem:[%s0 + $0x448] sm:$0xff]
    %v4566 = vld [vmem:[%s0 + $0x450] sm:$0xff]
    %v4567 = vld [vmem:[%s0 + $0x458] sm:$0xff]
    %v4568 = vld [vmem:[%s0 + $0x460] sm:$0xff]
    %v4569 = vld [vmem:[%s0 + $0x468] sm:$0xff]
    %v4570 = vld [vmem:[%s0 + $0x470] sm:$0xff]
    %v4571 = vld [vmem:[%s0 + $0x478] sm:$0xff]
    %v4572 = vld [vmem:[%s1 + $0x400] sm:$0xff]
    %v4573 = vld [vmem:[%s1 + $0x408] sm:$0xff]
    %v4574 = vld [vmem:[%s1 + $0x410] sm:$0xff]
    %v4575 = vld [vmem:[%s1 + $0x418] sm:$0xff]
    %v4576 = vld [vmem:[%s1 + $0x420] sm:$0xff]
    %v4577 = vld [vmem:[%s1 + $0x428] sm:$0xff]
    %v4578 = vld [vmem:[%s1 + $0x430] sm:$0xff]
    %v4579 = vld [vmem:[%s1 + $0x438] sm:$0xff]
    %v4580 = vld [vmem:[%s1 + $0x440] sm:$0xff]
    %v4581 = vld [vmem:[%s1 + $0x448] sm:$0xff]
    %v4582 = vld [vmem:[%s1 + $0x450] sm:$0xff]
    %v4583 = vld [vmem:[%s1 + $0x458] sm:$0xff]
    %v4584 = vld [vmem:[%s1 + $0x460] sm:$0xff]
    %v4585 = vld [vmem:[%s1 + $0x468] sm:$0xff]
    %v4586 = vld [vmem:[%s1 + $0x470] sm:$0xff]
    %v4587 = vld [vmem:[%s1 + $0x478] sm:$0xff]
    %4589 = vset.pattern.permute.xlu0 0
    %4590 = vperm.xlu0 %4589, %v4572
    %v4591 = vpop.permute.xlu0 %4590
    %4594 = vset.pattern.permute.xlu0 0
    %4595 = vperm.xlu0 %4594, %v4573
    %v4596 = vpop.permute.xlu0 %4595
    %4599 = vset.pattern.permute.xlu0 0
    %4600 = vperm.xlu0 %4599, %v4574
    %v4601 = vpop.permute.xlu0 %4600
    %4604 = vset.pattern.permute.xlu0 0
    %4605 = vperm.xlu0 %4604, %v4575
    %v4606 = vpop.permute.xlu0 %4605
    %4609 = vset.pattern.permute.xlu0 0
    %4610 = vperm.xlu0 %4609, %v4576
    %v4611 = vpop.permute.xlu0 %4610
    %4614 = vset.pattern.permute.xlu0 0
    %4615 = vperm.xlu0 %4614, %v4577
    %v4616 = vpop.permute.xlu0 %4615
    %4619 = vset.pattern.permute.xlu0 0
    %4620 = vperm.xlu0 %4619, %v4578
    %v4621 = vpop.permute.xlu0 %4620
    %4624 = vset.pattern.permute.xlu0 0
    %4625 = vperm.xlu0 %4624, %v4579
    %v4626 = vpop.permute.xlu0 %4625
    %4629 = vset.pattern.permute.xlu0 0
    %4630 = vperm.xlu0 %4629, %v4580
    %v4631 = vpop.permute.xlu0 %4630
    %4634 = vset.pattern.permute.xlu0 0
    %4635 = vperm.xlu0 %4634, %v4581
    %v4636 = vpop.permute.xlu0 %4635
    %4639 = vset.pattern.permute.xlu0 0
    %4640 = vperm.xlu0 %4639, %v4582
    %v4641 = vpop.permute.xlu0 %4640
    %4644 = vset.pattern.permute.xlu0 0
    %4645 = vperm.xlu0 %4644, %v4583
    %v4646 = vpop.permute.xlu0 %4645
    %4649 = vset.pattern.permute.xlu0 0
    %4650 = vperm.xlu0 %4649, %v4584
    %v4651 = vpop.permute.xlu0 %4650
    %4654 = vset.pattern.permute.xlu0 0
    %4655 = vperm.xlu0 %4654, %v4585
    %v4656 = vpop.permute.xlu0 %4655
    %4659 = vset.pattern.permute.xlu0 0
    %4660 = vperm.xlu0 %4659, %v4586
    %v4661 = vpop.permute.xlu0 %4660
    %4664 = vset.pattern.permute.xlu0 0
    %4665 = vperm.xlu0 %4664, %v4587
    %v4666 = vpop.permute.xlu0 %4665
    %v4668 = vmul.f32 %v4591, %v324
    %v4669 = vmul.f32 %v4596, %v324
    %v4670 = vmul.f32 %v4601, %v324
    %v4671 = vmul.f32 %v4606, %v324
    %v4672 = vmul.f32 %v4611, %v324
    %v4673 = vmul.f32 %v4616, %v324
    %v4674 = vmul.f32 %v4621, %v324
    %v4675 = vmul.f32 %v4626, %v324
    %v4676 = vmul.f32 %v4631, %v324
    %v4677 = vmul.f32 %v4636, %v324
    %v4678 = vmul.f32 %v4641, %v324
    %v4679 = vmul.f32 %v4646, %v324
    %v4680 = vmul.f32 %v4651, %v324
    %v4681 = vmul.f32 %v4656, %v324
    %v4682 = vmul.f32 %v4661, %v324
    %v4683 = vmul.f32 %v4666, %v324
    %v4685 = vsel %vm342, %v4556, 0
    %v4688 = vsel %vm342, %v4557, 0
    %v4691 = vsel %vm342, %v4558, 0
    %v4694 = vsel %vm342, %v4559, 0
    %v4697 = vsel %vm342, %v4560, 0
    %v4700 = vsel %vm342, %v4561, 0
    %v4703 = vsel %vm342, %v4562, 0
    %v4706 = vsel %vm342, %v4563, 0
    %v4709 = vsel %vm342, %v4564, 0
    %v4712 = vsel %vm342, %v4565, 0
    %v4715 = vsel %vm342, %v4566, 0
    %v4718 = vsel %vm342, %v4567, 0
    %v4721 = vsel %vm342, %v4568, 0
    %v4724 = vsel %vm342, %v4569, 0
    %v4727 = vsel %vm342, %v4570, 0
    %v4730 = vsel %vm342, %v4571, 0
    %4732 = vmatprep.subr.mxu0 0.0
    %4733 = vmatpush1.msra.mxu0 %v184
    %4734 = vmatprep.subr.mxu0 0.0
    %4735 = vmatpush1.msra.mxu0 %v185
    %4736 = vmatprep.subr.mxu0 0.0
    %4737 = vmatpush1.msra.mxu0 %v186
    %4738 = vmatprep.subr.mxu0 0.0
    %4739 = vmatpush1.msra.mxu0 %v187
    %4740 = vmatprep.subr.mxu0 0.0
    %4741 = vmatpush1.msra.mxu0 %v393
    %4742 = vmatprep.subr.mxu0 0.0
    %4743 = vmatpush1.msra.mxu0 0.0
    %4744 = vmatprep.subr.mxu0 0.0
    %4745 = vmatpush1.msra.mxu0 0.0
    %4746 = vmatprep.subr.mxu0 0.0
    %4747 = vmatpush1.msra.mxu0 0.0
    %4748 = vmatprep.subr.mxu0 0.0
    %4749 = vmatpush1.msra.mxu0 0.0
    %4750 = vmatprep.subr.mxu0 0.0
    %4751 = vmatpush1.msra.mxu0 0.0
    %4752 = vmatprep.subr.mxu0 0.0
    %4753 = vmatpush1.msra.mxu0 0.0
    %4754 = vmatprep.subr.mxu0 0.0
    %4755 = vmatpush1.msra.mxu0 0.0
    %4756 = vmatprep.subr.mxu0 0.0
    %4757 = vmatpush1.msra.mxu0 0.0
    %4758 = vmatprep.subr.mxu0 0.0
    %4759 = vmatpush1.msra.mxu0 0.0
    %4760 = vmatprep.subr.mxu0 0.0
    %4761 = vmatpush1.msra.mxu0 0.0
    %4762 = vmatprep.subr.mxu0 0.0
    %4763 = vmatpush1.msra.mxu0 0.0
    %4764 = vmatprep.subr.mxu0 0.0
    %4765 = vmatpush1.msra.mxu0 0.0
    %4766 = vmatprep.subr.mxu0 0.0
    %4767 = vmatpush1.msra.mxu0 0.0
    %4768 = vmatprep.subr.mxu0 0.0
    %4769 = vmatpush1.msra.mxu0 0.0
    %4770 = vmatprep.subr.mxu0 0.0
    %4771 = vmatpush1.msra.mxu0 0.0
    %4772 = vmatprep.subr.mxu0 0.0
    %4773 = vmatpush1.msra.mxu0 0.0
    %4774 = vmatprep.subr.mxu0 0.0
    %4775 = vmatpush1.msra.mxu0 0.0
    %4776 = vmatprep.subr.mxu0 0.0
    %4777 = vmatpush1.msra.mxu0 0.0
    %4778 = vmatprep.subr.mxu0 0.0
    %4779 = vmatpush1.msra.mxu0 0.0
    %4780 = vmatprep.subr.mxu0 0.0
    %4781 = vmatpush1.msra.mxu0 0.0
    %4782 = vmatprep.subr.mxu0 0.0
    %4783 = vmatpush1.msra.mxu0 0.0
    %4784 = vmatprep.subr.mxu0 0.0
    %4785 = vmatpush1.msra.mxu0 0.0
    %4786 = vmatprep.subr.mxu0 0.0
    %4787 = vmatpush1.msra.mxu0 0.0
    %4788 = vmatprep.subr.mxu0 0.0
    %4789 = vmatpush1.msra.mxu0 0.0
    %4790 = vmatprep.subr.mxu0 0.0
    %4791 = vmatpush1.msra.mxu0 0.0
    %4792 = vmatprep.subr.mxu0 0.0
    %4793 = vmatpush1.msra.mxu0 0.0
    %4794 = vmatprep.subr.mxu0 0.0
    %4795 = vmatpush1.msra.mxu0 0.0
    %4796 = vmatprep.mubr.f32.mxu0 0.0
    %4797 = vmatmul.mubr.f32.gmra.mrb[0].mxu0 %v4685
    %v4798 = vpop.f32.mrb[0].mxu0
    %v4799 = vadd.f32 %v4668, %v4798
    %v4800 = vpop.f32.mrb[0].mxu0
    %4801 = vmatprep.mubr.f32.mxu0 0.0
    %4802 = vmatmul.mubr.f32.gmra.mrb[0].mxu0 %v4688
    %v4803 = vpop.f32.mrb[0].mxu0
    %v4804 = vadd.f32 %v4669, %v4803
    %v4805 = vpop.f32.mrb[0].mxu0
    %4806 = vmatprep.mubr.f32.mxu0 0.0
    %4807 = vmatmul.mubr.f32.gmra.mrb[0].mxu0 %v4691
    %v4808 = vpop.f32.mrb[0].mxu0
    %v4809 = vadd.f32 %v4670, %v4808
    %v4810 = vpop.f32.mrb[0].mxu0
    %4811 = vmatprep.mubr.f32.mxu0 0.0
    %4812 = vmatmul.mubr.f32.gmra.mrb[0].mxu0 %v4694
    %v4813 = vpop.f32.mrb[0].mxu0
    %v4814 = vadd.f32 %v4671, %v4813
    %v4815 = vpop.f32.mrb[0].mxu0
    %4816 = vmatprep.mubr.f32.mxu0 0.0
    %4817 = vmatmul.mubr.f32.gmra.mrb[0].mxu0 %v4697
    %v4818 = vpop.f32.mrb[0].mxu0
    %v4819 = vadd.f32 %v4672, %v4818
    %v4820 = vpop.f32.mrb[0].mxu0
    %4821 = vmatprep.mubr.f32.mxu0 0.0
    %4822 = vmatmul.mubr.f32.gmra.mrb[0].mxu0 %v4700
    %v4823 = vpop.f32.mrb[0].mxu0
    %v4824 = vadd.f32 %v4673, %v4823
    %v4825 = vpop.f32.mrb[0].mxu0
    %4826 = vmatprep.mubr.f32.mxu0 0.0
    %4827 = vmatmul.mubr.f32.gmra.mrb[0].mxu0 %v4703
    %v4828 = vpop.f32.mrb[0].mxu0
    %v4829 = vadd.f32 %v4674, %v4828
    %v4830 = vpop.f32.mrb[0].mxu0
    %4831 = vmatprep.mubr.f32.mxu0 0.0
    %4832 = vmatmul.mubr.f32.gmra.mrb[0].mxu0 %v4706
    %v4833 = vpop.f32.mrb[0].mxu0
    %v4834 = vadd.f32 %v4675, %v4833
    %v4835 = vpop.f32.mrb[0].mxu0
    %4836 = vmatprep.mubr.f32.mxu0 0.0
    %4837 = vmatmul.mubr.f32.gmra.mrb[0].mxu0 %v4709
    %v4838 = vpop.f32.mrb[0].mxu0
    %v4839 = vadd.f32 %v4676, %v4838
    %v4840 = vpop.f32.mrb[0].mxu0
    %4841 = vmatprep.mubr.f32.mxu0 0.0
    %4842 = vmatmul.mubr.f32.gmra.mrb[0].mxu0 %v4712
    %v4843 = vpop.f32.mrb[0].mxu0
    %v4844 = vadd.f32 %v4677, %v4843
    %v4845 = vpop.f32.mrb[0].mxu0
    %4846 = vmatprep.mubr.f32.mxu0 0.0
    %4847 = vmatmul.mubr.f32.gmra.mrb[0].mxu0 %v4715
    %v4848 = vpop.f32.mrb[0].mxu0
    %v4849 = vadd.f32 %v4678, %v4848
    %v4850 = vpop.f32.mrb[0].mxu0
    %4851 = vmatprep.mubr.f32.mxu0 0.0
    %4852 = vmatmul.mubr.f32.gmra.mrb[0].mxu0 %v4718
    %v4853 = vpop.f32.mrb[0].mxu0
    %v4854 = vadd.f32 %v4679, %v4853
    %v4855 = vpop.f32.mrb[0].mxu0
    %4856 = vmatprep.mubr.f32.mxu0 0.0
    %4857 = vmatmul.mubr.f32.gmra.mrb[0].mxu0 %v4721
    %v4858 = vpop.f32.mrb[0].mxu0
    %v4859 = vadd.f32 %v4680, %v4858
    %v4860 = vpop.f32.mrb[0].mxu0
    %4861 = vmatprep.mubr.f32.mxu0 0.0
    %4862 = vmatmul.mubr.f32.gmra.mrb[0].mxu0 %v4724
    %v4863 = vpop.f32.mrb[0].mxu0
    %v4864 = vadd.f32 %v4681, %v4863
    %v4865 = vpop.f32.mrb[0].mxu0
    %4866 = vmatprep.mubr.f32.mxu0 0.0
    %4867 = vmatmul.mubr.f32.gmra.mrb[0].mxu0 %v4727
    %v4868 = vpop.f32.mrb[0].mxu0
    %v4869 = vadd.f32 %v4682, %v4868
    %v4870 = vpop.f32.mrb[0].mxu0
    %4871 = vmatprep.mubr.f32.mxu0 0.0
    %4872 = vmatmul.mubr.f32.gmra.mrb[0].mxu0 %v4730
    %v4873 = vpop.f32.mrb[0].mxu0
    %v4874 = vadd.f32 %v4683, %v4873
    %v4875 = vpop.f32.mrb[0].mxu0
    %4876 = vdwg.mxu0
    %v4877 = vmax.f32 %v4799, 0.0
    %v4878 = vmax.f32 %v4804, 0.0
    %v4879 = vmax.f32 %v4809, 0.0
    %v4880 = vmax.f32 %v4814, 0.0
    %v4881 = vmax.f32 %v4819, 0.0
    %v4882 = vmax.f32 %v4824, 0.0
    %v4883 = vmax.f32 %v4829, 0.0
    %v4884 = vmax.f32 %v4834, 0.0
    %v4885 = vmax.f32 %v4839, 0.0
    %v4886 = vmax.f32 %v4844, 0.0
    %v4887 = vmax.f32 %v4849, 0.0
    %v4888 = vmax.f32 %v4854, 0.0
    %v4889 = vmax.f32 %v4859, 0.0
    %v4890 = vmax.f32 %v4864, 0.0
    %v4891 = vmax.f32 %v4869, 0.0
    %v4892 = vmax.f32 %v4874, 0.0
    %v4894 = vsel %vm893, %v4877, 0
    %v4897 = vsel %vm893, %v4878, 0
    %v4900 = vsel %vm893, %v4879, 0
    %v4903 = vsel %vm893, %v4880, 0
    %v4906 = vsel %vm893, %v4881, 0
    %v4909 = vsel %vm893, %v4882, 0
    %v4912 = vsel %vm893, %v4883, 0
    %v4915 = vsel %vm893, %v4884, 0
    %v4918 = vsel %vm893, %v4885, 0
    %v4921 = vsel %vm893, %v4886, 0
    %v4924 = vsel %vm893, %v4887, 0
    %v4927 = vsel %vm893, %v4888, 0
    %v4930 = vsel %vm893, %v4889, 0
    %v4933 = vsel %vm893, %v4890, 0
    %v4936 = vsel %vm893, %v4891, 0
    %v4939 = vsel %vm893, %v4892, 0
    %4941 = vmatprep.subr.mxu0 0.0
    %4942 = vmatpush1.msra.mxu0 %v206
    %4943 = vmatprep.subr.mxu0 0.0
    %4944 = vmatpush1.msra.mxu0 %v207
    %4945 = vmatprep.subr.mxu0 0.0
    %4946 = vmatpush1.msra.mxu0 0.0
    %4947 = vmatprep.subr.mxu0 0.0
    %4948 = vmatpush1.msra.mxu0 0.0
    %4949 = vmatprep.subr.mxu0 0.0
    %4950 = vmatpush1.msra.mxu0 0.0
    %4951 = vmatprep.subr.mxu0 0.0
    %4952 = vmatpush1.msra.mxu0 0.0
    %4953 = vmatprep.subr.mxu0 0.0
    %4954 = vmatpush1.msra.mxu0 0.0
    %4955 = vmatprep.subr.mxu0 0.0
    %4956 = vmatpush1.msra.mxu0 0.0
    %4957 = vmatprep.subr.mxu0 0.0
    %4958 = vmatpush1.msra.mxu0 0.0
    %4959 = vmatprep.subr.mxu0 0.0
    %4960 = vmatpush1.msra.mxu0 0.0
    %4961 = vmatprep.subr.mxu0 0.0
    %4962 = vmatpush1.msra.mxu0 0.0
    %4963 = vmatprep.subr.mxu0 0.0
    %4964 = vmatpush1.msra.mxu0 0.0
    %4965 = vmatprep.subr.mxu0 0.0
    %4966 = vmatpush1.msra.mxu0 0.0
    %4967 = vmatprep.subr.mxu0 0.0
    %4968 = vmatpush1.msra.mxu0 0.0
    %4969 = vmatprep.subr.mxu0 0.0
    %4970 = vmatpush1.msra.mxu0 0.0
    %4971 = vmatprep.subr.mxu0 0.0
    %4972 = vmatpush1.msra.mxu0 0.0
    %4973 = vmatprep.subr.mxu0 0.0
    %4974 = vmatpush1.msra.mxu0 0.0
    %4975 = vmatprep.subr.mxu0 0.0
    %4976 = vmatpush1.msra.mxu0 0.0
    %4977 = vmatprep.subr.mxu0 0.0
    %4978 = vmatpush1.msra.mxu0 0.0
    %4979 = vmatprep.subr.mxu0 0.0
    %4980 = vmatpush1.msra.mxu0 0.0
    %4981 = vmatprep.subr.mxu0 0.0
    %4982 = vmatpush1.msra.mxu0 0.0
    %4983 = vmatprep.subr.mxu0 0.0
    %4984 = vmatpush1.msra.mxu0 0.0
    %4985 = vmatprep.subr.mxu0 0.0
    %4986 = vmatpush1.msra.mxu0 0.0
    %4987 = vmatprep.subr.mxu0 0.0
    %4988 = vmatpush1.msra.mxu0 0.0
    %4989 = vmatprep.subr.mxu0 0.0
    %4990 = vmatpush1.msra.mxu0 0.0
    %4991 = vmatprep.subr.mxu0 0.0
    %4992 = vmatpush1.msra.mxu0 0.0
    %4993 = vmatprep.subr.mxu0 0.0
    %4994 = vmatpush1.msra.mxu0 0.0
    %4995 = vmatprep.subr.mxu0 0.0
    %4996 = vmatpush1.msra.mxu0 0.0
    %4997 = vmatprep.subr.mxu0 0.0
    %4998 = vmatpush1.msra.mxu0 0.0
    %4999 = vmatprep.subr.mxu0 0.0
    %5000 = vmatpush1.msra.mxu0 0.0
    %5001 = vmatprep.subr.mxu0 0.0
    %5002 = vmatpush1.msra.mxu0 0.0
    %5003 = vmatprep.subr.mxu0 0.0
    %5004 = vmatpush1.msra.mxu0 0.0
    %5005 = vmatprep.mubr.f32.mxu0 0.0
    %5006 = vmatmul.mubr.f32.gmra.mrb[0].mxu0 %v4894
    %v5007 = vpop.f32.mrb[0].mxu0
    %v5008 = vadd.f32 0.0, %v5007
    %v5009 = vpop.f32.mrb[0].mxu0
    %5010 = vmatprep.mubr.f32.mxu0 0.0
    %5011 = vmatmul.mubr.f32.gmra.mrb[0].mxu0 %v4897
    %v5012 = vpop.f32.mrb[0].mxu0
    %v5013 = vadd.f32 0.0, %v5012
    %v5014 = vpop.f32.mrb[0].mxu0
    %5015 = vmatprep.mubr.f32.mxu0 0.0
    %5016 = vmatmul.mubr.f32.gmra.mrb[0].mxu0 %v4900
    %v5017 = vpop.f32.mrb[0].mxu0
    %v5018 = vadd.f32 0.0, %v5017
    %v5019 = vpop.f32.mrb[0].mxu0
    %5020 = vmatprep.mubr.f32.mxu0 0.0
    %5021 = vmatmul.mubr.f32.gmra.mrb[0].mxu0 %v4903
    %v5022 = vpop.f32.mrb[0].mxu0
    %v5023 = vadd.f32 0.0, %v5022
    %v5024 = vpop.f32.mrb[0].mxu0
    %5025 = vmatprep.mubr.f32.mxu0 0.0
    %5026 = vmatmul.mubr.f32.gmra.mrb[0].mxu0 %v4906
    %v5027 = vpop.f32.mrb[0].mxu0
    %v5028 = vadd.f32 0.0, %v5027
    %v5029 = vpop.f32.mrb[0].mxu0
    %5030 = vmatprep.mubr.f32.mxu0 0.0
    %5031 = vmatmul.mubr.f32.gmra.mrb[0].mxu0 %v4909
    %v5032 = vpop.f32.mrb[0].mxu0
    %v5033 = vadd.f32 0.0, %v5032
    %v5034 = vpop.f32.mrb[0].mxu0
    %5035 = vmatprep.mubr.f32.mxu0 0.0
    %5036 = vmatmul.mubr.f32.gmra.mrb[0].mxu0 %v4912
    %v5037 = vpop.f32.mrb[0].mxu0
    %v5038 = vadd.f32 0.0, %v5037
    %v5039 = vpop.f32.mrb[0].mxu0
    %5040 = vmatprep.mubr.f32.mxu0 0.0
    %5041 = vmatmul.mubr.f32.gmra.mrb[0].mxu0 %v4915
    %v5042 = vpop.f32.mrb[0].mxu0
    %v5043 = vadd.f32 0.0, %v5042
    %v5044 = vpop.f32.mrb[0].mxu0
    %5045 = vmatprep.mubr.f32.mxu0 0.0
    %5046 = vmatmul.mubr.f32.gmra.mrb[0].mxu0 %v4918
    %v5047 = vpop.f32.mrb[0].mxu0
    %v5048 = vadd.f32 0.0, %v5047
    %v5049 = vpop.f32.mrb[0].mxu0
    %5050 = vmatprep.mubr.f32.mxu0 0.0
    %5051 = vmatmul.mubr.f32.gmra.mrb[0].mxu0 %v4921
    %v5052 = vpop.f32.mrb[0].mxu0
    %v5053 = vadd.f32 0.0, %v5052
    %v5054 = vpop.f32.mrb[0].mxu0
    %5055 = vmatprep.mubr.f32.mxu0 0.0
    %5056 = vmatmul.mubr.f32.gmra.mrb[0].mxu0 %v4924
    %v5057 = vpop.f32.mrb[0].mxu0
    %v5058 = vadd.f32 0.0, %v5057
    %v5059 = vpop.f32.mrb[0].mxu0
    %5060 = vmatprep.mubr.f32.mxu0 0.0
    %5061 = vmatmul.mubr.f32.gmra.mrb[0].mxu0 %v4927
    %v5062 = vpop.f32.mrb[0].mxu0
    %v5063 = vadd.f32 0.0, %v5062
    %v5064 = vpop.f32.mrb[0].mxu0
    %5065 = vmatprep.mubr.f32.mxu0 0.0
    %5066 = vmatmul.mubr.f32.gmra.mrb[0].mxu0 %v4930
    %v5067 = vpop.f32.mrb[0].mxu0
    %v5068 = vadd.f32 0.0, %v5067
    %v5069 = vpop.f32.mrb[0].mxu0
    %5070 = vmatprep.mubr.f32.mxu0 0.0
    %5071 = vmatmul.mubr.f32.gmra.mrb[0].mxu0 %v4933
    %v5072 = vpop.f32.mrb[0].mxu0
    %v5073 = vadd.f32 0.0, %v5072
    %v5074 = vpop.f32.mrb[0].mxu0
    %5075 = vmatprep.mubr.f32.mxu0 0.0
    %5076 = vmatmul.mubr.f32.gmra.mrb[0].mxu0 %v4936
    %v5077 = vpop.f32.mrb[0].mxu0
    %v5078 = vadd.f32 0.0, %v5077
    %v5079 = vpop.f32.mrb[0].mxu0
    %5080 = vmatprep.mubr.f32.mxu0 0.0
    %5081 = vmatmul.mubr.f32.gmra.mrb[0].mxu0 %v4939
    %v5082 = vpop.f32.mrb[0].mxu0
    %v5083 = vadd.f32 0.0, %v5082
    %v5084 = vpop.f32.mrb[0].mxu0
    %5085 = vdwg.mxu0
    %v5086 = vadd.f32 %v4540, %v5008
    %v5087 = vadd.f32 %v4541, %v5013
    %v5088 = vadd.f32 %v4542, %v5018
    %v5089 = vadd.f32 %v4543, %v5023
    %v5090 = vadd.f32 %v4544, %v5028
    %v5091 = vadd.f32 %v4545, %v5033
    %v5092 = vadd.f32 %v4546, %v5038
    %v5093 = vadd.f32 %v4547, %v5043
    %v5094 = vadd.f32 %v4548, %v5048
    %v5095 = vadd.f32 %v4549, %v5053
    %v5096 = vadd.f32 %v4550, %v5058
    %v5097 = vadd.f32 %v4551, %v5063
    %v5098 = vadd.f32 %v4552, %v5068
    %v5099 = vadd.f32 %v4553, %v5073
    %v5100 = vadd.f32 %v4554, %v5078
    %v5101 = vadd.f32 %v4555, %v5083
    %v5102 = vld [vmem:[%s5] sm:$0x1]
    %v5104 = vlaneseq
    %v5105 = vshrl.u32 %v5104, 7
    %v5106 = vsub.s32 0, %v5105
    %v5107 = vrot.slane %v5102, %v5106
    %v5109 = vadd.f32 %v5086, %v5107
    %v5110 = vadd.f32 %v5087, %v5107
    %v5111 = vadd.f32 %v5088, %v5107
    %v5112 = vadd.f32 %v5089, %v5107
    %v5113 = vadd.f32 %v5090, %v5107
    %v5114 = vadd.f32 %v5091, %v5107
    %v5115 = vadd.f32 %v5092, %v5107
    %v5116 = vadd.f32 %v5093, %v5107
    %v5117 = vadd.f32 %v5094, %v5107
    %v5118 = vadd.f32 %v5095, %v5107
    %v5119 = vadd.f32 %v5096, %v5107
    %v5120 = vadd.f32 %v5097, %v5107
    %v5121 = vadd.f32 %v5098, %v5107
    %v5122 = vadd.f32 %v5099, %v5107
    %v5123 = vadd.f32 %v5100, %v5107
    %v5124 = vadd.f32 %v5101, %v5107
    %v5125 = vmax.f32 %v5109, 0.0
    %v5126 = vmax.f32 %v5110, 0.0
    %v5127 = vmax.f32 %v5111, 0.0
    %v5128 = vmax.f32 %v5112, 0.0
    %v5129 = vmax.f32 %v5113, 0.0
    %v5130 = vmax.f32 %v5114, 0.0
    %v5131 = vmax.f32 %v5115, 0.0
    %v5132 = vmax.f32 %v5116, 0.0
    %v5133 = vmax.f32 %v5117, 0.0
    %v5134 = vmax.f32 %v5118, 0.0
    %v5135 = vmax.f32 %v5119, 0.0
    %v5136 = vmax.f32 %v5120, 0.0
    %v5137 = vmax.f32 %v5121, 0.0
    %v5138 = vmax.f32 %v5122, 0.0
    %v5139 = vmax.f32 %v5123, 0.0
    %v5140 = vmax.f32 %v5124, 0.0
    %v5141 = vld [vmem:[#allocation7] sm:$0xff]
    %v5142 = vld [vmem:[#allocation7 + $0x8] sm:$0xff]
    %v5143 = vld [vmem:[#allocation7 + $0x10] sm:$0xff]
    %v5144 = vld [vmem:[#allocation7 + $0x18] sm:$0xff]
    %v5145 = vld [vmem:[#allocation7 + $0x20] sm:$0xff]
    %v5146 = vld [vmem:[#allocation7 + $0x28] sm:$0xff]
    %v5147 = vld [vmem:[#allocation7 + $0x30] sm:$0xff]
    %v5148 = vld [vmem:[#allocation7 + $0x38] sm:$0xff]
    %v5149 = vld [vmem:[#allocation7 + $0x40] sm:$0xff]
    %v5150 = vld [vmem:[#allocation7 + $0x48] sm:$0xff]
    %v5151 = vld [vmem:[#allocation7 + $0x50] sm:$0xff]
    %v5152 = vld [vmem:[#allocation7 + $0x58] sm:$0xff]
    %v5153 = vld [vmem:[#allocation7 + $0x60] sm:$0xff]
    %v5154 = vld [vmem:[#allocation7 + $0x68] sm:$0xff]
    %v5155 = vld [vmem:[#allocation7 + $0x70] sm:$0xff]
    %v5156 = vld [vmem:[#allocation7 + $0x78] sm:$0xff]
    %v5157 = vld [vmem:[#allocation7 + $0x80] sm:$0xff]
    %v5158 = vld [vmem:[#allocation7 + $0x88] sm:$0xff]
    %v5159 = vld [vmem:[#allocation7 + $0x90] sm:$0xff]
    %v5160 = vld [vmem:[#allocation7 + $0x98] sm:$0xff]
    %v5161 = vld [vmem:[#allocation7 + $0xa0] sm:$0xff]
    %v5162 = vld [vmem:[#allocation7 + $0xa8] sm:$0xff]
    %v5163 = vld [vmem:[#allocation7 + $0xb0] sm:$0xff]
    %v5164 = vld [vmem:[#allocation7 + $0xb8] sm:$0xff]
    %v5165 = vld [vmem:[#allocation7 + $0xc0] sm:$0xff]
    %v5166 = vld [vmem:[#allocation7 + $0xc8] sm:$0xff]
    %v5167 = vld [vmem:[#allocation7 + $0xd0] sm:$0xff]
    %v5168 = vld [vmem:[#allocation7 + $0xd8] sm:$0xff]
    %v5169 = vld [vmem:[#allocation7 + $0xe0] sm:$0xff]
    %v5170 = vld [vmem:[#allocation7 + $0xe8] sm:$0xff]
    %v5171 = vld [vmem:[#allocation7 + $0xf0] sm:$0xff]
    %v5172 = vld [vmem:[#allocation7 + $0xf8] sm:$0xff]
    %v5173 = vld [vmem:[#allocation7 + $0x100] sm:$0xff]
    %v5174 = vld [vmem:[#allocation7 + $0x108] sm:$0xff]
    %v5175 = vld [vmem:[#allocation7 + $0x110] sm:$0xff]
    %v5176 = vld [vmem:[#allocation7 + $0x118] sm:$0xff]
    %v5177 = vld [vmem:[#allocation7 + $0x120] sm:$0xff]
    %v5178 = vld [vmem:[#allocation7 + $0x128] sm:$0xff]
    %v5179 = vld [vmem:[#allocation7 + $0x130] sm:$0xff]
    %v5180 = vld [vmem:[#allocation7 + $0x138] sm:$0xff]
    %v5181 = vld [vmem:[#allocation7 + $0x140] sm:$0xff]
    %v5182 = vld [vmem:[#allocation7 + $0x148] sm:$0xff]
    %v5183 = vld [vmem:[#allocation7 + $0x150] sm:$0xff]
    %v5184 = vld [vmem:[#allocation7 + $0x158] sm:$0xff]
    %v5185 = vld [vmem:[#allocation7 + $0x160] sm:$0xff]
    %v5186 = vld [vmem:[#allocation7 + $0x168] sm:$0xff]
    %v5187 = vld [vmem:[#allocation7 + $0x170] sm:$0xff]
    %v5188 = vld [vmem:[#allocation7 + $0x178] sm:$0xff]
    %v5189 = vld [vmem:[#allocation7 + $0x180] sm:$0xff]
    %v5190 = vld [vmem:[#allocation7 + $0x188] sm:$0xff]
    %v5191 = vld [vmem:[#allocation7 + $0x190] sm:$0xff]
    %v5192 = vld [vmem:[#allocation7 + $0x198] sm:$0xff]
    %v5193 = vld [vmem:[#allocation7 + $0x1a0] sm:$0xff]
    %v5194 = vld [vmem:[#allocation7 + $0x1a8] sm:$0xff]
    %v5195 = vld [vmem:[#allocation7 + $0x1b0] sm:$0xff]
    %v5196 = vld [vmem:[#allocation7 + $0x1b8] sm:$0xff]
    %v5197 = vld [vmem:[#allocation7 + $0x1c0] sm:$0xff]
    %v5198 = vld [vmem:[#allocation7 + $0x1c8] sm:$0xff]
    %v5199 = vld [vmem:[#allocation7 + $0x1d0] sm:$0xff]
    %v5200 = vld [vmem:[#allocation7 + $0x1d8] sm:$0xff]
    %v5201 = vld [vmem:[#allocation7 + $0x1e0] sm:$0xff]
    %v5202 = vld [vmem:[#allocation7 + $0x1e8] sm:$0xff]
    %v5203 = vld [vmem:[#allocation7 + $0x1f0] sm:$0xff]
    %v5204 = vld [vmem:[#allocation7 + $0x1f8] sm:$0xff]
    %vm5205 = vcmask 261120
    %v5207 = vsel %vm5205, %v5126, 0
    %5209 = vmatprep.subr.mxu0 0.0
    %5210 = vmatpush1.msra.mxu0 %v5145
    %5211 = vmatprep.subr.mxu0 0.0
    %5212 = vmatpush1.msra.mxu0 %v5146
    %5213 = vmatprep.subr.mxu0 0.0
    %5214 = vmatpush1.msra.mxu0 %v5147
    %5215 = vmatprep.subr.mxu0 0.0
    %5216 = vmatpush1.msra.mxu0 %v5148
    %5217 = vmatprep.subr.mxu0 0.0
    %5218 = vmatpush1.msra.mxu0 0.0
    %5219 = vmatprep.subr.mxu0 0.0
    %5220 = vmatpush1.msra.mxu0 0.0
    %5221 = vmatprep.subr.mxu0 0.0
    %5222 = vmatpush1.msra.mxu0 0.0
    %5223 = vmatprep.subr.mxu0 0.0
    %5224 = vmatpush1.msra.mxu0 0.0
    %5225 = vmatprep.subr.mxu0 0.0
    %5226 = vmatpush1.msra.mxu0 0.0
    %5227 = vmatprep.subr.mxu0 0.0
    %5228 = vmatpush1.msra.mxu0 0.0
    %5229 = vmatprep.subr.mxu0 0.0
    %5230 = vmatpush1.msra.mxu0 0.0
    %5231 = vmatprep.subr.mxu0 0.0
    %5232 = vmatpush1.msra.mxu0 0.0
    %5233 = vmatprep.subr.mxu0 0.0
    %5234 = vmatpush1.msra.mxu0 0.0
    %5235 = vmatprep.subr.mxu0 0.0
    %5236 = vmatpush1.msra.mxu0 0.0
    %5237 = vmatprep.subr.mxu0 0.0
    %5238 = vmatpush1.msra.mxu0 0.0
    %5239 = vmatprep.subr.mxu0 0.0
    %5240 = vmatpush1.msra.mxu0 0.0
    %5241 = vmatprep.subr.mxu0 0.0
    %5242 = vmatpush1.msra.mxu0 0.0
    %5243 = vmatprep.subr.mxu0 0.0
    %5244 = vmatpush1.msra.mxu0 0.0
    %5245 = vmatprep.subr.mxu0 0.0
    %5246 = vmatpush1.msra.mxu0 0.0
    %5247 = vmatprep.subr.mxu0 0.0
    %5248 = vmatpush1.msra.mxu0 0.0
    %5249 = vmatprep.subr.mxu0 0.0
    %5250 = vmatpush1.msra.mxu0 0.0
    %5251 = vmatprep.subr.mxu0 0.0
    %5252 = vmatpush1.msra.mxu0 0.0
    %5253 = vmatprep.subr.mxu0 0.0
    %5254 = vmatpush1.msra.mxu0 0.0
    %5255 = vmatprep.subr.mxu0 0.0
    %5256 = vmatpush1.msra.mxu0 0.0
    %5257 = vmatprep.subr.mxu0 0.0
    %5258 = vmatpush1.msra.mxu0 0.0
    %5259 = vmatprep.subr.mxu0 0.0
    %5260 = vmatpush1.msra.mxu0 0.0
    %5261 = vmatprep.subr.mxu0 0.0
    %5262 = vmatpush1.msra.mxu0 0.0
    %5263 = vmatprep.subr.mxu0 0.0
    %5264 = vmatpush1.msra.mxu0 0.0
    %5265 = vmatprep.subr.mxu0 0.0
    %5266 = vmatpush1.msra.mxu0 0.0
    %5267 = vmatprep.subr.mxu0 0.0
    %5268 = vmatpush1.msra.mxu0 0.0
    %5269 = vmatprep.subr.mxu0 0.0
    %5270 = vmatpush1.msra.mxu0 0.0
    %5271 = vmatprep.subr.mxu0 0.0
    %5272 = vmatpush1.msra.mxu0 0.0
    %5273 = vmatprep.mubr.f32.mxu0 0.0
    %5274 = vmatmul.mubr.f32.gmra.mrb[0].mxu0 %v5207
    %v5275 = vpop.f32.mrb[0].mxu0
    %v5276 = vadd.f32 0.0, %v5275
    %v5277 = vpop.f32.mrb[0].mxu0
    %5278 = vdwg.mxu0
    %v5280 = vsel %vm5205, %v5125, 0
    %5282 = vmatprep.subr.mxu0 0.0
    %5283 = vmatpush1.msra.mxu0 %v5141
    %5284 = vmatprep.subr.mxu0 0.0
    %5285 = vmatpush1.msra.mxu0 %v5142
    %5286 = vmatprep.subr.mxu0 0.0
    %5287 = vmatpush1.msra.mxu0 %v5143
    %5288 = vmatprep.subr.mxu0 0.0
    %5289 = vmatpush1.msra.mxu0 %v5144
    %5290 = vmatprep.subr.mxu0 0.0
    %5291 = vmatpush1.msra.mxu0 0.0
    %5292 = vmatprep.subr.mxu0 0.0
    %5293 = vmatpush1.msra.mxu0 0.0
    %5294 = vmatprep.subr.mxu0 0.0
    %5295 = vmatpush1.msra.mxu0 0.0
    %5296 = vmatprep.subr.mxu0 0.0
    %5297 = vmatpush1.msra.mxu0 0.0
    %5298 = vmatprep.subr.mxu0 0.0
    %5299 = vmatpush1.msra.mxu0 0.0
    %5300 = vmatprep.subr.mxu0 0.0
    %5301 = vmatpush1.msra.mxu0 0.0
    %5302 = vmatprep.subr.mxu0 0.0
    %5303 = vmatpush1.msra.mxu0 0.0
    %5304 = vmatprep.subr.mxu0 0.0
    %5305 = vmatpush1.msra.mxu0 0.0
    %5306 = vmatprep.subr.mxu0 0.0
    %5307 = vmatpush1.msra.mxu0 0.0
    %5308 = vmatprep.subr.mxu0 0.0
    %5309 = vmatpush1.msra.mxu0 0.0
    %5310 = vmatprep.subr.mxu0 0.0
    %5311 = vmatpush1.msra.mxu0 0.0
    %5312 = vmatprep.subr.mxu0 0.0
    %5313 = vmatpush1.msra.mxu0 0.0
    %5314 = vmatprep.subr.mxu0 0.0
    %5315 = vmatpush1.msra.mxu0 0.0
    %5316 = vmatprep.subr.mxu0 0.0
    %5317 = vmatpush1.msra.mxu0 0.0
    %5318 = vmatprep.subr.mxu0 0.0
    %5319 = vmatpush1.msra.mxu0 0.0
    %5320 = vmatprep.subr.mxu0 0.0
    %5321 = vmatpush1.msra.mxu0 0.0
    %5322 = vmatprep.subr.mxu0 0.0
    %5323 = vmatpush1.msra.mxu0 0.0
    %5324 = vmatprep.subr.mxu0 0.0
    %5325 = vmatpush1.msra.mxu0 0.0
    %5326 = vmatprep.subr.mxu0 0.0
    %5327 = vmatpush1.msra.mxu0 0.0
    %5328 = vmatprep.subr.mxu0 0.0
    %5329 = vmatpush1.msra.mxu0 0.0
    %5330 = vmatprep.subr.mxu0 0.0
    %5331 = vmatpush1.msra.mxu0 0.0
    %5332 = vmatprep.subr.mxu0 0.0
    %5333 = vmatpush1.msra.mxu0 0.0
    %5334 = vmatprep.subr.mxu0 0.0
    %5335 = vmatpush1.msra.mxu0 0.0
    %5336 = vmatprep.subr.mxu0 0.0
    %5337 = vmatpush1.msra.mxu0 0.0
    %5338 = vmatprep.subr.mxu0 0.0
    %5339 = vmatpush1.msra.mxu0 0.0
    %5340 = vmatprep.subr.mxu0 0.0
    %5341 = vmatpush1.msra.mxu0 0.0
    %5342 = vmatprep.subr.mxu0 0.0
    %5343 = vmatpush1.msra.mxu0 0.0
    %5344 = vmatprep.subr.mxu0 0.0
    %5345 = vmatpush1.msra.mxu0 0.0
    %5346 = vmatprep.mubr.f32.mxu0 0.0
    %5347 = vmatmul.mubr.f32.gmra.mrb[0].mxu0 %v5280
    %v5348 = vpop.f32.mrb[0].mxu0
    %v5349 = vadd.f32 %v5276, %v5348
    %v5350 = vpop.f32.mrb[0].mxu0
    %5351 = vdwg.mxu0
    %v5353 = vsel %vm5205, %v5127, 0
    %5355 = vmatprep.subr.mxu0 0.0
    %5356 = vmatpush1.msra.mxu0 %v5149
    %5357 = vmatprep.subr.mxu0 0.0
    %5358 = vmatpush1.msra.mxu0 %v5150
    %5359 = vmatprep.subr.mxu0 0.0
    %5360 = vmatpush1.msra.mxu0 %v5151
    %5361 = vmatprep.subr.mxu0 0.0
    %5362 = vmatpush1.msra.mxu0 %v5152
    %5363 = vmatprep.subr.mxu0 0.0
    %5364 = vmatpush1.msra.mxu0 0.0
    %5365 = vmatprep.subr.mxu0 0.0
    %5366 = vmatpush1.msra.mxu0 0.0
    %5367 = vmatprep.subr.mxu0 0.0
    %5368 = vmatpush1.msra.mxu0 0.0
    %5369 = vmatprep.subr.mxu0 0.0
    %5370 = vmatpush1.msra.mxu0 0.0
    %5371 = vmatprep.subr.mxu0 0.0
    %5372 = vmatpush1.msra.mxu0 0.0
    %5373 = vmatprep.subr.mxu0 0.0
    %5374 = vmatpush1.msra.mxu0 0.0
    %5375 = vmatprep.subr.mxu0 0.0
    %5376 = vmatpush1.msra.mxu0 0.0
    %5377 = vmatprep.subr.mxu0 0.0
    %5378 = vmatpush1.msra.mxu0 0.0
    %5379 = vmatprep.subr.mxu0 0.0
    %5380 = vmatpush1.msra.mxu0 0.0
    %5381 = vmatprep.subr.mxu0 0.0
    %5382 = vmatpush1.msra.mxu0 0.0
    %5383 = vmatprep.subr.mxu0 0.0
    %5384 = vmatpush1.msra.mxu0 0.0
    %5385 = vmatprep.subr.mxu0 0.0
    %5386 = vmatpush1.msra.mxu0 0.0
    %5387 = vmatprep.subr.mxu0 0.0
    %5388 = vmatpush1.msra.mxu0 0.0
    %5389 = vmatprep.subr.mxu0 0.0
    %5390 = vmatpush1.msra.mxu0 0.0
    %5391 = vmatprep.subr.mxu0 0.0
    %5392 = vmatpush1.msra.mxu0 0.0
    %5393 = vmatprep.subr.mxu0 0.0
    %5394 = vmatpush1.msra.mxu0 0.0
    %5395 = vmatprep.subr.mxu0 0.0
    %5396 = vmatpush1.msra.mxu0 0.0
    %5397 = vmatprep.subr.mxu0 0.0
    %5398 = vmatpush1.msra.mxu0 0.0
    %5399 = vmatprep.subr.mxu0 0.0
    %5400 = vmatpush1.msra.mxu0 0.0
    %5401 = vmatprep.subr.mxu0 0.0
    %5402 = vmatpush1.msra.mxu0 0.0
    %5403 = vmatprep.subr.mxu0 0.0
    %5404 = vmatpush1.msra.mxu0 0.0
    %5405 = vmatprep.subr.mxu0 0.0
    %5406 = vmatpush1.msra.mxu0 0.0
    %5407 = vmatprep.subr.mxu0 0.0
    %5408 = vmatpush1.msra.mxu0 0.0
    %5409 = vmatprep.subr.mxu0 0.0
    %5410 = vmatpush1.msra.mxu0 0.0
    %5411 = vmatprep.subr.mxu0 0.0
    %5412 = vmatpush1.msra.mxu0 0.0
    %5413 = vmatprep.subr.mxu0 0.0
    %5414 = vmatpush1.msra.mxu0 0.0
    %5415 = vmatprep.subr.mxu0 0.0
    %5416 = vmatpush1.msra.mxu0 0.0
    %5417 = vmatprep.subr.mxu0 0.0
    %5418 = vmatpush1.msra.mxu0 0.0
    %5419 = vmatprep.mubr.f32.mxu0 0.0
    %5420 = vmatmul.mubr.f32.gmra.mrb[0].mxu0 %v5353
    %v5421 = vpop.f32.mrb[0].mxu0
    %v5422 = vadd.f32 0.0, %v5421
    %v5423 = vpop.f32.mrb[0].mxu0
    %5424 = vdwg.mxu0
    %v5425 = vadd.f32 %v5349, %v5422
    %v5427 = vsel %vm5205, %v5128, 0
    %5429 = vmatprep.subr.mxu0 0.0
    %5430 = vmatpush1.msra.mxu0 %v5153
    %5431 = vmatprep.subr.mxu0 0.0
    %5432 = vmatpush1.msra.mxu0 %v5154
    %5433 = vmatprep.subr.mxu0 0.0
    %5434 = vmatpush1.msra.mxu0 %v5155
    %5435 = vmatprep.subr.mxu0 0.0
    %5436 = vmatpush1.msra.mxu0 %v5156
    %5437 = vmatprep.subr.mxu0 0.0
    %5438 = vmatpush1.msra.mxu0 0.0
    %5439 = vmatprep.subr.mxu0 0.0
    %5440 = vmatpush1.msra.mxu0 0.0
    %5441 = vmatprep.subr.mxu0 0.0
    %5442 = vmatpush1.msra.mxu0 0.0
    %5443 = vmatprep.subr.mxu0 0.0
    %5444 = vmatpush1.msra.mxu0 0.0
    %5445 = vmatprep.subr.mxu0 0.0
    %5446 = vmatpush1.msra.mxu0 0.0
    %5447 = vmatprep.subr.mxu0 0.0
    %5448 = vmatpush1.msra.mxu0 0.0
    %5449 = vmatprep.subr.mxu0 0.0
    %5450 = vmatpush1.msra.mxu0 0.0
    %5451 = vmatprep.subr.mxu0 0.0
    %5452 = vmatpush1.msra.mxu0 0.0
    %5453 = vmatprep.subr.mxu0 0.0
    %5454 = vmatpush1.msra.mxu0 0.0
    %5455 = vmatprep.subr.mxu0 0.0
    %5456 = vmatpush1.msra.mxu0 0.0
    %5457 = vmatprep.subr.mxu0 0.0
    %5458 = vmatpush1.msra.mxu0 0.0
    %5459 = vmatprep.subr.mxu0 0.0
    %5460 = vmatpush1.msra.mxu0 0.0
    %5461 = vmatprep.subr.mxu0 0.0
    %5462 = vmatpush1.msra.mxu0 0.0
    %5463 = vmatprep.subr.mxu0 0.0
    %5464 = vmatpush1.msra.mxu0 0.0
    %5465 = vmatprep.subr.mxu0 0.0
    %5466 = vmatpush1.msra.mxu0 0.0
    %5467 = vmatprep.subr.mxu0 0.0
    %5468 = vmatpush1.msra.mxu0 0.0
    %5469 = vmatprep.subr.mxu0 0.0
    %5470 = vmatpush1.msra.mxu0 0.0
    %5471 = vmatprep.subr.mxu0 0.0
    %5472 = vmatpush1.msra.mxu0 0.0
    %5473 = vmatprep.subr.mxu0 0.0
    %5474 = vmatpush1.msra.mxu0 0.0
    %5475 = vmatprep.subr.mxu0 0.0
    %5476 = vmatpush1.msra.mxu0 0.0
    %5477 = vmatprep.subr.mxu0 0.0
    %5478 = vmatpush1.msra.mxu0 0.0
    %5479 = vmatprep.subr.mxu0 0.0
    %5480 = vmatpush1.msra.mxu0 0.0
    %5481 = vmatprep.subr.mxu0 0.0
    %5482 = vmatpush1.msra.mxu0 0.0
    %5483 = vmatprep.subr.mxu0 0.0
    %5484 = vmatpush1.msra.mxu0 0.0
    %5485 = vmatprep.subr.mxu0 0.0
    %5486 = vmatpush1.msra.mxu0 0.0
    %5487 = vmatprep.subr.mxu0 0.0
    %5488 = vmatpush1.msra.mxu0 0.0
    %5489 = vmatprep.subr.mxu0 0.0
    %5490 = vmatpush1.msra.mxu0 0.0
    %5491 = vmatprep.subr.mxu0 0.0
    %5492 = vmatpush1.msra.mxu0 0.0
    %5493 = vmatprep.mubr.f32.mxu0 0.0
    %5494 = vmatmul.mubr.f32.gmra.mrb[0].mxu0 %v5427
    %v5495 = vpop.f32.mrb[0].mxu0
    %v5496 = vadd.f32 0.0, %v5495
    %v5497 = vpop.f32.mrb[0].mxu0
    %5498 = vdwg.mxu0
    %v5499 = vadd.f32 %v5425, %v5496
    %v5501 = vsel %vm5205, %v5129, 0
    %5503 = vmatprep.subr.mxu0 0.0
    %5504 = vmatpush1.msra.mxu0 %v5157
    %5505 = vmatprep.subr.mxu0 0.0
    %5506 = vmatpush1.msra.mxu0 %v5158
    %5507 = vmatprep.subr.mxu0 0.0
    %5508 = vmatpush1.msra.mxu0 %v5159
    %5509 = vmatprep.subr.mxu0 0.0
    %5510 = vmatpush1.msra.mxu0 %v5160
    %5511 = vmatprep.subr.mxu0 0.0
    %5512 = vmatpush1.msra.mxu0 0.0
    %5513 = vmatprep.subr.mxu0 0.0
    %5514 = vmatpush1.msra.mxu0 0.0
    %5515 = vmatprep.subr.mxu0 0.0
    %5516 = vmatpush1.msra.mxu0 0.0
    %5517 = vmatprep.subr.mxu0 0.0
    %5518 = vmatpush1.msra.mxu0 0.0
    %5519 = vmatprep.subr.mxu0 0.0
    %5520 = vmatpush1.msra.mxu0 0.0
    %5521 = vmatprep.subr.mxu0 0.0
    %5522 = vmatpush1.msra.mxu0 0.0
    %5523 = vmatprep.subr.mxu0 0.0
    %5524 = vmatpush1.msra.mxu0 0.0
    %5525 = vmatprep.subr.mxu0 0.0
    %5526 = vmatpush1.msra.mxu0 0.0
    %5527 = vmatprep.subr.mxu0 0.0
    %5528 = vmatpush1.msra.mxu0 0.0
    %5529 = vmatprep.subr.mxu0 0.0
    %5530 = vmatpush1.msra.mxu0 0.0
    %5531 = vmatprep.subr.mxu0 0.0
    %5532 = vmatpush1.msra.mxu0 0.0
    %5533 = vmatprep.subr.mxu0 0.0
    %5534 = vmatpush1.msra.mxu0 0.0
    %5535 = vmatprep.subr.mxu0 0.0
    %5536 = vmatpush1.msra.mxu0 0.0
    %5537 = vmatprep.subr.mxu0 0.0
    %5538 = vmatpush1.msra.mxu0 0.0
    %5539 = vmatprep.subr.mxu0 0.0
    %5540 = vmatpush1.msra.mxu0 0.0
    %5541 = vmatprep.subr.mxu0 0.0
    %5542 = vmatpush1.msra.mxu0 0.0
    %5543 = vmatprep.subr.mxu0 0.0
    %5544 = vmatpush1.msra.mxu0 0.0
    %5545 = vmatprep.subr.mxu0 0.0
    %5546 = vmatpush1.msra.mxu0 0.0
    %5547 = vmatprep.subr.mxu0 0.0
    %5548 = vmatpush1.msra.mxu0 0.0
    %5549 = vmatprep.subr.mxu0 0.0
    %5550 = vmatpush1.msra.mxu0 0.0
    %5551 = vmatprep.subr.mxu0 0.0
    %5552 = vmatpush1.msra.mxu0 0.0
    %5553 = vmatprep.subr.mxu0 0.0
    %5554 = vmatpush1.msra.mxu0 0.0
    %5555 = vmatprep.subr.mxu0 0.0
    %5556 = vmatpush1.msra.mxu0 0.0
    %5557 = vmatprep.subr.mxu0 0.0
    %5558 = vmatpush1.msra.mxu0 0.0
    %5559 = vmatprep.subr.mxu0 0.0
    %5560 = vmatpush1.msra.mxu0 0.0
    %5561 = vmatprep.subr.mxu0 0.0
    %5562 = vmatpush1.msra.mxu0 0.0
    %5563 = vmatprep.subr.mxu0 0.0
    %5564 = vmatpush1.msra.mxu0 0.0
    %5565 = vmatprep.subr.mxu0 0.0
    %5566 = vmatpush1.msra.mxu0 0.0
    %5567 = vmatprep.mubr.f32.mxu0 0.0
    %5568 = vmatmul.mubr.f32.gmra.mrb[0].mxu0 %v5501
    %v5569 = vpop.f32.mrb[0].mxu0
    %v5570 = vadd.f32 0.0, %v5569
    %v5571 = vpop.f32.mrb[0].mxu0
    %5572 = vdwg.mxu0
    %v5573 = vadd.f32 %v5499, %v5570
    %v5575 = vsel %vm5205, %v5130, 0
    %5577 = vmatprep.subr.mxu0 0.0
    %5578 = vmatpush1.msra.mxu0 %v5161
    %5579 = vmatprep.subr.mxu0 0.0
    %5580 = vmatpush1.msra.mxu0 %v5162
    %5581 = vmatprep.subr.mxu0 0.0
    %5582 = vmatpush1.msra.mxu0 %v5163
    %5583 = vmatprep.subr.mxu0 0.0
    %5584 = vmatpush1.msra.mxu0 %v5164
    %5585 = vmatprep.subr.mxu0 0.0
    %5586 = vmatpush1.msra.mxu0 0.0
    %5587 = vmatprep.subr.mxu0 0.0
    %5588 = vmatpush1.msra.mxu0 0.0
    %5589 = vmatprep.subr.mxu0 0.0
    %5590 = vmatpush1.msra.mxu0 0.0
    %5591 = vmatprep.subr.mxu0 0.0
    %5592 = vmatpush1.msra.mxu0 0.0
    %5593 = vmatprep.subr.mxu0 0.0
    %5594 = vmatpush1.msra.mxu0 0.0
    %5595 = vmatprep.subr.mxu0 0.0
    %5596 = vmatpush1.msra.mxu0 0.0
    %5597 = vmatprep.subr.mxu0 0.0
    %5598 = vmatpush1.msra.mxu0 0.0
    %5599 = vmatprep.subr.mxu0 0.0
    %5600 = vmatpush1.msra.mxu0 0.0
    %5601 = vmatprep.subr.mxu0 0.0
    %5602 = vmatpush1.msra.mxu0 0.0
    %5603 = vmatprep.subr.mxu0 0.0
    %5604 = vmatpush1.msra.mxu0 0.0
    %5605 = vmatprep.subr.mxu0 0.0
    %5606 = vmatpush1.msra.mxu0 0.0
    %5607 = vmatprep.subr.mxu0 0.0
    %5608 = vmatpush1.msra.mxu0 0.0
    %5609 = vmatprep.subr.mxu0 0.0
    %5610 = vmatpush1.msra.mxu0 0.0
    %5611 = vmatprep.subr.mxu0 0.0
    %5612 = vmatpush1.msra.mxu0 0.0
    %5613 = vmatprep.subr.mxu0 0.0
    %5614 = vmatpush1.msra.mxu0 0.0
    %5615 = vmatprep.subr.mxu0 0.0
    %5616 = vmatpush1.msra.mxu0 0.0
    %5617 = vmatprep.subr.mxu0 0.0
    %5618 = vmatpush1.msra.mxu0 0.0
    %5619 = vmatprep.subr.mxu0 0.0
    %5620 = vmatpush1.msra.mxu0 0.0
    %5621 = vmatprep.subr.mxu0 0.0
    %5622 = vmatpush1.msra.mxu0 0.0
    %5623 = vmatprep.subr.mxu0 0.0
    %5624 = vmatpush1.msra.mxu0 0.0
    %5625 = vmatprep.subr.mxu0 0.0
    %5626 = vmatpush1.msra.mxu0 0.0
    %5627 = vmatprep.subr.mxu0 0.0
    %5628 = vmatpush1.msra.mxu0 0.0
    %5629 = vmatprep.subr.mxu0 0.0
    %5630 = vmatpush1.msra.mxu0 0.0
    %5631 = vmatprep.subr.mxu0 0.0
    %5632 = vmatpush1.msra.mxu0 0.0
    %5633 = vmatprep.subr.mxu0 0.0
    %5634 = vmatpush1.msra.mxu0 0.0
    %5635 = vmatprep.subr.mxu0 0.0
    %5636 = vmatpush1.msra.mxu0 0.0
    %5637 = vmatprep.subr.mxu0 0.0
    %5638 = vmatpush1.msra.mxu0 0.0
    %5639 = vmatprep.subr.mxu0 0.0
    %5640 = vmatpush1.msra.mxu0 0.0
    %5641 = vmatprep.mubr.f32.mxu0 0.0
    %5642 = vmatmul.mubr.f32.gmra.mrb[0].mxu0 %v5575
    %v5643 = vpop.f32.mrb[0].mxu0
    %v5644 = vadd.f32 0.0, %v5643
    %v5645 = vpop.f32.mrb[0].mxu0
    %5646 = vdwg.mxu0
    %v5647 = vadd.f32 %v5573, %v5644
    %v5649 = vsel %vm5205, %v5131, 0
    %5651 = vmatprep.subr.mxu0 0.0
    %5652 = vmatpush1.msra.mxu0 %v5165
    %5653 = vmatprep.subr.mxu0 0.0
    %5654 = vmatpush1.msra.mxu0 %v5166
    %5655 = vmatprep.subr.mxu0 0.0
    %5656 = vmatpush1.msra.mxu0 %v5167
    %5657 = vmatprep.subr.mxu0 0.0
    %5658 = vmatpush1.msra.mxu0 %v5168
    %5659 = vmatprep.subr.mxu0 0.0
    %5660 = vmatpush1.msra.mxu0 0.0
    %5661 = vmatprep.subr.mxu0 0.0
    %5662 = vmatpush1.msra.mxu0 0.0
    %5663 = vmatprep.subr.mxu0 0.0
    %5664 = vmatpush1.msra.mxu0 0.0
    %5665 = vmatprep.subr.mxu0 0.0
    %5666 = vmatpush1.msra.mxu0 0.0
    %5667 = vmatprep.subr.mxu0 0.0
    %5668 = vmatpush1.msra.mxu0 0.0
    %5669 = vmatprep.subr.mxu0 0.0
    %5670 = vmatpush1.msra.mxu0 0.0
    %5671 = vmatprep.subr.mxu0 0.0
    %5672 = vmatpush1.msra.mxu0 0.0
    %5673 = vmatprep.subr.mxu0 0.0
    %5674 = vmatpush1.msra.mxu0 0.0
    %5675 = vmatprep.subr.mxu0 0.0
    %5676 = vmatpush1.msra.mxu0 0.0
    %5677 = vmatprep.subr.mxu0 0.0
    %5678 = vmatpush1.msra.mxu0 0.0
    %5679 = vmatprep.subr.mxu0 0.0
    %5680 = vmatpush1.msra.mxu0 0.0
    %5681 = vmatprep.subr.mxu0 0.0
    %5682 = vmatpush1.msra.mxu0 0.0
    %5683 = vmatprep.subr.mxu0 0.0
    %5684 = vmatpush1.msra.mxu0 0.0
    %5685 = vmatprep.subr.mxu0 0.0
    %5686 = vmatpush1.msra.mxu0 0.0
    %5687 = vmatprep.subr.mxu0 0.0
    %5688 = vmatpush1.msra.mxu0 0.0
    %5689 = vmatprep.subr.mxu0 0.0
    %5690 = vmatpush1.msra.mxu0 0.0
    %5691 = vmatprep.subr.mxu0 0.0
    %5692 = vmatpush1.msra.mxu0 0.0
    %5693 = vmatprep.subr.mxu0 0.0
    %5694 = vmatpush1.msra.mxu0 0.0
    %5695 = vmatprep.subr.mxu0 0.0
    %5696 = vmatpush1.msra.mxu0 0.0
    %5697 = vmatprep.subr.mxu0 0.0
    %5698 = vmatpush1.msra.mxu0 0.0
    %5699 = vmatprep.subr.mxu0 0.0
    %5700 = vmatpush1.msra.mxu0 0.0
    %5701 = vmatprep.subr.mxu0 0.0
    %5702 = vmatpush1.msra.mxu0 0.0
    %5703 = vmatprep.subr.mxu0 0.0
    %5704 = vmatpush1.msra.mxu0 0.0
    %5705 = vmatprep.subr.mxu0 0.0
    %5706 = vmatpush1.msra.mxu0 0.0
    %5707 = vmatprep.subr.mxu0 0.0
    %5708 = vmatpush1.msra.mxu0 0.0
    %5709 = vmatprep.subr.mxu0 0.0
    %5710 = vmatpush1.msra.mxu0 0.0
    %5711 = vmatprep.subr.mxu0 0.0
    %5712 = vmatpush1.msra.mxu0 0.0
    %5713 = vmatprep.subr.mxu0 0.0
    %5714 = vmatpush1.msra.mxu0 0.0
    %5715 = vmatprep.mubr.f32.mxu0 0.0
    %5716 = vmatmul.mubr.f32.gmra.mrb[0].mxu0 %v5649
    %v5717 = vpop.f32.mrb[0].mxu0
    %v5718 = vadd.f32 0.0, %v5717
    %v5719 = vpop.f32.mrb[0].mxu0
    %5720 = vdwg.mxu0
    %v5721 = vadd.f32 %v5647, %v5718
    %v5723 = vsel %vm5205, %v5132, 0
    %5725 = vmatprep.subr.mxu0 0.0
    %5726 = vmatpush1.msra.mxu0 %v5169
    %5727 = vmatprep.subr.mxu0 0.0
    %5728 = vmatpush1.msra.mxu0 %v5170
    %5729 = vmatprep.subr.mxu0 0.0
    %5730 = vmatpush1.msra.mxu0 %v5171
    %5731 = vmatprep.subr.mxu0 0.0
    %5732 = vmatpush1.msra.mxu0 %v5172
    %5733 = vmatprep.subr.mxu0 0.0
    %5734 = vmatpush1.msra.mxu0 0.0
    %5735 = vmatprep.subr.mxu0 0.0
    %5736 = vmatpush1.msra.mxu0 0.0
    %5737 = vmatprep.subr.mxu0 0.0
    %5738 = vmatpush1.msra.mxu0 0.0
    %5739 = vmatprep.subr.mxu0 0.0
    %5740 = vmatpush1.msra.mxu0 0.0
    %5741 = vmatprep.subr.mxu0 0.0
    %5742 = vmatpush1.msra.mxu0 0.0
    %5743 = vmatprep.subr.mxu0 0.0
    %5744 = vmatpush1.msra.mxu0 0.0
    %5745 = vmatprep.subr.mxu0 0.0
    %5746 = vmatpush1.msra.mxu0 0.0
    %5747 = vmatprep.subr.mxu0 0.0
    %5748 = vmatpush1.msra.mxu0 0.0
    %5749 = vmatprep.subr.mxu0 0.0
    %5750 = vmatpush1.msra.mxu0 0.0
    %5751 = vmatprep.subr.mxu0 0.0
    %5752 = vmatpush1.msra.mxu0 0.0
    %5753 = vmatprep.subr.mxu0 0.0
    %5754 = vmatpush1.msra.mxu0 0.0
    %5755 = vmatprep.subr.mxu0 0.0
    %5756 = vmatpush1.msra.mxu0 0.0
    %5757 = vmatprep.subr.mxu0 0.0
    %5758 = vmatpush1.msra.mxu0 0.0
    %5759 = vmatprep.subr.mxu0 0.0
    %5760 = vmatpush1.msra.mxu0 0.0
    %5761 = vmatprep.subr.mxu0 0.0
    %5762 = vmatpush1.msra.mxu0 0.0
    %5763 = vmatprep.subr.mxu0 0.0
    %5764 = vmatpush1.msra.mxu0 0.0
    %5765 = vmatprep.subr.mxu0 0.0
    %5766 = vmatpush1.msra.mxu0 0.0
    %5767 = vmatprep.subr.mxu0 0.0
    %5768 = vmatpush1.msra.mxu0 0.0
    %5769 = vmatprep.subr.mxu0 0.0
    %5770 = vmatpush1.msra.mxu0 0.0
    %5771 = vmatprep.subr.mxu0 0.0
    %5772 = vmatpush1.msra.mxu0 0.0
    %5773 = vmatprep.subr.mxu0 0.0
    %5774 = vmatpush1.msra.mxu0 0.0
    %5775 = vmatprep.subr.mxu0 0.0
    %5776 = vmatpush1.msra.mxu0 0.0
    %5777 = vmatprep.subr.mxu0 0.0
    %5778 = vmatpush1.msra.mxu0 0.0
    %5779 = vmatprep.subr.mxu0 0.0
    %5780 = vmatpush1.msra.mxu0 0.0
    %5781 = vmatprep.subr.mxu0 0.0
    %5782 = vmatpush1.msra.mxu0 0.0
    %5783 = vmatprep.subr.mxu0 0.0
    %5784 = vmatpush1.msra.mxu0 0.0
    %5785 = vmatprep.subr.mxu0 0.0
    %5786 = vmatpush1.msra.mxu0 0.0
    %5787 = vmatprep.subr.mxu0 0.0
    %5788 = vmatpush1.msra.mxu0 0.0
    %5789 = vmatprep.mubr.f32.mxu0 0.0
    %5790 = vmatmul.mubr.f32.gmra.mrb[0].mxu0 %v5723
    %v5791 = vpop.f32.mrb[0].mxu0
    %v5792 = vadd.f32 0.0, %v5791
    %v5793 = vpop.f32.mrb[0].mxu0
    %5794 = vdwg.mxu0
    %v5795 = vadd.f32 %v5721, %v5792
    %v5797 = vsel %vm5205, %v5133, 0
    %5799 = vmatprep.subr.mxu0 0.0
    %5800 = vmatpush1.msra.mxu0 %v5173
    %5801 = vmatprep.subr.mxu0 0.0
    %5802 = vmatpush1.msra.mxu0 %v5174
    %5803 = vmatprep.subr.mxu0 0.0
    %5804 = vmatpush1.msra.mxu0 %v5175
    %5805 = vmatprep.subr.mxu0 0.0
    %5806 = vmatpush1.msra.mxu0 %v5176
    %5807 = vmatprep.subr.mxu0 0.0
    %5808 = vmatpush1.msra.mxu0 0.0
    %5809 = vmatprep.subr.mxu0 0.0
    %5810 = vmatpush1.msra.mxu0 0.0
    %5811 = vmatprep.subr.mxu0 0.0
    %5812 = vmatpush1.msra.mxu0 0.0
    %5813 = vmatprep.subr.mxu0 0.0
    %5814 = vmatpush1.msra.mxu0 0.0
    %5815 = vmatprep.subr.mxu0 0.0
    %5816 = vmatpush1.msra.mxu0 0.0
    %5817 = vmatprep.subr.mxu0 0.0
    %5818 = vmatpush1.msra.mxu0 0.0
    %5819 = vmatprep.subr.mxu0 0.0
    %5820 = vmatpush1.msra.mxu0 0.0
    %5821 = vmatprep.subr.mxu0 0.0
    %5822 = vmatpush1.msra.mxu0 0.0
    %5823 = vmatprep.subr.mxu0 0.0
    %5824 = vmatpush1.msra.mxu0 0.0
    %5825 = vmatprep.subr.mxu0 0.0
    %5826 = vmatpush1.msra.mxu0 0.0
    %5827 = vmatprep.subr.mxu0 0.0
    %5828 = vmatpush1.msra.mxu0 0.0
    %5829 = vmatprep.subr.mxu0 0.0
    %5830 = vmatpush1.msra.mxu0 0.0
    %5831 = vmatprep.subr.mxu0 0.0
    %5832 = vmatpush1.msra.mxu0 0.0
    %5833 = vmatprep.subr.mxu0 0.0
    %5834 = vmatpush1.msra.mxu0 0.0
    %5835 = vmatprep.subr.mxu0 0.0
    %5836 = vmatpush1.msra.mxu0 0.0
    %5837 = vmatprep.subr.mxu0 0.0
    %5838 = vmatpush1.msra.mxu0 0.0
    %5839 = vmatprep.subr.mxu0 0.0
    %5840 = vmatpush1.msra.mxu0 0.0
    %5841 = vmatprep.subr.mxu0 0.0
    %5842 = vmatpush1.msra.mxu0 0.0
    %5843 = vmatprep.subr.mxu0 0.0
    %5844 = vmatpush1.msra.mxu0 0.0
    %5845 = vmatprep.subr.mxu0 0.0
    %5846 = vmatpush1.msra.mxu0 0.0
    %5847 = vmatprep.subr.mxu0 0.0
    %5848 = vmatpush1.msra.mxu0 0.0
    %5849 = vmatprep.subr.mxu0 0.0
    %5850 = vmatpush1.msra.mxu0 0.0
    %5851 = vmatprep.subr.mxu0 0.0
    %5852 = vmatpush1.msra.mxu0 0.0
    %5853 = vmatprep.subr.mxu0 0.0
    %5854 = vmatpush1.msra.mxu0 0.0
    %5855 = vmatprep.subr.mxu0 0.0
    %5856 = vmatpush1.msra.mxu0 0.0
    %5857 = vmatprep.subr.mxu0 0.0
    %5858 = vmatpush1.msra.mxu0 0.0
    %5859 = vmatprep.subr.mxu0 0.0
    %5860 = vmatpush1.msra.mxu0 0.0
    %5861 = vmatprep.subr.mxu0 0.0
    %5862 = vmatpush1.msra.mxu0 0.0
    %5863 = vmatprep.mubr.f32.mxu0 0.0
    %5864 = vmatmul.mubr.f32.gmra.mrb[0].mxu0 %v5797
    %v5865 = vpop.f32.mrb[0].mxu0
    %v5866 = vadd.f32 0.0, %v5865
    %v5867 = vpop.f32.mrb[0].mxu0
    %5868 = vdwg.mxu0
    %v5869 = vadd.f32 %v5795, %v5866
    %v5871 = vsel %vm5205, %v5134, 0
    %5873 = vmatprep.subr.mxu0 0.0
    %5874 = vmatpush1.msra.mxu0 %v5177
    %5875 = vmatprep.subr.mxu0 0.0
    %5876 = vmatpush1.msra.mxu0 %v5178
    %5877 = vmatprep.subr.mxu0 0.0
    %5878 = vmatpush1.msra.mxu0 %v5179
    %5879 = vmatprep.subr.mxu0 0.0
    %5880 = vmatpush1.msra.mxu0 %v5180
    %5881 = vmatprep.subr.mxu0 0.0
    %5882 = vmatpush1.msra.mxu0 0.0
    %5883 = vmatprep.subr.mxu0 0.0
    %5884 = vmatpush1.msra.mxu0 0.0
    %5885 = vmatprep.subr.mxu0 0.0
    %5886 = vmatpush1.msra.mxu0 0.0
    %5887 = vmatprep.subr.mxu0 0.0
    %5888 = vmatpush1.msra.mxu0 0.0
    %5889 = vmatprep.subr.mxu0 0.0
    %5890 = vmatpush1.msra.mxu0 0.0
    %5891 = vmatprep.subr.mxu0 0.0
    %5892 = vmatpush1.msra.mxu0 0.0
    %5893 = vmatprep.subr.mxu0 0.0
    %5894 = vmatpush1.msra.mxu0 0.0
    %5895 = vmatprep.subr.mxu0 0.0
    %5896 = vmatpush1.msra.mxu0 0.0
    %5897 = vmatprep.subr.mxu0 0.0
    %5898 = vmatpush1.msra.mxu0 0.0
    %5899 = vmatprep.subr.mxu0 0.0
    %5900 = vmatpush1.msra.mxu0 0.0
    %5901 = vmatprep.subr.mxu0 0.0
    %5902 = vmatpush1.msra.mxu0 0.0
    %5903 = vmatprep.subr.mxu0 0.0
    %5904 = vmatpush1.msra.mxu0 0.0
    %5905 = vmatprep.subr.mxu0 0.0
    %5906 = vmatpush1.msra.mxu0 0.0
    %5907 = vmatprep.subr.mxu0 0.0
    %5908 = vmatpush1.msra.mxu0 0.0
    %5909 = vmatprep.subr.mxu0 0.0
    %5910 = vmatpush1.msra.mxu0 0.0
    %5911 = vmatprep.subr.mxu0 0.0
    %5912 = vmatpush1.msra.mxu0 0.0
    %5913 = vmatprep.subr.mxu0 0.0
    %5914 = vmatpush1.msra.mxu0 0.0
    %5915 = vmatprep.subr.mxu0 0.0
    %5916 = vmatpush1.msra.mxu0 0.0
    %5917 = vmatprep.subr.mxu0 0.0
    %5918 = vmatpush1.msra.mxu0 0.0
    %5919 = vmatprep.subr.mxu0 0.0
    %5920 = vmatpush1.msra.mxu0 0.0
    %5921 = vmatprep.subr.mxu0 0.0
    %5922 = vmatpush1.msra.mxu0 0.0
    %5923 = vmatprep.subr.mxu0 0.0
    %5924 = vmatpush1.msra.mxu0 0.0
    %5925 = vmatprep.subr.mxu0 0.0
    %5926 = vmatpush1.msra.mxu0 0.0
    %5927 = vmatprep.subr.mxu0 0.0
    %5928 = vmatpush1.msra.mxu0 0.0
    %5929 = vmatprep.subr.mxu0 0.0
    %5930 = vmatpush1.msra.mxu0 0.0
    %5931 = vmatprep.subr.mxu0 0.0
    %5932 = vmatpush1.msra.mxu0 0.0
    %5933 = vmatprep.subr.mxu0 0.0
    %5934 = vmatpush1.msra.mxu0 0.0
    %5935 = vmatprep.subr.mxu0 0.0
    %5936 = vmatpush1.msra.mxu0 0.0
    %5937 = vmatprep.mubr.f32.mxu0 0.0
    %5938 = vmatmul.mubr.f32.gmra.mrb[0].mxu0 %v5871
    %v5939 = vpop.f32.mrb[0].mxu0
    %v5940 = vadd.f32 0.0, %v5939
    %v5941 = vpop.f32.mrb[0].mxu0
    %5942 = vdwg.mxu0
    %v5943 = vadd.f32 %v5869, %v5940
    %v5945 = vsel %vm5205, %v5135, 0
    %5947 = vmatprep.subr.mxu0 0.0
    %5948 = vmatpush1.msra.mxu0 %v5181
    %5949 = vmatprep.subr.mxu0 0.0
    %5950 = vmatpush1.msra.mxu0 %v5182
    %5951 = vmatprep.subr.mxu0 0.0
    %5952 = vmatpush1.msra.mxu0 %v5183
    %5953 = vmatprep.subr.mxu0 0.0
    %5954 = vmatpush1.msra.mxu0 %v5184
    %5955 = vmatprep.subr.mxu0 0.0
    %5956 = vmatpush1.msra.mxu0 0.0
    %5957 = vmatprep.subr.mxu0 0.0
    %5958 = vmatpush1.msra.mxu0 0.0
    %5959 = vmatprep.subr.mxu0 0.0
    %5960 = vmatpush1.msra.mxu0 0.0
    %5961 = vmatprep.subr.mxu0 0.0
    %5962 = vmatpush1.msra.mxu0 0.0
    %5963 = vmatprep.subr.mxu0 0.0
    %5964 = vmatpush1.msra.mxu0 0.0
    %5965 = vmatprep.subr.mxu0 0.0
    %5966 = vmatpush1.msra.mxu0 0.0
    %5967 = vmatprep.subr.mxu0 0.0
    %5968 = vmatpush1.msra.mxu0 0.0
    %5969 = vmatprep.subr.mxu0 0.0
    %5970 = vmatpush1.msra.mxu0 0.0
    %5971 = vmatprep.subr.mxu0 0.0
    %5972 = vmatpush1.msra.mxu0 0.0
    %5973 = vmatprep.subr.mxu0 0.0
    %5974 = vmatpush1.msra.mxu0 0.0
    %5975 = vmatprep.subr.mxu0 0.0
    %5976 = vmatpush1.msra.mxu0 0.0
    %5977 = vmatprep.subr.mxu0 0.0
    %5978 = vmatpush1.msra.mxu0 0.0
    %5979 = vmatprep.subr.mxu0 0.0
    %5980 = vmatpush1.msra.mxu0 0.0
    %5981 = vmatprep.subr.mxu0 0.0
    %5982 = vmatpush1.msra.mxu0 0.0
    %5983 = vmatprep.subr.mxu0 0.0
    %5984 = vmatpush1.msra.mxu0 0.0
    %5985 = vmatprep.subr.mxu0 0.0
    %5986 = vmatpush1.msra.mxu0 0.0
    %5987 = vmatprep.subr.mxu0 0.0
    %5988 = vmatpush1.msra.mxu0 0.0
    %5989 = vmatprep.subr.mxu0 0.0
    %5990 = vmatpush1.msra.mxu0 0.0
    %5991 = vmatprep.subr.mxu0 0.0
    %5992 = vmatpush1.msra.mxu0 0.0
    %5993 = vmatprep.subr.mxu0 0.0
    %5994 = vmatpush1.msra.mxu0 0.0
    %5995 = vmatprep.subr.mxu0 0.0
    %5996 = vmatpush1.msra.mxu0 0.0
    %5997 = vmatprep.subr.mxu0 0.0
    %5998 = vmatpush1.msra.mxu0 0.0
    %5999 = vmatprep.subr.mxu0 0.0
    %6000 = vmatpush1.msra.mxu0 0.0
    %6001 = vmatprep.subr.mxu0 0.0
    %6002 = vmatpush1.msra.mxu0 0.0
    %6003 = vmatprep.subr.mxu0 0.0
    %6004 = vmatpush1.msra.mxu0 0.0
    %6005 = vmatprep.subr.mxu0 0.0
    %6006 = vmatpush1.msra.mxu0 0.0
    %6007 = vmatprep.subr.mxu0 0.0
    %6008 = vmatpush1.msra.mxu0 0.0
    %6009 = vmatprep.subr.mxu0 0.0
    %6010 = vmatpush1.msra.mxu0 0.0
    %6011 = vmatprep.mubr.f32.mxu0 0.0
    %6012 = vmatmul.mubr.f32.gmra.mrb[0].mxu0 %v5945
    %v6013 = vpop.f32.mrb[0].mxu0
    %v6014 = vadd.f32 0.0, %v6013
    %v6015 = vpop.f32.mrb[0].mxu0
    %6016 = vdwg.mxu0
    %v6017 = vadd.f32 %v5943, %v6014
    %v6019 = vsel %vm5205, %v5136, 0
    %6021 = vmatprep.subr.mxu0 0.0
    %6022 = vmatpush1.msra.mxu0 %v5185
    %6023 = vmatprep.subr.mxu0 0.0
    %6024 = vmatpush1.msra.mxu0 %v5186
    %6025 = vmatprep.subr.mxu0 0.0
    %6026 = vmatpush1.msra.mxu0 %v5187
    %6027 = vmatprep.subr.mxu0 0.0
    %6028 = vmatpush1.msra.mxu0 %v5188
    %6029 = vmatprep.subr.mxu0 0.0
    %6030 = vmatpush1.msra.mxu0 0.0
    %6031 = vmatprep.subr.mxu0 0.0
    %6032 = vmatpush1.msra.mxu0 0.0
    %6033 = vmatprep.subr.mxu0 0.0
    %6034 = vmatpush1.msra.mxu0 0.0
    %6035 = vmatprep.subr.mxu0 0.0
    %6036 = vmatpush1.msra.mxu0 0.0
    %6037 = vmatprep.subr.mxu0 0.0
    %6038 = vmatpush1.msra.mxu0 0.0
    %6039 = vmatprep.subr.mxu0 0.0
    %6040 = vmatpush1.msra.mxu0 0.0
    %6041 = vmatprep.subr.mxu0 0.0
    %6042 = vmatpush1.msra.mxu0 0.0
    %6043 = vmatprep.subr.mxu0 0.0
    %6044 = vmatpush1.msra.mxu0 0.0
    %6045 = vmatprep.subr.mxu0 0.0
    %6046 = vmatpush1.msra.mxu0 0.0
    %6047 = vmatprep.subr.mxu0 0.0
    %6048 = vmatpush1.msra.mxu0 0.0
    %6049 = vmatprep.subr.mxu0 0.0
    %6050 = vmatpush1.msra.mxu0 0.0
    %6051 = vmatprep.subr.mxu0 0.0
    %6052 = vmatpush1.msra.mxu0 0.0
    %6053 = vmatprep.subr.mxu0 0.0
    %6054 = vmatpush1.msra.mxu0 0.0
    %6055 = vmatprep.subr.mxu0 0.0
    %6056 = vmatpush1.msra.mxu0 0.0
    %6057 = vmatprep.subr.mxu0 0.0
    %6058 = vmatpush1.msra.mxu0 0.0
    %6059 = vmatprep.subr.mxu0 0.0
    %6060 = vmatpush1.msra.mxu0 0.0
    %6061 = vmatprep.subr.mxu0 0.0
    %6062 = vmatpush1.msra.mxu0 0.0
    %6063 = vmatprep.subr.mxu0 0.0
    %6064 = vmatpush1.msra.mxu0 0.0
    %6065 = vmatprep.subr.mxu0 0.0
    %6066 = vmatpush1.msra.mxu0 0.0
    %6067 = vmatprep.subr.mxu0 0.0
    %6068 = vmatpush1.msra.mxu0 0.0
    %6069 = vmatprep.subr.mxu0 0.0
    %6070 = vmatpush1.msra.mxu0 0.0
    %6071 = vmatprep.subr.mxu0 0.0
    %6072 = vmatpush1.msra.mxu0 0.0
    %6073 = vmatprep.subr.mxu0 0.0
    %6074 = vmatpush1.msra.mxu0 0.0
    %6075 = vmatprep.subr.mxu0 0.0
    %6076 = vmatpush1.msra.mxu0 0.0
    %6077 = vmatprep.subr.mxu0 0.0
    %6078 = vmatpush1.msra.mxu0 0.0
    %6079 = vmatprep.subr.mxu0 0.0
    %6080 = vmatpush1.msra.mxu0 0.0
    %6081 = vmatprep.subr.mxu0 0.0
    %6082 = vmatpush1.msra.mxu0 0.0
    %6083 = vmatprep.subr.mxu0 0.0
    %6084 = vmatpush1.msra.mxu0 0.0
    %6085 = vmatprep.mubr.f32.mxu0 0.0
    %6086 = vmatmul.mubr.f32.gmra.mrb[0].mxu0 %v6019
    %v6087 = vpop.f32.mrb[0].mxu0
    %v6088 = vadd.f32 0.0, %v6087
    %v6089 = vpop.f32.mrb[0].mxu0
    %6090 = vdwg.mxu0
    %v6091 = vadd.f32 %v6017, %v6088
    %v6093 = vsel %vm5205, %v5137, 0
    %6095 = vmatprep.subr.mxu0 0.0
    %6096 = vmatpush1.msra.mxu0 %v5189
    %6097 = vmatprep.subr.mxu0 0.0
    %6098 = vmatpush1.msra.mxu0 %v5190
    %6099 = vmatprep.subr.mxu0 0.0
    %6100 = vmatpush1.msra.mxu0 %v5191
    %6101 = vmatprep.subr.mxu0 0.0
    %6102 = vmatpush1.msra.mxu0 %v5192
    %6103 = vmatprep.subr.mxu0 0.0
    %6104 = vmatpush1.msra.mxu0 0.0
    %6105 = vmatprep.subr.mxu0 0.0
    %6106 = vmatpush1.msra.mxu0 0.0
    %6107 = vmatprep.subr.mxu0 0.0
    %6108 = vmatpush1.msra.mxu0 0.0
    %6109 = vmatprep.subr.mxu0 0.0
    %6110 = vmatpush1.msra.mxu0 0.0
    %6111 = vmatprep.subr.mxu0 0.0
    %6112 = vmatpush1.msra.mxu0 0.0
    %6113 = vmatprep.subr.mxu0 0.0
    %6114 = vmatpush1.msra.mxu0 0.0
    %6115 = vmatprep.subr.mxu0 0.0
    %6116 = vmatpush1.msra.mxu0 0.0
    %6117 = vmatprep.subr.mxu0 0.0
    %6118 = vmatpush1.msra.mxu0 0.0
    %6119 = vmatprep.subr.mxu0 0.0
    %6120 = vmatpush1.msra.mxu0 0.0
    %6121 = vmatprep.subr.mxu0 0.0
    %6122 = vmatpush1.msra.mxu0 0.0
    %6123 = vmatprep.subr.mxu0 0.0
    %6124 = vmatpush1.msra.mxu0 0.0
    %6125 = vmatprep.subr.mxu0 0.0
    %6126 = vmatpush1.msra.mxu0 0.0
    %6127 = vmatprep.subr.mxu0 0.0
    %6128 = vmatpush1.msra.mxu0 0.0
    %6129 = vmatprep.subr.mxu0 0.0
    %6130 = vmatpush1.msra.mxu0 0.0
    %6131 = vmatprep.subr.mxu0 0.0
    %6132 = vmatpush1.msra.mxu0 0.0
    %6133 = vmatprep.subr.mxu0 0.0
    %6134 = vmatpush1.msra.mxu0 0.0
    %6135 = vmatprep.subr.mxu0 0.0
    %6136 = vmatpush1.msra.mxu0 0.0
    %6137 = vmatprep.subr.mxu0 0.0
    %6138 = vmatpush1.msra.mxu0 0.0
    %6139 = vmatprep.subr.mxu0 0.0
    %6140 = vmatpush1.msra.mxu0 0.0
    %6141 = vmatprep.subr.mxu0 0.0
    %6142 = vmatpush1.msra.mxu0 0.0
    %6143 = vmatprep.subr.mxu0 0.0
    %6144 = vmatpush1.msra.mxu0 0.0
    %6145 = vmatprep.subr.mxu0 0.0
    %6146 = vmatpush1.msra.mxu0 0.0
    %6147 = vmatprep.subr.mxu0 0.0
    %6148 = vmatpush1.msra.mxu0 0.0
    %6149 = vmatprep.subr.mxu0 0.0
    %6150 = vmatpush1.msra.mxu0 0.0
    %6151 = vmatprep.subr.mxu0 0.0
    %6152 = vmatpush1.msra.mxu0 0.0
    %6153 = vmatprep.subr.mxu0 0.0
    %6154 = vmatpush1.msra.mxu0 0.0
    %6155 = vmatprep.subr.mxu0 0.0
    %6156 = vmatpush1.msra.mxu0 0.0
    %6157 = vmatprep.subr.mxu0 0.0
    %6158 = vmatpush1.msra.mxu0 0.0
    %6159 = vmatprep.mubr.f32.mxu0 0.0
    %6160 = vmatmul.mubr.f32.gmra.mrb[0].mxu0 %v6093
    %v6161 = vpop.f32.mrb[0].mxu0
    %v6162 = vadd.f32 0.0, %v6161
    %v6163 = vpop.f32.mrb[0].mxu0
    %6164 = vdwg.mxu0
    %v6165 = vadd.f32 %v6091, %v6162
    %v6167 = vsel %vm5205, %v5138, 0
    %6169 = vmatprep.subr.mxu0 0.0
    %6170 = vmatpush1.msra.mxu0 %v5193
    %6171 = vmatprep.subr.mxu0 0.0
    %6172 = vmatpush1.msra.mxu0 %v5194
    %6173 = vmatprep.subr.mxu0 0.0
    %6174 = vmatpush1.msra.mxu0 %v5195
    %6175 = vmatprep.subr.mxu0 0.0
    %6176 = vmatpush1.msra.mxu0 %v5196
    %6177 = vmatprep.subr.mxu0 0.0
    %6178 = vmatpush1.msra.mxu0 0.0
    %6179 = vmatprep.subr.mxu0 0.0
    %6180 = vmatpush1.msra.mxu0 0.0
    %6181 = vmatprep.subr.mxu0 0.0
    %6182 = vmatpush1.msra.mxu0 0.0
    %6183 = vmatprep.subr.mxu0 0.0
    %6184 = vmatpush1.msra.mxu0 0.0
    %6185 = vmatprep.subr.mxu0 0.0
    %6186 = vmatpush1.msra.mxu0 0.0
    %6187 = vmatprep.subr.mxu0 0.0
    %6188 = vmatpush1.msra.mxu0 0.0
    %6189 = vmatprep.subr.mxu0 0.0
    %6190 = vmatpush1.msra.mxu0 0.0
    %6191 = vmatprep.subr.mxu0 0.0
    %6192 = vmatpush1.msra.mxu0 0.0
    %6193 = vmatprep.subr.mxu0 0.0
    %6194 = vmatpush1.msra.mxu0 0.0
    %6195 = vmatprep.subr.mxu0 0.0
    %6196 = vmatpush1.msra.mxu0 0.0
    %6197 = vmatprep.subr.mxu0 0.0
    %6198 = vmatpush1.msra.mxu0 0.0
    %6199 = vmatprep.subr.mxu0 0.0
    %6200 = vmatpush1.msra.mxu0 0.0
    %6201 = vmatprep.subr.mxu0 0.0
    %6202 = vmatpush1.msra.mxu0 0.0
    %6203 = vmatprep.subr.mxu0 0.0
    %6204 = vmatpush1.msra.mxu0 0.0
    %6205 = vmatprep.subr.mxu0 0.0
    %6206 = vmatpush1.msra.mxu0 0.0
    %6207 = vmatprep.subr.mxu0 0.0
    %6208 = vmatpush1.msra.mxu0 0.0
    %6209 = vmatprep.subr.mxu0 0.0
    %6210 = vmatpush1.msra.mxu0 0.0
    %6211 = vmatprep.subr.mxu0 0.0
    %6212 = vmatpush1.msra.mxu0 0.0
    %6213 = vmatprep.subr.mxu0 0.0
    %6214 = vmatpush1.msra.mxu0 0.0
    %6215 = vmatprep.subr.mxu0 0.0
    %6216 = vmatpush1.msra.mxu0 0.0
    %6217 = vmatprep.subr.mxu0 0.0
    %6218 = vmatpush1.msra.mxu0 0.0
    %6219 = vmatprep.subr.mxu0 0.0
    %6220 = vmatpush1.msra.mxu0 0.0
    %6221 = vmatprep.subr.mxu0 0.0
    %6222 = vmatpush1.msra.mxu0 0.0
    %6223 = vmatprep.subr.mxu0 0.0
    %6224 = vmatpush1.msra.mxu0 0.0
    %6225 = vmatprep.subr.mxu0 0.0
    %6226 = vmatpush1.msra.mxu0 0.0
    %6227 = vmatprep.subr.mxu0 0.0
    %6228 = vmatpush1.msra.mxu0 0.0
    %6229 = vmatprep.subr.mxu0 0.0
    %6230 = vmatpush1.msra.mxu0 0.0
    %6231 = vmatprep.subr.mxu0 0.0
    %6232 = vmatpush1.msra.mxu0 0.0
    %6233 = vmatprep.mubr.f32.mxu0 0.0
    %6234 = vmatmul.mubr.f32.gmra.mrb[0].mxu0 %v6167
    %v6235 = vpop.f32.mrb[0].mxu0
    %v6236 = vadd.f32 0.0, %v6235
    %v6237 = vpop.f32.mrb[0].mxu0
    %6238 = vdwg.mxu0
    %v6239 = vadd.f32 %v6165, %v6236
    %v6241 = vsel %vm5205, %v5139, 0
    %6243 = vmatprep.subr.mxu0 0.0
    %6244 = vmatpush1.msra.mxu0 %v5197
    %6245 = vmatprep.subr.mxu0 0.0
    %6246 = vmatpush1.msra.mxu0 %v5198
    %6247 = vmatprep.subr.mxu0 0.0
    %6248 = vmatpush1.msra.mxu0 %v5199
    %6249 = vmatprep.subr.mxu0 0.0
    %6250 = vmatpush1.msra.mxu0 %v5200
    %6251 = vmatprep.subr.mxu0 0.0
    %6252 = vmatpush1.msra.mxu0 0.0
    %6253 = vmatprep.subr.mxu0 0.0
    %6254 = vmatpush1.msra.mxu0 0.0
    %6255 = vmatprep.subr.mxu0 0.0
    %6256 = vmatpush1.msra.mxu0 0.0
    %6257 = vmatprep.subr.mxu0 0.0
    %6258 = vmatpush1.msra.mxu0 0.0
    %6259 = vmatprep.subr.mxu0 0.0
    %6260 = vmatpush1.msra.mxu0 0.0
    %6261 = vmatprep.subr.mxu0 0.0
    %6262 = vmatpush1.msra.mxu0 0.0
    %6263 = vmatprep.subr.mxu0 0.0
    %6264 = vmatpush1.msra.mxu0 0.0
    %6265 = vmatprep.subr.mxu0 0.0
    %6266 = vmatpush1.msra.mxu0 0.0
    %6267 = vmatprep.subr.mxu0 0.0
    %6268 = vmatpush1.msra.mxu0 0.0
    %6269 = vmatprep.subr.mxu0 0.0
    %6270 = vmatpush1.msra.mxu0 0.0
    %6271 = vmatprep.subr.mxu0 0.0
    %6272 = vmatpush1.msra.mxu0 0.0
    %6273 = vmatprep.subr.mxu0 0.0
    %6274 = vmatpush1.msra.mxu0 0.0
    %6275 = vmatprep.subr.mxu0 0.0
    %6276 = vmatpush1.msra.mxu0 0.0
    %6277 = vmatprep.subr.mxu0 0.0
    %6278 = vmatpush1.msra.mxu0 0.0
    %6279 = vmatprep.subr.mxu0 0.0
    %6280 = vmatpush1.msra.mxu0 0.0
    %6281 = vmatprep.subr.mxu0 0.0
    %6282 = vmatpush1.msra.mxu0 0.0
    %6283 = vmatprep.subr.mxu0 0.0
    %6284 = vmatpush1.msra.mxu0 0.0
    %6285 = vmatprep.subr.mxu0 0.0
    %6286 = vmatpush1.msra.mxu0 0.0
    %6287 = vmatprep.subr.mxu0 0.0
    %6288 = vmatpush1.msra.mxu0 0.0
    %6289 = vmatprep.subr.mxu0 0.0
    %6290 = vmatpush1.msra.mxu0 0.0
    %6291 = vmatprep.subr.mxu0 0.0
    %6292 = vmatpush1.msra.mxu0 0.0
    %6293 = vmatprep.subr.mxu0 0.0
    %6294 = vmatpush1.msra.mxu0 0.0
    %6295 = vmatprep.subr.mxu0 0.0
    %6296 = vmatpush1.msra.mxu0 0.0
    %6297 = vmatprep.subr.mxu0 0.0
    %6298 = vmatpush1.msra.mxu0 0.0
    %6299 = vmatprep.subr.mxu0 0.0
    %6300 = vmatpush1.msra.mxu0 0.0
    %6301 = vmatprep.subr.mxu0 0.0
    %6302 = vmatpush1.msra.mxu0 0.0
    %6303 = vmatprep.subr.mxu0 0.0
    %6304 = vmatpush1.msra.mxu0 0.0
    %6305 = vmatprep.subr.mxu0 0.0
    %6306 = vmatpush1.msra.mxu0 0.0
    %6307 = vmatprep.mubr.f32.mxu0 0.0
    %6308 = vmatmul.mubr.f32.gmra.mrb[0].mxu0 %v6241
    %v6309 = vpop.f32.mrb[0].mxu0
    %v6310 = vadd.f32 0.0, %v6309
    %v6311 = vpop.f32.mrb[0].mxu0
    %6312 = vdwg.mxu0
    %v6313 = vadd.f32 %v6239, %v6310
    %v6315 = vsel %vm5205, %v5140, 0
    %6317 = vmatprep.subr.mxu0 0.0
    %6318 = vmatpush1.msra.mxu0 %v5201
    %6319 = vmatprep.subr.mxu0 0.0
    %6320 = vmatpush1.msra.mxu0 %v5202
    %6321 = vmatprep.subr.mxu0 0.0
    %6322 = vmatpush1.msra.mxu0 %v5203
    %6323 = vmatprep.subr.mxu0 0.0
    %6324 = vmatpush1.msra.mxu0 %v5204
    %6325 = vmatprep.subr.mxu0 0.0
    %6326 = vmatpush1.msra.mxu0 0.0
    %6327 = vmatprep.subr.mxu0 0.0
    %6328 = vmatpush1.msra.mxu0 0.0
    %6329 = vmatprep.subr.mxu0 0.0
    %6330 = vmatpush1.msra.mxu0 0.0
    %6331 = vmatprep.subr.mxu0 0.0
    %6332 = vmatpush1.msra.mxu0 0.0
    %6333 = vmatprep.subr.mxu0 0.0
    %6334 = vmatpush1.msra.mxu0 0.0
    %6335 = vmatprep.subr.mxu0 0.0
    %6336 = vmatpush1.msra.mxu0 0.0
    %6337 = vmatprep.subr.mxu0 0.0
    %6338 = vmatpush1.msra.mxu0 0.0
    %6339 = vmatprep.subr.mxu0 0.0
    %6340 = vmatpush1.msra.mxu0 0.0
    %6341 = vmatprep.subr.mxu0 0.0
    %6342 = vmatpush1.msra.mxu0 0.0
    %6343 = vmatprep.subr.mxu0 0.0
    %6344 = vmatpush1.msra.mxu0 0.0
    %6345 = vmatprep.subr.mxu0 0.0
    %6346 = vmatpush1.msra.mxu0 0.0
    %6347 = vmatprep.subr.mxu0 0.0
    %6348 = vmatpush1.msra.mxu0 0.0
    %6349 = vmatprep.subr.mxu0 0.0
    %6350 = vmatpush1.msra.mxu0 0.0
    %6351 = vmatprep.subr.mxu0 0.0
    %6352 = vmatpush1.msra.mxu0 0.0
    %6353 = vmatprep.subr.mxu0 0.0
    %6354 = vmatpush1.msra.mxu0 0.0
    %6355 = vmatprep.subr.mxu0 0.0
    %6356 = vmatpush1.msra.mxu0 0.0
    %6357 = vmatprep.subr.mxu0 0.0
    %6358 = vmatpush1.msra.mxu0 0.0
    %6359 = vmatprep.subr.mxu0 0.0
    %6360 = vmatpush1.msra.mxu0 0.0
    %6361 = vmatprep.subr.mxu0 0.0
    %6362 = vmatpush1.msra.mxu0 0.0
    %6363 = vmatprep.subr.mxu0 0.0
    %6364 = vmatpush1.msra.mxu0 0.0
    %6365 = vmatprep.subr.mxu0 0.0
    %6366 = vmatpush1.msra.mxu0 0.0
    %6367 = vmatprep.subr.mxu0 0.0
    %6368 = vmatpush1.msra.mxu0 0.0
    %6369 = vmatprep.subr.mxu0 0.0
    %6370 = vmatpush1.msra.mxu0 0.0
    %6371 = vmatprep.subr.mxu0 0.0
    %6372 = vmatpush1.msra.mxu0 0.0
    %6373 = vmatprep.subr.mxu0 0.0
    %6374 = vmatpush1.msra.mxu0 0.0
    %6375 = vmatprep.subr.mxu0 0.0
    %6376 = vmatpush1.msra.mxu0 0.0
    %6377 = vmatprep.subr.mxu0 0.0
    %6378 = vmatpush1.msra.mxu0 0.0
    %6379 = vmatprep.subr.mxu0 0.0
    %6380 = vmatpush1.msra.mxu0 0.0
    %6381 = vmatprep.mubr.f32.mxu0 0.0
    %6382 = vmatmul.mubr.f32.gmra.mrb[0].mxu0 %v6315
    %v6383 = vpop.f32.mrb[0].mxu0
    %v6384 = vadd.f32 0.0, %v6383
    %v6385 = vpop.f32.mrb[0].mxu0
    %6386 = vdwg.mxu0
    %v6387 = vadd.f32 %v6313, %v6384
    %v6388 = vld [vmem:[%s7] sm:$0x1]
    %v6390 = vlaneseq
    %v6391 = vshrl.u32 %v6390, 7
    %v6392 = vsub.s32 0, %v6391
    %v6393 = vrot.slane %v6388, %v6392
    %v6395 = vadd.f32 %v6387, %v6393
    %v6396 = vmax.f32 %v6395, 0.0
    %6397 = vst [vmem:[#allocation16] sm:$0xff] %v6396
    %v6398 = vld [vmem:[%s8] sm:$0xff]
    %v6399 = vld [vmem:[%s8 + $0x8] sm:$0xff]
    %v6400 = vld [vmem:[%s8 + $0x10] sm:$0xff]
    %v6401 = vld [vmem:[%s8 + $0x18] sm:$0xff]
    %v6402 = vld [vmem:[%s8 + $0x20] sm:$0xff]
    %v6403 = vld [vmem:[%s8 + $0x28] sm:$0xff]
    %v6404 = vld [vmem:[%s8 + $0x30] sm:$0xff]
    %v6405 = vld [vmem:[%s8 + $0x38] sm:$0xff]
    %v6406 = vld [vmem:[%s8 + $0x40] sm:$0xff]
    %v6407 = vld [vmem:[%s8 + $0x48] sm:$0xff]
    %v6408 = vld [vmem:[%s8 + $0x50] sm:$0xff]
    %v6409 = vld [vmem:[%s8 + $0x58] sm:$0xff]
    %v6410 = vld [vmem:[%s8 + $0x60] sm:$0xff]
    %v6411 = vld [vmem:[%s8 + $0x68] sm:$0xff]
    %v6412 = vld [vmem:[%s8 + $0x70] sm:$0xff]
    %v6413 = vld [vmem:[%s8 + $0x78] sm:$0xff]
    %v6414 = vld [vmem:[%s9] sm:$0x1]
    %v6416 = vlaneseq
    %v6417 = vshrl.u32 %v6416, 7
    %v6418 = vsub.s32 0, %v6417
    %v6419 = vrot.slane %v6414, %v6418
    %6421 = vmatprep.subr.mxu0 0.0
    %6422 = vmatpush1.msra.mxu0 %v6398
    %6423 = vmatprep.subr.mxu0 0.0
    %6424 = vmatpush1.msra.mxu0 %v6399
    %6425 = vmatprep.subr.mxu0 0.0
    %6426 = vmatpush1.msra.mxu0 %v6400
    %6427 = vmatprep.subr.mxu0 0.0
    %6428 = vmatpush1.msra.mxu0 %v6401
    %6429 = vmatprep.subr.mxu0 0.0
    %6430 = vmatpush1.msra.mxu0 %v6402
    %6431 = vmatprep.subr.mxu0 0.0
    %6432 = vmatpush1.msra.mxu0 %v6403
    %6433 = vmatprep.subr.mxu0 0.0
    %6434 = vmatpush1.msra.mxu0 %v6404
    %6435 = vmatprep.subr.mxu0 0.0
    %6436 = vmatpush1.msra.mxu0 %v6405
    %6437 = vmatprep.subr.mxu0 0.0
    %6438 = vmatpush1.msra.mxu0 %v6406
    %6439 = vmatprep.subr.mxu0 0.0
    %6440 = vmatpush1.msra.mxu0 %v6407
    %6441 = vmatprep.subr.mxu0 0.0
    %6442 = vmatpush1.msra.mxu0 %v6408
    %6443 = vmatprep.subr.mxu0 0.0
    %6444 = vmatpush1.msra.mxu0 %v6409
    %6445 = vmatprep.subr.mxu0 0.0
    %6446 = vmatpush1.msra.mxu0 %v6410
    %6447 = vmatprep.subr.mxu0 0.0
    %6448 = vmatpush1.msra.mxu0 %v6411
    %6449 = vmatprep.subr.mxu0 0.0
    %6450 = vmatpush1.msra.mxu0 %v6412
    %6451 = vmatprep.subr.mxu0 0.0
    %6452 = vmatpush1.msra.mxu0 %v6413
    %6453 = vmatprep.subr.mxu0 0.0
    %6454 = vmatpush1.msra.mxu0 0.0
    %6455 = vmatprep.subr.mxu0 0.0
    %6456 = vmatpush1.msra.mxu0 0.0
    %6457 = vmatprep.subr.mxu0 0.0
    %6458 = vmatpush1.msra.mxu0 0.0
    %6459 = vmatprep.subr.mxu0 0.0
    %6460 = vmatpush1.msra.mxu0 0.0
    %6461 = vmatprep.subr.mxu0 0.0
    %6462 = vmatpush1.msra.mxu0 0.0
    %6463 = vmatprep.subr.mxu0 0.0
    %6464 = vmatpush1.msra.mxu0 0.0
    %6465 = vmatprep.subr.mxu0 0.0
    %6466 = vmatpush1.msra.mxu0 0.0
    %6467 = vmatprep.subr.mxu0 0.0
    %6468 = vmatpush1.msra.mxu0 0.0
    %6469 = vmatprep.subr.mxu0 0.0
    %6470 = vmatpush1.msra.mxu0 0.0
    %6471 = vmatprep.subr.mxu0 0.0
    %6472 = vmatpush1.msra.mxu0 0.0
    %6473 = vmatprep.subr.mxu0 0.0
    %6474 = vmatpush1.msra.mxu0 0.0
    %6475 = vmatprep.subr.mxu0 0.0
    %6476 = vmatpush1.msra.mxu0 0.0
    %6477 = vmatprep.subr.mxu0 0.0
    %6478 = vmatpush1.msra.mxu0 0.0
    %6479 = vmatprep.subr.mxu0 0.0
    %6480 = vmatpush1.msra.mxu0 0.0
    %6481 = vmatprep.subr.mxu0 0.0
    %6482 = vmatpush1.msra.mxu0 0.0
    %6483 = vmatprep.subr.mxu0 0.0
    %6484 = vmatpush1.msra.mxu0 0.0
    %6485 = vmatprep.mubr.f32.mxu0 0.0
    %6486 = vmatmul.mubr.f32.gmra.mrb[0].mxu0 %v6396
    %v6487 = vpop.f32.mrb[0].mxu0
    %v6488 = vadd.f32 %v6419, %v6487
    %v6489 = vpop.f32.mrb[0].mxu0
    %6490 = vdwg.mxu0
    %v6491 = vld [vmem:[%s10] sm:$0xff]
    %v6492 = vld [vmem:[%s10 + $0x8] sm:$0xff]
    %v6493 = vld [vmem:[%s10 + $0x10] sm:$0xff]
    %v6494 = vld [vmem:[%s10 + $0x18] sm:$0xff]
    %v6495 = vld [vmem:[%s10 + $0x20] sm:$0xff]
    %v6496 = vld [vmem:[%s10 + $0x28] sm:$0xff]
    %v6497 = vld [vmem:[%s10 + $0x30] sm:$0xff]
    %v6498 = vld [vmem:[%s10 + $0x38] sm:$0xff]
    %v6499 = vld [vmem:[%s10 + $0x40] sm:$0xff]
    %v6500 = vld [vmem:[%s10 + $0x48] sm:$0xff]
    %v6501 = vld [vmem:[%s10 + $0x50] sm:$0xff]
    %v6502 = vld [vmem:[%s10 + $0x58] sm:$0xff]
    %v6503 = vld [vmem:[%s10 + $0x60] sm:$0xff]
    %v6504 = vld [vmem:[%s10 + $0x68] sm:$0xff]
    %v6505 = vld [vmem:[%s10 + $0x70] sm:$0xff]
    %v6506 = vld [vmem:[%s10 + $0x78] sm:$0xff]
    %v6507 = vld [vmem:[%s10 + $0x80] sm:$0xff]
    %v6508 = vld [vmem:[%s10 + $0x88] sm:$0xff]
    %v6509 = vld [vmem:[%s10 + $0x90] sm:$0xff]
    %v6510 = vld [vmem:[%s10 + $0x98] sm:$0xff]
    %v6511 = vld [vmem:[%s10 + $0xa0] sm:$0xff]
    %v6512 = vld [vmem:[%s10 + $0xa8] sm:$0xff]
    %v6513 = vld [vmem:[%s10 + $0xb0] sm:$0xff]
    %v6514 = vld [vmem:[%s10 + $0xb8] sm:$0xff]
    %v6515 = vld [vmem:[%s10 + $0xc0] sm:$0xff]
    %v6516 = vld [vmem:[%s10 + $0xc8] sm:$0xff]
    %v6517 = vld [vmem:[%s10 + $0xd0] sm:$0xff]
    %v6518 = vld [vmem:[%s10 + $0xd8] sm:$0xff]
    %v6519 = vld [vmem:[%s10 + $0xe0] sm:$0xff]
    %v6520 = vld [vmem:[%s10 + $0xe8] sm:$0xff]
    %v6521 = vld [vmem:[%s10 + $0xf0] sm:$0xff]
    %v6522 = vld [vmem:[%s10 + $0xf8] sm:$0xff]
    %v6523 = vld [vmem:[%s11] sm:$0x3]
    %v6525 = vlaneseq
    %v6526 = vshrl.u32 %v6525, 7
    %v6527 = vsub.s32 0, %v6526
    %v6528 = vrot.slane %v6523, %v6527
    %6530 = vmatprep.subr.mxu0 %v6492
    %6531 = vmatpush1.msra.mxu0 %v6491
    %6532 = vmatprep.subr.mxu0 %v6494
    %6533 = vmatpush1.msra.mxu0 %v6493
    %6534 = vmatprep.subr.mxu0 %v6496
    %6535 = vmatpush1.msra.mxu0 %v6495
    %6536 = vmatprep.subr.mxu0 %v6498
    %6537 = vmatpush1.msra.mxu0 %v6497
    %6538 = vmatprep.subr.mxu0 %v6500
    %6539 = vmatpush1.msra.mxu0 %v6499
    %6540 = vmatprep.subr.mxu0 %v6502
    %6541 = vmatpush1.msra.mxu0 %v6501
    %6542 = vmatprep.subr.mxu0 %v6504
    %6543 = vmatpush1.msra.mxu0 %v6503
    %6544 = vmatprep.subr.mxu0 %v6506
    %6545 = vmatpush1.msra.mxu0 %v6505
    %6546 = vmatprep.subr.mxu0 %v6508
    %6547 = vmatpush1.msra.mxu0 %v6507
    %6548 = vmatprep.subr.mxu0 %v6510
    %6549 = vmatpush1.msra.mxu0 %v6509
    %6550 = vmatprep.subr.mxu0 %v6512
    %6551 = vmatpush1.msra.mxu0 %v6511
    %6552 = vmatprep.subr.mxu0 %v6514
    %6553 = vmatpush1.msra.mxu0 %v6513
    %6554 = vmatprep.subr.mxu0 %v6516
    %6555 = vmatpush1.msra.mxu0 %v6515
    %6556 = vmatprep.subr.mxu0 %v6518
    %6557 = vmatpush1.msra.mxu0 %v6517
    %6558 = vmatprep.subr.mxu0 %v6520
    %6559 = vmatpush1.msra.mxu0 %v6519
    %6560 = vmatprep.subr.mxu0 %v6522
    %6561 = vmatpush1.msra.mxu0 %v6521
    %6562 = vmatprep.subr.mxu0 0.0
    %6563 = vmatpush1.msra.mxu0 0.0
    %6564 = vmatprep.subr.mxu0 0.0
    %6565 = vmatpush1.msra.mxu0 0.0
    %6566 = vmatprep.subr.mxu0 0.0
    %6567 = vmatpush1.msra.mxu0 0.0
    %6568 = vmatprep.subr.mxu0 0.0
    %6569 = vmatpush1.msra.mxu0 0.0
    %6570 = vmatprep.subr.mxu0 0.0
    %6571 = vmatpush1.msra.mxu0 0.0
    %6572 = vmatprep.subr.mxu0 0.0
    %6573 = vmatpush1.msra.mxu0 0.0
    %6574 = vmatprep.subr.mxu0 0.0
    %6575 = vmatpush1.msra.mxu0 0.0
    %6576 = vmatprep.subr.mxu0 0.0
    %6577 = vmatpush1.msra.mxu0 0.0
    %6578 = vmatprep.subr.mxu0 0.0
    %6579 = vmatpush1.msra.mxu0 0.0
    %6580 = vmatprep.subr.mxu0 0.0
    %6581 = vmatpush1.msra.mxu0 0.0
    %6582 = vmatprep.subr.mxu0 0.0
    %6583 = vmatpush1.msra.mxu0 0.0
    %6584 = vmatprep.subr.mxu0 0.0
    %6585 = vmatpush1.msra.mxu0 0.0
    %6586 = vmatprep.subr.mxu0 0.0
    %6587 = vmatpush1.msra.mxu0 0.0
    %6588 = vmatprep.subr.mxu0 0.0
    %6589 = vmatpush1.msra.mxu0 0.0
    %6590 = vmatprep.subr.mxu0 0.0
    %6591 = vmatpush1.msra.mxu0 0.0
    %6592 = vmatprep.subr.mxu0 0.0
    %6593 = vmatpush1.msra.mxu0 0.0
    %6594 = vmatprep.mubr.f32.mxu0 0.0
    %6595 = vmatmul.mubr.f32.gmra.mrb[0].mxu0 %v6488
    %v6596 = vpop.f32.mrb[0].mxu0
    %v6597 = vadd.f32 %v6528, %v6596
    %v6598 = vpop.f32.mrb[0].mxu0
    %6599 = vdwg.mxu0
    %v6600 = vld [vmem:[%s20] sm:$0xff]
    %v6601 = vmul.f32 %v6597, 0.5
    %v6602 = vmul.f32 %v6601, 1.442695
    %v6603 = vpow.pop %v6602
    %v6604 = vmul.f32 %v6600, %v6603
    %v6605 = vadd.f32 %v6604, %v6597
    %v6606 = vld [vmem:[#allocation8] sm:$0xff]
    %v6607 = vld [vmem:[#allocation8 + $0x8] sm:$0xff]
    %v6608 = vld [vmem:[#allocation8 + $0x10] sm:$0xff]
    %v6609 = vld [vmem:[#allocation8 + $0x18] sm:$0xff]
    %v6610 = vld [vmem:[#allocation8 + $0x20] sm:$0xff]
    %v6611 = vld [vmem:[#allocation8 + $0x28] sm:$0xff]
    %v6612 = vld [vmem:[#allocation8 + $0x30] sm:$0xff]
    %v6613 = vld [vmem:[#allocation8 + $0x38] sm:$0xff]
    %v6614 = vld [vmem:[#allocation8 + $0x40] sm:$0xff]
    %v6615 = vld [vmem:[#allocation8 + $0x48] sm:$0xff]
    %v6616 = vld [vmem:[#allocation8 + $0x50] sm:$0xff]
    %v6617 = vld [vmem:[#allocation8 + $0x58] sm:$0xff]
    %v6618 = vld [vmem:[#allocation8 + $0x60] sm:$0xff]
    %v6619 = vld [vmem:[#allocation8 + $0x68] sm:$0xff]
    %v6620 = vld [vmem:[#allocation8 + $0x70] sm:$0xff]
    %v6621 = vld [vmem:[#allocation8 + $0x78] sm:$0xff]
    %v6622 = vld [vmem:[%s13] sm:$0x1]
    %v6624 = vlaneseq
    %v6625 = vshrl.u32 %v6624, 7
    %v6626 = vsub.s32 0, %v6625
    %v6627 = vrot.slane %v6622, %v6626
    %6629 = vmatprep.subr.mxu0 0.0
    %6630 = vmatpush1.msra.mxu0 %v6606
    %6631 = vmatprep.subr.mxu0 0.0
    %6632 = vmatpush1.msra.mxu0 %v6607
    %6633 = vmatprep.subr.mxu0 0.0
    %6634 = vmatpush1.msra.mxu0 %v6608
    %6635 = vmatprep.subr.mxu0 0.0
    %6636 = vmatpush1.msra.mxu0 %v6609
    %6637 = vmatprep.subr.mxu0 0.0
    %6638 = vmatpush1.msra.mxu0 %v6610
    %6639 = vmatprep.subr.mxu0 0.0
    %6640 = vmatpush1.msra.mxu0 %v6611
    %6641 = vmatprep.subr.mxu0 0.0
    %6642 = vmatpush1.msra.mxu0 %v6612
    %6643 = vmatprep.subr.mxu0 0.0
    %6644 = vmatpush1.msra.mxu0 %v6613
    %6645 = vmatprep.subr.mxu0 0.0
    %6646 = vmatpush1.msra.mxu0 %v6614
    %6647 = vmatprep.subr.mxu0 0.0
    %6648 = vmatpush1.msra.mxu0 %v6615
    %6649 = vmatprep.subr.mxu0 0.0
    %6650 = vmatpush1.msra.mxu0 %v6616
    %6651 = vmatprep.subr.mxu0 0.0
    %6652 = vmatpush1.msra.mxu0 %v6617
    %6653 = vmatprep.subr.mxu0 0.0
    %6654 = vmatpush1.msra.mxu0 %v6618
    %6655 = vmatprep.subr.mxu0 0.0
    %6656 = vmatpush1.msra.mxu0 %v6619
    %6657 = vmatprep.subr.mxu0 0.0
    %6658 = vmatpush1.msra.mxu0 %v6620
    %6659 = vmatprep.subr.mxu0 0.0
    %6660 = vmatpush1.msra.mxu0 %v6621
    %6661 = vmatprep.subr.mxu0 0.0
    %6662 = vmatpush1.msra.mxu0 0.0
    %6663 = vmatprep.subr.mxu0 0.0
    %6664 = vmatpush1.msra.mxu0 0.0
    %6665 = vmatprep.subr.mxu0 0.0
    %6666 = vmatpush1.msra.mxu0 0.0
    %6667 = vmatprep.subr.mxu0 0.0
    %6668 = vmatpush1.msra.mxu0 0.0
    %6669 = vmatprep.subr.mxu0 0.0
    %6670 = vmatpush1.msra.mxu0 0.0
    %6671 = vmatprep.subr.mxu0 0.0
    %6672 = vmatpush1.msra.mxu0 0.0
    %6673 = vmatprep.subr.mxu0 0.0
    %6674 = vmatpush1.msra.mxu0 0.0
    %6675 = vmatprep.subr.mxu0 0.0
    %6676 = vmatpush1.msra.mxu0 0.0
    %6677 = vmatprep.subr.mxu0 0.0
    %6678 = vmatpush1.msra.mxu0 0.0
    %6679 = vmatprep.subr.mxu0 0.0
    %6680 = vmatpush1.msra.mxu0 0.0
    %6681 = vmatprep.subr.mxu0 0.0
    %6682 = vmatpush1.msra.mxu0 0.0
    %6683 = vmatprep.subr.mxu0 0.0
    %6684 = vmatpush1.msra.mxu0 0.0
    %6685 = vmatprep.subr.mxu0 0.0
    %6686 = vmatpush1.msra.mxu0 0.0
    %6687 = vmatprep.subr.mxu0 0.0
    %6688 = vmatpush1.msra.mxu0 0.0
    %6689 = vmatprep.subr.mxu0 0.0
    %6690 = vmatpush1.msra.mxu0 0.0
    %6691 = vmatprep.subr.mxu0 0.0
    %6692 = vmatpush1.msra.mxu0 0.0
    %6693 = vmatprep.mubr.f32.mxu0 0.0
    %6694 = vmatmul.mubr.f32.gmra.mrb[0].mxu0 %v6488
    %v6695 = vpop.f32.mrb[0].mxu0
    %v6696 = vadd.f32 %v6627, %v6695
    %v6697 = vpop.f32.mrb[0].mxu0
    %6698 = vdwg.mxu0
    %v6699 = vlaneseq
    %v6700 = vand.u32 %v6699, 127
    %v6701 = vlaneseq
    %v6702 = vshrl.u32 %v6701, 7
    %6703 = vmax.xlane.f32.xlu0 %v6696
    %v6704 = vpop.xlane.xlu0 %6703
    %vm6705 = vcmp.ge.f32.partialorder %v6696, %v6704
    %v6706 = vcvt.s32.f32 %v6700
    %v6707 = vsel %vm6705, %v6706, 1e+09
    %6708 = vmin.xlane.f32.xlu0 %v6707
    %v6709 = vpop.xlane.xlu0 %6708
    %v6710 = vcvt.f32.s32.to.zero.pseudo %v6709
    %vm6711 = vcmask 7168
    %6712 = vst.msk [vmem:[%s23] sm:$0xff] %vm6711, %v6710
    %vm6713 = vcmp.eq.s32.totalorder %v6700, %v6710
    %vm6714 = vcmp.lt.s32.totalorder %v6702, 2
    %vm6715 = vmand %vm6713, %vm6714
    %v6716 = vsel %vm6715, 1.0, 0.0
    %v6717 = vrot.slane %v6716, 4
    %v6718 = vmax.f32 %v6716, %v6717
    %v6719 = vrot.slane %v6718, 2
    %v6720 = vmax.f32 %v6718, %v6719
    %v6721 = vrot.slane %v6720, 1
    %v6722 = vmax.f32 %v6720, %v6721
    %vm6723 = vcmp.eq.s32.totalorder %v6702, 0
    %v6724 = vsel %vm6723, %v6722, 0.0
    %v6725 = vld [vmem:[#allocation10] sm:$0xff]
    %v6726 = vld [vmem:[#allocation10 + $0x8] sm:$0xff]
    %v6727 = vld [vmem:[#allocation10 + $0x10] sm:$0xff]
    %v6728 = vld [vmem:[#allocation10 + $0x18] sm:$0xff]
    %v6729 = vld [vmem:[#allocation10 + $0x20] sm:$0xff]
    %v6730 = vld [vmem:[#allocation10 + $0x28] sm:$0xff]
    %v6731 = vld [vmem:[#allocation10 + $0x30] sm:$0xff]
    %v6732 = vld [vmem:[#allocation10 + $0x38] sm:$0xff]
    %v6733 = vld [vmem:[#allocation10 + $0x40] sm:$0xff]
    %v6734 = vld [vmem:[#allocation10 + $0x48] sm:$0xff]
    %v6735 = vld [vmem:[#allocation10 + $0x50] sm:$0xff]
    %v6736 = vld [vmem:[#allocation10 + $0x58] sm:$0xff]
    %v6737 = vld [vmem:[#allocation10 + $0x60] sm:$0xff]
    %v6738 = vld [vmem:[#allocation10 + $0x68] sm:$0xff]
    %v6739 = vld [vmem:[#allocation10 + $0x70] sm:$0xff]
    %v6740 = vld [vmem:[#allocation10 + $0x78] sm:$0xff]
    %v6741 = vld [vmem:[#allocation10 + $0x80] sm:$0xff]
    %v6742 = vld [vmem:[#allocation10 + $0x88] sm:$0xff]
    %v6743 = vld [vmem:[#allocation10 + $0x90] sm:$0xff]
    %v6744 = vld [vmem:[#allocation10 + $0x98] sm:$0xff]
    %v6745 = vld [vmem:[#allocation10 + $0xa0] sm:$0xff]
    %v6746 = vld [vmem:[#allocation10 + $0xa8] sm:$0xff]
    %v6747 = vld [vmem:[#allocation10 + $0xb0] sm:$0xff]
    %v6748 = vld [vmem:[#allocation10 + $0xb8] sm:$0xff]
    %v6749 = vld [vmem:[#allocation10 + $0xc0] sm:$0xff]
    %v6750 = vld [vmem:[#allocation10 + $0xc8] sm:$0xff]
    %v6751 = vld [vmem:[#allocation10 + $0xd0] sm:$0xff]
    %v6752 = vld [vmem:[#allocation10 + $0xd8] sm:$0xff]
    %v6753 = vld [vmem:[#allocation10 + $0xe0] sm:$0xff]
    %v6754 = vld [vmem:[#allocation10 + $0xe8] sm:$0xff]
    %v6755 = vld [vmem:[#allocation10 + $0xf0] sm:$0xff]
    %v6756 = vld [vmem:[#allocation10 + $0xf8] sm:$0xff]
    %v6757 = vld [vmem:[#allocation11] sm:$0xff]
    %v6758 = vld [vmem:[#allocation11 + $0x8] sm:$0xff]
    %v6759 = vld [vmem:[#allocation11 + $0x10] sm:$0xff]
    %v6760 = vld [vmem:[#allocation11 + $0x18] sm:$0xff]
    %v6761 = vld [vmem:[#allocation11 + $0x20] sm:$0xff]
    %v6762 = vld [vmem:[#allocation11 + $0x28] sm:$0xff]
    %v6763 = vld [vmem:[#allocation11 + $0x30] sm:$0xff]
    %v6764 = vld [vmem:[#allocation11 + $0x38] sm:$0xff]
    %v6765 = vld [vmem:[#allocation11 + $0x40] sm:$0xff]
    %v6766 = vld [vmem:[#allocation11 + $0x48] sm:$0xff]
    %v6767 = vld [vmem:[#allocation11 + $0x50] sm:$0xff]
    %v6768 = vld [vmem:[#allocation11 + $0x58] sm:$0xff]
    %v6769 = vld [vmem:[#allocation11 + $0x60] sm:$0xff]
    %v6770 = vld [vmem:[#allocation11 + $0x68] sm:$0xff]
    %v6771 = vld [vmem:[#allocation11 + $0x70] sm:$0xff]
    %v6772 = vld [vmem:[#allocation11 + $0x78] sm:$0xff]
    %v6773 = vld [vmem:[#allocation11 + $0x80] sm:$0xff]
    %v6774 = vld [vmem:[#allocation11 + $0x88] sm:$0xff]
    %v6775 = vld [vmem:[#allocation11 + $0x90] sm:$0xff]
    %v6776 = vld [vmem:[#allocation11 + $0x98] sm:$0xff]
    %v6777 = vld [vmem:[#allocation11 + $0xa0] sm:$0xff]
    %v6778 = vld [vmem:[#allocation11 + $0xa8] sm:$0xff]
    %v6779 = vld [vmem:[#allocation11 + $0xb0] sm:$0xff]
    %v6780 = vld [vmem:[#allocation11 + $0xb8] sm:$0xff]
    %v6781 = vld [vmem:[#allocation11 + $0xc0] sm:$0xff]
    %v6782 = vld [vmem:[#allocation11 + $0xc8] sm:$0xff]
    %v6783 = vld [vmem:[#allocation11 + $0xd0] sm:$0xff]
    %v6784 = vld [vmem:[#allocation11 + $0xd8] sm:$0xff]
    %v6785 = vld [vmem:[#allocation11 + $0xe0] sm:$0xff]
    %v6786 = vld [vmem:[#allocation11 + $0xe8] sm:$0xff]
    %v6787 = vld [vmem:[#allocation11 + $0xf0] sm:$0xff]
    %v6788 = vld [vmem:[#allocation11 + $0xf8] sm:$0xff]
    %6789 = vmatprep.subr.mxu0 %v6758
    %6790 = vmatpush1.msra.mxu0 %v6757
    %6791 = vmatprep.subr.mxu0 %v6760
    %6792 = vmatpush1.msra.mxu0 %v6759
    %6793 = vmatprep.subr.mxu0 %v6762
    %6794 = vmatpush1.msra.mxu0 %v6761
    %6795 = vmatprep.subr.mxu0 %v6764
    %6796 = vmatpush1.msra.mxu0 %v6763
    %6797 = vmatprep.subr.mxu0 %v6766
    %6798 = vmatpush1.msra.mxu0 %v6765
    %6799 = vmatprep.subr.mxu0 %v6768
    %6800 = vmatpush1.msra.mxu0 %v6767
    %6801 = vmatprep.subr.mxu0 %v6770
    %6802 = vmatpush1.msra.mxu0 %v6769
    %6803 = vmatprep.subr.mxu0 %v6772
    %6804 = vmatpush1.msra.mxu0 %v6771
    %6805 = vmatprep.subr.mxu0 %v6774
    %6806 = vmatpush1.msra.mxu0 %v6773
    %6807 = vmatprep.subr.mxu0 %v6776
    %6808 = vmatpush1.msra.mxu0 %v6775
    %6809 = vmatprep.subr.mxu0 %v6778
    %6810 = vmatpush1.msra.mxu0 %v6777
    %6811 = vmatprep.subr.mxu0 %v6780
    %6812 = vmatpush1.msra.mxu0 %v6779
    %6813 = vmatprep.subr.mxu0 %v6782
    %6814 = vmatpush1.msra.mxu0 %v6781
    %6815 = vmatprep.subr.mxu0 %v6784
    %6816 = vmatpush1.msra.mxu0 %v6783
    %6817 = vmatprep.subr.mxu0 %v6786
    %6818 = vmatpush1.msra.mxu0 %v6785
    %6819 = vmatprep.subr.mxu0 %v6788
    %6820 = vmatpush1.msra.mxu0 %v6787
    %6821 = vmatprep.subr.mxu0 0.0
    %6822 = vmatpush1.msra.mxu0 0.0
    %6823 = vmatprep.subr.mxu0 0.0
    %6824 = vmatpush1.msra.mxu0 0.0
    %6825 = vmatprep.subr.mxu0 0.0
    %6826 = vmatpush1.msra.mxu0 0.0
    %6827 = vmatprep.subr.mxu0 0.0
    %6828 = vmatpush1.msra.mxu0 0.0
    %6829 = vmatprep.subr.mxu0 0.0
    %6830 = vmatpush1.msra.mxu0 0.0
    %6831 = vmatprep.subr.mxu0 0.0
    %6832 = vmatpush1.msra.mxu0 0.0
    %6833 = vmatprep.subr.mxu0 0.0
    %6834 = vmatpush1.msra.mxu0 0.0
    %6835 = vmatprep.subr.mxu0 0.0
    %6836 = vmatpush1.msra.mxu0 0.0
    %6837 = vmatprep.subr.mxu0 0.0
    %6838 = vmatpush1.msra.mxu0 0.0
    %6839 = vmatprep.subr.mxu0 0.0
    %6840 = vmatpush1.msra.mxu0 0.0
    %6841 = vmatprep.subr.mxu0 0.0
    %6842 = vmatpush1.msra.mxu0 0.0
    %6843 = vmatprep.subr.mxu0 0.0
    %6844 = vmatpush1.msra.mxu0 0.0
    %6845 = vmatprep.subr.mxu0 0.0
    %6846 = vmatpush1.msra.mxu0 0.0
    %6847 = vmatprep.subr.mxu0 0.0
    %6848 = vmatpush1.msra.mxu0 0.0
    %6849 = vmatprep.subr.mxu0 0.0
    %6850 = vmatpush1.msra.mxu0 0.0
    %6851 = vmatprep.subr.mxu0 0.0
    %6852 = vmatpush1.msra.mxu0 0.0
    %6853 = vmatprep.mubr.f32.mxu0 0.0
    %6854 = vmatmul.mubr.f32.gmra.mrb[0].mxu0 %v6724
    %v6855 = vpop.f32.mrb[0].mxu0
    %v6856 = vadd.f32 0.0, %v6855
    %v6857 = vpop.f32.mrb[0].mxu0
    %v6858 = vadd.f32 0.0, %v6857
    %6859 = vdwg.mxu0
    %6860 = vmatprep.subr.mxu0 %v6726
    %6861 = vmatpush1.msra.mxu0 %v6725
    %6862 = vmatprep.subr.mxu0 %v6728
    %6863 = vmatpush1.msra.mxu0 %v6727
    %6864 = vmatprep.subr.mxu0 %v6730
    %6865 = vmatpush1.msra.mxu0 %v6729
    %6866 = vmatprep.subr.mxu0 %v6732
    %6867 = vmatpush1.msra.mxu0 %v6731
    %6868 = vmatprep.subr.mxu0 %v6734
    %6869 = vmatpush1.msra.mxu0 %v6733
    %6870 = vmatprep.subr.mxu0 %v6736
    %6871 = vmatpush1.msra.mxu0 %v6735
    %6872 = vmatprep.subr.mxu0 %v6738
    %6873 = vmatpush1.msra.mxu0 %v6737
    %6874 = vmatprep.subr.mxu0 %v6740
    %6875 = vmatpush1.msra.mxu0 %v6739
    %6876 = vmatprep.subr.mxu0 %v6742
    %6877 = vmatpush1.msra.mxu0 %v6741
    %6878 = vmatprep.subr.mxu0 %v6744
    %6879 = vmatpush1.msra.mxu0 %v6743
    %6880 = vmatprep.subr.mxu0 %v6746
    %6881 = vmatpush1.msra.mxu0 %v6745
    %6882 = vmatprep.subr.mxu0 %v6748
    %6883 = vmatpush1.msra.mxu0 %v6747
    %6884 = vmatprep.subr.mxu0 %v6750
    %6885 = vmatpush1.msra.mxu0 %v6749
    %6886 = vmatprep.subr.mxu0 %v6752
    %6887 = vmatpush1.msra.mxu0 %v6751
    %6888 = vmatprep.subr.mxu0 %v6754
    %6889 = vmatpush1.msra.mxu0 %v6753
    %6890 = vmatprep.subr.mxu0 %v6756
    %6891 = vmatpush1.msra.mxu0 %v6755
    %6892 = vmatprep.subr.mxu0 0.0
    %6893 = vmatpush1.msra.mxu0 0.0
    %6894 = vmatprep.subr.mxu0 0.0
    %6895 = vmatpush1.msra.mxu0 0.0
    %6896 = vmatprep.subr.mxu0 0.0
    %6897 = vmatpush1.msra.mxu0 0.0
    %6898 = vmatprep.subr.mxu0 0.0
    %6899 = vmatpush1.msra.mxu0 0.0
    %6900 = vmatprep.subr.mxu0 0.0
    %6901 = vmatpush1.msra.mxu0 0.0
    %6902 = vmatprep.subr.mxu0 0.0
    %6903 = vmatpush1.msra.mxu0 0.0
    %6904 = vmatprep.subr.mxu0 0.0
    %6905 = vmatpush1.msra.mxu0 0.0
    %6906 = vmatprep.subr.mxu0 0.0
    %6907 = vmatpush1.msra.mxu0 0.0
    %6908 = vmatprep.subr.mxu0 0.0
    %6909 = vmatpush1.msra.mxu0 0.0
    %6910 = vmatprep.subr.mxu0 0.0
    %6911 = vmatpush1.msra.mxu0 0.0
    %6912 = vmatprep.subr.mxu0 0.0
    %6913 = vmatpush1.msra.mxu0 0.0
    %6914 = vmatprep.subr.mxu0 0.0
    %6915 = vmatpush1.msra.mxu0 0.0
    %6916 = vmatprep.subr.mxu0 0.0
    %6917 = vmatpush1.msra.mxu0 0.0
    %6918 = vmatprep.subr.mxu0 0.0
    %6919 = vmatpush1.msra.mxu0 0.0
    %6920 = vmatprep.subr.mxu0 0.0
    %6921 = vmatpush1.msra.mxu0 0.0
    %6922 = vmatprep.subr.mxu0 0.0
    %6923 = vmatpush1.msra.mxu0 0.0
    %6924 = vmatprep.mubr.f32.mxu0 0.0
    %6925 = vmatmul.mubr.f32.gmra.mrb[0].mxu0 %v6488
    %v6926 = vpop.f32.mrb[0].mxu0
    %v6927 = vadd.f32 %v6856, %v6926
    %v6928 = vpop.f32.mrb[0].mxu0
    %v6929 = vadd.f32 %v6858, %v6928
    %6930 = vdwg.mxu0
    %v6931 = vld [vmem:[#allocation13] sm:$0xff]
    %v6932 = vld [vmem:[#allocation13 + $0x8] sm:$0xff]
    %v6933 = vld [vmem:[#allocation13 + $0x10] sm:$0xff]
    %v6934 = vld [vmem:[#allocation13 + $0x18] sm:$0xff]
    %v6935 = vld [vmem:[#allocation13 + $0x20] sm:$0xff]
    %v6936 = vld [vmem:[#allocation13 + $0x28] sm:$0xff]
    %v6937 = vld [vmem:[#allocation13 + $0x30] sm:$0xff]
    %v6938 = vld [vmem:[#allocation13 + $0x38] sm:$0xff]
    %v6939 = vld [vmem:[#allocation13 + $0x40] sm:$0xff]
    %v6940 = vld [vmem:[#allocation13 + $0x48] sm:$0xff]
    %v6941 = vld [vmem:[#allocation13 + $0x50] sm:$0xff]
    %v6942 = vld [vmem:[#allocation13 + $0x58] sm:$0xff]
    %v6943 = vld [vmem:[#allocation13 + $0x60] sm:$0xff]
    %v6944 = vld [vmem:[#allocation13 + $0x68] sm:$0xff]
    %v6945 = vld [vmem:[#allocation13 + $0x70] sm:$0xff]
    %v6946 = vld [vmem:[#allocation13 + $0x78] sm:$0xff]
    %v6947 = vld [vmem:[#allocation13 + $0x80] sm:$0xff]
    %v6948 = vld [vmem:[#allocation13 + $0x88] sm:$0xff]
    %v6949 = vld [vmem:[#allocation13 + $0x90] sm:$0xff]
    %v6950 = vld [vmem:[#allocation13 + $0x98] sm:$0xff]
    %v6951 = vld [vmem:[#allocation13 + $0xa0] sm:$0xff]
    %v6952 = vld [vmem:[#allocation13 + $0xa8] sm:$0xff]
    %v6953 = vld [vmem:[#allocation13 + $0xb0] sm:$0xff]
    %v6954 = vld [vmem:[#allocation13 + $0xb8] sm:$0xff]
    %v6955 = vld [vmem:[#allocation13 + $0xc0] sm:$0xff]
    %v6956 = vld [vmem:[#allocation13 + $0xc8] sm:$0xff]
    %v6957 = vld [vmem:[#allocation13 + $0xd0] sm:$0xff]
    %v6958 = vld [vmem:[#allocation13 + $0xd8] sm:$0xff]
    %v6959 = vld [vmem:[#allocation13 + $0xe0] sm:$0xff]
    %v6960 = vld [vmem:[#allocation13 + $0xe8] sm:$0xff]
    %v6961 = vld [vmem:[#allocation13 + $0xf0] sm:$0xff]
    %v6962 = vld [vmem:[#allocation13 + $0xf8] sm:$0xff]
    %6963 = vmatprep.subr.mxu0 %v6932
    %6964 = vmatpush1.msra.mxu0 %v6931
    %6965 = vmatprep.subr.mxu0 %v6934
    %6966 = vmatpush1.msra.mxu0 %v6933
    %6967 = vmatprep.subr.mxu0 %v6936
    %6968 = vmatpush1.msra.mxu0 %v6935
    %6969 = vmatprep.subr.mxu0 %v6938
    %6970 = vmatpush1.msra.mxu0 %v6937
    %6971 = vmatprep.subr.mxu0 %v6940
    %6972 = vmatpush1.msra.mxu0 %v6939
    %6973 = vmatprep.subr.mxu0 %v6942
    %6974 = vmatpush1.msra.mxu0 %v6941
    %6975 = vmatprep.subr.mxu0 %v6944
    %6976 = vmatpush1.msra.mxu0 %v6943
    %6977 = vmatprep.subr.mxu0 %v6946
    %6978 = vmatpush1.msra.mxu0 %v6945
    %6979 = vmatprep.subr.mxu0 %v6948
    %6980 = vmatpush1.msra.mxu0 %v6947
    %6981 = vmatprep.subr.mxu0 %v6950
    %6982 = vmatpush1.msra.mxu0 %v6949
    %6983 = vmatprep.subr.mxu0 %v6952
    %6984 = vmatpush1.msra.mxu0 %v6951
    %6985 = vmatprep.subr.mxu0 %v6954
    %6986 = vmatpush1.msra.mxu0 %v6953
    %6987 = vmatprep.subr.mxu0 %v6956
    %6988 = vmatpush1.msra.mxu0 %v6955
    %6989 = vmatprep.subr.mxu0 %v6958
    %6990 = vmatpush1.msra.mxu0 %v6957
    %6991 = vmatprep.subr.mxu0 %v6960
    %6992 = vmatpush1.msra.mxu0 %v6959
    %6993 = vmatprep.subr.mxu0 %v6962
    %6994 = vmatpush1.msra.mxu0 %v6961
    %6995 = vmatprep.subr.mxu0 0.0
    %6996 = vmatpush1.msra.mxu0 0.0
    %6997 = vmatprep.subr.mxu0 0.0
    %6998 = vmatpush1.msra.mxu0 0.0
    %6999 = vmatprep.subr.mxu0 0.0
    %7000 = vmatpush1.msra.mxu0 0.0
    %7001 = vmatprep.subr.mxu0 0.0
    %7002 = vmatpush1.msra.mxu0 0.0
    %7003 = vmatprep.subr.mxu0 0.0
    %7004 = vmatpush1.msra.mxu0 0.0
    %7005 = vmatprep.subr.mxu0 0.0
    %7006 = vmatpush1.msra.mxu0 0.0
    %7007 = vmatprep.subr.mxu0 0.0
    %7008 = vmatpush1.msra.mxu0 0.0
    %7009 = vmatprep.subr.mxu0 0.0
    %7010 = vmatpush1.msra.mxu0 0.0
    %7011 = vmatprep.subr.mxu0 0.0
    %7012 = vmatpush1.msra.mxu0 0.0
    %7013 = vmatprep.subr.mxu0 0.0
    %7014 = vmatpush1.msra.mxu0 0.0
    %7015 = vmatprep.subr.mxu0 0.0
    %7016 = vmatpush1.msra.mxu0 0.0
    %7017 = vmatprep.subr.mxu0 0.0
    %7018 = vmatpush1.msra.mxu0 0.0
    %7019 = vmatprep.subr.mxu0 0.0
    %7020 = vmatpush1.msra.mxu0 0.0
    %7021 = vmatprep.subr.mxu0 0.0
    %7022 = vmatpush1.msra.mxu0 0.0
    %7023 = vmatprep.subr.mxu0 0.0
    %7024 = vmatpush1.msra.mxu0 0.0
    %7025 = vmatprep.subr.mxu0 0.0
    %7026 = vmatpush1.msra.mxu0 0.0
    %7027 = vmatprep.mubr.f32.mxu0 0.0
    %7028 = vmatmul.mubr.f32.gmra.mrb[0].mxu0 %v6605
    %v7029 = vpop.f32.mrb[0].mxu0
    %v7030 = vadd.f32 0.0, %v7029
    %v7031 = vpop.f32.mrb[0].mxu0
    %v7032 = vadd.f32 0.0, %v7031
    %7033 = vdwg.mxu0
    %v7034 = vadd.f32 %v6927, %v7030
    %v7035 = vadd.f32 %v6929, %v7032
    %v7036 = vld [vmem:[%s17] sm:$0x3]
    %v7038 = vlaneseq
    %v7039 = vshrl.u32 %v7038, 7
    %v7040 = vsub.s32 0, %v7039
    %v7041 = vrot.slane %v7036, %v7040
    %v7042 = vlaneseq
    %v7043 = vshrl.u32 %v7042, 7
    %v7044 = vsub.s32 1, %v7043
    %v7045 = vrot.slane %v7036, %v7044
    %v7048 = vadd.f32 %v7034, %v7041
    %v7049 = vadd.f32 %v7035, %v7045
    %v7050 = vmax.f32 %v7048, 0.0
    %v7051 = vmax.f32 %v7049, 0.0
    %v7052 = vld [vmem:[#allocation14] sm:$0xff]
    %v7053 = vld [vmem:[#allocation14 + $0x8] sm:$0xff]
    %v7054 = vld [vmem:[#allocation14 + $0x10] sm:$0xff]
    %v7055 = vld [vmem:[#allocation14 + $0x18] sm:$0xff]
    %v7056 = vld [vmem:[#allocation14 + $0x20] sm:$0xff]
    %v7057 = vld [vmem:[#allocation14 + $0x28] sm:$0xff]
    %v7058 = vld [vmem:[#allocation14 + $0x30] sm:$0xff]
    %v7059 = vld [vmem:[#allocation14 + $0x38] sm:$0xff]
    %v7060 = vld [vmem:[#allocation14 + $0x40] sm:$0xff]
    %v7061 = vld [vmem:[#allocation14 + $0x48] sm:$0xff]
    %v7062 = vld [vmem:[#allocation14 + $0x50] sm:$0xff]
    %v7063 = vld [vmem:[#allocation14 + $0x58] sm:$0xff]
    %v7064 = vld [vmem:[#allocation14 + $0x60] sm:$0xff]
    %v7065 = vld [vmem:[#allocation14 + $0x68] sm:$0xff]
    %v7066 = vld [vmem:[#allocation14 + $0x70] sm:$0xff]
    %v7067 = vld [vmem:[#allocation14 + $0x78] sm:$0xff]
    %v7068 = vld [vmem:[#allocation14 + $0x80] sm:$0xff]
    %v7069 = vld [vmem:[#allocation14 + $0x88] sm:$0xff]
    %v7070 = vld [vmem:[#allocation14 + $0x90] sm:$0xff]
    %v7071 = vld [vmem:[#allocation14 + $0x98] sm:$0xff]
    %v7072 = vld [vmem:[#allocation14 + $0xa0] sm:$0xff]
    %v7073 = vld [vmem:[#allocation14 + $0xa8] sm:$0xff]
    %v7074 = vld [vmem:[#allocation14 + $0xb0] sm:$0xff]
    %v7075 = vld [vmem:[#allocation14 + $0xb8] sm:$0xff]
    %v7076 = vld [vmem:[#allocation14 + $0xc0] sm:$0xff]
    %v7077 = vld [vmem:[#allocation14 + $0xc8] sm:$0xff]
    %v7078 = vld [vmem:[#allocation14 + $0xd0] sm:$0xff]
    %v7079 = vld [vmem:[#allocation14 + $0xd8] sm:$0xff]
    %v7080 = vld [vmem:[#allocation14 + $0xe0] sm:$0xff]
    %v7081 = vld [vmem:[#allocation14 + $0xe8] sm:$0xff]
    %v7082 = vld [vmem:[#allocation14 + $0xf0] sm:$0xff]
    %v7083 = vld [vmem:[#allocation14 + $0xf8] sm:$0xff]
    %v7084 = vld [vmem:[%s19] sm:$0x1]
    %v7086 = vlaneseq
    %v7087 = vshrl.u32 %v7086, 7
    %v7088 = vsub.s32 0, %v7087
    %v7089 = vrot.slane %v7084, %v7088
    %7091 = vmatprep.subr.mxu0 0.0
    %7092 = vmatpush1.msra.mxu0 %v7052
    %7093 = vmatprep.subr.mxu0 0.0
    %7094 = vmatpush1.msra.mxu0 %v7053
    %7095 = vmatprep.subr.mxu0 0.0
    %7096 = vmatpush1.msra.mxu0 %v7054
    %7097 = vmatprep.subr.mxu0 0.0
    %7098 = vmatpush1.msra.mxu0 %v7055
    %7099 = vmatprep.subr.mxu0 0.0
    %7100 = vmatpush1.msra.mxu0 %v7056
    %7101 = vmatprep.subr.mxu0 0.0
    %7102 = vmatpush1.msra.mxu0 %v7057
    %7103 = vmatprep.subr.mxu0 0.0
    %7104 = vmatpush1.msra.mxu0 %v7058
    %7105 = vmatprep.subr.mxu0 0.0
    %7106 = vmatpush1.msra.mxu0 %v7059
    %7107 = vmatprep.subr.mxu0 0.0
    %7108 = vmatpush1.msra.mxu0 %v7060
    %7109 = vmatprep.subr.mxu0 0.0
    %7110 = vmatpush1.msra.mxu0 %v7061
    %7111 = vmatprep.subr.mxu0 0.0
    %7112 = vmatpush1.msra.mxu0 %v7062
    %7113 = vmatprep.subr.mxu0 0.0
    %7114 = vmatpush1.msra.mxu0 %v7063
    %7115 = vmatprep.subr.mxu0 0.0
    %7116 = vmatpush1.msra.mxu0 %v7064
    %7117 = vmatprep.subr.mxu0 0.0
    %7118 = vmatpush1.msra.mxu0 %v7065
    %7119 = vmatprep.subr.mxu0 0.0
    %7120 = vmatpush1.msra.mxu0 %v7066
    %7121 = vmatprep.subr.mxu0 0.0
    %7122 = vmatpush1.msra.mxu0 %v7067
    %7123 = vmatprep.subr.mxu0 0.0
    %7124 = vmatpush1.msra.mxu0 %v7068
    %7125 = vmatprep.subr.mxu0 0.0
    %7126 = vmatpush1.msra.mxu0 %v7069
    %7127 = vmatprep.subr.mxu0 0.0
    %7128 = vmatpush1.msra.mxu0 %v7070
    %7129 = vmatprep.subr.mxu0 0.0
    %7130 = vmatpush1.msra.mxu0 %v7071
    %7131 = vmatprep.subr.mxu0 0.0
    %7132 = vmatpush1.msra.mxu0 %v7072
    %7133 = vmatprep.subr.mxu0 0.0
    %7134 = vmatpush1.msra.mxu0 %v7073
    %7135 = vmatprep.subr.mxu0 0.0
    %7136 = vmatpush1.msra.mxu0 %v7074
    %7137 = vmatprep.subr.mxu0 0.0
    %7138 = vmatpush1.msra.mxu0 %v7075
    %7139 = vmatprep.subr.mxu0 0.0
    %7140 = vmatpush1.msra.mxu0 %v7076
    %7141 = vmatprep.subr.mxu0 0.0
    %7142 = vmatpush1.msra.mxu0 %v7077
    %7143 = vmatprep.subr.mxu0 0.0
    %7144 = vmatpush1.msra.mxu0 %v7078
    %7145 = vmatprep.subr.mxu0 0.0
    %7146 = vmatpush1.msra.mxu0 %v7079
    %7147 = vmatprep.subr.mxu0 0.0
    %7148 = vmatpush1.msra.mxu0 %v7080
    %7149 = vmatprep.subr.mxu0 0.0
    %7150 = vmatpush1.msra.mxu0 %v7081
    %7151 = vmatprep.subr.mxu0 0.0
    %7152 = vmatpush1.msra.mxu0 %v7082
    %7153 = vmatprep.subr.mxu0 0.0
    %7154 = vmatpush1.msra.mxu0 %v7083
    %7155 = vmatprep.mubr.f32.mxu0 %v7051
    %7156 = vmatmul.mubr.f32.gmra.mrb[0].mxu0 %v7050
    %v7157 = vpop.f32.mrb[0].mxu0
    %v7158 = vadd.f32 %v7089, %v7157
    %v7159 = vpop.f32.mrb[0].mxu0
    %7160 = vdwg.mxu0
    %v7161 = vsub.f32 0.0, %v7158
    %v7162 = vmul.f32 %v7161, 1.442695
    %v7163 = vpow.pop %v7162
    %v7164 = vadd.f32 %v7163, 1.0
    %v7165 = vrcp.pop %v7164
    %7166 = vst [vmem:[%s22] sm:$0xff] %v7165
    // Predicated region
    $region122: #{forward_i2s.1} parent=1 // pred_check
      _
    $region123: #{forward_i2s.1} parent=1 // pred_check_branch
      %7168 = sbr.rel (0) target = $region125
    $region124: #{forward_i2s.1} parent=1 // pred_region
      _
    $region125: #{forward_i2s.1} parent=1 // pred_fallthru
      _
    // Predicated region
    $region126: #{forward_i2s.1} parent=1 // pred_check
      _
    $region127: #{forward_i2s.1} parent=1 // pred_check_branch
      %7170 = sbr.rel (0) target = $region129
    $region128: #{forward_i2s.1} parent=1 // pred_region
      _
    $region129: #{forward_i2s.1} parent=1 // pred_fallthru
      _
    // Predicated region
    $region130: #{forward_i2s.1} parent=1 // pred_check
      _
    $region131: #{forward_i2s.1} parent=1 // pred_check_branch
      %7172 = sbr.rel (0) target = $region133
    $region132: #{forward_i2s.1} parent=1 // pred_region
      %s7174 = ssub.s32 128, 128
      %7175 = vsyncadd [#allocation4], %s7174
      %s7177 = sshll.u32 [#allocation16], 4
      %s7178 = int_to_ptr.vmem [resolvable:$true] %s7177
      %7180 = dma.vmem_to_hbm [thread:$0]  %s7178, 128, %s24, [#allocation4]
    $region133: #{forward_i2s.1} parent=1 // pred_fallthru
      _
    // Predicated region
    $region134: #{forward_i2s.1} parent=1 // pred_check
      _
    $region135: #{forward_i2s.1} parent=1 // pred_check_branch
      %7182 = sbr.rel (0) target = $region137
    $region136: #{forward_i2s.1} parent=1 // pred_region
      _
    $region137: #{forward_i2s.1} parent=1 // pred_fallthru
      _
    // Predicated region
    $region138: #{forward_i2s.1} parent=1 // pred_check
      _
    $region139: #{forward_i2s.1} parent=1 // pred_check_branch
      %7184 = sbr.rel (0) target = $region141
    $region140: #{forward_i2s.1} parent=1 // pred_region
      _
    $region141: #{forward_i2s.1} parent=1 // pred_fallthru
      _
    // Predicated region
    $region142: #{forward_i2s.1} parent=1 // pred_check
      _
    $region143: #{forward_i2s.1} parent=1 // pred_check_branch
      %7186 = sbr.rel (0) target = $region145
    $region144: #{forward_i2s.1} parent=1 // pred_region
      %7187 = dma.done [#allocation4], 128
    $region145: #{forward_i2s.1} parent=1 // pred_fallthru
      _
    %7188 = vsyncpa [#allocation3], 1
    %7189 = vsyncpa [#allocation6], 1
    %7190 = vsyncpa [#allocation9], 1
    %7191 = vsyncpa [#allocation12], 1
    %7192 = vsyncpa [#allocation15], 1
    %7193 = vsyncpa [#allocation4], 1

</llo_original>
